<compile_context>
chip_gen: v7x
topology: tpu7x:2x2x1
jax: 0.10.0
libtpu: 0.0.40
codegen_flags: <defaults>
</compile_context>

<pallas_src>
import functools

import jax
import jax.numpy as jnp
from jax import lax
from jax.experimental import pallas as pl
from jax.experimental.pallas import tpu as pltpu


def _round_up(x, m):
    return ((x + m - 1) // m) * m


# --------------------------- hardware queries ------------------------------ #
def _tpu_hw():
    """Returns (generation, vmem_capacity_bytes), defensively."""
    gen = 0
    try:
        kind = jax.devices()[0].device_kind.lower()
        for g in (7, 6, 5, 4):
            if f"v{g}" in kind:
                gen = g
                break
    except Exception:
        pass
    cap = None
    try:
        cap = int(pltpu.get_tpu_info().vmem_capacity_bytes)
    except Exception:
        cap = None
    if not cap or cap <= 0:
        cap = (64 << 20) if gen >= 7 else (128 << 20)
    return gen, cap


def _select_out_tiling(out, gen):
    """(OUTp, TN): lane-dense OUT padding + tile, generation-aware."""
    if gen and gen < 6:               # v5e: single vst slot, 4x128x128 MXU
        gran, max_tn = 128, 256
    else:                             # v6e / v7x (2x256x256 MXU) and unknown
        gran = 256 if out > 128 else 128
        max_tn = 512
    outp = _round_up(out, gran)
    tn = min(outp, max_tn)
    while outp % tn:
        tn -= 128
    return outp, tn


def _select_row_tile(oh, ow):
    """th such that th*ow lands near 512 MXU rows (capped at OH)."""
    return max(1, min(oh, -(-512 // max(ow, 1))))


def _vmem_bytes_needed(hpp, wp, c, k0, kc, tn, th, ow, image_buffers):
    """VMEM footprint estimate using the real on-chip layout (lane/sublane pad)."""
    cp = _round_up(c, 128)
    img = hpp * _round_up(wp, 16) * cp * 2 * image_buffers          # bf16 image
    wts = k0 * _round_up(kc, 16) * _round_up(tn, 128) * 2 * 2       # bf16 weights x2
    outb = th * _round_up(ow, 8) * tn * 4 * 2                       # f32 out tile x2
    shf = 8 * tn * 4 * 2                                            # f32 shift x2
    acc = _round_up(th * ow, 8) * tn * 4                            # f32 accumulator
    slab = th * _round_up(wp, 16) * cp * 2 * 2                      # hoisted row slabs
    patch = _round_up(th * ow, 16) * _round_up(kc, 128) * 2 * 2     # folded operand
    return img + wts + outb + shf + acc + slab + patch


def _image_block_spec(hpp, wp, c, single_buffer):
    index_map = lambda b, o, h: (b, 0, 0, 0)
    shape = (1, hpp, wp, c)
    if single_buffer:
        # Block index only changes with the batch axis; double buffering would
        # only overlap the rare batch transition while doubling the largest
        # VMEM resident. Fall back gracefully if unsupported.
        try:
            return pl.BlockSpec(shape, index_map, pipeline_mode=pl.Buffered(1))
        except Exception:
            pass
    return pl.BlockSpec(shape, index_map)


# ----------------------------- Pallas kernel ------------------------------- #
def _conv_bn_relu_kernel(x_ref, w_ref, s_ref, o_ref, *,
                         kh, kw, stride, dilation, th, ow, relu, fold_w):
    """Direct conv: per kh tap, one (th*OW, KW*C) @ (KW*C, TN) matmul (fold_w),
    or per-(kh,kw) tap (th*OW, C) @ (C, TN) matmuls otherwise.

    x_ref: (1, Hp, Wp, C)                 bf16  padded NHWC image (batch-resident)
    w_ref: (KH, KW*C, TN) or (KH*KW, C, TN) bf16 BN-scale-folded weights (OUT-resident)
    s_ref: (1, TN)                        f32   BN shift (+ folded conv bias)
    o_ref: (1, th, OW, TN)                f32   output tile (NHWC, lane-dense)
    """
    c = x_ref.shape[-1]
    tn = o_ref.shape[-1]
    h0 = pl.multiple_of(pl.program_id(2) * (th * stride), th * stride)

    def col_slice(arr, j):
        c0 = j * dilation
        if stride == 1:
            return arr[:, c0:c0 + ow, :]
        return arr[:, c0:c0 + (ow - 1) * stride + 1:stride, :]

    acc = jnp.zeros((th * ow, tn), jnp.float32)
    for i in range(kh):
        if stride == 1:
            rows = pl.ds(h0 + i * dilation, th)
        else:
            rows = pl.ds(h0 + i * dilation, th, stride=stride)
        slab = x_ref[0, rows, :, :]                       # (th, Wp, C), one gather per kh tap
        if fold_w:
            if kw == 1:
                patch = col_slice(slab, 0)
            else:
                patch = jnp.concatenate([col_slice(slab, j) for j in range(kw)],
                                        axis=-1)          # (th, OW, KW*C)
            acc = acc + jnp.dot(patch.reshape(th * ow, kw * c), w_ref[i],
                                preferred_element_type=jnp.float32)
        else:
            for j in range(kw):
                patch = col_slice(slab, j)                # (th, OW, C)
                acc = acc + jnp.dot(patch.reshape(th * ow, c), w_ref[i * kw + j],
                                    preferred_element_type=jnp.float32)

    y = acc + s_ref[...]                                  # f32 epilogue
    if relu:
        y = jnp.maximum(y, 0.0)
    o_ref[...] = y.reshape(1, th, ow, tn).astype(o_ref.dtype)


# ------------------------------- wrapper ------------------------------------ #
def _fused_conv_bn_relu(xp, w_khwc_o, shift, *, kh, kw, stride, dilation,
                        oh, ow, relu):
    """xp: (N,Hp,Wp,C) bf16 (conv-padded NHWC), w_khwc_o: (KH,KW,C,OUT) f32,
    shift: (OUT,) f32. Returns (N, OH, OW, OUT) f32."""
    n, hp, wp, c = xp.shape
    out = w_khwc_o.shape[-1]

    gen, vmem_cap = _tpu_hw()
    outp, tn = _select_out_tiling(out, gen)
    th = _select_row_tile(oh, ow)
    ohp = _round_up(oh, th)

    # Pad input H so the (possibly ragged) last row tile never reads OOB; the
    # extra output rows are sliced off below.
    extra_h = (ohp - oh) * stride
    if extra_h:
        xp = jnp.pad(xp, ((0, 0), (0, extra_h), (0, 0), (0, 0)))
    hpp = hp + extra_h

    wpad = jnp.pad(w_khwc_o, ((0, 0), (0, 0), (0, 0), (0, outp - out))
                   ).astype(jnp.bfloat16)                           # (KH,KW,C,OUTp)
    shift_p = jnp.pad(shift, (0, outp - out)).reshape(1, outp).astype(jnp.float32)

    grid = (n, outp // tn, ohp // th)                # H innermost: weights resident
    flops = 2 * n * oh * ow * c * out * kh * kw
    bytes_accessed = (xp.size * 2 + wpad.size * 2 + shift_p.size * 4
                      + n * ohp * ow * outp * 4)
    cost = pl.CostEstimate(flops=flops, transcendentals=0,
                           bytes_accessed=bytes_accessed)

    def build(fold_w, single_buffer_image):
        kc = kw * c if fold_w else c
        k0 = kh if fold_w else kh * kw
        w3d = wpad.reshape(k0, kc, outp)             # free reshape in HBM
        needed = _vmem_bytes_needed(hpp, wp, c, k0, kc, tn, th, ow,
                                    1 if single_buffer_image else 2)
        vmem_limit = int(min(int(0.9 * vmem_cap),
                             max(32 << 20, int(1.5 * needed) + (4 << 20))))
        kernel = functools.partial(
            _conv_bn_relu_kernel, kh=kh, kw=kw, stride=stride,
            dilation=dilation, th=th, ow=ow, relu=relu, fold_w=fold_w)
        call = pl.pallas_call(
            kernel,
            out_shape=jax.ShapeDtypeStruct((n, ohp, ow, outp), jnp.float32),
            grid=grid,
            in_specs=[
                _image_block_spec(hpp, wp, c, single_buffer_image),
                # Weight block depends only on the OUT axis -> resident across
                # the (innermost) H sweep.
                pl.BlockSpec((k0, kc, tn), lambda b, o, h: (0, 0, o)),
                pl.BlockSpec((1, tn), lambda b, o, h: (0, o)),
            ],
            out_specs=pl.BlockSpec((1, th, ow, tn), lambda b, o, h: (b, h, 0, o)),
            compiler_params=pltpu.CompilerParams(
                dimension_semantics=("parallel", "parallel", "parallel"),
                vmem_limit_bytes=vmem_limit),
            cost_estimate=cost,
        )
        return call, w3d

    # Preferred config first; fall back if a config fails to lower on this
    # toolchain (e.g. unaligned minor-dim concat for tiny C, or Buffered(1)).
    y, last_err = None, None
    for fold_w, single_buf in ((True, True), (True, False), (False, False)):
        try:
            call, w3d = build(fold_w, single_buf)
            y = call(xp, w3d, shift_p)
            jax.block_until_ready(y)
            break
        except Exception as e:            # pragma: no cover - fallback path
            last_err, y = e, None
    if y is None:
        raise last_err
    return y[:, :oh, :, :out]


# ------------------------------- module ------------------------------------ #
class BasicConvPallas:
    """Pallas port of BasicConv (Conv2d + BatchNorm2d[inference] + ReLU)."""
    # TODO(synk): grouped convolution (groups > 1) is not implemented.
    # TODO(synk): very large C or very large images would need a C-reduction
    #             grid axis and input-H tiling with a halo; current design keeps
    #             one padded image per batch element resident in VMEM.
    # TODO(synk): when OW is a multiple of 128 the kernel could emit NCHW
    #             directly (out block (1, TN, th, OW)) and skip the final XLA
    #             transpose; kept NHWC + transpose (lane-dense store) for OW<128.

    def __init__(self, in_planes, out_planes, kernel_size, stride=1, padding=0,
                 dilation=1, groups=1, relu=True, bn=True, bias=False, key=None):
        assert groups == 1, "groups > 1 not supported"
        self.stride, self.padding, self.dilation = stride, padding, dilation
        self.relu, self.bn = relu, bn
        self.kh = self.kw = kernel_size
        key = jax.random.PRNGKey(0) if key is None else key
        kw_, kg, kb, km, kv, kbias = jax.random.split(key, 6)
        # Conv weight, PyTorch layout (OUT, C, KH, KW), deterministic init.
        self.weight = 0.1 * jax.random.normal(
            kw_, (out_planes, in_planes, kernel_size, kernel_size), jnp.float32)
        self.bias = (0.1 * jax.random.normal(kbias, (out_planes,), jnp.float32)
                     if bias else None)
        if bn:
            self.gamma = 1.0 + 0.1 * jax.random.normal(kg, (out_planes,), jnp.float32)
            self.beta = 0.1 * jax.random.normal(kb, (out_planes,), jnp.float32)
            self.running_mean = 0.1 * jax.random.normal(km, (out_planes,), jnp.float32)
            self.running_var = jax.random.uniform(
                kv, (out_planes,), jnp.float32, minval=0.5, maxval=1.5)
            self.eps = 1e-5
        else:
            self.gamma = self.beta = self.running_mean = self.running_var = None

    def __call__(self, x):
        # x: (N, C, H, W) f32
        n, c, h, w = x.shape
        out = self.weight.shape[0]
        kh, kw = self.kh, self.kw
        s, p, d = self.stride, self.padding, self.dilation
        oh = (h + 2 * p - d * (kh - 1) - 1) // s + 1
        ow = (w + 2 * p - d * (kw - 1) - 1) // s + 1

        # Fold BN (inference form, running stats) into weight scale / shift.
        if self.bn:
            scale = self.gamma / jnp.sqrt(self.running_var + self.eps)
            shift = self.beta - self.running_mean * scale
        else:
            scale = jnp.ones((out,), jnp.float32)
            shift = jnp.zeros((out,), jnp.float32)
        if self.bias is not None:
            shift = shift + self.bias * scale

        w_scaled = self.weight * scale[:, None, None, None]   # (O,C,KH,KW)
        w_khwc_o = w_scaled.transpose(2, 3, 1, 0)              # (KH,KW,C,O)

        # NHWC + spatial padding, bf16 operands for the MXU (f32 accumulate).
        xp = jnp.pad(x.transpose(0, 2, 3, 1),
                     ((0, 0), (p, p), (p, p), (0, 0))).astype(jnp.bfloat16)

        y = _fused_conv_bn_relu(xp, w_khwc_o, shift, kh=kh, kw=kw, stride=s,
                                dilation=d, oh=oh, ow=ow, relu=self.relu)
        # Single XLA transpose back to PyTorch NCHW.
        return y.transpose(0, 3, 1, 2)


# ------------------------------ reference ----------------------------------- #
def _reference(module, x):
    y = lax.conv_general_dilated(
        x, module.weight, window_strides=(module.stride, module.stride),
        padding=[(module.padding, module.padding)] * 2,
        rhs_dilation=(module.dilation, module.dilation),
        dimension_numbers=("NCHW", "OIHW", "NCHW"))
    if module.bias is not None:
        y = y + module.bias[None, :, None, None]
    if module.bn:
        scale = module.gamma / jnp.sqrt(module.running_var + module.eps)
        shift = module.beta - module.running_mean * scale
        y = y * scale[None, :, None, None] + shift[None, :, None, None]
    if module.relu:
        y = jnp.maximum(y, 0.0)
    return y


if __name__ == "__main__":
    key = jax.random.PRNGKey(0)
    kx, kp = jax.random.split(key)
    # Small shapes consistent with the module: N=2, C_in=4, H=W=16, C_out=8, k=3
    x = jax.random.normal(kx, (2, 4, 16, 16), jnp.float32)
    mod = BasicConvPallas(in_planes=4, out_planes=8, kernel_size=3,
                          stride=1, padding=1, dilation=1,
                          relu=True, bn=True, key=kp)
    out = mod(x)
    jax.block_until_ready(out)
    ref = _reference(mod, x)
    assert out.shape == (2, 8, 16, 16), out.shape
    # bf16 MXU operands with f32 accumulate -> loosened tolerance vs f32 ref.
    assert jnp.allclose(out, ref, atol=3e-2, rtol=3e-2), "mismatch vs reference"
    print("KERNEL_OK")
</pallas_src>

<mosaic_0001>
module attributes {stable_mosaic.version = 11 : i64} {
  func.func @_conv_bn_relu_kernel(%arg0: i32, %arg1: i32, %arg2: i32, %arg3: memref<1x18x18x4xbf16, #tpu.memory_space<vmem>>, %arg4: memref<3x12x128xbf16, #tpu.memory_space<vmem>>, %arg5: memref<1x128xf32, #tpu.memory_space<vmem>>, %arg6: memref<1x16x16x128xf32, #tpu.memory_space<vmem>>) attributes {dimension_semantics = [#tpu.dimension_semantics<parallel>, #tpu.dimension_semantics<parallel>, #tpu.dimension_semantics<parallel>], iteration_bounds = array<i64: 2, 1, 1>, scalar_prefetch = 0 : i64, scratch_operands = 0 : i64, tpu.core_type = #tpu.core_type<tc>, window_params = [{pipeline_mode = #tpu.pipeline_mode<synchronous>, transform_indices = @transform_0, window_bounds = array<i64: 1, 18, 18, 4>}, {transform_indices = @transform_1, window_bounds = array<i64: 3, 12, 128>}, {transform_indices = @transform_2, window_bounds = array<i64: 1, 128>}, {transform_indices = @transform_3, window_bounds = array<i64: 1, 16, 16, 128>}]} {
    %c16_i32 = arith.constant 16 : i32
    %0 = arith.muli %arg2, %c16_i32 : i32
    %1 = tpu.assume_multiple %0, 16 : i32
    %cst = arith.constant 0.000000e+00 : f32
    %2 = vector.broadcast %cst : f32 to vector<256x128xf32>
    %c0_i32 = arith.constant 0 : i32
    %3 = arith.addi %1, %c0_i32 : i32
    %c0 = arith.constant 0 : index
    %4 = arith.index_cast %3 : i32 to index
    %c0_0 = arith.constant 0 : index
    %c0_1 = arith.constant 0 : index
    %5 = vector.load %arg3[%c0, %4, %c0_0, %c0_1] : memref<1x18x18x4xbf16, #tpu.memory_space<vmem>>, vector<1x16x18x4xbf16>
    %6 = vector.shape_cast %5 : vector<1x16x18x4xbf16> to vector<16x18x4xbf16>
    %7 = vector.extract_strided_slice %6 {offsets = [0, 0, 0], sizes = [16, 16, 4], strides = [1, 1, 1]} : vector<16x18x4xbf16> to vector<16x16x4xbf16>
    %8 = vector.extract_strided_slice %6 {offsets = [0, 1, 0], sizes = [16, 16, 4], strides = [1, 1, 1]} : vector<16x18x4xbf16> to vector<16x16x4xbf16>
    %9 = vector.extract_strided_slice %6 {offsets = [0, 2, 0], sizes = [16, 16, 4], strides = [1, 1, 1]} : vector<16x18x4xbf16> to vector<16x16x4xbf16>
    %10 = tpu.concatenate %7, %8, %9 in 2 : vector<16x16x4xbf16>, vector<16x16x4xbf16>, vector<16x16x4xbf16> -> vector<16x16x12xbf16>
    %11 = vector.shape_cast %10 : vector<16x16x12xbf16> to vector<256x12xbf16>
    %c0_2 = arith.constant 0 : index
    %c0_3 = arith.constant 0 : index
    %c0_4 = arith.constant 0 : index
    %12 = vector.load %arg4[%c0_2, %c0_3, %c0_4] : memref<3x12x128xbf16, #tpu.memory_space<vmem>>, vector<1x12x128xbf16>
    %13 = vector.shape_cast %12 : vector<1x12x128xbf16> to vector<12x128xbf16>
    %cst_5 = arith.constant dense<0.000000e+00> : vector<256x128xf32>
    %14 = tpu.matmul %11, %13, %cst_5 {dimension_numbers = #tpu.dot_dimension_numbers<[1], [0], [0], [1], [0, 0, 1, 1], [], []>} : vector<256x12xbf16>, vector<12x128xbf16>, vector<256x128xf32> -> vector<256x128xf32>
    %15 = arith.addf %2, %14 : vector<256x128xf32>
    %c1_i32 = arith.constant 1 : i32
    %16 = arith.addi %1, %c1_i32 : i32
    %c0_6 = arith.constant 0 : index
    %17 = arith.index_cast %16 : i32 to index
    %c0_7 = arith.constant 0 : index
    %c0_8 = arith.constant 0 : index
    %18 = vector.load %arg3[%c0_6, %17, %c0_7, %c0_8] : memref<1x18x18x4xbf16, #tpu.memory_space<vmem>>, vector<1x16x18x4xbf16>
    %19 = vector.shape_cast %18 : vector<1x16x18x4xbf16> to vector<16x18x4xbf16>
    %20 = vector.extract_strided_slice %19 {offsets = [0, 0, 0], sizes = [16, 16, 4], strides = [1, 1, 1]} : vector<16x18x4xbf16> to vector<16x16x4xbf16>
    %21 = vector.extract_strided_slice %19 {offsets = [0, 1, 0], sizes = [16, 16, 4], strides = [1, 1, 1]} : vector<16x18x4xbf16> to vector<16x16x4xbf16>
    %22 = vector.extract_strided_slice %19 {offsets = [0, 2, 0], sizes = [16, 16, 4], strides = [1, 1, 1]} : vector<16x18x4xbf16> to vector<16x16x4xbf16>
    %23 = tpu.concatenate %20, %21, %22 in 2 : vector<16x16x4xbf16>, vector<16x16x4xbf16>, vector<16x16x4xbf16> -> vector<16x16x12xbf16>
    %24 = vector.shape_cast %23 : vector<16x16x12xbf16> to vector<256x12xbf16>
    %c1 = arith.constant 1 : index
    %c0_9 = arith.constant 0 : index
    %c0_10 = arith.constant 0 : index
    %25 = vector.load %arg4[%c1, %c0_9, %c0_10] : memref<3x12x128xbf16, #tpu.memory_space<vmem>>, vector<1x12x128xbf16>
    %26 = vector.shape_cast %25 : vector<1x12x128xbf16> to vector<12x128xbf16>
    %cst_11 = arith.constant dense<0.000000e+00> : vector<256x128xf32>
    %27 = tpu.matmul %24, %26, %cst_11 {dimension_numbers = #tpu.dot_dimension_numbers<[1], [0], [0], [1], [0, 0, 1, 1], [], []>} : vector<256x12xbf16>, vector<12x128xbf16>, vector<256x128xf32> -> vector<256x128xf32>
    %28 = arith.addf %15, %27 : vector<256x128xf32>
    %c2_i32 = arith.constant 2 : i32
    %29 = arith.addi %1, %c2_i32 : i32
    %c0_12 = arith.constant 0 : index
    %30 = arith.index_cast %29 : i32 to index
    %c0_13 = arith.constant 0 : index
    %c0_14 = arith.constant 0 : index
    %31 = vector.load %arg3[%c0_12, %30, %c0_13, %c0_14] : memref<1x18x18x4xbf16, #tpu.memory_space<vmem>>, vector<1x16x18x4xbf16>
    %32 = vector.shape_cast %31 : vector<1x16x18x4xbf16> to vector<16x18x4xbf16>
    %33 = vector.extract_strided_slice %32 {offsets = [0, 0, 0], sizes = [16, 16, 4], strides = [1, 1, 1]} : vector<16x18x4xbf16> to vector<16x16x4xbf16>
    %34 = vector.extract_strided_slice %32 {offsets = [0, 1, 0], sizes = [16, 16, 4], strides = [1, 1, 1]} : vector<16x18x4xbf16> to vector<16x16x4xbf16>
    %35 = vector.extract_strided_slice %32 {offsets = [0, 2, 0], sizes = [16, 16, 4], strides = [1, 1, 1]} : vector<16x18x4xbf16> to vector<16x16x4xbf16>
    %36 = tpu.concatenate %33, %34, %35 in 2 : vector<16x16x4xbf16>, vector<16x16x4xbf16>, vector<16x16x4xbf16> -> vector<16x16x12xbf16>
    %37 = vector.shape_cast %36 : vector<16x16x12xbf16> to vector<256x12xbf16>
    %c2 = arith.constant 2 : index
    %c0_15 = arith.constant 0 : index
    %c0_16 = arith.constant 0 : index
    %38 = vector.load %arg4[%c2, %c0_15, %c0_16] : memref<3x12x128xbf16, #tpu.memory_space<vmem>>, vector<1x12x128xbf16>
    %39 = vector.shape_cast %38 : vector<1x12x128xbf16> to vector<12x128xbf16>
    %cst_17 = arith.constant dense<0.000000e+00> : vector<256x128xf32>
    %40 = tpu.matmul %37, %39, %cst_17 {dimension_numbers = #tpu.dot_dimension_numbers<[1], [0], [0], [1], [0, 0, 1, 1], [], []>} : vector<256x12xbf16>, vector<12x128xbf16>, vector<256x128xf32> -> vector<256x128xf32>
    %41 = arith.addf %28, %40 : vector<256x128xf32>
    %c0_18 = arith.constant 0 : index
    %c0_19 = arith.constant 0 : index
    %42 = vector.load %arg5[%c0_18, %c0_19] : memref<1x128xf32, #tpu.memory_space<vmem>>, vector<1x128xf32>
    %43 = vector.broadcast %42 : vector<1x128xf32> to vector<256x128xf32>
    %44 = arith.addf %41, %43 : vector<256x128xf32>
    %cst_20 = arith.constant 0.000000e+00 : f32
    %45 = vector.broadcast %cst_20 : f32 to vector<256x128xf32>
    %46 = arith.maximumf %44, %45 : vector<256x128xf32>
    %47 = vector.shape_cast %46 : vector<256x128xf32> to vector<1x16x16x128xf32>
    %c0_21 = arith.constant 0 : index
    %c0_22 = arith.constant 0 : index
    %c0_23 = arith.constant 0 : index
    %c0_24 = arith.constant 0 : index
    %48 = vector.load %arg6[%c0_21, %c0_22, %c0_23, %c0_24] : memref<1x16x16x128xf32, #tpu.memory_space<vmem>>, vector<1x16x16x128xf32>
    tpu.vector_store %arg6[%c0_21, %c0_22, %c0_23, %c0_24], %47 {strides = array<i32>} : memref<1x16x16x128xf32, #tpu.memory_space<vmem>>, vector<1x16x16x128xf32>,
    return
  }
  func.func @transform_0(%arg0: i32, %arg1: i32, %arg2: i32) -> (i32, i32, i32, i32) {
    %c0_i32 = arith.constant 0 : i32
    %c0_i32_0 = arith.constant 0 : i32
    %c0_i32_1 = arith.constant 0 : i32
    %c0_i32_2 = arith.constant 0 : i32
    return %arg0, %c0_i32, %c0_i32_0, %c0_i32_1 : i32, i32, i32, i32
  }
  func.func @transform_1(%arg0: i32, %arg1: i32, %arg2: i32) -> (i32, i32, i32) {
    %c0_i32 = arith.constant 0 : i32
    %c0_i32_0 = arith.constant 0 : i32
    %c0_i32_1 = arith.constant 0 : i32
    return %c0_i32, %c0_i32_0, %arg1 : i32, i32, i32
  }
  func.func @transform_2(%arg0: i32, %arg1: i32, %arg2: i32) -> (i32, i32) {
    %c0_i32 = arith.constant 0 : i32
    %c0_i32_0 = arith.constant 0 : i32
    return %c0_i32, %arg1 : i32, i32
  }
  func.func @transform_3(%arg0: i32, %arg1: i32, %arg2: i32) -> (i32, i32, i32, i32) {
    %c0_i32 = arith.constant 0 : i32
    %c0_i32_0 = arith.constant 0 : i32
    return %arg0, %arg2, %c0_i32, %arg1 : i32, i32, i32, i32
  }
}

module attributes {stable_mosaic.version = 11 : i64} {
  func.func @_conv_bn_relu_kernel(%arg0: i32, %arg1: i32, %arg2: i32, %arg3: memref<1x18x18x4xbf16, #tpu.memory_space<vmem>>, %arg4: memref<3x12x128xbf16, #tpu.memory_space<vmem>>, %arg5: memref<1x128xf32, #tpu.memory_space<vmem>>, %arg6: memref<1x16x16x128xf32, #tpu.memory_space<vmem>>) attributes {dimension_semantics = [#tpu.dimension_semantics<parallel>, #tpu.dimension_semantics<parallel>, #tpu.dimension_semantics<parallel>], iteration_bounds = array<i64: 2, 1, 1>, scalar_prefetch = 0 : i64, scratch_operands = 0 : i64, tpu.core_type = #tpu.core_type<tc>, window_params = [{transform_indices = @transform_0, window_bounds = array<i64: 1, 18, 18, 4>}, {transform_indices = @transform_1, window_bounds = array<i64: 3, 12, 128>}, {transform_indices = @transform_2, window_bounds = array<i64: 1, 128>}, {transform_indices = @transform_3, window_bounds = array<i64: 1, 16, 16, 128>}]} {
    %c16_i32 = arith.constant 16 : i32
    %0 = arith.muli %arg2, %c16_i32 : i32
    %1 = tpu.assume_multiple %0, 16 : i32
    %cst = arith.constant 0.000000e+00 : f32
    %2 = vector.broadcast %cst : f32 to vector<256x128xf32>
    %c0_i32 = arith.constant 0 : i32
    %3 = arith.addi %1, %c0_i32 : i32
    %c0 = arith.constant 0 : index
    %4 = arith.index_cast %3 : i32 to index
    %c0_0 = arith.constant 0 : index
    %c0_1 = arith.constant 0 : index
    %5 = vector.load %arg3[%c0, %4, %c0_0, %c0_1] : memref<1x18x18x4xbf16, #tpu.memory_space<vmem>>, vector<1x16x18x4xbf16>
    %6 = vector.shape_cast %5 : vector<1x16x18x4xbf16> to vector<16x18x4xbf16>
    %7 = vector.extract_strided_slice %6 {offsets = [0, 0, 0], sizes = [16, 16, 4], strides = [1, 1, 1]} : vector<16x18x4xbf16> to vector<16x16x4xbf16>
    %8 = vector.extract_strided_slice %6 {offsets = [0, 1, 0], sizes = [16, 16, 4], strides = [1, 1, 1]} : vector<16x18x4xbf16> to vector<16x16x4xbf16>
    %9 = vector.extract_strided_slice %6 {offsets = [0, 2, 0], sizes = [16, 16, 4], strides = [1, 1, 1]} : vector<16x18x4xbf16> to vector<16x16x4xbf16>
    %10 = tpu.concatenate %7, %8, %9 in 2 : vector<16x16x4xbf16>, vector<16x16x4xbf16>, vector<16x16x4xbf16> -> vector<16x16x12xbf16>
    %11 = vector.shape_cast %10 : vector<16x16x12xbf16> to vector<256x12xbf16>
    %c0_2 = arith.constant 0 : index
    %c0_3 = arith.constant 0 : index
    %c0_4 = arith.constant 0 : index
    %12 = vector.load %arg4[%c0_2, %c0_3, %c0_4] : memref<3x12x128xbf16, #tpu.memory_space<vmem>>, vector<1x12x128xbf16>
    %13 = vector.shape_cast %12 : vector<1x12x128xbf16> to vector<12x128xbf16>
    %cst_5 = arith.constant dense<0.000000e+00> : vector<256x128xf32>
    %14 = tpu.matmul %11, %13, %cst_5 {dimension_numbers = #tpu.dot_dimension_numbers<[1], [0], [0], [1], [0, 0, 1, 1], [], []>} : vector<256x12xbf16>, vector<12x128xbf16>, vector<256x128xf32> -> vector<256x128xf32>
    %15 = arith.addf %2, %14 : vector<256x128xf32>
    %c1_i32 = arith.constant 1 : i32
    %16 = arith.addi %1, %c1_i32 : i32
    %c0_6 = arith.constant 0 : index
    %17 = arith.index_cast %16 : i32 to index
    %c0_7 = arith.constant 0 : index
    %c0_8 = arith.constant 0 : index
    %18 = vector.load %arg3[%c0_6, %17, %c0_7, %c0_8] : memref<1x18x18x4xbf16, #tpu.memory_space<vmem>>, vector<1x16x18x4xbf16>
    %19 = vector.shape_cast %18 : vector<1x16x18x4xbf16> to vector<16x18x4xbf16>
    %20 = vector.extract_strided_slice %19 {offsets = [0, 0, 0], sizes = [16, 16, 4], strides = [1, 1, 1]} : vector<16x18x4xbf16> to vector<16x16x4xbf16>
    %21 = vector.extract_strided_slice %19 {offsets = [0, 1, 0], sizes = [16, 16, 4], strides = [1, 1, 1]} : vector<16x18x4xbf16> to vector<16x16x4xbf16>
    %22 = vector.extract_strided_slice %19 {offsets = [0, 2, 0], sizes = [16, 16, 4], strides = [1, 1, 1]} : vector<16x18x4xbf16> to vector<16x16x4xbf16>
    %23 = tpu.concatenate %20, %21, %22 in 2 : vector<16x16x4xbf16>, vector<16x16x4xbf16>, vector<16x16x4xbf16> -> vector<16x16x12xbf16>
    %24 = vector.shape_cast %23 : vector<16x16x12xbf16> to vector<256x12xbf16>
    %c1 = arith.constant 1 : index
    %c0_9 = arith.constant 0 : index
    %c0_10 = arith.constant 0 : index
    %25 = vector.load %arg4[%c1, %c0_9, %c0_10] : memref<3x12x128xbf16, #tpu.memory_space<vmem>>, vector<1x12x128xbf16>
    %26 = vector.shape_cast %25 : vector<1x12x128xbf16> to vector<12x128xbf16>
    %cst_11 = arith.constant dense<0.000000e+00> : vector<256x128xf32>
    %27 = tpu.matmul %24, %26, %cst_11 {dimension_numbers = #tpu.dot_dimension_numbers<[1], [0], [0], [1], [0, 0, 1, 1], [], []>} : vector<256x12xbf16>, vector<12x128xbf16>, vector<256x128xf32> -> vector<256x128xf32>
    %28 = arith.addf %15, %27 : vector<256x128xf32>
    %c2_i32 = arith.constant 2 : i32
    %29 = arith.addi %1, %c2_i32 : i32
    %c0_12 = arith.constant 0 : index
    %30 = arith.index_cast %29 : i32 to index
    %c0_13 = arith.constant 0 : index
    %c0_14 = arith.constant 0 : index
    %31 = vector.load %arg3[%c0_12, %30, %c0_13, %c0_14] : memref<1x18x18x4xbf16, #tpu.memory_space<vmem>>, vector<1x16x18x4xbf16>
    %32 = vector.shape_cast %31 : vector<1x16x18x4xbf16> to vector<16x18x4xbf16>
    %33 = vector.extract_strided_slice %32 {offsets = [0, 0, 0], sizes = [16, 16, 4], strides = [1, 1, 1]} : vector<16x18x4xbf16> to vector<16x16x4xbf16>
    %34 = vector.extract_strided_slice %32 {offsets = [0, 1, 0], sizes = [16, 16, 4], strides = [1, 1, 1]} : vector<16x18x4xbf16> to vector<16x16x4xbf16>
    %35 = vector.extract_strided_slice %32 {offsets = [0, 2, 0], sizes = [16, 16, 4], strides = [1, 1, 1]} : vector<16x18x4xbf16> to vector<16x16x4xbf16>
    %36 = tpu.concatenate %33, %34, %35 in 2 : vector<16x16x4xbf16>, vector<16x16x4xbf16>, vector<16x16x4xbf16> -> vector<16x16x12xbf16>
    %37 = vector.shape_cast %36 : vector<16x16x12xbf16> to vector<256x12xbf16>
    %c2 = arith.constant 2 : index
    %c0_15 = arith.constant 0 : index
    %c0_16 = arith.constant 0 : index
    %38 = vector.load %arg4[%c2, %c0_15, %c0_16] : memref<3x12x128xbf16, #tpu.memory_space<vmem>>, vector<1x12x128xbf16>
    %39 = vector.shape_cast %38 : vector<1x12x128xbf16> to vector<12x128xbf16>
    %cst_17 = arith.constant dense<0.000000e+00> : vector<256x128xf32>
    %40 = tpu.matmul %37, %39, %cst_17 {dimension_numbers = #tpu.dot_dimension_numbers<[1], [0], [0], [1], [0, 0, 1, 1], [], []>} : vector<256x12xbf16>, vector<12x128xbf16>, vector<256x128xf32> -> vector<256x128xf32>
    %41 = arith.addf %28, %40 : vector<256x128xf32>
    %c0_18 = arith.constant 0 : index
    %c0_19 = arith.constant 0 : index
    %42 = vector.load %arg5[%c0_18, %c0_19] : memref<1x128xf32, #tpu.memory_space<vmem>>, vector<1x128xf32>
    %43 = vector.broadcast %42 : vector<1x128xf32> to vector<256x128xf32>
    %44 = arith.addf %41, %43 : vector<256x128xf32>
    %cst_20 = arith.constant 0.000000e+00 : f32
    %45 = vector.broadcast %cst_20 : f32 to vector<256x128xf32>
    %46 = arith.maximumf %44, %45 : vector<256x128xf32>
    %47 = vector.shape_cast %46 : vector<256x128xf32> to vector<1x16x16x128xf32>
    %c0_21 = arith.constant 0 : index
    %c0_22 = arith.constant 0 : index
    %c0_23 = arith.constant 0 : index
    %c0_24 = arith.constant 0 : index
    %48 = vector.load %arg6[%c0_21, %c0_22, %c0_23, %c0_24] : memref<1x16x16x128xf32, #tpu.memory_space<vmem>>, vector<1x16x16x128xf32>
    tpu.vector_store %arg6[%c0_21, %c0_22, %c0_23, %c0_24], %47 {strides = array<i32>} : memref<1x16x16x128xf32, #tpu.memory_space<vmem>>, vector<1x16x16x128xf32>,
    return
  }
  func.func @transform_0(%arg0: i32, %arg1: i32, %arg2: i32) -> (i32, i32, i32, i32) {
    %c0_i32 = arith.constant 0 : i32
    %c0_i32_0 = arith.constant 0 : i32
    %c0_i32_1 = arith.constant 0 : i32
    %c0_i32_2 = arith.constant 0 : i32
    return %arg0, %c0_i32, %c0_i32_0, %c0_i32_1 : i32, i32, i32, i32
  }
  func.func @transform_1(%arg0: i32, %arg1: i32, %arg2: i32) -> (i32, i32, i32) {
    %c0_i32 = arith.constant 0 : i32
    %c0_i32_0 = arith.constant 0 : i32
    %c0_i32_1 = arith.constant 0 : i32
    return %c0_i32, %c0_i32_0, %arg1 : i32, i32, i32
  }
  func.func @transform_2(%arg0: i32, %arg1: i32, %arg2: i32) -> (i32, i32) {
    %c0_i32 = arith.constant 0 : i32
    %c0_i32_0 = arith.constant 0 : i32
    return %c0_i32, %arg1 : i32, i32
  }
  func.func @transform_3(%arg0: i32, %arg1: i32, %arg2: i32) -> (i32, i32, i32, i32) {
    %c0_i32 = arith.constant 0 : i32
    %c0_i32_0 = arith.constant 0 : i32
    return %arg0, %arg2, %c0_i32, %arg1 : i32, i32, i32, i32
  }
}

module attributes {stable_mosaic.version = 11 : i64} {
  func.func @_conv_bn_relu_kernel(%arg0: i32, %arg1: i32, %arg2: i32, %arg3: memref<1x18x18x4xbf16, #tpu.memory_space<vmem>>, %arg4: memref<9x4x128xbf16, #tpu.memory_space<vmem>>, %arg5: memref<1x128xf32, #tpu.memory_space<vmem>>, %arg6: memref<1x16x16x128xf32, #tpu.memory_space<vmem>>) attributes {dimension_semantics = [#tpu.dimension_semantics<parallel>, #tpu.dimension_semantics<parallel>, #tpu.dimension_semantics<parallel>], iteration_bounds = array<i64: 2, 1, 1>, scalar_prefetch = 0 : i64, scratch_operands = 0 : i64, tpu.core_type = #tpu.core_type<tc>, window_params = [{transform_indices = @transform_0, window_bounds = array<i64: 1, 18, 18, 4>}, {transform_indices = @transform_1, window_bounds = array<i64: 9, 4, 128>}, {transform_indices = @transform_2, window_bounds = array<i64: 1, 128>}, {transform_indices = @transform_3, window_bounds = array<i64: 1, 16, 16, 128>}]} {
    %c16_i32 = arith.constant 16 : i32
    %0 = arith.muli %arg2, %c16_i32 : i32
    %1 = tpu.assume_multiple %0, 16 : i32
    %cst = arith.constant 0.000000e+00 : f32
    %2 = vector.broadcast %cst : f32 to vector<256x128xf32>
    %c0_i32 = arith.constant 0 : i32
    %3 = arith.addi %1, %c0_i32 : i32
    %c0 = arith.constant 0 : index
    %4 = arith.index_cast %3 : i32 to index
    %c0_0 = arith.constant 0 : index
    %c0_1 = arith.constant 0 : index
    %5 = vector.load %arg3[%c0, %4, %c0_0, %c0_1] : memref<1x18x18x4xbf16, #tpu.memory_space<vmem>>, vector<1x16x18x4xbf16>
    %6 = vector.shape_cast %5 : vector<1x16x18x4xbf16> to vector<16x18x4xbf16>
    %7 = vector.extract_strided_slice %6 {offsets = [0, 0, 0], sizes = [16, 16, 4], strides = [1, 1, 1]} : vector<16x18x4xbf16> to vector<16x16x4xbf16>
    %8 = vector.shape_cast %7 : vector<16x16x4xbf16> to vector<256x4xbf16>
    %c0_2 = arith.constant 0 : index
    %c0_3 = arith.constant 0 : index
    %c0_4 = arith.constant 0 : index
    %9 = vector.load %arg4[%c0_2, %c0_3, %c0_4] : memref<9x4x128xbf16, #tpu.memory_space<vmem>>, vector<1x4x128xbf16>
    %10 = vector.shape_cast %9 : vector<1x4x128xbf16> to vector<4x128xbf16>
    %cst_5 = arith.constant dense<0.000000e+00> : vector<256x128xf32>
    %11 = tpu.matmul %8, %10, %cst_5 {dimension_numbers = #tpu.dot_dimension_numbers<[1], [0], [0], [1], [0, 0, 1, 1], [], []>} : vector<256x4xbf16>, vector<4x128xbf16>, vector<256x128xf32> -> vector<256x128xf32>
    %12 = arith.addf %2, %11 : vector<256x128xf32>
    %13 = vector.extract_strided_slice %6 {offsets = [0, 1, 0], sizes = [16, 16, 4], strides = [1, 1, 1]} : vector<16x18x4xbf16> to vector<16x16x4xbf16>
    %14 = vector.shape_cast %13 : vector<16x16x4xbf16> to vector<256x4xbf16>
    %c1 = arith.constant 1 : index
    %c0_6 = arith.constant 0 : index
    %c0_7 = arith.constant 0 : index
    %15 = vector.load %arg4[%c1, %c0_6, %c0_7] : memref<9x4x128xbf16, #tpu.memory_space<vmem>>, vector<1x4x128xbf16>
    %16 = vector.shape_cast %15 : vector<1x4x128xbf16> to vector<4x128xbf16>
    %cst_8 = arith.constant dense<0.000000e+00> : vector<256x128xf32>
    %17 = tpu.matmul %14, %16, %cst_8 {dimension_numbers = #tpu.dot_dimension_numbers<[1], [0], [0], [1], [0, 0, 1, 1], [], []>} : vector<256x4xbf16>, vector<4x128xbf16>, vector<256x128xf32> -> vector<256x128xf32>
    %18 = arith.addf %12, %17 : vector<256x128xf32>
    %19 = vector.extract_strided_slice %6 {offsets = [0, 2, 0], sizes = [16, 16, 4], strides = [1, 1, 1]} : vector<16x18x4xbf16> to vector<16x16x4xbf16>
    %20 = vector.shape_cast %19 : vector<16x16x4xbf16> to vector<256x4xbf16>
    %c2 = arith.constant 2 : index
    %c0_9 = arith.constant 0 : index
    %c0_10 = arith.constant 0 : index
    %21 = vector.load %arg4[%c2, %c0_9, %c0_10] : memref<9x4x128xbf16, #tpu.memory_space<vmem>>, vector<1x4x128xbf16>
    %22 = vector.shape_cast %21 : vector<1x4x128xbf16> to vector<4x128xbf16>
    %cst_11 = arith.constant dense<0.000000e+00> : vector<256x128xf32>
    %23 = tpu.matmul %20, %22, %cst_11 {dimension_numbers = #tpu.dot_dimension_numbers<[1], [0], [0], [1], [0, 0, 1, 1], [], []>} : vector<256x4xbf16>, vector<4x128xbf16>, vector<256x128xf32> -> vector<256x128xf32>
    %24 = arith.addf %18, %23 : vector<256x128xf32>
    %c1_i32 = arith.constant 1 : i32
    %25 = arith.addi %1, %c1_i32 : i32
    %c0_12 = arith.constant 0 : index
    %26 = arith.index_cast %25 : i32 to index
    %c0_13 = arith.constant 0 : index
    %c0_14 = arith.constant 0 : index
    %27 = vector.load %arg3[%c0_12, %26, %c0_13, %c0_14] : memref<1x18x18x4xbf16, #tpu.memory_space<vmem>>, vector<1x16x18x4xbf16>
    %28 = vector.shape_cast %27 : vector<1x16x18x4xbf16> to vector<16x18x4xbf16>
    %29 = vector.extract_strided_slice %28 {offsets = [0, 0, 0], sizes = [16, 16, 4], strides = [1, 1, 1]} : vector<16x18x4xbf16> to vector<16x16x4xbf16>
    %30 = vector.shape_cast %29 : vector<16x16x4xbf16> to vector<256x4xbf16>
    %c3 = arith.constant 3 : index
    %c0_15 = arith.constant 0 : index
    %c0_16 = arith.constant 0 : index
    %31 = vector.load %arg4[%c3, %c0_15, %c0_16] : memref<9x4x128xbf16, #tpu.memory_space<vmem>>, vector<1x4x128xbf16>
    %32 = vector.shape_cast %31 : vector<1x4x128xbf16> to vector<4x128xbf16>
    %cst_17 = arith.constant dense<0.000000e+00> : vector<256x128xf32>
    %33 = tpu.matmul %30, %32, %cst_17 {dimension_numbers = #tpu.dot_dimension_numbers<[1], [0], [0], [1], [0, 0, 1, 1], [], []>} : vector<256x4xbf16>, vector<4x128xbf16>, vector<256x128xf32> -> vector<256x128xf32>
    %34 = arith.addf %24, %33 : vector<256x128xf32>
    %35 = vector.extract_strided_slice %28 {offsets = [0, 1, 0], sizes = [16, 16, 4], strides = [1, 1, 1]} : vector<16x18x4xbf16> to vector<16x16x4xbf16>
    %36 = vector.shape_cast %35 : vector<16x16x4xbf16> to vector<256x4xbf16>
    %c4 = arith.constant 4 : index
    %c0_18 = arith.constant 0 : index
    %c0_19 = arith.constant 0 : index
    %37 = vector.load %arg4[%c4, %c0_18, %c0_19] : memref<9x4x128xbf16, #tpu.memory_space<vmem>>, vector<1x4x128xbf16>
    %38 = vector.shape_cast %37 : vector<1x4x128xbf16> to vector<4x128xbf16>
    %cst_20 = arith.constant dense<0.000000e+00> : vector<256x128xf32>
    %39 = tpu.matmul %36, %38, %cst_20 {dimension_numbers = #tpu.dot_dimension_numbers<[1], [0], [0], [1], [0, 0, 1, 1], [], []>} : vector<256x4xbf16>, vector<4x128xbf16>, vector<256x128xf32> -> vector<256x128xf32>
    %40 = arith.addf %34, %39 : vector<256x128xf32>
    %41 = vector.extract_strided_slice %28 {offsets = [0, 2, 0], sizes = [16, 16, 4], strides = [1, 1, 1]} : vector<16x18x4xbf16> to vector<16x16x4xbf16>
    %42 = vector.shape_cast %41 : vector<16x16x4xbf16> to vector<256x4xbf16>
    %c5 = arith.constant 5 : index
    %c0_21 = arith.constant 0 : index
    %c0_22 = arith.constant 0 : index
    %43 = vector.load %arg4[%c5, %c0_21, %c0_22] : memref<9x4x128xbf16, #tpu.memory_space<vmem>>, vector<1x4x128xbf16>
    %44 = vector.shape_cast %43 : vector<1x4x128xbf16> to vector<4x128xbf16>
    %cst_23 = arith.constant dense<0.000000e+00> : vector<256x128xf32>
    %45 = tpu.matmul %42, %44, %cst_23 {dimension_numbers = #tpu.dot_dimension_numbers<[1], [0], [0], [1], [0, 0, 1, 1], [], []>} : vector<256x4xbf16>, vector<4x128xbf16>, vector<256x128xf32> -> vector<256x128xf32>
    %46 = arith.addf %40, %45 : vector<256x128xf32>
    %c2_i32 = arith.constant 2 : i32
    %47 = arith.addi %1, %c2_i32 : i32
    %c0_24 = arith.constant 0 : index
    %48 = arith.index_cast %47 : i32 to index
    %c0_25 = arith.constant 0 : index
    %c0_26 = arith.constant 0 : index
    %49 = vector.load %arg3[%c0_24, %48, %c0_25, %c0_26] : memref<1x18x18x4xbf16, #tpu.memory_space<vmem>>, vector<1x16x18x4xbf16>
    %50 = vector.shape_cast %49 : vector<1x16x18x4xbf16> to vector<16x18x4xbf16>
    %51 = vector.extract_strided_slice %50 {offsets = [0, 0, 0], sizes = [16, 16, 4], strides = [1, 1, 1]} : vector<16x18x4xbf16> to vector<16x16x4xbf16>
    %52 = vector.shape_cast %51 : vector<16x16x4xbf16> to vector<256x4xbf16>
    %c6 = arith.constant 6 : index
    %c0_27 = arith.constant 0 : index
    %c0_28 = arith.constant 0 : index
    %53 = vector.load %arg4[%c6, %c0_27, %c0_28] : memref<9x4x128xbf16, #tpu.memory_space<vmem>>, vector<1x4x128xbf16>
    %54 = vector.shape_cast %53 : vector<1x4x128xbf16> to vector<4x128xbf16>
    %cst_29 = arith.constant dense<0.000000e+00> : vector<256x128xf32>
    %55 = tpu.matmul %52, %54, %cst_29 {dimension_numbers = #tpu.dot_dimension_numbers<[1], [0], [0], [1], [0, 0, 1, 1], [], []>} : vector<256x4xbf16>, vector<4x128xbf16>, vector<256x128xf32> -> vector<256x128xf32>
    %56 = arith.addf %46, %55 : vector<256x128xf32>
    %57 = vector.extract_strided_slice %50 {offsets = [0, 1, 0], sizes = [16, 16, 4], strides = [1, 1, 1]} : vector<16x18x4xbf16> to vector<16x16x4xbf16>
    %58 = vector.shape_cast %57 : vector<16x16x4xbf16> to vector<256x4xbf16>
    %c7 = arith.constant 7 : index
    %c0_30 = arith.constant 0 : index
    %c0_31 = arith.constant 0 : index
    %59 = vector.load %arg4[%c7, %c0_30, %c0_31] : memref<9x4x128xbf16, #tpu.memory_space<vmem>>, vector<1x4x128xbf16>
    %60 = vector.shape_cast %59 : vector<1x4x128xbf16> to vector<4x128xbf16>
    %cst_32 = arith.constant dense<0.000000e+00> : vector<256x128xf32>
    %61 = tpu.matmul %58, %60, %cst_32 {dimension_numbers = #tpu.dot_dimension_numbers<[1], [0], [0], [1], [0, 0, 1, 1], [], []>} : vector<256x4xbf16>, vector<4x128xbf16>, vector<256x128xf32> -> vector<256x128xf32>
    %62 = arith.addf %56, %61 : vector<256x128xf32>
    %63 = vector.extract_strided_slice %50 {offsets = [0, 2, 0], sizes = [16, 16, 4], strides = [1, 1, 1]} : vector<16x18x4xbf16> to vector<16x16x4xbf16>
    %64 = vector.shape_cast %63 : vector<16x16x4xbf16> to vector<256x4xbf16>
    %c8 = arith.constant 8 : index
    %c0_33 = arith.constant 0 : index
    %c0_34 = arith.constant 0 : index
    %65 = vector.load %arg4[%c8, %c0_33, %c0_34] : memref<9x4x128xbf16, #tpu.memory_space<vmem>>, vector<1x4x128xbf16>
    %66 = vector.shape_cast %65 : vector<1x4x128xbf16> to vector<4x128xbf16>
    %cst_35 = arith.constant dense<0.000000e+00> : vector<256x128xf32>
    %67 = tpu.matmul %64, %66, %cst_35 {dimension_numbers = #tpu.dot_dimension_numbers<[1], [0], [0], [1], [0, 0, 1, 1], [], []>} : vector<256x4xbf16>, vector<4x128xbf16>, vector<256x128xf32> -> vector<256x128xf32>
    %68 = arith.addf %62, %67 : vector<256x128xf32>
    %c0_36 = arith.constant 0 : index
    %c0_37 = arith.constant 0 : index
    %69 = vector.load %arg5[%c0_36, %c0_37] : memref<1x128xf32, #tpu.memory_space<vmem>>, vector<1x128xf32>
    %70 = vector.broadcast %69 : vector<1x128xf32> to vector<256x128xf32>
    %71 = arith.addf %68, %70 : vector<256x128xf32>
    %cst_38 = arith.constant 0.000000e+00 : f32
    %72 = vector.broadcast %cst_38 : f32 to vector<256x128xf32>
    %73 = arith.maximumf %71, %72 : vector<256x128xf32>
    %74 = vector.shape_cast %73 : vector<256x128xf32> to vector<1x16x16x128xf32>
    %c0_39 = arith.constant 0 : index
    %c0_40 = arith.constant 0 : index
    %c0_41 = arith.constant 0 : index
    %c0_42 = arith.constant 0 : index
    %75 = vector.load %arg6[%c0_39, %c0_40, %c0_41, %c0_42] : memref<1x16x16x128xf32, #tpu.memory_space<vmem>>, vector<1x16x16x128xf32>
    tpu.vector_store %arg6[%c0_39, %c0_40, %c0_41, %c0_42], %74 {strides = array<i32>} : memref<1x16x16x128xf32, #tpu.memory_space<vmem>>, vector<1x16x16x128xf32>,
    return
  }
  func.func @transform_0(%arg0: i32, %arg1: i32, %arg2: i32) -> (i32, i32, i32, i32) {
    %c0_i32 = arith.constant 0 : i32
    %c0_i32_0 = arith.constant 0 : i32
    %c0_i32_1 = arith.constant 0 : i32
    %c0_i32_2 = arith.constant 0 : i32
    return %arg0, %c0_i32, %c0_i32_0, %c0_i32_1 : i32, i32, i32, i32
  }
  func.func @transform_1(%arg0: i32, %arg1: i32, %arg2: i32) -> (i32, i32, i32) {
    %c0_i32 = arith.constant 0 : i32
    %c0_i32_0 = arith.constant 0 : i32
    %c0_i32_1 = arith.constant 0 : i32
    return %c0_i32, %c0_i32_0, %arg1 : i32, i32, i32
  }
  func.func @transform_2(%arg0: i32, %arg1: i32, %arg2: i32) -> (i32, i32) {
    %c0_i32 = arith.constant 0 : i32
    %c0_i32_0 = arith.constant 0 : i32
    return %c0_i32, %arg1 : i32, i32
  }
  func.func @transform_3(%arg0: i32, %arg1: i32, %arg2: i32) -> (i32, i32, i32, i32) {
    %c0_i32 = arith.constant 0 : i32
    %c0_i32_0 = arith.constant 0 : i32
    return %arg0, %arg2, %c0_i32, %arg1 : i32, i32, i32, i32
  }
}

</mosaic_0001>

<llo_original>
// kernel: tpu_custom_call.1
$region0: #{tpu_custom_call.1}
  #allocation0 [shape = 'u32[]', space=smem, size = 0x4, offset = 0x4, fixed_abs, tag = 'smem constant byte address 0x4 - core index']
  #allocation1 [shape = 'u32[144,128]{1,0:T(1,128)}', space=vmem, size = 0x12000, scoped, tag = 'internal scratch']
  %s0 = inlined_call_operand.vmem [shape: bf16[2,18,18,4], index: 0, kind: input, shape index: {}]
  %s1 = inlined_call_operand.vmem [shape: bf16[3,12,128], index: 1, kind: input, shape index: {}]
  %s2 = inlined_call_operand.vmem [shape: f32[1,128], index: 2, kind: input, shape index: {}]
  %s3 = inlined_call_operand.hbm [shape: f32[2,16,16,128], index: 3, kind: output, shape index: {}]
  %s4 = sld [smem:[#allocation0]]
  $region45: #{tpu_custom_call.1} parent=0
    _
  %s6 = ssub.s32 1, %s4
  %s7 = scalar_select 0, %s6, %s4
  $region1: #{tpu_custom_call.1} parent=0
    #allocation2 [shape = 'u8[262144]{0}', space=vmem, size = 0x40000, scoped, tag = 'output window, operand 0']
    #allocation3 [shape = 's32[2]{0}', space=sflag, size = 0x8, scoped, tag = 'scoped memory for tpu_custom_call.1']
    %8 = vsyncpa [#allocation3], 0
    %s9 = scalar_lea.sflag [#allocation3], 1
    %10 = vsyncpa %s9, 0
    loop: start=0, step=1, limit=4
    $region2: #{tpu_custom_call.1} parent=1 // loop_pre_header
      _
    $region3: #{tpu_custom_call.1} parent=1 // loop_header
      %s12 = sphi 0, %s16
      %p13 = scmp.ge.s32.totalorder %s12, 4
      %s19 = sphi 0, %s38
      %s20 = sphi 0, %s34
      %s21 = sphi 0, %s30
      %s22 = sphi 0, %s19
      %s23 = sphi 0, %s20
      %s24 = sphi 0, %s21
      %s25 = sphi 0, %s22
      %s26 = sphi 0, %s23
      %s27 = sphi 0, %s24
      %s41 = sphi 0, %s43
      %s44 = sphi 0, %s41
      %s45 = sphi 0, %s44
      %s61 = sphi 0, %s45
      %s67 = sphi 0, %s69
      %s70 = sphi 0, %s67
      %s71 = sphi 0, %s70
      %s87 = sphi 0, %s71
      %s93 = sphi 0, %s95
      %s96 = sphi 0, %s93
      %s97 = sphi 0, %s96
      %s113 = sphi 0, %s97
      %s123 = sphi 0, %s125
      %s126 = sphi 0, %s123
      %s127 = sphi 0, %s126
      %s143 = sphi 0, %s127
    $region4: #{tpu_custom_call.1} parent=1 // loop_header_branch
      %15 = sbr.rel (%p13) target = $region8
    $region5: #{tpu_custom_call.1} parent=1 // loop_body
      %s17 = ssub.s32 %s12, 1
      %s18 = ssub.s32 %s12, 2
      %s28 = sadd.s32 1, %s21
      %p29 = scmp.ge.s32.totalorder %s28, 1
      %s30 = scalar_select %p29, 0, %s28
      %s31 = sadd.s32 1, %s20
      %s32 = scalar_select %p29, %s31, %s20
      %p33 = scmp.ge.s32.totalorder %s32, 1
      %s34 = scalar_select %p33, 0, %s32
      %s35 = sadd.s32 1, %s19
      %s36 = scalar_select %p33, %s35, %s19
      %p37 = scmp.ge.s32.totalorder %s36, 2
      %s38 = scalar_select %p37, 0, %s36
      %s39 = ssub.s32 %s19, %s38
      %p40 = scmp.eq.s32.totalorder %s39, 0
      %s42 = sadd.s32 %s41, 1
      %s43 = scalar_select %p40, %s41, %s42
      %p46 = pneg %p40
      %p47 = scmp.eq.s32.totalorder %s12, 1
      %p48 = por %p46, %p47
      %p49 = scmp.ne.s32.totalorder %s41, %s44
      %p50 = scmp.eq.s32.totalorder %s12, 0
      %p51 = por %p49, %p50
      %p52 = scmp.ne.s32.totalorder %s41, %s44
      %p53 = scmp.eq.s32.totalorder %s17, 1
      %p54 = por %p52, %p53
      %p55 = scmp.ne.s32.totalorder %s44, %s45
      %p56 = scmp.eq.s32.totalorder %s17, 0
      %p57 = por %p55, %p56
      %p58 = scmp.ne.s32.totalorder %s44, %s45
      %p59 = scmp.eq.s32.totalorder %s18, 1
      %p60 = por %p58, %p59
      %p62 = scmp.ne.s32.totalorder %s45, %s61
      %p63 = scmp.eq.s32.totalorder %s18, 0
      %p64 = por %p62, %p63
      %s65 = ssub.s32 %s20, %s34
      %p66 = scmp.eq.s32.totalorder %s65, 0
      %s68 = sadd.s32 %s67, 1
      %s69 = scalar_select %p66, %s67, %s68
      %p72 = pneg %p66
      %p73 = scmp.eq.s32.totalorder %s12, 1
      %p74 = por %p72, %p73
      %p75 = scmp.ne.s32.totalorder %s67, %s70
      %p76 = scmp.eq.s32.totalorder %s12, 0
      %p77 = por %p75, %p76
      %p78 = scmp.ne.s32.totalorder %s67, %s70
      %p79 = scmp.eq.s32.totalorder %s17, 1
      %p80 = por %p78, %p79
      %p81 = scmp.ne.s32.totalorder %s70, %s71
      %p82 = scmp.eq.s32.totalorder %s17, 0
      %p83 = por %p81, %p82
      %p84 = scmp.ne.s32.totalorder %s70, %s71
      %p85 = scmp.eq.s32.totalorder %s18, 1
      %p86 = por %p84, %p85
      %p88 = scmp.ne.s32.totalorder %s71, %s87
      %p89 = scmp.eq.s32.totalorder %s18, 0
      %p90 = por %p88, %p89
      %s91 = ssub.s32 %s20, %s34
      %p92 = scmp.eq.s32.totalorder %s91, 0
      %s94 = sadd.s32 %s93, 1
      %s95 = scalar_select %p92, %s93, %s94
      %p98 = pneg %p92
      %p99 = scmp.eq.s32.totalorder %s12, 1
      %p100 = por %p98, %p99
      %p101 = scmp.ne.s32.totalorder %s93, %s96
      %p102 = scmp.eq.s32.totalorder %s12, 0
      %p103 = por %p101, %p102
      %p104 = scmp.ne.s32.totalorder %s93, %s96
      %p105 = scmp.eq.s32.totalorder %s17, 1
      %p106 = por %p104, %p105
      %p107 = scmp.ne.s32.totalorder %s96, %s97
      %p108 = scmp.eq.s32.totalorder %s17, 0
      %p109 = por %p107, %p108
      %p110 = scmp.ne.s32.totalorder %s96, %s97
      %p111 = scmp.eq.s32.totalorder %s18, 1
      %p112 = por %p110, %p111
      %p114 = scmp.ne.s32.totalorder %s97, %s113
      %p115 = scmp.eq.s32.totalorder %s18, 0
      %p116 = por %p114, %p115
      %s117 = ssub.s32 %s19, %s38
      %s118 = ssub.s32 %s21, %s30
      %s119 = sor.u32 %s117, %s118
      %s120 = ssub.s32 %s20, %s34
      %s121 = sor.u32 %s119, %s120
      %p122 = scmp.eq.s32.totalorder %s121, 0
      %s124 = sadd.s32 %s123, 1
      %s125 = scalar_select %p122, %s123, %s124
      %p128 = pneg %p122
      %p129 = scmp.eq.s32.totalorder %s12, 1
      %p130 = por %p128, %p129
      %p131 = scmp.ne.s32.totalorder %s123, %s126
      %p132 = scmp.eq.s32.totalorder %s12, 0
      %p133 = por %p131, %p132
      %p134 = scmp.ne.s32.totalorder %s123, %s126
      %p135 = scmp.eq.s32.totalorder %s17, 1
      %p136 = por %p134, %p135
      %p137 = scmp.ne.s32.totalorder %s126, %s127
      %p138 = scmp.eq.s32.totalorder %s17, 0
      %p139 = por %p137, %p138
      %p140 = scmp.ne.s32.totalorder %s126, %s127
      %p141 = scmp.eq.s32.totalorder %s18, 1
      %p142 = por %p140, %p141
      %p144 = scmp.ne.s32.totalorder %s127, %s143
      %p145 = scmp.eq.s32.totalorder %s18, 0
      %p146 = por %p144, %p145
      %p147 = scmp.le.s32.totalorder 1, %s12
      %p148 = scmp.lt.s32.totalorder %s12, 3
      %p149 = pnand %p147, %p148
      %p150 = pneg %p149
      // Predicated region
      $region9: #{tpu_custom_call.1} parent=5 // pred_check
        _
      $region10: #{tpu_custom_call.1} parent=5 // pred_check_branch
        %152 = sbr.rel (%p149) target = $region12
      $region11: #{tpu_custom_call.1} parent=5 // pred_region
        %s153 = ssub.s32 %s12, 1
        // Predicated region
        $region13: #{tpu_custom_call.1} parent=11 // pred_check
          %p154 = pneg %p57
        $region14: #{tpu_custom_call.1} parent=11 // pred_check_branch
          %156 = sbr.rel (%p154) target = $region16
        $region15: #{tpu_custom_call.1} parent=11 // pred_region
          %p157 = scmp.lt.s32.totalorder %s22, 1
          %s158 = scalar_select %p157, %s22, 1
          %s159 = smul.addr %s158, 54
          %s160 = smul.addr %s159, 4
          %s161 = scalar_lea.vmem %s0, %s160
        $region16: #{tpu_custom_call.1} parent=11 // pred_fallthru
          _
        // Predicated region
        $region17: #{tpu_custom_call.1} parent=11 // pred_check
          %p162 = pneg %p83
        $region18: #{tpu_custom_call.1} parent=11 // pred_check_branch
          %164 = sbr.rel (%p162) target = $region20
        $region19: #{tpu_custom_call.1} parent=11 // pred_region
          %p165 = scmp.lt.s32.totalorder %s23, 0
          %s166 = scalar_select %p165, %s23, 0
          %s167 = smul.addr %s166, 4
          %s168 = scalar_lea.vmem %s1, %s167
        $region20: #{tpu_custom_call.1} parent=11 // pred_fallthru
          _
        // Predicated region
        $region21: #{tpu_custom_call.1} parent=11 // pred_check
          %p169 = pneg %p109
        $region22: #{tpu_custom_call.1} parent=11 // pred_check_branch
          %171 = sbr.rel (%p169) target = $region24
        $region23: #{tpu_custom_call.1} parent=11 // pred_region
          %p172 = scmp.lt.s32.totalorder %s23, 0
          %s173 = scalar_select %p172, %s23, 0
          %s174 = scalar_lea.vmem %s2, %s173
        $region24: #{tpu_custom_call.1} parent=11 // pred_fallthru
          _
      $region12: #{tpu_custom_call.1} parent=5 // pred_fallthru
        _
      %p175 = scmp.lt.s32.totalorder %s12, 2
      // Predicated region
      $region25: #{tpu_custom_call.1} parent=5 // pred_check
        %p176 = pneg %p175
      $region26: #{tpu_custom_call.1} parent=5 // pred_check_branch
        %178 = sbr.rel (%p176) target = $region28
      $region27: #{tpu_custom_call.1} parent=5 // pred_region
        _
      $region28: #{tpu_custom_call.1} parent=5 // pred_fallthru
        _
      %p179 = scmp.le.s32.totalorder 1, %s12
      %p180 = scmp.lt.s32.totalorder %s12, 3
      %p181 = pnand %p179, %p180
      %p182 = pneg %p181
      // Predicated region
      $region29: #{tpu_custom_call.1} parent=5 // pred_check
        _
      $region30: #{tpu_custom_call.1} parent=5 // pred_check_branch
        %184 = sbr.rel (%p181) target = $region32
      $region31: #{tpu_custom_call.1} parent=5 // pred_region
        %s185 = ssub.s32 %s12, 1
        %p186 = scmp.lt.s32.totalorder %s22, 1
        %s187 = scalar_select %p186, %s22, 1
        %s188 = smul.addr %s187, 54
        %s189 = smul.addr %s188, 4
        %s190 = scalar_lea.vmem %s0, %s189
        %p191 = pneg %p57
        %p192 = pneg %p54
        %p193 = scmp.lt.s32.totalorder %s23, 0
        %s194 = scalar_select %p193, %s23, 0
        %s195 = smul.addr %s194, 4
        %s196 = scalar_lea.vmem %s1, %s195
        %p197 = pneg %p83
        %p198 = pneg %p80
        %p199 = scmp.lt.s32.totalorder %s23, 0
        %s200 = scalar_select %p199, %s23, 0
        %s201 = scalar_lea.vmem %s2, %s200
        %p202 = pneg %p109
        %p203 = pneg %p106
        %p204 = pneg %p139
        %p205 = pneg %p136
        %s206 = sand.u32 %s126, 1
        %s207 = scalar_lea.sflag [#allocation3], %s206
        %s208 = sand.u32 %s126, 1
        %s209 = smul.addr %s208, 256
        %s210 = scalar_lea.vmem [#allocation2], %s209
        %p211 = scmp.lt.s32.totalorder %s22, 1
        %s212 = scalar_select %p211, %s22, 1
        %s213 = smul.addr %s212, 54
        %s214 = smul.addr %s213, 4
        %s215 = scalar_lea.vmem %s0, %s214
        %p216 = scmp.lt.s32.totalorder %s23, 0
        %s217 = scalar_select %p216, %s23, 0
        %s218 = smul.addr %s217, 4
        %s219 = scalar_lea.vmem %s1, %s218
        %p220 = scmp.lt.s32.totalorder %s23, 0
        %s221 = scalar_select %p220, %s23, 0
        %s222 = scalar_lea.vmem %s2, %s221
        %s223 = smul.u32 16, %s24
        %s225 = smul.u32 %s24, 16
        %s226 = smul.u32 %s225, 3
        %s227 = smul.addr %s226, 4
        %s228 = scalar_lea.vmem %s215, %s227
        %v229 = vld [vmem:[%s228] sm:$0xf]
        %v230 = vld [vmem:[%s228 + $0x4] sm:$0xf]
        %v231 = vld [vmem:[%s228 + $0x8] sm:$0x1]
        %v232 = vld [vmem:[%s228 + $0xc] sm:$0xf]
        %v233 = vld [vmem:[%s228 + $0x10] sm:$0xf]
        %v234 = vld [vmem:[%s228 + $0x14] sm:$0x1]
        %v235 = vld [vmem:[%s228 + $0x18] sm:$0xf]
        %v236 = vld [vmem:[%s228 + $0x1c] sm:$0xf]
        %v237 = vld [vmem:[%s228 + $0x20] sm:$0x1]
        %v238 = vld [vmem:[%s228 + $0x24] sm:$0xf]
        %v239 = vld [vmem:[%s228 + $0x28] sm:$0xf]
        %v240 = vld [vmem:[%s228 + $0x2c] sm:$0x1]
        %v241 = vld [vmem:[%s228 + $0x30] sm:$0xf]
        %v242 = vld [vmem:[%s228 + $0x34] sm:$0xf]
        %v243 = vld [vmem:[%s228 + $0x38] sm:$0x1]
        %v244 = vld [vmem:[%s228 + $0x3c] sm:$0xf]
        %v245 = vld [vmem:[%s228 + $0x40] sm:$0xf]
        %v246 = vld [vmem:[%s228 + $0x44] sm:$0x1]
        %v247 = vld [vmem:[%s228 + $0x48] sm:$0xf]
        %v248 = vld [vmem:[%s228 + $0x4c] sm:$0xf]
        %v249 = vld [vmem:[%s228 + $0x50] sm:$0x1]
        %v250 = vld [vmem:[%s228 + $0x54] sm:$0xf]
        %v251 = vld [vmem:[%s228 + $0x58] sm:$0xf]
        %v252 = vld [vmem:[%s228 + $0x5c] sm:$0x1]
        %v253 = vld [vmem:[%s228 + $0x60] sm:$0xf]
        %v254 = vld [vmem:[%s228 + $0x64] sm:$0xf]
        %v255 = vld [vmem:[%s228 + $0x68] sm:$0x1]
        %v256 = vld [vmem:[%s228 + $0x6c] sm:$0xf]
        %v257 = vld [vmem:[%s228 + $0x70] sm:$0xf]
        %v258 = vld [vmem:[%s228 + $0x74] sm:$0x1]
        %v259 = vld [vmem:[%s228 + $0x78] sm:$0xf]
        %v260 = vld [vmem:[%s228 + $0x7c] sm:$0xf]
        %v261 = vld [vmem:[%s228 + $0x80] sm:$0x1]
        %v262 = vld [vmem:[%s228 + $0x84] sm:$0xf]
        %v263 = vld [vmem:[%s228 + $0x88] sm:$0xf]
        %v264 = vld [vmem:[%s228 + $0x8c] sm:$0x1]
        %v265 = vld [vmem:[%s228 + $0x90] sm:$0xf]
        %v266 = vld [vmem:[%s228 + $0x94] sm:$0xf]
        %v267 = vld [vmem:[%s228 + $0x98] sm:$0x1]
        %v268 = vld [vmem:[%s228 + $0x9c] sm:$0xf]
        %v269 = vld [vmem:[%s228 + $0xa0] sm:$0xf]
        %v270 = vld [vmem:[%s228 + $0xa4] sm:$0x1]
        %v271 = vld [vmem:[%s228 + $0xa8] sm:$0xf]
        %v272 = vld [vmem:[%s228 + $0xac] sm:$0xf]
        %v273 = vld [vmem:[%s228 + $0xb0] sm:$0x1]
        %v274 = vld [vmem:[%s228 + $0xb4] sm:$0xf]
        %v275 = vld [vmem:[%s228 + $0xb8] sm:$0xf]
        %v276 = vld [vmem:[%s228 + $0xbc] sm:$0x1]
        %v309 = vunpack.c.l.b16 %v229
        %v310 = vunpack.c.l.b16 %v230
        %v311 = vunpack.c.l.b16 %v232
        %v312 = vunpack.c.l.b16 %v233
        %v313 = vunpack.c.l.b16 %v235
        %v314 = vunpack.c.l.b16 %v236
        %v315 = vunpack.c.l.b16 %v238
        %v316 = vunpack.c.l.b16 %v239
        %v317 = vunpack.c.l.b16 %v241
        %v318 = vunpack.c.l.b16 %v242
        %v319 = vunpack.c.l.b16 %v244
        %v320 = vunpack.c.l.b16 %v245
        %v321 = vunpack.c.l.b16 %v247
        %v322 = vunpack.c.l.b16 %v248
        %v323 = vunpack.c.l.b16 %v250
        %v324 = vunpack.c.l.b16 %v251
        %v325 = vunpack.c.l.b16 %v253
        %v326 = vunpack.c.l.b16 %v254
        %v327 = vunpack.c.l.b16 %v256
        %v328 = vunpack.c.l.b16 %v257
        %v329 = vunpack.c.l.b16 %v259
        %v330 = vunpack.c.l.b16 %v260
        %v331 = vunpack.c.l.b16 %v262
        %v332 = vunpack.c.l.b16 %v263
        %v333 = vunpack.c.l.b16 %v265
        %v334 = vunpack.c.l.b16 %v266
        %v335 = vunpack.c.l.b16 %v268
        %v336 = vunpack.c.l.b16 %v269
        %v337 = vunpack.c.l.b16 %v271
        %v338 = vunpack.c.l.b16 %v272
        %v339 = vunpack.c.l.b16 %v274
        %v340 = vunpack.c.l.b16 %v275
        %v341 = vpack.c.b16 %v310, %v309
        %v342 = vpack.c.b16 %v312, %v311
        %v343 = vpack.c.b16 %v314, %v313
        %v344 = vpack.c.b16 %v316, %v315
        %v345 = vpack.c.b16 %v318, %v317
        %v346 = vpack.c.b16 %v320, %v319
        %v347 = vpack.c.b16 %v322, %v321
        %v348 = vpack.c.b16 %v324, %v323
        %v349 = vpack.c.b16 %v326, %v325
        %v350 = vpack.c.b16 %v328, %v327
        %v351 = vpack.c.b16 %v330, %v329
        %v352 = vpack.c.b16 %v332, %v331
        %v353 = vpack.c.b16 %v334, %v333
        %v354 = vpack.c.b16 %v336, %v335
        %v355 = vpack.c.b16 %v338, %v337
        %v356 = vpack.c.b16 %v340, %v339
        %v373 = vunpack.c.l.b16 %v231
        %v374 = vunpack.c.l.b16 %v234
        %v375 = vunpack.c.l.b16 %v237
        %v376 = vunpack.c.l.b16 %v240
        %v377 = vunpack.c.l.b16 %v243
        %v378 = vunpack.c.l.b16 %v246
        %v379 = vunpack.c.l.b16 %v249
        %v380 = vunpack.c.l.b16 %v252
        %v381 = vunpack.c.l.b16 %v255
        %v382 = vunpack.c.l.b16 %v258
        %v383 = vunpack.c.l.b16 %v261
        %v384 = vunpack.c.l.b16 %v264
        %v385 = vunpack.c.l.b16 %v267
        %v386 = vunpack.c.l.b16 %v270
        %v387 = vunpack.c.l.b16 %v273
        %v388 = vunpack.c.l.b16 %v276
        %v389 = vpack.c.b16 %v373, %v373
        %v390 = vpack.c.b16 %v374, %v374
        %v391 = vpack.c.b16 %v375, %v375
        %v392 = vpack.c.b16 %v376, %v376
        %v393 = vpack.c.b16 %v377, %v377
        %v394 = vpack.c.b16 %v378, %v378
        %v395 = vpack.c.b16 %v379, %v379
        %v396 = vpack.c.b16 %v380, %v380
        %v397 = vpack.c.b16 %v381, %v381
        %v398 = vpack.c.b16 %v382, %v382
        %v399 = vpack.c.b16 %v383, %v383
        %v400 = vpack.c.b16 %v384, %v384
        %v401 = vpack.c.b16 %v385, %v385
        %v402 = vpack.c.b16 %v386, %v386
        %v403 = vpack.c.b16 %v387, %v387
        %v404 = vpack.c.b16 %v388, %v388
        %vm405 = vsmask.f32 7424
        %v407 = vshrl.u32 %v341, 16
        %v409 = vshll.u32 %v341, 16
        %v411 = vrot.slane %v409, 1
        %v412 = vor.u32 %v407, %v411
        %v414 = vshll.u32 %v389, 16
        %v416 = vrot.slane %v414, 1
        %v417 = vsel %vm405, %v412, %v416
        %v419 = vshrl.u32 %v342, 16
        %v421 = vshll.u32 %v342, 16
        %v423 = vrot.slane %v421, 1
        %v424 = vor.u32 %v419, %v423
        %v426 = vshll.u32 %v390, 16
        %v428 = vrot.slane %v426, 1
        %v429 = vsel %vm405, %v424, %v428
        %v431 = vshrl.u32 %v343, 16
        %v433 = vshll.u32 %v343, 16
        %v435 = vrot.slane %v433, 1
        %v436 = vor.u32 %v431, %v435
        %v438 = vshll.u32 %v391, 16
        %v440 = vrot.slane %v438, 1
        %v441 = vsel %vm405, %v436, %v440
        %v443 = vshrl.u32 %v344, 16
        %v445 = vshll.u32 %v344, 16
        %v447 = vrot.slane %v445, 1
        %v448 = vor.u32 %v443, %v447
        %v450 = vshll.u32 %v392, 16
        %v452 = vrot.slane %v450, 1
        %v453 = vsel %vm405, %v448, %v452
        %v455 = vshrl.u32 %v345, 16
        %v457 = vshll.u32 %v345, 16
        %v459 = vrot.slane %v457, 1
        %v460 = vor.u32 %v455, %v459
        %v462 = vshll.u32 %v393, 16
        %v464 = vrot.slane %v462, 1
        %v465 = vsel %vm405, %v460, %v464
        %v467 = vshrl.u32 %v346, 16
        %v469 = vshll.u32 %v346, 16
        %v471 = vrot.slane %v469, 1
        %v472 = vor.u32 %v467, %v471
        %v474 = vshll.u32 %v394, 16
        %v476 = vrot.slane %v474, 1
        %v477 = vsel %vm405, %v472, %v476
        %v479 = vshrl.u32 %v347, 16
        %v481 = vshll.u32 %v347, 16
        %v483 = vrot.slane %v481, 1
        %v484 = vor.u32 %v479, %v483
        %v486 = vshll.u32 %v395, 16
        %v488 = vrot.slane %v486, 1
        %v489 = vsel %vm405, %v484, %v488
        %v491 = vshrl.u32 %v348, 16
        %v493 = vshll.u32 %v348, 16
        %v495 = vrot.slane %v493, 1
        %v496 = vor.u32 %v491, %v495
        %v498 = vshll.u32 %v396, 16
        %v500 = vrot.slane %v498, 1
        %v501 = vsel %vm405, %v496, %v500
        %v503 = vshrl.u32 %v349, 16
        %v505 = vshll.u32 %v349, 16
        %v507 = vrot.slane %v505, 1
        %v508 = vor.u32 %v503, %v507
        %v510 = vshll.u32 %v397, 16
        %v512 = vrot.slane %v510, 1
        %v513 = vsel %vm405, %v508, %v512
        %v515 = vshrl.u32 %v350, 16
        %v517 = vshll.u32 %v350, 16
        %v519 = vrot.slane %v517, 1
        %v520 = vor.u32 %v515, %v519
        %v522 = vshll.u32 %v398, 16
        %v524 = vrot.slane %v522, 1
        %v525 = vsel %vm405, %v520, %v524
        %v527 = vshrl.u32 %v351, 16
        %v529 = vshll.u32 %v351, 16
        %v531 = vrot.slane %v529, 1
        %v532 = vor.u32 %v527, %v531
        %v534 = vshll.u32 %v399, 16
        %v536 = vrot.slane %v534, 1
        %v537 = vsel %vm405, %v532, %v536
        %v539 = vshrl.u32 %v352, 16
        %v541 = vshll.u32 %v352, 16
        %v543 = vrot.slane %v541, 1
        %v544 = vor.u32 %v539, %v543
        %v546 = vshll.u32 %v400, 16
        %v548 = vrot.slane %v546, 1
        %v549 = vsel %vm405, %v544, %v548
        %v551 = vshrl.u32 %v353, 16
        %v553 = vshll.u32 %v353, 16
        %v555 = vrot.slane %v553, 1
        %v556 = vor.u32 %v551, %v555
        %v558 = vshll.u32 %v401, 16
        %v560 = vrot.slane %v558, 1
        %v561 = vsel %vm405, %v556, %v560
        %v563 = vshrl.u32 %v354, 16
        %v565 = vshll.u32 %v354, 16
        %v567 = vrot.slane %v565, 1
        %v568 = vor.u32 %v563, %v567
        %v570 = vshll.u32 %v402, 16
        %v572 = vrot.slane %v570, 1
        %v573 = vsel %vm405, %v568, %v572
        %v575 = vshrl.u32 %v355, 16
        %v577 = vshll.u32 %v355, 16
        %v579 = vrot.slane %v577, 1
        %v580 = vor.u32 %v575, %v579
        %v582 = vshll.u32 %v403, 16
        %v584 = vrot.slane %v582, 1
        %v585 = vsel %vm405, %v580, %v584
        %v587 = vshrl.u32 %v356, 16
        %v589 = vshll.u32 %v356, 16
        %v591 = vrot.slane %v589, 1
        %v592 = vor.u32 %v587, %v591
        %v594 = vshll.u32 %v404, 16
        %v596 = vrot.slane %v594, 1
        %v597 = vsel %vm405, %v592, %v596
        %598 = vrot.lane.b32.xlu0 %v417, 4
        %v599 = vpop.permute.xlu0 %598
        %600 = vrot.lane.b32.xlu0 %v429, 4
        %v601 = vpop.permute.xlu0 %600
        %602 = vrot.lane.b32.xlu0 %v441, 4
        %v603 = vpop.permute.xlu0 %602
        %604 = vrot.lane.b32.xlu0 %v453, 4
        %v605 = vpop.permute.xlu0 %604
        %606 = vrot.lane.b32.xlu0 %v465, 4
        %v607 = vpop.permute.xlu0 %606
        %608 = vrot.lane.b32.xlu0 %v477, 4
        %v609 = vpop.permute.xlu0 %608
        %610 = vrot.lane.b32.xlu0 %v489, 4
        %v611 = vpop.permute.xlu0 %610
        %612 = vrot.lane.b32.xlu0 %v501, 4
        %v613 = vpop.permute.xlu0 %612
        %614 = vrot.lane.b32.xlu0 %v513, 4
        %v615 = vpop.permute.xlu0 %614
        %616 = vrot.lane.b32.xlu0 %v525, 4
        %v617 = vpop.permute.xlu0 %616
        %618 = vrot.lane.b32.xlu0 %v537, 4
        %v619 = vpop.permute.xlu0 %618
        %620 = vrot.lane.b32.xlu0 %v549, 4
        %v621 = vpop.permute.xlu0 %620
        %622 = vrot.lane.b32.xlu0 %v561, 4
        %v623 = vpop.permute.xlu0 %622
        %624 = vrot.lane.b32.xlu0 %v573, 4
        %v625 = vpop.permute.xlu0 %624
        %626 = vrot.lane.b32.xlu0 %v585, 4
        %v627 = vpop.permute.xlu0 %626
        %628 = vrot.lane.b32.xlu0 %v597, 4
        %v629 = vpop.permute.xlu0 %628
        %vm630 = vcmask 1046528
        %v631 = vrot.slane %v341, 1
        %v632 = vrot.slane %v389, 1
        %v633 = vsel %vm630, %v631, %v632
        %v634 = vrot.slane %v342, 1
        %v635 = vrot.slane %v390, 1
        %v636 = vsel %vm630, %v634, %v635
        %v637 = vrot.slane %v343, 1
        %v638 = vrot.slane %v391, 1
        %v639 = vsel %vm630, %v637, %v638
        %v640 = vrot.slane %v344, 1
        %v641 = vrot.slane %v392, 1
        %v642 = vsel %vm630, %v640, %v641
        %v643 = vrot.slane %v345, 1
        %v644 = vrot.slane %v393, 1
        %v645 = vsel %vm630, %v643, %v644
        %v646 = vrot.slane %v346, 1
        %v647 = vrot.slane %v394, 1
        %v648 = vsel %vm630, %v646, %v647
        %v649 = vrot.slane %v347, 1
        %v650 = vrot.slane %v395, 1
        %v651 = vsel %vm630, %v649, %v650
        %v652 = vrot.slane %v348, 1
        %v653 = vrot.slane %v396, 1
        %v654 = vsel %vm630, %v652, %v653
        %v655 = vrot.slane %v349, 1
        %v656 = vrot.slane %v397, 1
        %v657 = vsel %vm630, %v655, %v656
        %v658 = vrot.slane %v350, 1
        %v659 = vrot.slane %v398, 1
        %v660 = vsel %vm630, %v658, %v659
        %v661 = vrot.slane %v351, 1
        %v662 = vrot.slane %v399, 1
        %v663 = vsel %vm630, %v661, %v662
        %v664 = vrot.slane %v352, 1
        %v665 = vrot.slane %v400, 1
        %v666 = vsel %vm630, %v664, %v665
        %v667 = vrot.slane %v353, 1
        %v668 = vrot.slane %v401, 1
        %v669 = vsel %vm630, %v667, %v668
        %v670 = vrot.slane %v354, 1
        %v671 = vrot.slane %v402, 1
        %v672 = vsel %vm630, %v670, %v671
        %v673 = vrot.slane %v355, 1
        %v674 = vrot.slane %v403, 1
        %v675 = vsel %vm630, %v673, %v674
        %v676 = vrot.slane %v356, 1
        %v677 = vrot.slane %v404, 1
        %v678 = vsel %vm630, %v676, %v677
        %679 = vrot.lane.b32.xlu0 %v633, 8
        %v680 = vpop.permute.xlu0 %679
        %681 = vrot.lane.b32.xlu0 %v636, 8
        %v682 = vpop.permute.xlu0 %681
        %683 = vrot.lane.b32.xlu0 %v639, 8
        %v684 = vpop.permute.xlu0 %683
        %685 = vrot.lane.b32.xlu0 %v642, 8
        %v686 = vpop.permute.xlu0 %685
        %687 = vrot.lane.b32.xlu0 %v645, 8
        %v688 = vpop.permute.xlu0 %687
        %689 = vrot.lane.b32.xlu0 %v648, 8
        %v690 = vpop.permute.xlu0 %689
        %691 = vrot.lane.b32.xlu0 %v651, 8
        %v692 = vpop.permute.xlu0 %691
        %693 = vrot.lane.b32.xlu0 %v654, 8
        %v694 = vpop.permute.xlu0 %693
        %695 = vrot.lane.b32.xlu0 %v657, 8
        %v696 = vpop.permute.xlu0 %695
        %697 = vrot.lane.b32.xlu0 %v660, 8
        %v698 = vpop.permute.xlu0 %697
        %699 = vrot.lane.b32.xlu0 %v663, 8
        %v700 = vpop.permute.xlu0 %699
        %701 = vrot.lane.b32.xlu0 %v666, 8
        %v702 = vpop.permute.xlu0 %701
        %703 = vrot.lane.b32.xlu0 %v669, 8
        %v704 = vpop.permute.xlu0 %703
        %705 = vrot.lane.b32.xlu0 %v672, 8
        %v706 = vpop.permute.xlu0 %705
        %707 = vrot.lane.b32.xlu0 %v675, 8
        %v708 = vpop.permute.xlu0 %707
        %709 = vrot.lane.b32.xlu0 %v678, 8
        %v710 = vpop.permute.xlu0 %709
        %vm711 = vcmask 31744
        %v713 = vsel %vm711, %v341, %v599
        %v715 = vsel %vm711, %v342, %v601
        %v717 = vsel %vm711, %v343, %v603
        %v719 = vsel %vm711, %v344, %v605
        %v721 = vsel %vm711, %v345, %v607
        %v723 = vsel %vm711, %v346, %v609
        %v725 = vsel %vm711, %v347, %v611
        %v727 = vsel %vm711, %v348, %v613
        %v729 = vsel %vm711, %v349, %v615
        %v731 = vsel %vm711, %v350, %v617
        %v733 = vsel %vm711, %v351, %v619
        %v735 = vsel %vm711, %v352, %v621
        %v737 = vsel %vm711, %v353, %v623
        %v739 = vsel %vm711, %v354, %v625
        %v741 = vsel %vm711, %v355, %v627
        %v743 = vsel %vm711, %v356, %v629
        %vm744 = vcmask 64512
        %v746 = vsel %vm744, %v713, %v680
        %v748 = vsel %vm744, %v715, %v682
        %v750 = vsel %vm744, %v717, %v684
        %v752 = vsel %vm744, %v719, %v686
        %v754 = vsel %vm744, %v721, %v688
        %v756 = vsel %vm744, %v723, %v690
        %v758 = vsel %vm744, %v725, %v692
        %v760 = vsel %vm744, %v727, %v694
        %v762 = vsel %vm744, %v729, %v696
        %v764 = vsel %vm744, %v731, %v698
        %v766 = vsel %vm744, %v733, %v700
        %v768 = vsel %vm744, %v735, %v702
        %v770 = vsel %vm744, %v737, %v704
        %v772 = vsel %vm744, %v739, %v706
        %v774 = vsel %vm744, %v741, %v708
        %v776 = vsel %vm744, %v743, %v710
        %v777 = vld [vmem:[%s219] sm:$0xf]
        %v778 = vld [vmem:[%s219 + $0x4] sm:$0x3]
        %s779 = sadd.s32 %s225, 1
        %s780 = smul.u32 %s779, 3
        %s781 = smul.addr %s780, 4
        %s782 = scalar_lea.vmem %s215, %s781
        %v783 = vld [vmem:[%s782] sm:$0xf]
        %v784 = vld [vmem:[%s782 + $0x4] sm:$0xf]
        %v785 = vld [vmem:[%s782 + $0x8] sm:$0x1]
        %v786 = vld [vmem:[%s782 + $0xc] sm:$0xf]
        %v787 = vld [vmem:[%s782 + $0x10] sm:$0xf]
        %v788 = vld [vmem:[%s782 + $0x14] sm:$0x1]
        %v789 = vld [vmem:[%s782 + $0x18] sm:$0xf]
        %v790 = vld [vmem:[%s782 + $0x1c] sm:$0xf]
        %v791 = vld [vmem:[%s782 + $0x20] sm:$0x1]
        %v792 = vld [vmem:[%s782 + $0x24] sm:$0xf]
        %v793 = vld [vmem:[%s782 + $0x28] sm:$0xf]
        %v794 = vld [vmem:[%s782 + $0x2c] sm:$0x1]
        %v795 = vld [vmem:[%s782 + $0x30] sm:$0xf]
        %v796 = vld [vmem:[%s782 + $0x34] sm:$0xf]
        %v797 = vld [vmem:[%s782 + $0x38] sm:$0x1]
        %v798 = vld [vmem:[%s782 + $0x3c] sm:$0xf]
        %v799 = vld [vmem:[%s782 + $0x40] sm:$0xf]
        %v800 = vld [vmem:[%s782 + $0x44] sm:$0x1]
        %v801 = vld [vmem:[%s782 + $0x48] sm:$0xf]
        %v802 = vld [vmem:[%s782 + $0x4c] sm:$0xf]
        %v803 = vld [vmem:[%s782 + $0x50] sm:$0x1]
        %v804 = vld [vmem:[%s782 + $0x54] sm:$0xf]
        %v805 = vld [vmem:[%s782 + $0x58] sm:$0xf]
        %v806 = vld [vmem:[%s782 + $0x5c] sm:$0x1]
        %v807 = vld [vmem:[%s782 + $0x60] sm:$0xf]
        %v808 = vld [vmem:[%s782 + $0x64] sm:$0xf]
        %v809 = vld [vmem:[%s782 + $0x68] sm:$0x1]
        %v810 = vld [vmem:[%s782 + $0x6c] sm:$0xf]
        %v811 = vld [vmem:[%s782 + $0x70] sm:$0xf]
        %v812 = vld [vmem:[%s782 + $0x74] sm:$0x1]
        %v813 = vld [vmem:[%s782 + $0x78] sm:$0xf]
        %v814 = vld [vmem:[%s782 + $0x7c] sm:$0xf]
        %v815 = vld [vmem:[%s782 + $0x80] sm:$0x1]
        %v816 = vld [vmem:[%s782 + $0x84] sm:$0xf]
        %v817 = vld [vmem:[%s782 + $0x88] sm:$0xf]
        %v818 = vld [vmem:[%s782 + $0x8c] sm:$0x1]
        %v819 = vld [vmem:[%s782 + $0x90] sm:$0xf]
        %v820 = vld [vmem:[%s782 + $0x94] sm:$0xf]
        %v821 = vld [vmem:[%s782 + $0x98] sm:$0x1]
        %v822 = vld [vmem:[%s782 + $0x9c] sm:$0xf]
        %v823 = vld [vmem:[%s782 + $0xa0] sm:$0xf]
        %v824 = vld [vmem:[%s782 + $0xa4] sm:$0x1]
        %v825 = vld [vmem:[%s782 + $0xa8] sm:$0xf]
        %v826 = vld [vmem:[%s782 + $0xac] sm:$0xf]
        %v827 = vld [vmem:[%s782 + $0xb0] sm:$0x1]
        %v828 = vld [vmem:[%s782 + $0xb4] sm:$0xf]
        %v829 = vld [vmem:[%s782 + $0xb8] sm:$0xf]
        %v830 = vld [vmem:[%s782 + $0xbc] sm:$0x1]
        %v863 = vunpack.c.l.b16 %v783
        %v864 = vunpack.c.l.b16 %v784
        %v865 = vunpack.c.l.b16 %v786
        %v866 = vunpack.c.l.b16 %v787
        %v867 = vunpack.c.l.b16 %v789
        %v868 = vunpack.c.l.b16 %v790
        %v869 = vunpack.c.l.b16 %v792
        %v870 = vunpack.c.l.b16 %v793
        %v871 = vunpack.c.l.b16 %v795
        %v872 = vunpack.c.l.b16 %v796
        %v873 = vunpack.c.l.b16 %v798
        %v874 = vunpack.c.l.b16 %v799
        %v875 = vunpack.c.l.b16 %v801
        %v876 = vunpack.c.l.b16 %v802
        %v877 = vunpack.c.l.b16 %v804
        %v878 = vunpack.c.l.b16 %v805
        %v879 = vunpack.c.l.b16 %v807
        %v880 = vunpack.c.l.b16 %v808
        %v881 = vunpack.c.l.b16 %v810
        %v882 = vunpack.c.l.b16 %v811
        %v883 = vunpack.c.l.b16 %v813
        %v884 = vunpack.c.l.b16 %v814
        %v885 = vunpack.c.l.b16 %v816
        %v886 = vunpack.c.l.b16 %v817
        %v887 = vunpack.c.l.b16 %v819
        %v888 = vunpack.c.l.b16 %v820
        %v889 = vunpack.c.l.b16 %v822
        %v890 = vunpack.c.l.b16 %v823
        %v891 = vunpack.c.l.b16 %v825
        %v892 = vunpack.c.l.b16 %v826
        %v893 = vunpack.c.l.b16 %v828
        %v894 = vunpack.c.l.b16 %v829
        %v895 = vpack.c.b16 %v864, %v863
        %v896 = vpack.c.b16 %v866, %v865
        %v897 = vpack.c.b16 %v868, %v867
        %v898 = vpack.c.b16 %v870, %v869
        %v899 = vpack.c.b16 %v872, %v871
        %v900 = vpack.c.b16 %v874, %v873
        %v901 = vpack.c.b16 %v876, %v875
        %v902 = vpack.c.b16 %v878, %v877
        %v903 = vpack.c.b16 %v880, %v879
        %v904 = vpack.c.b16 %v882, %v881
        %v905 = vpack.c.b16 %v884, %v883
        %v906 = vpack.c.b16 %v886, %v885
        %v907 = vpack.c.b16 %v888, %v887
        %v908 = vpack.c.b16 %v890, %v889
        %v909 = vpack.c.b16 %v892, %v891
        %v910 = vpack.c.b16 %v894, %v893
        %v927 = vunpack.c.l.b16 %v785
        %v928 = vunpack.c.l.b16 %v788
        %v929 = vunpack.c.l.b16 %v791
        %v930 = vunpack.c.l.b16 %v794
        %v931 = vunpack.c.l.b16 %v797
        %v932 = vunpack.c.l.b16 %v800
        %v933 = vunpack.c.l.b16 %v803
        %v934 = vunpack.c.l.b16 %v806
        %v935 = vunpack.c.l.b16 %v809
        %v936 = vunpack.c.l.b16 %v812
        %v937 = vunpack.c.l.b16 %v815
        %v938 = vunpack.c.l.b16 %v818
        %v939 = vunpack.c.l.b16 %v821
        %v940 = vunpack.c.l.b16 %v824
        %v941 = vunpack.c.l.b16 %v827
        %v942 = vunpack.c.l.b16 %v830
        %v943 = vpack.c.b16 %v927, %v927
        %v944 = vpack.c.b16 %v928, %v928
        %v945 = vpack.c.b16 %v929, %v929
        %v946 = vpack.c.b16 %v930, %v930
        %v947 = vpack.c.b16 %v931, %v931
        %v948 = vpack.c.b16 %v932, %v932
        %v949 = vpack.c.b16 %v933, %v933
        %v950 = vpack.c.b16 %v934, %v934
        %v951 = vpack.c.b16 %v935, %v935
        %v952 = vpack.c.b16 %v936, %v936
        %v953 = vpack.c.b16 %v937, %v937
        %v954 = vpack.c.b16 %v938, %v938
        %v955 = vpack.c.b16 %v939, %v939
        %v956 = vpack.c.b16 %v940, %v940
        %v957 = vpack.c.b16 %v941, %v941
        %v958 = vpack.c.b16 %v942, %v942
        %v960 = vshrl.u32 %v895, 16
        %v962 = vshll.u32 %v895, 16
        %v964 = vrot.slane %v962, 1
        %v965 = vor.u32 %v960, %v964
        %v967 = vshll.u32 %v943, 16
        %v969 = vrot.slane %v967, 1
        %v970 = vsel %vm405, %v965, %v969
        %v972 = vshrl.u32 %v896, 16
        %v974 = vshll.u32 %v896, 16
        %v976 = vrot.slane %v974, 1
        %v977 = vor.u32 %v972, %v976
        %v979 = vshll.u32 %v944, 16
        %v981 = vrot.slane %v979, 1
        %v982 = vsel %vm405, %v977, %v981
        %v984 = vshrl.u32 %v897, 16
        %v986 = vshll.u32 %v897, 16
        %v988 = vrot.slane %v986, 1
        %v989 = vor.u32 %v984, %v988
        %v991 = vshll.u32 %v945, 16
        %v993 = vrot.slane %v991, 1
        %v994 = vsel %vm405, %v989, %v993
        %v996 = vshrl.u32 %v898, 16
        %v998 = vshll.u32 %v898, 16
        %v1000 = vrot.slane %v998, 1
        %v1001 = vor.u32 %v996, %v1000
        %v1003 = vshll.u32 %v946, 16
        %v1005 = vrot.slane %v1003, 1
        %v1006 = vsel %vm405, %v1001, %v1005
        %v1008 = vshrl.u32 %v899, 16
        %v1010 = vshll.u32 %v899, 16
        %v1012 = vrot.slane %v1010, 1
        %v1013 = vor.u32 %v1008, %v1012
        %v1015 = vshll.u32 %v947, 16
        %v1017 = vrot.slane %v1015, 1
        %v1018 = vsel %vm405, %v1013, %v1017
        %v1020 = vshrl.u32 %v900, 16
        %v1022 = vshll.u32 %v900, 16
        %v1024 = vrot.slane %v1022, 1
        %v1025 = vor.u32 %v1020, %v1024
        %v1027 = vshll.u32 %v948, 16
        %v1029 = vrot.slane %v1027, 1
        %v1030 = vsel %vm405, %v1025, %v1029
        %v1032 = vshrl.u32 %v901, 16
        %v1034 = vshll.u32 %v901, 16
        %v1036 = vrot.slane %v1034, 1
        %v1037 = vor.u32 %v1032, %v1036
        %v1039 = vshll.u32 %v949, 16
        %v1041 = vrot.slane %v1039, 1
        %v1042 = vsel %vm405, %v1037, %v1041
        %v1044 = vshrl.u32 %v902, 16
        %v1046 = vshll.u32 %v902, 16
        %v1048 = vrot.slane %v1046, 1
        %v1049 = vor.u32 %v1044, %v1048
        %v1051 = vshll.u32 %v950, 16
        %v1053 = vrot.slane %v1051, 1
        %v1054 = vsel %vm405, %v1049, %v1053
        %v1056 = vshrl.u32 %v903, 16
        %v1058 = vshll.u32 %v903, 16
        %v1060 = vrot.slane %v1058, 1
        %v1061 = vor.u32 %v1056, %v1060
        %v1063 = vshll.u32 %v951, 16
        %v1065 = vrot.slane %v1063, 1
        %v1066 = vsel %vm405, %v1061, %v1065
        %v1068 = vshrl.u32 %v904, 16
        %v1070 = vshll.u32 %v904, 16
        %v1072 = vrot.slane %v1070, 1
        %v1073 = vor.u32 %v1068, %v1072
        %v1075 = vshll.u32 %v952, 16
        %v1077 = vrot.slane %v1075, 1
        %v1078 = vsel %vm405, %v1073, %v1077
        %v1080 = vshrl.u32 %v905, 16
        %v1082 = vshll.u32 %v905, 16
        %v1084 = vrot.slane %v1082, 1
        %v1085 = vor.u32 %v1080, %v1084
        %v1087 = vshll.u32 %v953, 16
        %v1089 = vrot.slane %v1087, 1
        %v1090 = vsel %vm405, %v1085, %v1089
        %v1092 = vshrl.u32 %v906, 16
        %v1094 = vshll.u32 %v906, 16
        %v1096 = vrot.slane %v1094, 1
        %v1097 = vor.u32 %v1092, %v1096
        %v1099 = vshll.u32 %v954, 16
        %v1101 = vrot.slane %v1099, 1
        %v1102 = vsel %vm405, %v1097, %v1101
        %v1104 = vshrl.u32 %v907, 16
        %v1106 = vshll.u32 %v907, 16
        %v1108 = vrot.slane %v1106, 1
        %v1109 = vor.u32 %v1104, %v1108
        %v1111 = vshll.u32 %v955, 16
        %v1113 = vrot.slane %v1111, 1
        %v1114 = vsel %vm405, %v1109, %v1113
        %v1116 = vshrl.u32 %v908, 16
        %v1118 = vshll.u32 %v908, 16
        %v1120 = vrot.slane %v1118, 1
        %v1121 = vor.u32 %v1116, %v1120
        %v1123 = vshll.u32 %v956, 16
        %v1125 = vrot.slane %v1123, 1
        %v1126 = vsel %vm405, %v1121, %v1125
        %v1128 = vshrl.u32 %v909, 16
        %v1130 = vshll.u32 %v909, 16
        %v1132 = vrot.slane %v1130, 1
        %v1133 = vor.u32 %v1128, %v1132
        %v1135 = vshll.u32 %v957, 16
        %v1137 = vrot.slane %v1135, 1
        %v1138 = vsel %vm405, %v1133, %v1137
        %v1140 = vshrl.u32 %v910, 16
        %v1142 = vshll.u32 %v910, 16
        %v1144 = vrot.slane %v1142, 1
        %v1145 = vor.u32 %v1140, %v1144
        %v1147 = vshll.u32 %v958, 16
        %v1149 = vrot.slane %v1147, 1
        %v1150 = vsel %vm405, %v1145, %v1149
        %1151 = vrot.lane.b32.xlu0 %v970, 4
        %v1152 = vpop.permute.xlu0 %1151
        %1153 = vrot.lane.b32.xlu0 %v982, 4
        %v1154 = vpop.permute.xlu0 %1153
        %1155 = vrot.lane.b32.xlu0 %v994, 4
        %v1156 = vpop.permute.xlu0 %1155
        %1157 = vrot.lane.b32.xlu0 %v1006, 4
        %v1158 = vpop.permute.xlu0 %1157
        %1159 = vrot.lane.b32.xlu0 %v1018, 4
        %v1160 = vpop.permute.xlu0 %1159
        %1161 = vrot.lane.b32.xlu0 %v1030, 4
        %v1162 = vpop.permute.xlu0 %1161
        %1163 = vrot.lane.b32.xlu0 %v1042, 4
        %v1164 = vpop.permute.xlu0 %1163
        %1165 = vrot.lane.b32.xlu0 %v1054, 4
        %v1166 = vpop.permute.xlu0 %1165
        %1167 = vrot.lane.b32.xlu0 %v1066, 4
        %v1168 = vpop.permute.xlu0 %1167
        %1169 = vrot.lane.b32.xlu0 %v1078, 4
        %v1170 = vpop.permute.xlu0 %1169
        %1171 = vrot.lane.b32.xlu0 %v1090, 4
        %v1172 = vpop.permute.xlu0 %1171
        %1173 = vrot.lane.b32.xlu0 %v1102, 4
        %v1174 = vpop.permute.xlu0 %1173
        %1175 = vrot.lane.b32.xlu0 %v1114, 4
        %v1176 = vpop.permute.xlu0 %1175
        %1177 = vrot.lane.b32.xlu0 %v1126, 4
        %v1178 = vpop.permute.xlu0 %1177
        %1179 = vrot.lane.b32.xlu0 %v1138, 4
        %v1180 = vpop.permute.xlu0 %1179
        %1181 = vrot.lane.b32.xlu0 %v1150, 4
        %v1182 = vpop.permute.xlu0 %1181
        %v1183 = vrot.slane %v895, 1
        %v1184 = vrot.slane %v943, 1
        %v1185 = vsel %vm630, %v1183, %v1184
        %v1186 = vrot.slane %v896, 1
        %v1187 = vrot.slane %v944, 1
        %v1188 = vsel %vm630, %v1186, %v1187
        %v1189 = vrot.slane %v897, 1
        %v1190 = vrot.slane %v945, 1
        %v1191 = vsel %vm630, %v1189, %v1190
        %v1192 = vrot.slane %v898, 1
        %v1193 = vrot.slane %v946, 1
        %v1194 = vsel %vm630, %v1192, %v1193
        %v1195 = vrot.slane %v899, 1
        %v1196 = vrot.slane %v947, 1
        %v1197 = vsel %vm630, %v1195, %v1196
        %v1198 = vrot.slane %v900, 1
        %v1199 = vrot.slane %v948, 1
        %v1200 = vsel %vm630, %v1198, %v1199
        %v1201 = vrot.slane %v901, 1
        %v1202 = vrot.slane %v949, 1
        %v1203 = vsel %vm630, %v1201, %v1202
        %v1204 = vrot.slane %v902, 1
        %v1205 = vrot.slane %v950, 1
        %v1206 = vsel %vm630, %v1204, %v1205
        %v1207 = vrot.slane %v903, 1
        %v1208 = vrot.slane %v951, 1
        %v1209 = vsel %vm630, %v1207, %v1208
        %v1210 = vrot.slane %v904, 1
        %v1211 = vrot.slane %v952, 1
        %v1212 = vsel %vm630, %v1210, %v1211
        %v1213 = vrot.slane %v905, 1
        %v1214 = vrot.slane %v953, 1
        %v1215 = vsel %vm630, %v1213, %v1214
        %v1216 = vrot.slane %v906, 1
        %v1217 = vrot.slane %v954, 1
        %v1218 = vsel %vm630, %v1216, %v1217
        %v1219 = vrot.slane %v907, 1
        %v1220 = vrot.slane %v955, 1
        %v1221 = vsel %vm630, %v1219, %v1220
        %v1222 = vrot.slane %v908, 1
        %v1223 = vrot.slane %v956, 1
        %v1224 = vsel %vm630, %v1222, %v1223
        %v1225 = vrot.slane %v909, 1
        %v1226 = vrot.slane %v957, 1
        %v1227 = vsel %vm630, %v1225, %v1226
        %v1228 = vrot.slane %v910, 1
        %v1229 = vrot.slane %v958, 1
        %v1230 = vsel %vm630, %v1228, %v1229
        %1231 = vrot.lane.b32.xlu0 %v1185, 8
        %v1232 = vpop.permute.xlu0 %1231
        %1233 = vrot.lane.b32.xlu0 %v1188, 8
        %v1234 = vpop.permute.xlu0 %1233
        %1235 = vrot.lane.b32.xlu0 %v1191, 8
        %v1236 = vpop.permute.xlu0 %1235
        %1237 = vrot.lane.b32.xlu0 %v1194, 8
        %v1238 = vpop.permute.xlu0 %1237
        %1239 = vrot.lane.b32.xlu0 %v1197, 8
        %v1240 = vpop.permute.xlu0 %1239
        %1241 = vrot.lane.b32.xlu0 %v1200, 8
        %v1242 = vpop.permute.xlu0 %1241
        %1243 = vrot.lane.b32.xlu0 %v1203, 8
        %v1244 = vpop.permute.xlu0 %1243
        %1245 = vrot.lane.b32.xlu0 %v1206, 8
        %v1246 = vpop.permute.xlu0 %1245
        %1247 = vrot.lane.b32.xlu0 %v1209, 8
        %v1248 = vpop.permute.xlu0 %1247
        %1249 = vrot.lane.b32.xlu0 %v1212, 8
        %v1250 = vpop.permute.xlu0 %1249
        %1251 = vrot.lane.b32.xlu0 %v1215, 8
        %v1252 = vpop.permute.xlu0 %1251
        %1253 = vrot.lane.b32.xlu0 %v1218, 8
        %v1254 = vpop.permute.xlu0 %1253
        %1255 = vrot.lane.b32.xlu0 %v1221, 8
        %v1256 = vpop.permute.xlu0 %1255
        %1257 = vrot.lane.b32.xlu0 %v1224, 8
        %v1258 = vpop.permute.xlu0 %1257
        %1259 = vrot.lane.b32.xlu0 %v1227, 8
        %v1260 = vpop.permute.xlu0 %1259
        %1261 = vrot.lane.b32.xlu0 %v1230, 8
        %v1262 = vpop.permute.xlu0 %1261
        %v1264 = vsel %vm711, %v895, %v1152
        %v1266 = vsel %vm711, %v896, %v1154
        %v1268 = vsel %vm711, %v897, %v1156
        %v1270 = vsel %vm711, %v898, %v1158
        %v1272 = vsel %vm711, %v899, %v1160
        %v1274 = vsel %vm711, %v900, %v1162
        %v1276 = vsel %vm711, %v901, %v1164
        %v1278 = vsel %vm711, %v902, %v1166
        %v1280 = vsel %vm711, %v903, %v1168
        %v1282 = vsel %vm711, %v904, %v1170
        %v1284 = vsel %vm711, %v905, %v1172
        %v1286 = vsel %vm711, %v906, %v1174
        %v1288 = vsel %vm711, %v907, %v1176
        %v1290 = vsel %vm711, %v908, %v1178
        %v1292 = vsel %vm711, %v909, %v1180
        %v1294 = vsel %vm711, %v910, %v1182
        %v1296 = vsel %vm744, %v1264, %v1232
        %v1298 = vsel %vm744, %v1266, %v1234
        %v1300 = vsel %vm744, %v1268, %v1236
        %v1302 = vsel %vm744, %v1270, %v1238
        %v1304 = vsel %vm744, %v1272, %v1240
        %v1306 = vsel %vm744, %v1274, %v1242
        %v1308 = vsel %vm744, %v1276, %v1244
        %v1310 = vsel %vm744, %v1278, %v1246
        %v1312 = vsel %vm744, %v1280, %v1248
        %v1314 = vsel %vm744, %v1282, %v1250
        %v1316 = vsel %vm744, %v1284, %v1252
        %v1318 = vsel %vm744, %v1286, %v1254
        %v1320 = vsel %vm744, %v1288, %v1256
        %v1322 = vsel %vm744, %v1290, %v1258
        %v1324 = vsel %vm744, %v1292, %v1260
        %v1326 = vsel %vm744, %v1294, %v1262
        %s1327 = scalar_lea.vmem %s219, 8
        %v1328 = vld [vmem:[%s1327] sm:$0xf]
        %v1329 = vld [vmem:[%s1327 + $0x4] sm:$0x3]
        %v1332 = vunpack.c.l.b16 %v1328
        %v1333 = vunpack.c.l.b16 %v1329
        %v1334 = vpack.c.b16 %v1333, %v1332
        %vm1335 = vcmask 97280
        %v1336 = vsel %vm1335, %v1296, 0
        %v1338 = vsel %vm1335, %v1298, 0
        %v1340 = vsel %vm1335, %v1300, 0
        %v1342 = vsel %vm1335, %v1302, 0
        %v1344 = vsel %vm1335, %v1304, 0
        %v1346 = vsel %vm1335, %v1306, 0
        %v1348 = vsel %vm1335, %v1308, 0
        %v1350 = vsel %vm1335, %v1310, 0
        %v1352 = vsel %vm1335, %v1312, 0
        %v1354 = vsel %vm1335, %v1314, 0
        %v1356 = vsel %vm1335, %v1316, 0
        %v1358 = vsel %vm1335, %v1318, 0
        %v1360 = vsel %vm1335, %v1320, 0
        %v1362 = vsel %vm1335, %v1322, 0
        %v1364 = vsel %vm1335, %v1324, 0
        %v1366 = vsel %vm1335, %v1326, 0
        %vm1368 = vcmask 1045504
        %v1370 = vsel %vm1368, %v1334, 0
        %1372 = vmatprep.subr.bf16.mxu0 0
        %1373 = vmatpush1.bf16.msra.mxu0 %v1370
        %1374 = vmatprep.subr.bf16.mxu0 0
        %1375 = vmatpush1.bf16.msra.mxu0 0
        %1376 = vmatprep.subr.bf16.mxu0 0
        %1377 = vmatpush1.bf16.msra.mxu0 0
        %1378 = vmatprep.subr.bf16.mxu0 0
        %1379 = vmatpush1.bf16.msra.mxu0 0
        %1380 = vmatprep.subr.bf16.mxu0 0
        %1381 = vmatpush1.bf16.msra.mxu0 0
        %1382 = vmatprep.subr.bf16.mxu0 0
        %1383 = vmatpush1.bf16.msra.mxu0 0
        %1384 = vmatprep.subr.bf16.mxu0 0
        %1385 = vmatpush1.bf16.msra.mxu0 0
        %1386 = vmatprep.subr.bf16.mxu0 0
        %1387 = vmatpush1.bf16.msra.mxu0 0
        %1388 = vmatprep.subr.bf16.mxu0 0
        %1389 = vmatpush1.bf16.msra.mxu0 0
        %1390 = vmatprep.subr.bf16.mxu0 0
        %1391 = vmatpush1.bf16.msra.mxu0 0
        %1392 = vmatprep.subr.bf16.mxu0 0
        %1393 = vmatpush1.bf16.msra.mxu0 0
        %1394 = vmatprep.subr.bf16.mxu0 0
        %1395 = vmatpush1.bf16.msra.mxu0 0
        %1396 = vmatprep.subr.bf16.mxu0 0
        %1397 = vmatpush1.bf16.msra.mxu0 0
        %1398 = vmatprep.subr.bf16.mxu0 0
        %1399 = vmatpush1.bf16.msra.mxu0 0
        %1400 = vmatprep.subr.bf16.mxu0 0
        %1401 = vmatpush1.bf16.msra.mxu0 0
        %1402 = vmatprep.subr.bf16.mxu0 0
        %1403 = vmatpush1.bf16.msra.mxu0 0
        %1404 = vmatprep.mubr.bf16.mxu0 0
        %1405 = vmatmul.mubr.bf16.gmra.mrb[0].mxu0 %v1336
        %v1406 = vpop.f32.mrb[0].mxu0
        %v1407 = vadd.f32 0.0, %v1406
        %v1408 = vpop.f32.mrb[0].mxu0
        %v1409 = vpop.f32.mrb[0].mxu0
        %v1410 = vadd.f32 0.0, %v1409
        %v1411 = vpop.f32.mrb[0].mxu0
        %1412 = vmatprep.mubr.bf16.mxu0 0
        %1413 = vmatmul.mubr.bf16.gmra.mrb[0].mxu0 %v1338
        %v1414 = vpop.f32.mrb[0].mxu0
        %v1415 = vadd.f32 0.0, %v1414
        %v1416 = vpop.f32.mrb[0].mxu0
        %v1417 = vpop.f32.mrb[0].mxu0
        %v1418 = vadd.f32 0.0, %v1417
        %v1419 = vpop.f32.mrb[0].mxu0
        %1420 = vmatprep.mubr.bf16.mxu0 0
        %1421 = vmatmul.mubr.bf16.gmra.mrb[0].mxu0 %v1340
        %v1422 = vpop.f32.mrb[0].mxu0
        %v1423 = vadd.f32 0.0, %v1422
        %v1424 = vpop.f32.mrb[0].mxu0
        %v1425 = vpop.f32.mrb[0].mxu0
        %v1426 = vadd.f32 0.0, %v1425
        %v1427 = vpop.f32.mrb[0].mxu0
        %1428 = vmatprep.mubr.bf16.mxu0 0
        %1429 = vmatmul.mubr.bf16.gmra.mrb[0].mxu0 %v1342
        %v1430 = vpop.f32.mrb[0].mxu0
        %v1431 = vadd.f32 0.0, %v1430
        %v1432 = vpop.f32.mrb[0].mxu0
        %v1433 = vpop.f32.mrb[0].mxu0
        %v1434 = vadd.f32 0.0, %v1433
        %v1435 = vpop.f32.mrb[0].mxu0
        %1436 = vmatprep.mubr.bf16.mxu0 0
        %1437 = vmatmul.mubr.bf16.gmra.mrb[0].mxu0 %v1344
        %v1438 = vpop.f32.mrb[0].mxu0
        %v1439 = vadd.f32 0.0, %v1438
        %v1440 = vpop.f32.mrb[0].mxu0
        %v1441 = vpop.f32.mrb[0].mxu0
        %v1442 = vadd.f32 0.0, %v1441
        %v1443 = vpop.f32.mrb[0].mxu0
        %1444 = vmatprep.mubr.bf16.mxu0 0
        %1445 = vmatmul.mubr.bf16.gmra.mrb[0].mxu0 %v1346
        %v1446 = vpop.f32.mrb[0].mxu0
        %v1447 = vadd.f32 0.0, %v1446
        %v1448 = vpop.f32.mrb[0].mxu0
        %v1449 = vpop.f32.mrb[0].mxu0
        %v1450 = vadd.f32 0.0, %v1449
        %v1451 = vpop.f32.mrb[0].mxu0
        %1452 = vmatprep.mubr.bf16.mxu0 0
        %1453 = vmatmul.mubr.bf16.gmra.mrb[0].mxu0 %v1348
        %v1454 = vpop.f32.mrb[0].mxu0
        %v1455 = vadd.f32 0.0, %v1454
        %v1456 = vpop.f32.mrb[0].mxu0
        %v1457 = vpop.f32.mrb[0].mxu0
        %v1458 = vadd.f32 0.0, %v1457
        %v1459 = vpop.f32.mrb[0].mxu0
        %1460 = vmatprep.mubr.bf16.mxu0 0
        %1461 = vmatmul.mubr.bf16.gmra.mrb[0].mxu0 %v1350
        %v1462 = vpop.f32.mrb[0].mxu0
        %v1463 = vadd.f32 0.0, %v1462
        %v1464 = vpop.f32.mrb[0].mxu0
        %v1465 = vpop.f32.mrb[0].mxu0
        %v1466 = vadd.f32 0.0, %v1465
        %v1467 = vpop.f32.mrb[0].mxu0
        %1468 = vmatprep.mubr.bf16.mxu0 0
        %1469 = vmatmul.mubr.bf16.gmra.mrb[0].mxu0 %v1352
        %v1470 = vpop.f32.mrb[0].mxu0
        %v1471 = vadd.f32 0.0, %v1470
        %v1472 = vpop.f32.mrb[0].mxu0
        %v1473 = vpop.f32.mrb[0].mxu0
        %v1474 = vadd.f32 0.0, %v1473
        %v1475 = vpop.f32.mrb[0].mxu0
        %1476 = vmatprep.mubr.bf16.mxu0 0
        %1477 = vmatmul.mubr.bf16.gmra.mrb[0].mxu0 %v1354
        %v1478 = vpop.f32.mrb[0].mxu0
        %v1479 = vadd.f32 0.0, %v1478
        %v1480 = vpop.f32.mrb[0].mxu0
        %v1481 = vpop.f32.mrb[0].mxu0
        %v1482 = vadd.f32 0.0, %v1481
        %v1483 = vpop.f32.mrb[0].mxu0
        %1484 = vmatprep.mubr.bf16.mxu0 0
        %1485 = vmatmul.mubr.bf16.gmra.mrb[0].mxu0 %v1356
        %v1486 = vpop.f32.mrb[0].mxu0
        %v1487 = vadd.f32 0.0, %v1486
        %v1488 = vpop.f32.mrb[0].mxu0
        %v1489 = vpop.f32.mrb[0].mxu0
        %v1490 = vadd.f32 0.0, %v1489
        %v1491 = vpop.f32.mrb[0].mxu0
        %1492 = vmatprep.mubr.bf16.mxu0 0
        %1493 = vmatmul.mubr.bf16.gmra.mrb[0].mxu0 %v1358
        %v1494 = vpop.f32.mrb[0].mxu0
        %v1495 = vadd.f32 0.0, %v1494
        %v1496 = vpop.f32.mrb[0].mxu0
        %v1497 = vpop.f32.mrb[0].mxu0
        %v1498 = vadd.f32 0.0, %v1497
        %v1499 = vpop.f32.mrb[0].mxu0
        %1500 = vmatprep.mubr.bf16.mxu0 0
        %1501 = vmatmul.mubr.bf16.gmra.mrb[0].mxu0 %v1360
        %v1502 = vpop.f32.mrb[0].mxu0
        %v1503 = vadd.f32 0.0, %v1502
        %v1504 = vpop.f32.mrb[0].mxu0
        %v1505 = vpop.f32.mrb[0].mxu0
        %v1506 = vadd.f32 0.0, %v1505
        %v1507 = vpop.f32.mrb[0].mxu0
        %1508 = vmatprep.mubr.bf16.mxu0 0
        %1509 = vmatmul.mubr.bf16.gmra.mrb[0].mxu0 %v1362
        %v1510 = vpop.f32.mrb[0].mxu0
        %v1511 = vadd.f32 0.0, %v1510
        %v1512 = vpop.f32.mrb[0].mxu0
        %v1513 = vpop.f32.mrb[0].mxu0
        %v1514 = vadd.f32 0.0, %v1513
        %v1515 = vpop.f32.mrb[0].mxu0
        %1516 = vmatprep.mubr.bf16.mxu0 0
        %1517 = vmatmul.mubr.bf16.gmra.mrb[0].mxu0 %v1364
        %v1518 = vpop.f32.mrb[0].mxu0
        %v1519 = vadd.f32 0.0, %v1518
        %v1520 = vpop.f32.mrb[0].mxu0
        %v1521 = vpop.f32.mrb[0].mxu0
        %v1522 = vadd.f32 0.0, %v1521
        %v1523 = vpop.f32.mrb[0].mxu0
        %1524 = vmatprep.mubr.bf16.mxu0 0
        %1525 = vmatmul.mubr.bf16.gmra.mrb[0].mxu0 %v1366
        %v1526 = vpop.f32.mrb[0].mxu0
        %v1527 = vadd.f32 0.0, %v1526
        %v1528 = vpop.f32.mrb[0].mxu0
        %v1529 = vpop.f32.mrb[0].mxu0
        %v1530 = vadd.f32 0.0, %v1529
        %v1531 = vpop.f32.mrb[0].mxu0
        %1532 = vdwg.mxu0
        %v1535 = vunpack.c.l.b16 %v777
        %v1536 = vunpack.c.l.b16 %v778
        %v1537 = vpack.c.b16 %v1536, %v1535
        %v1538 = vsel %vm1335, %v746, 0
        %v1540 = vsel %vm1335, %v748, 0
        %v1542 = vsel %vm1335, %v750, 0
        %v1544 = vsel %vm1335, %v752, 0
        %v1546 = vsel %vm1335, %v754, 0
        %v1548 = vsel %vm1335, %v756, 0
        %v1550 = vsel %vm1335, %v758, 0
        %v1552 = vsel %vm1335, %v760, 0
        %v1554 = vsel %vm1335, %v762, 0
        %v1556 = vsel %vm1335, %v764, 0
        %v1558 = vsel %vm1335, %v766, 0
        %v1560 = vsel %vm1335, %v768, 0
        %v1562 = vsel %vm1335, %v770, 0
        %v1564 = vsel %vm1335, %v772, 0
        %v1566 = vsel %vm1335, %v774, 0
        %v1568 = vsel %vm1335, %v776, 0
        %v1571 = vsel %vm1368, %v1537, 0
        %1573 = vmatprep.subr.bf16.mxu0 0
        %1574 = vmatpush1.bf16.msra.mxu0 %v1571
        %1575 = vmatprep.subr.bf16.mxu0 0
        %1576 = vmatpush1.bf16.msra.mxu0 0
        %1577 = vmatprep.subr.bf16.mxu0 0
        %1578 = vmatpush1.bf16.msra.mxu0 0
        %1579 = vmatprep.subr.bf16.mxu0 0
        %1580 = vmatpush1.bf16.msra.mxu0 0
        %1581 = vmatprep.subr.bf16.mxu0 0
        %1582 = vmatpush1.bf16.msra.mxu0 0
        %1583 = vmatprep.subr.bf16.mxu0 0
        %1584 = vmatpush1.bf16.msra.mxu0 0
        %1585 = vmatprep.subr.bf16.mxu0 0
        %1586 = vmatpush1.bf16.msra.mxu0 0
        %1587 = vmatprep.subr.bf16.mxu0 0
        %1588 = vmatpush1.bf16.msra.mxu0 0
        %1589 = vmatprep.subr.bf16.mxu0 0
        %1590 = vmatpush1.bf16.msra.mxu0 0
        %1591 = vmatprep.subr.bf16.mxu0 0
        %1592 = vmatpush1.bf16.msra.mxu0 0
        %1593 = vmatprep.subr.bf16.mxu0 0
        %1594 = vmatpush1.bf16.msra.mxu0 0
        %1595 = vmatprep.subr.bf16.mxu0 0
        %1596 = vmatpush1.bf16.msra.mxu0 0
        %1597 = vmatprep.subr.bf16.mxu0 0
        %1598 = vmatpush1.bf16.msra.mxu0 0
        %1599 = vmatprep.subr.bf16.mxu0 0
        %1600 = vmatpush1.bf16.msra.mxu0 0
        %1601 = vmatprep.subr.bf16.mxu0 0
        %1602 = vmatpush1.bf16.msra.mxu0 0
        %1603 = vmatprep.subr.bf16.mxu0 0
        %1604 = vmatpush1.bf16.msra.mxu0 0
        %1605 = vmatprep.mubr.bf16.mxu0 0
        %1606 = vmatmul.mubr.bf16.gmra.mrb[0].mxu0 %v1538
        %v1607 = vpop.f32.mrb[0].mxu0
        %v1608 = vadd.f32 %v1407, %v1607
        %v1609 = vpop.f32.mrb[0].mxu0
        %v1610 = vpop.f32.mrb[0].mxu0
        %v1611 = vadd.f32 %v1410, %v1610
        %v1612 = vpop.f32.mrb[0].mxu0
        %1613 = vmatprep.mubr.bf16.mxu0 0
        %1614 = vmatmul.mubr.bf16.gmra.mrb[0].mxu0 %v1540
        %v1615 = vpop.f32.mrb[0].mxu0
        %v1616 = vadd.f32 %v1415, %v1615
        %v1617 = vpop.f32.mrb[0].mxu0
        %v1618 = vpop.f32.mrb[0].mxu0
        %v1619 = vadd.f32 %v1418, %v1618
        %v1620 = vpop.f32.mrb[0].mxu0
        %1621 = vmatprep.mubr.bf16.mxu0 0
        %1622 = vmatmul.mubr.bf16.gmra.mrb[0].mxu0 %v1542
        %v1623 = vpop.f32.mrb[0].mxu0
        %v1624 = vadd.f32 %v1423, %v1623
        %v1625 = vpop.f32.mrb[0].mxu0
        %v1626 = vpop.f32.mrb[0].mxu0
        %v1627 = vadd.f32 %v1426, %v1626
        %v1628 = vpop.f32.mrb[0].mxu0
        %1629 = vmatprep.mubr.bf16.mxu0 0
        %1630 = vmatmul.mubr.bf16.gmra.mrb[0].mxu0 %v1544
        %v1631 = vpop.f32.mrb[0].mxu0
        %v1632 = vadd.f32 %v1431, %v1631
        %v1633 = vpop.f32.mrb[0].mxu0
        %v1634 = vpop.f32.mrb[0].mxu0
        %v1635 = vadd.f32 %v1434, %v1634
        %v1636 = vpop.f32.mrb[0].mxu0
        %1637 = vmatprep.mubr.bf16.mxu0 0
        %1638 = vmatmul.mubr.bf16.gmra.mrb[0].mxu0 %v1546
        %v1639 = vpop.f32.mrb[0].mxu0
        %v1640 = vadd.f32 %v1439, %v1639
        %v1641 = vpop.f32.mrb[0].mxu0
        %v1642 = vpop.f32.mrb[0].mxu0
        %v1643 = vadd.f32 %v1442, %v1642
        %v1644 = vpop.f32.mrb[0].mxu0
        %1645 = vmatprep.mubr.bf16.mxu0 0
        %1646 = vmatmul.mubr.bf16.gmra.mrb[0].mxu0 %v1548
        %v1647 = vpop.f32.mrb[0].mxu0
        %v1648 = vadd.f32 %v1447, %v1647
        %v1649 = vpop.f32.mrb[0].mxu0
        %v1650 = vpop.f32.mrb[0].mxu0
        %v1651 = vadd.f32 %v1450, %v1650
        %v1652 = vpop.f32.mrb[0].mxu0
        %1653 = vmatprep.mubr.bf16.mxu0 0
        %1654 = vmatmul.mubr.bf16.gmra.mrb[0].mxu0 %v1550
        %v1655 = vpop.f32.mrb[0].mxu0
        %v1656 = vadd.f32 %v1455, %v1655
        %v1657 = vpop.f32.mrb[0].mxu0
        %v1658 = vpop.f32.mrb[0].mxu0
        %v1659 = vadd.f32 %v1458, %v1658
        %v1660 = vpop.f32.mrb[0].mxu0
        %1661 = vmatprep.mubr.bf16.mxu0 0
        %1662 = vmatmul.mubr.bf16.gmra.mrb[0].mxu0 %v1552
        %v1663 = vpop.f32.mrb[0].mxu0
        %v1664 = vadd.f32 %v1463, %v1663
        %v1665 = vpop.f32.mrb[0].mxu0
        %v1666 = vpop.f32.mrb[0].mxu0
        %v1667 = vadd.f32 %v1466, %v1666
        %v1668 = vpop.f32.mrb[0].mxu0
        %1669 = vmatprep.mubr.bf16.mxu0 0
        %1670 = vmatmul.mubr.bf16.gmra.mrb[0].mxu0 %v1554
        %v1671 = vpop.f32.mrb[0].mxu0
        %v1672 = vadd.f32 %v1471, %v1671
        %v1673 = vpop.f32.mrb[0].mxu0
        %v1674 = vpop.f32.mrb[0].mxu0
        %v1675 = vadd.f32 %v1474, %v1674
        %v1676 = vpop.f32.mrb[0].mxu0
        %1677 = vmatprep.mubr.bf16.mxu0 0
        %1678 = vmatmul.mubr.bf16.gmra.mrb[0].mxu0 %v1556
        %v1679 = vpop.f32.mrb[0].mxu0
        %v1680 = vadd.f32 %v1479, %v1679
        %v1681 = vpop.f32.mrb[0].mxu0
        %v1682 = vpop.f32.mrb[0].mxu0
        %v1683 = vadd.f32 %v1482, %v1682
        %v1684 = vpop.f32.mrb[0].mxu0
        %1685 = vmatprep.mubr.bf16.mxu0 0
        %1686 = vmatmul.mubr.bf16.gmra.mrb[0].mxu0 %v1558
        %v1687 = vpop.f32.mrb[0].mxu0
        %v1688 = vadd.f32 %v1487, %v1687
        %v1689 = vpop.f32.mrb[0].mxu0
        %v1690 = vpop.f32.mrb[0].mxu0
        %v1691 = vadd.f32 %v1490, %v1690
        %v1692 = vpop.f32.mrb[0].mxu0
        %1693 = vmatprep.mubr.bf16.mxu0 0
        %1694 = vmatmul.mubr.bf16.gmra.mrb[0].mxu0 %v1560
        %v1695 = vpop.f32.mrb[0].mxu0
        %v1696 = vadd.f32 %v1495, %v1695
        %v1697 = vpop.f32.mrb[0].mxu0
        %v1698 = vpop.f32.mrb[0].mxu0
        %v1699 = vadd.f32 %v1498, %v1698
        %v1700 = vpop.f32.mrb[0].mxu0
        %1701 = vmatprep.mubr.bf16.mxu0 0
        %1702 = vmatmul.mubr.bf16.gmra.mrb[0].mxu0 %v1562
        %v1703 = vpop.f32.mrb[0].mxu0
        %v1704 = vadd.f32 %v1503, %v1703
        %v1705 = vpop.f32.mrb[0].mxu0
        %v1706 = vpop.f32.mrb[0].mxu0
        %v1707 = vadd.f32 %v1506, %v1706
        %v1708 = vpop.f32.mrb[0].mxu0
        %1709 = vmatprep.mubr.bf16.mxu0 0
        %1710 = vmatmul.mubr.bf16.gmra.mrb[0].mxu0 %v1564
        %v1711 = vpop.f32.mrb[0].mxu0
        %v1712 = vadd.f32 %v1511, %v1711
        %v1713 = vpop.f32.mrb[0].mxu0
        %v1714 = vpop.f32.mrb[0].mxu0
        %v1715 = vadd.f32 %v1514, %v1714
        %v1716 = vpop.f32.mrb[0].mxu0
        %1717 = vmatprep.mubr.bf16.mxu0 0
        %1718 = vmatmul.mubr.bf16.gmra.mrb[0].mxu0 %v1566
        %v1719 = vpop.f32.mrb[0].mxu0
        %v1720 = vadd.f32 %v1519, %v1719
        %v1721 = vpop.f32.mrb[0].mxu0
        %v1722 = vpop.f32.mrb[0].mxu0
        %v1723 = vadd.f32 %v1522, %v1722
        %v1724 = vpop.f32.mrb[0].mxu0
        %1725 = vmatprep.mubr.bf16.mxu0 0
        %1726 = vmatmul.mubr.bf16.gmra.mrb[0].mxu0 %v1568
        %v1727 = vpop.f32.mrb[0].mxu0
        %v1728 = vadd.f32 %v1527, %v1727
        %v1729 = vpop.f32.mrb[0].mxu0
        %v1730 = vpop.f32.mrb[0].mxu0
        %v1731 = vadd.f32 %v1530, %v1730
        %v1732 = vpop.f32.mrb[0].mxu0
        %1733 = vdwg.mxu0
        %s1734 = sadd.s32 %s225, 2
        %s1735 = smul.u32 %s1734, 3
        %s1736 = smul.addr %s1735, 4
        %s1737 = scalar_lea.vmem %s215, %s1736
        %v1738 = vld [vmem:[%s1737] sm:$0xf]
        %v1739 = vld [vmem:[%s1737 + $0x4] sm:$0xf]
        %v1740 = vld [vmem:[%s1737 + $0x8] sm:$0x1]
        %v1741 = vld [vmem:[%s1737 + $0xc] sm:$0xf]
        %v1742 = vld [vmem:[%s1737 + $0x10] sm:$0xf]
        %v1743 = vld [vmem:[%s1737 + $0x14] sm:$0x1]
        %v1744 = vld [vmem:[%s1737 + $0x18] sm:$0xf]
        %v1745 = vld [vmem:[%s1737 + $0x1c] sm:$0xf]
        %v1746 = vld [vmem:[%s1737 + $0x20] sm:$0x1]
        %v1747 = vld [vmem:[%s1737 + $0x24] sm:$0xf]
        %v1748 = vld [vmem:[%s1737 + $0x28] sm:$0xf]
        %v1749 = vld [vmem:[%s1737 + $0x2c] sm:$0x1]
        %v1750 = vld [vmem:[%s1737 + $0x30] sm:$0xf]
        %v1751 = vld [vmem:[%s1737 + $0x34] sm:$0xf]
        %v1752 = vld [vmem:[%s1737 + $0x38] sm:$0x1]
        %v1753 = vld [vmem:[%s1737 + $0x3c] sm:$0xf]
        %v1754 = vld [vmem:[%s1737 + $0x40] sm:$0xf]
        %v1755 = vld [vmem:[%s1737 + $0x44] sm:$0x1]
        %v1756 = vld [vmem:[%s1737 + $0x48] sm:$0xf]
        %v1757 = vld [vmem:[%s1737 + $0x4c] sm:$0xf]
        %v1758 = vld [vmem:[%s1737 + $0x50] sm:$0x1]
        %v1759 = vld [vmem:[%s1737 + $0x54] sm:$0xf]
        %v1760 = vld [vmem:[%s1737 + $0x58] sm:$0xf]
        %v1761 = vld [vmem:[%s1737 + $0x5c] sm:$0x1]
        %v1762 = vld [vmem:[%s1737 + $0x60] sm:$0xf]
        %v1763 = vld [vmem:[%s1737 + $0x64] sm:$0xf]
        %v1764 = vld [vmem:[%s1737 + $0x68] sm:$0x1]
        %v1765 = vld [vmem:[%s1737 + $0x6c] sm:$0xf]
        %v1766 = vld [vmem:[%s1737 + $0x70] sm:$0xf]
        %v1767 = vld [vmem:[%s1737 + $0x74] sm:$0x1]
        %v1768 = vld [vmem:[%s1737 + $0x78] sm:$0xf]
        %v1769 = vld [vmem:[%s1737 + $0x7c] sm:$0xf]
        %v1770 = vld [vmem:[%s1737 + $0x80] sm:$0x1]
        %v1771 = vld [vmem:[%s1737 + $0x84] sm:$0xf]
        %v1772 = vld [vmem:[%s1737 + $0x88] sm:$0xf]
        %v1773 = vld [vmem:[%s1737 + $0x8c] sm:$0x1]
        %v1774 = vld [vmem:[%s1737 + $0x90] sm:$0xf]
        %v1775 = vld [vmem:[%s1737 + $0x94] sm:$0xf]
        %v1776 = vld [vmem:[%s1737 + $0x98] sm:$0x1]
        %v1777 = vld [vmem:[%s1737 + $0x9c] sm:$0xf]
        %v1778 = vld [vmem:[%s1737 + $0xa0] sm:$0xf]
        %v1779 = vld [vmem:[%s1737 + $0xa4] sm:$0x1]
        %v1780 = vld [vmem:[%s1737 + $0xa8] sm:$0xf]
        %v1781 = vld [vmem:[%s1737 + $0xac] sm:$0xf]
        %v1782 = vld [vmem:[%s1737 + $0xb0] sm:$0x1]
        %v1783 = vld [vmem:[%s1737 + $0xb4] sm:$0xf]
        %v1784 = vld [vmem:[%s1737 + $0xb8] sm:$0xf]
        %v1785 = vld [vmem:[%s1737 + $0xbc] sm:$0x1]
        %v1818 = vunpack.c.l.b16 %v1738
        %v1819 = vunpack.c.l.b16 %v1739
        %v1820 = vunpack.c.l.b16 %v1741
        %v1821 = vunpack.c.l.b16 %v1742
        %v1822 = vunpack.c.l.b16 %v1744
        %v1823 = vunpack.c.l.b16 %v1745
        %v1824 = vunpack.c.l.b16 %v1747
        %v1825 = vunpack.c.l.b16 %v1748
        %v1826 = vunpack.c.l.b16 %v1750
        %v1827 = vunpack.c.l.b16 %v1751
        %v1828 = vunpack.c.l.b16 %v1753
        %v1829 = vunpack.c.l.b16 %v1754
        %v1830 = vunpack.c.l.b16 %v1756
        %v1831 = vunpack.c.l.b16 %v1757
        %v1832 = vunpack.c.l.b16 %v1759
        %v1833 = vunpack.c.l.b16 %v1760
        %v1834 = vunpack.c.l.b16 %v1762
        %v1835 = vunpack.c.l.b16 %v1763
        %v1836 = vunpack.c.l.b16 %v1765
        %v1837 = vunpack.c.l.b16 %v1766
        %v1838 = vunpack.c.l.b16 %v1768
        %v1839 = vunpack.c.l.b16 %v1769
        %v1840 = vunpack.c.l.b16 %v1771
        %v1841 = vunpack.c.l.b16 %v1772
        %v1842 = vunpack.c.l.b16 %v1774
        %v1843 = vunpack.c.l.b16 %v1775
        %v1844 = vunpack.c.l.b16 %v1777
        %v1845 = vunpack.c.l.b16 %v1778
        %v1846 = vunpack.c.l.b16 %v1780
        %v1847 = vunpack.c.l.b16 %v1781
        %v1848 = vunpack.c.l.b16 %v1783
        %v1849 = vunpack.c.l.b16 %v1784
        %v1850 = vpack.c.b16 %v1819, %v1818
        %v1851 = vpack.c.b16 %v1821, %v1820
        %v1852 = vpack.c.b16 %v1823, %v1822
        %v1853 = vpack.c.b16 %v1825, %v1824
        %v1854 = vpack.c.b16 %v1827, %v1826
        %v1855 = vpack.c.b16 %v1829, %v1828
        %v1856 = vpack.c.b16 %v1831, %v1830
        %v1857 = vpack.c.b16 %v1833, %v1832
        %v1858 = vpack.c.b16 %v1835, %v1834
        %v1859 = vpack.c.b16 %v1837, %v1836
        %v1860 = vpack.c.b16 %v1839, %v1838
        %v1861 = vpack.c.b16 %v1841, %v1840
        %v1862 = vpack.c.b16 %v1843, %v1842
        %v1863 = vpack.c.b16 %v1845, %v1844
        %v1864 = vpack.c.b16 %v1847, %v1846
        %v1865 = vpack.c.b16 %v1849, %v1848
        %v1882 = vunpack.c.l.b16 %v1740
        %v1883 = vunpack.c.l.b16 %v1743
        %v1884 = vunpack.c.l.b16 %v1746
        %v1885 = vunpack.c.l.b16 %v1749
        %v1886 = vunpack.c.l.b16 %v1752
        %v1887 = vunpack.c.l.b16 %v1755
        %v1888 = vunpack.c.l.b16 %v1758
        %v1889 = vunpack.c.l.b16 %v1761
        %v1890 = vunpack.c.l.b16 %v1764
        %v1891 = vunpack.c.l.b16 %v1767
        %v1892 = vunpack.c.l.b16 %v1770
        %v1893 = vunpack.c.l.b16 %v1773
        %v1894 = vunpack.c.l.b16 %v1776
        %v1895 = vunpack.c.l.b16 %v1779
        %v1896 = vunpack.c.l.b16 %v1782
        %v1897 = vunpack.c.l.b16 %v1785
        %v1898 = vpack.c.b16 %v1882, %v1882
        %v1899 = vpack.c.b16 %v1883, %v1883
        %v1900 = vpack.c.b16 %v1884, %v1884
        %v1901 = vpack.c.b16 %v1885, %v1885
        %v1902 = vpack.c.b16 %v1886, %v1886
        %v1903 = vpack.c.b16 %v1887, %v1887
        %v1904 = vpack.c.b16 %v1888, %v1888
        %v1905 = vpack.c.b16 %v1889, %v1889
        %v1906 = vpack.c.b16 %v1890, %v1890
        %v1907 = vpack.c.b16 %v1891, %v1891
        %v1908 = vpack.c.b16 %v1892, %v1892
        %v1909 = vpack.c.b16 %v1893, %v1893
        %v1910 = vpack.c.b16 %v1894, %v1894
        %v1911 = vpack.c.b16 %v1895, %v1895
        %v1912 = vpack.c.b16 %v1896, %v1896
        %v1913 = vpack.c.b16 %v1897, %v1897
        %v1915 = vshrl.u32 %v1850, 16
        %v1917 = vshll.u32 %v1850, 16
        %v1919 = vrot.slane %v1917, 1
        %v1920 = vor.u32 %v1915, %v1919
        %v1922 = vshll.u32 %v1898, 16
        %v1924 = vrot.slane %v1922, 1
        %v1925 = vsel %vm405, %v1920, %v1924
        %v1927 = vshrl.u32 %v1851, 16
        %v1929 = vshll.u32 %v1851, 16
        %v1931 = vrot.slane %v1929, 1
        %v1932 = vor.u32 %v1927, %v1931
        %v1934 = vshll.u32 %v1899, 16
        %v1936 = vrot.slane %v1934, 1
        %v1937 = vsel %vm405, %v1932, %v1936
        %v1939 = vshrl.u32 %v1852, 16
        %v1941 = vshll.u32 %v1852, 16
        %v1943 = vrot.slane %v1941, 1
        %v1944 = vor.u32 %v1939, %v1943
        %v1946 = vshll.u32 %v1900, 16
        %v1948 = vrot.slane %v1946, 1
        %v1949 = vsel %vm405, %v1944, %v1948
        %v1951 = vshrl.u32 %v1853, 16
        %v1953 = vshll.u32 %v1853, 16
        %v1955 = vrot.slane %v1953, 1
        %v1956 = vor.u32 %v1951, %v1955
        %v1958 = vshll.u32 %v1901, 16
        %v1960 = vrot.slane %v1958, 1
        %v1961 = vsel %vm405, %v1956, %v1960
        %v1963 = vshrl.u32 %v1854, 16
        %v1965 = vshll.u32 %v1854, 16
        %v1967 = vrot.slane %v1965, 1
        %v1968 = vor.u32 %v1963, %v1967
        %v1970 = vshll.u32 %v1902, 16
        %v1972 = vrot.slane %v1970, 1
        %v1973 = vsel %vm405, %v1968, %v1972
        %v1975 = vshrl.u32 %v1855, 16
        %v1977 = vshll.u32 %v1855, 16
        %v1979 = vrot.slane %v1977, 1
        %v1980 = vor.u32 %v1975, %v1979
        %v1982 = vshll.u32 %v1903, 16
        %v1984 = vrot.slane %v1982, 1
        %v1985 = vsel %vm405, %v1980, %v1984
        %v1987 = vshrl.u32 %v1856, 16
        %v1989 = vshll.u32 %v1856, 16
        %v1991 = vrot.slane %v1989, 1
        %v1992 = vor.u32 %v1987, %v1991
        %v1994 = vshll.u32 %v1904, 16
        %v1996 = vrot.slane %v1994, 1
        %v1997 = vsel %vm405, %v1992, %v1996
        %v1999 = vshrl.u32 %v1857, 16
        %v2001 = vshll.u32 %v1857, 16
        %v2003 = vrot.slane %v2001, 1
        %v2004 = vor.u32 %v1999, %v2003
        %v2006 = vshll.u32 %v1905, 16
        %v2008 = vrot.slane %v2006, 1
        %v2009 = vsel %vm405, %v2004, %v2008
        %v2011 = vshrl.u32 %v1858, 16
        %v2013 = vshll.u32 %v1858, 16
        %v2015 = vrot.slane %v2013, 1
        %v2016 = vor.u32 %v2011, %v2015
        %v2018 = vshll.u32 %v1906, 16
        %v2020 = vrot.slane %v2018, 1
        %v2021 = vsel %vm405, %v2016, %v2020
        %v2023 = vshrl.u32 %v1859, 16
        %v2025 = vshll.u32 %v1859, 16
        %v2027 = vrot.slane %v2025, 1
        %v2028 = vor.u32 %v2023, %v2027
        %v2030 = vshll.u32 %v1907, 16
        %v2032 = vrot.slane %v2030, 1
        %v2033 = vsel %vm405, %v2028, %v2032
        %v2035 = vshrl.u32 %v1860, 16
        %v2037 = vshll.u32 %v1860, 16
        %v2039 = vrot.slane %v2037, 1
        %v2040 = vor.u32 %v2035, %v2039
        %v2042 = vshll.u32 %v1908, 16
        %v2044 = vrot.slane %v2042, 1
        %v2045 = vsel %vm405, %v2040, %v2044
        %v2047 = vshrl.u32 %v1861, 16
        %v2049 = vshll.u32 %v1861, 16
        %v2051 = vrot.slane %v2049, 1
        %v2052 = vor.u32 %v2047, %v2051
        %v2054 = vshll.u32 %v1909, 16
        %v2056 = vrot.slane %v2054, 1
        %v2057 = vsel %vm405, %v2052, %v2056
        %v2059 = vshrl.u32 %v1862, 16
        %v2061 = vshll.u32 %v1862, 16
        %v2063 = vrot.slane %v2061, 1
        %v2064 = vor.u32 %v2059, %v2063
        %v2066 = vshll.u32 %v1910, 16
        %v2068 = vrot.slane %v2066, 1
        %v2069 = vsel %vm405, %v2064, %v2068
        %v2071 = vshrl.u32 %v1863, 16
        %v2073 = vshll.u32 %v1863, 16
        %v2075 = vrot.slane %v2073, 1
        %v2076 = vor.u32 %v2071, %v2075
        %v2078 = vshll.u32 %v1911, 16
        %v2080 = vrot.slane %v2078, 1
        %v2081 = vsel %vm405, %v2076, %v2080
        %v2083 = vshrl.u32 %v1864, 16
        %v2085 = vshll.u32 %v1864, 16
        %v2087 = vrot.slane %v2085, 1
        %v2088 = vor.u32 %v2083, %v2087
        %v2090 = vshll.u32 %v1912, 16
        %v2092 = vrot.slane %v2090, 1
        %v2093 = vsel %vm405, %v2088, %v2092
        %v2095 = vshrl.u32 %v1865, 16
        %v2097 = vshll.u32 %v1865, 16
        %v2099 = vrot.slane %v2097, 1
        %v2100 = vor.u32 %v2095, %v2099
        %v2102 = vshll.u32 %v1913, 16
        %v2104 = vrot.slane %v2102, 1
        %v2105 = vsel %vm405, %v2100, %v2104
        %2106 = vrot.lane.b32.xlu0 %v1925, 4
        %v2107 = vpop.permute.xlu0 %2106
        %2108 = vrot.lane.b32.xlu0 %v1937, 4
        %v2109 = vpop.permute.xlu0 %2108
        %2110 = vrot.lane.b32.xlu0 %v1949, 4
        %v2111 = vpop.permute.xlu0 %2110
        %2112 = vrot.lane.b32.xlu0 %v1961, 4
        %v2113 = vpop.permute.xlu0 %2112
        %2114 = vrot.lane.b32.xlu0 %v1973, 4
        %v2115 = vpop.permute.xlu0 %2114
        %2116 = vrot.lane.b32.xlu0 %v1985, 4
        %v2117 = vpop.permute.xlu0 %2116
        %2118 = vrot.lane.b32.xlu0 %v1997, 4
        %v2119 = vpop.permute.xlu0 %2118
        %2120 = vrot.lane.b32.xlu0 %v2009, 4
        %v2121 = vpop.permute.xlu0 %2120
        %2122 = vrot.lane.b32.xlu0 %v2021, 4
        %v2123 = vpop.permute.xlu0 %2122
        %2124 = vrot.lane.b32.xlu0 %v2033, 4
        %v2125 = vpop.permute.xlu0 %2124
        %2126 = vrot.lane.b32.xlu0 %v2045, 4
        %v2127 = vpop.permute.xlu0 %2126
        %2128 = vrot.lane.b32.xlu0 %v2057, 4
        %v2129 = vpop.permute.xlu0 %2128
        %2130 = vrot.lane.b32.xlu0 %v2069, 4
        %v2131 = vpop.permute.xlu0 %2130
        %2132 = vrot.lane.b32.xlu0 %v2081, 4
        %v2133 = vpop.permute.xlu0 %2132
        %2134 = vrot.lane.b32.xlu0 %v2093, 4
        %v2135 = vpop.permute.xlu0 %2134
        %2136 = vrot.lane.b32.xlu0 %v2105, 4
        %v2137 = vpop.permute.xlu0 %2136
        %v2138 = vrot.slane %v1850, 1
        %v2139 = vrot.slane %v1898, 1
        %v2140 = vsel %vm630, %v2138, %v2139
        %v2141 = vrot.slane %v1851, 1
        %v2142 = vrot.slane %v1899, 1
        %v2143 = vsel %vm630, %v2141, %v2142
        %v2144 = vrot.slane %v1852, 1
        %v2145 = vrot.slane %v1900, 1
        %v2146 = vsel %vm630, %v2144, %v2145
        %v2147 = vrot.slane %v1853, 1
        %v2148 = vrot.slane %v1901, 1
        %v2149 = vsel %vm630, %v2147, %v2148
        %v2150 = vrot.slane %v1854, 1
        %v2151 = vrot.slane %v1902, 1
        %v2152 = vsel %vm630, %v2150, %v2151
        %v2153 = vrot.slane %v1855, 1
        %v2154 = vrot.slane %v1903, 1
        %v2155 = vsel %vm630, %v2153, %v2154
        %v2156 = vrot.slane %v1856, 1
        %v2157 = vrot.slane %v1904, 1
        %v2158 = vsel %vm630, %v2156, %v2157
        %v2159 = vrot.slane %v1857, 1
        %v2160 = vrot.slane %v1905, 1
        %v2161 = vsel %vm630, %v2159, %v2160
        %v2162 = vrot.slane %v1858, 1
        %v2163 = vrot.slane %v1906, 1
        %v2164 = vsel %vm630, %v2162, %v2163
        %v2165 = vrot.slane %v1859, 1
        %v2166 = vrot.slane %v1907, 1
        %v2167 = vsel %vm630, %v2165, %v2166
        %v2168 = vrot.slane %v1860, 1
        %v2169 = vrot.slane %v1908, 1
        %v2170 = vsel %vm630, %v2168, %v2169
        %v2171 = vrot.slane %v1861, 1
        %v2172 = vrot.slane %v1909, 1
        %v2173 = vsel %vm630, %v2171, %v2172
        %v2174 = vrot.slane %v1862, 1
        %v2175 = vrot.slane %v1910, 1
        %v2176 = vsel %vm630, %v2174, %v2175
        %v2177 = vrot.slane %v1863, 1
        %v2178 = vrot.slane %v1911, 1
        %v2179 = vsel %vm630, %v2177, %v2178
        %v2180 = vrot.slane %v1864, 1
        %v2181 = vrot.slane %v1912, 1
        %v2182 = vsel %vm630, %v2180, %v2181
        %v2183 = vrot.slane %v1865, 1
        %v2184 = vrot.slane %v1913, 1
        %v2185 = vsel %vm630, %v2183, %v2184
        %2186 = vrot.lane.b32.xlu0 %v2140, 8
        %v2187 = vpop.permute.xlu0 %2186
        %2188 = vrot.lane.b32.xlu0 %v2143, 8
        %v2189 = vpop.permute.xlu0 %2188
        %2190 = vrot.lane.b32.xlu0 %v2146, 8
        %v2191 = vpop.permute.xlu0 %2190
        %2192 = vrot.lane.b32.xlu0 %v2149, 8
        %v2193 = vpop.permute.xlu0 %2192
        %2194 = vrot.lane.b32.xlu0 %v2152, 8
        %v2195 = vpop.permute.xlu0 %2194
        %2196 = vrot.lane.b32.xlu0 %v2155, 8
        %v2197 = vpop.permute.xlu0 %2196
        %2198 = vrot.lane.b32.xlu0 %v2158, 8
        %v2199 = vpop.permute.xlu0 %2198
        %2200 = vrot.lane.b32.xlu0 %v2161, 8
        %v2201 = vpop.permute.xlu0 %2200
        %2202 = vrot.lane.b32.xlu0 %v2164, 8
        %v2203 = vpop.permute.xlu0 %2202
        %2204 = vrot.lane.b32.xlu0 %v2167, 8
        %v2205 = vpop.permute.xlu0 %2204
        %2206 = vrot.lane.b32.xlu0 %v2170, 8
        %v2207 = vpop.permute.xlu0 %2206
        %2208 = vrot.lane.b32.xlu0 %v2173, 8
        %v2209 = vpop.permute.xlu0 %2208
        %2210 = vrot.lane.b32.xlu0 %v2176, 8
        %v2211 = vpop.permute.xlu0 %2210
        %2212 = vrot.lane.b32.xlu0 %v2179, 8
        %v2213 = vpop.permute.xlu0 %2212
        %2214 = vrot.lane.b32.xlu0 %v2182, 8
        %v2215 = vpop.permute.xlu0 %2214
        %2216 = vrot.lane.b32.xlu0 %v2185, 8
        %v2217 = vpop.permute.xlu0 %2216
        %v2219 = vsel %vm711, %v1850, %v2107
        %v2221 = vsel %vm711, %v1851, %v2109
        %v2223 = vsel %vm711, %v1852, %v2111
        %v2225 = vsel %vm711, %v1853, %v2113
        %v2227 = vsel %vm711, %v1854, %v2115
        %v2229 = vsel %vm711, %v1855, %v2117
        %v2231 = vsel %vm711, %v1856, %v2119
        %v2233 = vsel %vm711, %v1857, %v2121
        %v2235 = vsel %vm711, %v1858, %v2123
        %v2237 = vsel %vm711, %v1859, %v2125
        %v2239 = vsel %vm711, %v1860, %v2127
        %v2241 = vsel %vm711, %v1861, %v2129
        %v2243 = vsel %vm711, %v1862, %v2131
        %v2245 = vsel %vm711, %v1863, %v2133
        %v2247 = vsel %vm711, %v1864, %v2135
        %v2249 = vsel %vm711, %v1865, %v2137
        %v2251 = vsel %vm744, %v2219, %v2187
        %v2253 = vsel %vm744, %v2221, %v2189
        %v2255 = vsel %vm744, %v2223, %v2191
        %v2257 = vsel %vm744, %v2225, %v2193
        %v2259 = vsel %vm744, %v2227, %v2195
        %v2261 = vsel %vm744, %v2229, %v2197
        %v2263 = vsel %vm744, %v2231, %v2199
        %v2265 = vsel %vm744, %v2233, %v2201
        %v2267 = vsel %vm744, %v2235, %v2203
        %v2269 = vsel %vm744, %v2237, %v2205
        %v2271 = vsel %vm744, %v2239, %v2207
        %v2273 = vsel %vm744, %v2241, %v2209
        %v2275 = vsel %vm744, %v2243, %v2211
        %v2277 = vsel %vm744, %v2245, %v2213
        %v2279 = vsel %vm744, %v2247, %v2215
        %v2281 = vsel %vm744, %v2249, %v2217
        %s2282 = scalar_lea.vmem %s219, 16
        %v2283 = vld [vmem:[%s2282] sm:$0xf]
        %v2284 = vld [vmem:[%s2282 + $0x4] sm:$0x3]
        %v2287 = vunpack.c.l.b16 %v2283
        %v2288 = vunpack.c.l.b16 %v2284
        %v2289 = vpack.c.b16 %v2288, %v2287
        %v2290 = vsel %vm1335, %v2251, 0
        %v2292 = vsel %vm1335, %v2253, 0
        %v2294 = vsel %vm1335, %v2255, 0
        %v2296 = vsel %vm1335, %v2257, 0
        %v2298 = vsel %vm1335, %v2259, 0
        %v2300 = vsel %vm1335, %v2261, 0
        %v2302 = vsel %vm1335, %v2263, 0
        %v2304 = vsel %vm1335, %v2265, 0
        %v2306 = vsel %vm1335, %v2267, 0
        %v2308 = vsel %vm1335, %v2269, 0
        %v2310 = vsel %vm1335, %v2271, 0
        %v2312 = vsel %vm1335, %v2273, 0
        %v2314 = vsel %vm1335, %v2275, 0
        %v2316 = vsel %vm1335, %v2277, 0
        %v2318 = vsel %vm1335, %v2279, 0
        %v2320 = vsel %vm1335, %v2281, 0
        %v2323 = vsel %vm1368, %v2289, 0
        %2325 = vmatprep.subr.bf16.mxu0 0
        %2326 = vmatpush1.bf16.msra.mxu0 %v2323
        %2327 = vmatprep.subr.bf16.mxu0 0
        %2328 = vmatpush1.bf16.msra.mxu0 0
        %2329 = vmatprep.subr.bf16.mxu0 0
        %2330 = vmatpush1.bf16.msra.mxu0 0
        %2331 = vmatprep.subr.bf16.mxu0 0
        %2332 = vmatpush1.bf16.msra.mxu0 0
        %2333 = vmatprep.subr.bf16.mxu0 0
        %2334 = vmatpush1.bf16.msra.mxu0 0
        %2335 = vmatprep.subr.bf16.mxu0 0
        %2336 = vmatpush1.bf16.msra.mxu0 0
        %2337 = vmatprep.subr.bf16.mxu0 0
        %2338 = vmatpush1.bf16.msra.mxu0 0
        %2339 = vmatprep.subr.bf16.mxu0 0
        %2340 = vmatpush1.bf16.msra.mxu0 0
        %2341 = vmatprep.subr.bf16.mxu0 0
        %2342 = vmatpush1.bf16.msra.mxu0 0
        %2343 = vmatprep.subr.bf16.mxu0 0
        %2344 = vmatpush1.bf16.msra.mxu0 0
        %2345 = vmatprep.subr.bf16.mxu0 0
        %2346 = vmatpush1.bf16.msra.mxu0 0
        %2347 = vmatprep.subr.bf16.mxu0 0
        %2348 = vmatpush1.bf16.msra.mxu0 0
        %2349 = vmatprep.subr.bf16.mxu0 0
        %2350 = vmatpush1.bf16.msra.mxu0 0
        %2351 = vmatprep.subr.bf16.mxu0 0
        %2352 = vmatpush1.bf16.msra.mxu0 0
        %2353 = vmatprep.subr.bf16.mxu0 0
        %2354 = vmatpush1.bf16.msra.mxu0 0
        %2355 = vmatprep.subr.bf16.mxu0 0
        %2356 = vmatpush1.bf16.msra.mxu0 0
        %2357 = vmatprep.mubr.bf16.mxu0 0
        %2358 = vmatmul.mubr.bf16.gmra.mrb[0].mxu0 %v2290
        %v2359 = vpop.f32.mrb[0].mxu0
        %v2360 = vadd.f32 0.0, %v2359
        %v2361 = vpop.f32.mrb[0].mxu0
        %v2362 = vpop.f32.mrb[0].mxu0
        %v2363 = vadd.f32 0.0, %v2362
        %v2364 = vpop.f32.mrb[0].mxu0
        %2365 = vmatprep.mubr.bf16.mxu0 0
        %2366 = vmatmul.mubr.bf16.gmra.mrb[0].mxu0 %v2292
        %v2367 = vpop.f32.mrb[0].mxu0
        %v2368 = vadd.f32 0.0, %v2367
        %v2369 = vpop.f32.mrb[0].mxu0
        %v2370 = vpop.f32.mrb[0].mxu0
        %v2371 = vadd.f32 0.0, %v2370
        %v2372 = vpop.f32.mrb[0].mxu0
        %2373 = vmatprep.mubr.bf16.mxu0 0
        %2374 = vmatmul.mubr.bf16.gmra.mrb[0].mxu0 %v2294
        %v2375 = vpop.f32.mrb[0].mxu0
        %v2376 = vadd.f32 0.0, %v2375
        %v2377 = vpop.f32.mrb[0].mxu0
        %v2378 = vpop.f32.mrb[0].mxu0
        %v2379 = vadd.f32 0.0, %v2378
        %v2380 = vpop.f32.mrb[0].mxu0
        %2381 = vmatprep.mubr.bf16.mxu0 0
        %2382 = vmatmul.mubr.bf16.gmra.mrb[0].mxu0 %v2296
        %v2383 = vpop.f32.mrb[0].mxu0
        %v2384 = vadd.f32 0.0, %v2383
        %v2385 = vpop.f32.mrb[0].mxu0
        %v2386 = vpop.f32.mrb[0].mxu0
        %v2387 = vadd.f32 0.0, %v2386
        %v2388 = vpop.f32.mrb[0].mxu0
        %2389 = vmatprep.mubr.bf16.mxu0 0
        %2390 = vmatmul.mubr.bf16.gmra.mrb[0].mxu0 %v2298
        %v2391 = vpop.f32.mrb[0].mxu0
        %v2392 = vadd.f32 0.0, %v2391
        %v2393 = vpop.f32.mrb[0].mxu0
        %v2394 = vpop.f32.mrb[0].mxu0
        %v2395 = vadd.f32 0.0, %v2394
        %v2396 = vpop.f32.mrb[0].mxu0
        %2397 = vmatprep.mubr.bf16.mxu0 0
        %2398 = vmatmul.mubr.bf16.gmra.mrb[0].mxu0 %v2300
        %v2399 = vpop.f32.mrb[0].mxu0
        %v2400 = vadd.f32 0.0, %v2399
        %v2401 = vpop.f32.mrb[0].mxu0
        %v2402 = vpop.f32.mrb[0].mxu0
        %v2403 = vadd.f32 0.0, %v2402
        %v2404 = vpop.f32.mrb[0].mxu0
        %2405 = vmatprep.mubr.bf16.mxu0 0
        %2406 = vmatmul.mubr.bf16.gmra.mrb[0].mxu0 %v2302
        %v2407 = vpop.f32.mrb[0].mxu0
        %v2408 = vadd.f32 0.0, %v2407
        %v2409 = vpop.f32.mrb[0].mxu0
        %v2410 = vpop.f32.mrb[0].mxu0
        %v2411 = vadd.f32 0.0, %v2410
        %v2412 = vpop.f32.mrb[0].mxu0
        %2413 = vmatprep.mubr.bf16.mxu0 0
        %2414 = vmatmul.mubr.bf16.gmra.mrb[0].mxu0 %v2304
        %v2415 = vpop.f32.mrb[0].mxu0
        %v2416 = vadd.f32 0.0, %v2415
        %v2417 = vpop.f32.mrb[0].mxu0
        %v2418 = vpop.f32.mrb[0].mxu0
        %v2419 = vadd.f32 0.0, %v2418
        %v2420 = vpop.f32.mrb[0].mxu0
        %2421 = vmatprep.mubr.bf16.mxu0 0
        %2422 = vmatmul.mubr.bf16.gmra.mrb[0].mxu0 %v2306
        %v2423 = vpop.f32.mrb[0].mxu0
        %v2424 = vadd.f32 0.0, %v2423
        %v2425 = vpop.f32.mrb[0].mxu0
        %v2426 = vpop.f32.mrb[0].mxu0
        %v2427 = vadd.f32 0.0, %v2426
        %v2428 = vpop.f32.mrb[0].mxu0
        %2429 = vmatprep.mubr.bf16.mxu0 0
        %2430 = vmatmul.mubr.bf16.gmra.mrb[0].mxu0 %v2308
        %v2431 = vpop.f32.mrb[0].mxu0
        %v2432 = vadd.f32 0.0, %v2431
        %v2433 = vpop.f32.mrb[0].mxu0
        %v2434 = vpop.f32.mrb[0].mxu0
        %v2435 = vadd.f32 0.0, %v2434
        %v2436 = vpop.f32.mrb[0].mxu0
        %2437 = vmatprep.mubr.bf16.mxu0 0
        %2438 = vmatmul.mubr.bf16.gmra.mrb[0].mxu0 %v2310
        %v2439 = vpop.f32.mrb[0].mxu0
        %v2440 = vadd.f32 0.0, %v2439
        %v2441 = vpop.f32.mrb[0].mxu0
        %v2442 = vpop.f32.mrb[0].mxu0
        %v2443 = vadd.f32 0.0, %v2442
        %v2444 = vpop.f32.mrb[0].mxu0
        %2445 = vmatprep.mubr.bf16.mxu0 0
        %2446 = vmatmul.mubr.bf16.gmra.mrb[0].mxu0 %v2312
        %v2447 = vpop.f32.mrb[0].mxu0
        %v2448 = vadd.f32 0.0, %v2447
        %v2449 = vpop.f32.mrb[0].mxu0
        %v2450 = vpop.f32.mrb[0].mxu0
        %v2451 = vadd.f32 0.0, %v2450
        %v2452 = vpop.f32.mrb[0].mxu0
        %2453 = vmatprep.mubr.bf16.mxu0 0
        %2454 = vmatmul.mubr.bf16.gmra.mrb[0].mxu0 %v2314
        %v2455 = vpop.f32.mrb[0].mxu0
        %v2456 = vadd.f32 0.0, %v2455
        %v2457 = vpop.f32.mrb[0].mxu0
        %v2458 = vpop.f32.mrb[0].mxu0
        %v2459 = vadd.f32 0.0, %v2458
        %v2460 = vpop.f32.mrb[0].mxu0
        %2461 = vmatprep.mubr.bf16.mxu0 0
        %2462 = vmatmul.mubr.bf16.gmra.mrb[0].mxu0 %v2316
        %v2463 = vpop.f32.mrb[0].mxu0
        %v2464 = vadd.f32 0.0, %v2463
        %v2465 = vpop.f32.mrb[0].mxu0
        %v2466 = vpop.f32.mrb[0].mxu0
        %v2467 = vadd.f32 0.0, %v2466
        %v2468 = vpop.f32.mrb[0].mxu0
        %2469 = vmatprep.mubr.bf16.mxu0 0
        %2470 = vmatmul.mubr.bf16.gmra.mrb[0].mxu0 %v2318
        %v2471 = vpop.f32.mrb[0].mxu0
        %v2472 = vadd.f32 0.0, %v2471
        %v2473 = vpop.f32.mrb[0].mxu0
        %v2474 = vpop.f32.mrb[0].mxu0
        %v2475 = vadd.f32 0.0, %v2474
        %v2476 = vpop.f32.mrb[0].mxu0
        %2477 = vmatprep.mubr.bf16.mxu0 0
        %2478 = vmatmul.mubr.bf16.gmra.mrb[0].mxu0 %v2320
        %v2479 = vpop.f32.mrb[0].mxu0
        %v2480 = vadd.f32 0.0, %v2479
        %v2481 = vpop.f32.mrb[0].mxu0
        %v2482 = vpop.f32.mrb[0].mxu0
        %v2483 = vadd.f32 0.0, %v2482
        %v2484 = vpop.f32.mrb[0].mxu0
        %2485 = vdwg.mxu0
        %v2486 = vadd.f32 %v1608, %v2360
        %v2487 = vadd.f32 %v1611, %v2363
        %v2488 = vadd.f32 %v1616, %v2368
        %v2489 = vadd.f32 %v1619, %v2371
        %v2490 = vadd.f32 %v1624, %v2376
        %v2491 = vadd.f32 %v1627, %v2379
        %v2492 = vadd.f32 %v1632, %v2384
        %v2493 = vadd.f32 %v1635, %v2387
        %v2494 = vadd.f32 %v1640, %v2392
        %v2495 = vadd.f32 %v1643, %v2395
        %v2496 = vadd.f32 %v1648, %v2400
        %v2497 = vadd.f32 %v1651, %v2403
        %v2498 = vadd.f32 %v1656, %v2408
        %v2499 = vadd.f32 %v1659, %v2411
        %v2500 = vadd.f32 %v1664, %v2416
        %v2501 = vadd.f32 %v1667, %v2419
        %v2502 = vadd.f32 %v1672, %v2424
        %v2503 = vadd.f32 %v1675, %v2427
        %v2504 = vadd.f32 %v1680, %v2432
        %v2505 = vadd.f32 %v1683, %v2435
        %v2506 = vadd.f32 %v1688, %v2440
        %v2507 = vadd.f32 %v1691, %v2443
        %v2508 = vadd.f32 %v1696, %v2448
        %v2509 = vadd.f32 %v1699, %v2451
        %v2510 = vadd.f32 %v1704, %v2456
        %v2511 = vadd.f32 %v1707, %v2459
        %v2512 = vadd.f32 %v1712, %v2464
        %v2513 = vadd.f32 %v1715, %v2467
        %v2514 = vadd.f32 %v1720, %v2472
        %v2515 = vadd.f32 %v1723, %v2475
        %v2516 = vadd.f32 %v1728, %v2480
        %v2517 = vadd.f32 %v1731, %v2483
        %v2518 = vld [vmem:[%s222] sm:$0x1]
        %v2520 = vlaneseq
        %v2521 = vshrl.u32 %v2520, 7
        %v2522 = vsub.s32 0, %v2521
        %v2523 = vrot.slane %v2518, %v2522
        %v2525 = vadd.f32 %v2486, %v2523
        %v2526 = vadd.f32 %v2487, %v2523
        %v2527 = vadd.f32 %v2488, %v2523
        %v2528 = vadd.f32 %v2489, %v2523
        %v2529 = vadd.f32 %v2490, %v2523
        %v2530 = vadd.f32 %v2491, %v2523
        %v2531 = vadd.f32 %v2492, %v2523
        %v2532 = vadd.f32 %v2493, %v2523
        %v2533 = vadd.f32 %v2494, %v2523
        %v2534 = vadd.f32 %v2495, %v2523
        %v2535 = vadd.f32 %v2496, %v2523
        %v2536 = vadd.f32 %v2497, %v2523
        %v2537 = vadd.f32 %v2498, %v2523
        %v2538 = vadd.f32 %v2499, %v2523
        %v2539 = vadd.f32 %v2500, %v2523
        %v2540 = vadd.f32 %v2501, %v2523
        %v2541 = vadd.f32 %v2502, %v2523
        %v2542 = vadd.f32 %v2503, %v2523
        %v2543 = vadd.f32 %v2504, %v2523
        %v2544 = vadd.f32 %v2505, %v2523
        %v2545 = vadd.f32 %v2506, %v2523
        %v2546 = vadd.f32 %v2507, %v2523
        %v2547 = vadd.f32 %v2508, %v2523
        %v2548 = vadd.f32 %v2509, %v2523
        %v2549 = vadd.f32 %v2510, %v2523
        %v2550 = vadd.f32 %v2511, %v2523
        %v2551 = vadd.f32 %v2512, %v2523
        %v2552 = vadd.f32 %v2513, %v2523
        %v2553 = vadd.f32 %v2514, %v2523
        %v2554 = vadd.f32 %v2515, %v2523
        %v2555 = vadd.f32 %v2516, %v2523
        %v2556 = vadd.f32 %v2517, %v2523
        %v2557 = vmax.f32 %v2525, 0.0
        %v2558 = vmax.f32 %v2526, 0.0
        %v2559 = vmax.f32 %v2527, 0.0
        %v2560 = vmax.f32 %v2528, 0.0
        %v2561 = vmax.f32 %v2529, 0.0
        %v2562 = vmax.f32 %v2530, 0.0
        %v2563 = vmax.f32 %v2531, 0.0
        %v2564 = vmax.f32 %v2532, 0.0
        %v2565 = vmax.f32 %v2533, 0.0
        %v2566 = vmax.f32 %v2534, 0.0
        %v2567 = vmax.f32 %v2535, 0.0
        %v2568 = vmax.f32 %v2536, 0.0
        %v2569 = vmax.f32 %v2537, 0.0
        %v2570 = vmax.f32 %v2538, 0.0
        %v2571 = vmax.f32 %v2539, 0.0
        %v2572 = vmax.f32 %v2540, 0.0
        %v2573 = vmax.f32 %v2541, 0.0
        %v2574 = vmax.f32 %v2542, 0.0
        %v2575 = vmax.f32 %v2543, 0.0
        %v2576 = vmax.f32 %v2544, 0.0
        %v2577 = vmax.f32 %v2545, 0.0
        %v2578 = vmax.f32 %v2546, 0.0
        %v2579 = vmax.f32 %v2547, 0.0
        %v2580 = vmax.f32 %v2548, 0.0
        %v2581 = vmax.f32 %v2549, 0.0
        %v2582 = vmax.f32 %v2550, 0.0
        %v2583 = vmax.f32 %v2551, 0.0
        %v2584 = vmax.f32 %v2552, 0.0
        %v2585 = vmax.f32 %v2553, 0.0
        %v2586 = vmax.f32 %v2554, 0.0
        %v2587 = vmax.f32 %v2555, 0.0
        %v2588 = vmax.f32 %v2556, 0.0
        %2589 = vst [vmem:[%s210] sm:$0xff] %v2557
        %2590 = vst [vmem:[%s210 + $0x8] sm:$0xff] %v2558
        %2591 = vst [vmem:[%s210 + $0x10] sm:$0xff] %v2559
        %2592 = vst [vmem:[%s210 + $0x18] sm:$0xff] %v2560
        %2593 = vst [vmem:[%s210 + $0x20] sm:$0xff] %v2561
        %2594 = vst [vmem:[%s210 + $0x28] sm:$0xff] %v2562
        %2595 = vst [vmem:[%s210 + $0x30] sm:$0xff] %v2563
        %2596 = vst [vmem:[%s210 + $0x38] sm:$0xff] %v2564
        %2597 = vst [vmem:[%s210 + $0x40] sm:$0xff] %v2565
        %2598 = vst [vmem:[%s210 + $0x48] sm:$0xff] %v2566
        %2599 = vst [vmem:[%s210 + $0x50] sm:$0xff] %v2567
        %2600 = vst [vmem:[%s210 + $0x58] sm:$0xff] %v2568
        %2601 = vst [vmem:[%s210 + $0x60] sm:$0xff] %v2569
        %2602 = vst [vmem:[%s210 + $0x68] sm:$0xff] %v2570
        %2603 = vst [vmem:[%s210 + $0x70] sm:$0xff] %v2571
        %2604 = vst [vmem:[%s210 + $0x78] sm:$0xff] %v2572
        %2605 = vst [vmem:[%s210 + $0x80] sm:$0xff] %v2573
        %2606 = vst [vmem:[%s210 + $0x88] sm:$0xff] %v2574
        %2607 = vst [vmem:[%s210 + $0x90] sm:$0xff] %v2575
        %2608 = vst [vmem:[%s210 + $0x98] sm:$0xff] %v2576
        %2609 = vst [vmem:[%s210 + $0xa0] sm:$0xff] %v2577
        %2610 = vst [vmem:[%s210 + $0xa8] sm:$0xff] %v2578
        %2611 = vst [vmem:[%s210 + $0xb0] sm:$0xff] %v2579
        %2612 = vst [vmem:[%s210 + $0xb8] sm:$0xff] %v2580
        %2613 = vst [vmem:[%s210 + $0xc0] sm:$0xff] %v2581
        %2614 = vst [vmem:[%s210 + $0xc8] sm:$0xff] %v2582
        %2615 = vst [vmem:[%s210 + $0xd0] sm:$0xff] %v2583
        %2616 = vst [vmem:[%s210 + $0xd8] sm:$0xff] %v2584
        %2617 = vst [vmem:[%s210 + $0xe0] sm:$0xff] %v2585
        %2618 = vst [vmem:[%s210 + $0xe8] sm:$0xff] %v2586
        %2619 = vst [vmem:[%s210 + $0xf0] sm:$0xff] %v2587
        %2620 = vst [vmem:[%s210 + $0xf8] sm:$0xff] %v2588
        %s2621 = sand.u32 %s126, 1
        %s2622 = scalar_lea.sflag [#allocation3], %s2621
        %s2623 = sand.u32 %s126, 1
        %s2624 = smul.addr %s2623, 256
        %s2625 = scalar_lea.vmem [#allocation2], %s2624
        // Predicated region
        $region33: #{tpu_custom_call.1} parent=31 // pred_check
          %p2626 = pneg %p136
        $region34: #{tpu_custom_call.1} parent=31 // pred_check_branch
          %2628 = sbr.rel (%p2626) target = $region36
        $region35: #{tpu_custom_call.1} parent=31 // pred_region
          %s2629 = smul.u32 16, %s24
          %s2631 = ssub.s32 4096, 4096
          %2632 = vsyncadd %s2622, %s2631
          %s2633 = smul.addr %s2629, 2
          %s2634 = sadd.s32 %s23, %s2633
          %s2635 = smul.addr %s22, 32
          %s2636 = sadd.s32 %s2634, %s2635
          %s2637 = smul.addr %s2636, 128
          %s2638 = scalar_lea.hbm %s3, %s2637
          %s2639 = sshll.u32 %s2625, 4
          %s2640 = int_to_ptr.vmem [resolvable:$true] %s2639
          %2645 = dma.vmem_to_hbm [thread:$0]  %s2640, 4096, %s2638, %s2622, 128, 128, 8
        $region36: #{tpu_custom_call.1} parent=31 // pred_fallthru
          _
      $region32: #{tpu_custom_call.1} parent=5 // pred_fallthru
        _
      %p2646 = scmp.le.s32.totalorder 2, %s12
      // Predicated region
      $region37: #{tpu_custom_call.1} parent=5 // pred_check
        %p2647 = pneg %p2646
      $region38: #{tpu_custom_call.1} parent=5 // pred_check_branch
        %2649 = sbr.rel (%p2647) target = $region40
      $region39: #{tpu_custom_call.1} parent=5 // pred_region
        %s2650 = ssub.s32 %s12, 2
        // Predicated region
        $region41: #{tpu_custom_call.1} parent=39 // pred_check
          %p2651 = pneg %p142
        $region42: #{tpu_custom_call.1} parent=39 // pred_check_branch
          %2653 = sbr.rel (%p2651) target = $region44
        $region43: #{tpu_custom_call.1} parent=39 // pred_region
          %s2654 = sand.u32 %s127, 1
          %s2655 = scalar_lea.sflag [#allocation3], %s2654
          %s2656 = sand.u32 %s127, 1
          %s2657 = smul.addr %s2656, 256
          %s2658 = scalar_lea.vmem [#allocation2], %s2657
          %2659 = dma.done %s2655, 4096
        $region44: #{tpu_custom_call.1} parent=39 // pred_fallthru
          _
      $region40: #{tpu_custom_call.1} parent=5 // pred_fallthru
        _
    $region6: #{tpu_custom_call.1} parent=1 // loop_footer
      %s16 = sadd.s32 1, %s12
    $region7: #{tpu_custom_call.1} parent=1 // loop_footer_branch
      %11 = sbr.rel target = $region3
    $region8: #{tpu_custom_call.1} parent=1 // loop_exit
      _
    %2660 = vsyncpa [#allocation3], 1
    %s2661 = scalar_lea.sflag [#allocation3], 1
    %2662 = vsyncpa %s2661, 1

// kernel: tpu_custom_call.1
$region0: #{tpu_custom_call.1}
  #allocation0 [shape = 'u32[]', space=smem, size = 0x4, offset = 0x4, fixed_abs, tag = 'smem constant byte address 0x4 - core index']
  #allocation1 [shape = 'u32[144,128]{1,0:T(1,128)}', space=vmem, size = 0x12000, scoped, tag = 'internal scratch']
  %s0 = inlined_call_operand.vmem [shape: bf16[2,18,18,4], index: 0, kind: input, shape index: {}]
  %s1 = inlined_call_operand.vmem [shape: bf16[3,12,128], index: 1, kind: input, shape index: {}]
  %s2 = inlined_call_operand.vmem [shape: f32[1,128], index: 2, kind: input, shape index: {}]
  %s3 = inlined_call_operand.hbm [shape: f32[2,16,16,128], index: 3, kind: output, shape index: {}]
  %s4 = sld [smem:[#allocation0]]
  $region45: #{tpu_custom_call.1} parent=0
    _
  %s6 = ssub.s32 1, %s4
  %s7 = scalar_select 0, %s6, %s4
  $region1: #{tpu_custom_call.1} parent=0
    #allocation2 [shape = 'u8[262144]{0}', space=vmem, size = 0x40000, scoped, tag = 'output window, operand 0']
    #allocation3 [shape = 's32[2]{0}', space=sflag, size = 0x8, scoped, tag = 'scoped memory for tpu_custom_call.1']
    %8 = vsyncpa [#allocation3], 0
    %s9 = scalar_lea.sflag [#allocation3], 1
    %10 = vsyncpa %s9, 0
    loop: start=0, step=1, limit=4
    $region2: #{tpu_custom_call.1} parent=1 // loop_pre_header
      _
    $region3: #{tpu_custom_call.1} parent=1 // loop_header
      %s12 = sphi 0, %s16
      %p13 = scmp.ge.s32.totalorder %s12, 4
      %s19 = sphi 0, %s38
      %s20 = sphi 0, %s34
      %s21 = sphi 0, %s30
      %s22 = sphi 0, %s19
      %s23 = sphi 0, %s20
      %s24 = sphi 0, %s21
      %s25 = sphi 0, %s22
      %s26 = sphi 0, %s23
      %s27 = sphi 0, %s24
      %s41 = sphi 0, %s43
      %s44 = sphi 0, %s41
      %s45 = sphi 0, %s44
      %s61 = sphi 0, %s45
      %s67 = sphi 0, %s69
      %s70 = sphi 0, %s67
      %s71 = sphi 0, %s70
      %s87 = sphi 0, %s71
      %s93 = sphi 0, %s95
      %s96 = sphi 0, %s93
      %s97 = sphi 0, %s96
      %s113 = sphi 0, %s97
      %s123 = sphi 0, %s125
      %s126 = sphi 0, %s123
      %s127 = sphi 0, %s126
      %s143 = sphi 0, %s127
    $region4: #{tpu_custom_call.1} parent=1 // loop_header_branch
      %15 = sbr.rel (%p13) target = $region8
    $region5: #{tpu_custom_call.1} parent=1 // loop_body
      %s17 = ssub.s32 %s12, 1
      %s18 = ssub.s32 %s12, 2
      %s28 = sadd.s32 1, %s21
      %p29 = scmp.ge.s32.totalorder %s28, 1
      %s30 = scalar_select %p29, 0, %s28
      %s31 = sadd.s32 1, %s20
      %s32 = scalar_select %p29, %s31, %s20
      %p33 = scmp.ge.s32.totalorder %s32, 1
      %s34 = scalar_select %p33, 0, %s32
      %s35 = sadd.s32 1, %s19
      %s36 = scalar_select %p33, %s35, %s19
      %p37 = scmp.ge.s32.totalorder %s36, 2
      %s38 = scalar_select %p37, 0, %s36
      %s39 = ssub.s32 %s19, %s38
      %p40 = scmp.eq.s32.totalorder %s39, 0
      %s42 = sadd.s32 %s41, 1
      %s43 = scalar_select %p40, %s41, %s42
      %p46 = pneg %p40
      %p47 = scmp.eq.s32.totalorder %s12, 1
      %p48 = por %p46, %p47
      %p49 = scmp.ne.s32.totalorder %s41, %s44
      %p50 = scmp.eq.s32.totalorder %s12, 0
      %p51 = por %p49, %p50
      %p52 = scmp.ne.s32.totalorder %s41, %s44
      %p53 = scmp.eq.s32.totalorder %s17, 1
      %p54 = por %p52, %p53
      %p55 = scmp.ne.s32.totalorder %s44, %s45
      %p56 = scmp.eq.s32.totalorder %s17, 0
      %p57 = por %p55, %p56
      %p58 = scmp.ne.s32.totalorder %s44, %s45
      %p59 = scmp.eq.s32.totalorder %s18, 1
      %p60 = por %p58, %p59
      %p62 = scmp.ne.s32.totalorder %s45, %s61
      %p63 = scmp.eq.s32.totalorder %s18, 0
      %p64 = por %p62, %p63
      %s65 = ssub.s32 %s20, %s34
      %p66 = scmp.eq.s32.totalorder %s65, 0
      %s68 = sadd.s32 %s67, 1
      %s69 = scalar_select %p66, %s67, %s68
      %p72 = pneg %p66
      %p73 = scmp.eq.s32.totalorder %s12, 1
      %p74 = por %p72, %p73
      %p75 = scmp.ne.s32.totalorder %s67, %s70
      %p76 = scmp.eq.s32.totalorder %s12, 0
      %p77 = por %p75, %p76
      %p78 = scmp.ne.s32.totalorder %s67, %s70
      %p79 = scmp.eq.s32.totalorder %s17, 1
      %p80 = por %p78, %p79
      %p81 = scmp.ne.s32.totalorder %s70, %s71
      %p82 = scmp.eq.s32.totalorder %s17, 0
      %p83 = por %p81, %p82
      %p84 = scmp.ne.s32.totalorder %s70, %s71
      %p85 = scmp.eq.s32.totalorder %s18, 1
      %p86 = por %p84, %p85
      %p88 = scmp.ne.s32.totalorder %s71, %s87
      %p89 = scmp.eq.s32.totalorder %s18, 0
      %p90 = por %p88, %p89
      %s91 = ssub.s32 %s20, %s34
      %p92 = scmp.eq.s32.totalorder %s91, 0
      %s94 = sadd.s32 %s93, 1
      %s95 = scalar_select %p92, %s93, %s94
      %p98 = pneg %p92
      %p99 = scmp.eq.s32.totalorder %s12, 1
      %p100 = por %p98, %p99
      %p101 = scmp.ne.s32.totalorder %s93, %s96
      %p102 = scmp.eq.s32.totalorder %s12, 0
      %p103 = por %p101, %p102
      %p104 = scmp.ne.s32.totalorder %s93, %s96
      %p105 = scmp.eq.s32.totalorder %s17, 1
      %p106 = por %p104, %p105
      %p107 = scmp.ne.s32.totalorder %s96, %s97
      %p108 = scmp.eq.s32.totalorder %s17, 0
      %p109 = por %p107, %p108
      %p110 = scmp.ne.s32.totalorder %s96, %s97
      %p111 = scmp.eq.s32.totalorder %s18, 1
      %p112 = por %p110, %p111
      %p114 = scmp.ne.s32.totalorder %s97, %s113
      %p115 = scmp.eq.s32.totalorder %s18, 0
      %p116 = por %p114, %p115
      %s117 = ssub.s32 %s19, %s38
      %s118 = ssub.s32 %s21, %s30
      %s119 = sor.u32 %s117, %s118
      %s120 = ssub.s32 %s20, %s34
      %s121 = sor.u32 %s119, %s120
      %p122 = scmp.eq.s32.totalorder %s121, 0
      %s124 = sadd.s32 %s123, 1
      %s125 = scalar_select %p122, %s123, %s124
      %p128 = pneg %p122
      %p129 = scmp.eq.s32.totalorder %s12, 1
      %p130 = por %p128, %p129
      %p131 = scmp.ne.s32.totalorder %s123, %s126
      %p132 = scmp.eq.s32.totalorder %s12, 0
      %p133 = por %p131, %p132
      %p134 = scmp.ne.s32.totalorder %s123, %s126
      %p135 = scmp.eq.s32.totalorder %s17, 1
      %p136 = por %p134, %p135
      %p137 = scmp.ne.s32.totalorder %s126, %s127
      %p138 = scmp.eq.s32.totalorder %s17, 0
      %p139 = por %p137, %p138
      %p140 = scmp.ne.s32.totalorder %s126, %s127
      %p141 = scmp.eq.s32.totalorder %s18, 1
      %p142 = por %p140, %p141
      %p144 = scmp.ne.s32.totalorder %s127, %s143
      %p145 = scmp.eq.s32.totalorder %s18, 0
      %p146 = por %p144, %p145
      %p147 = scmp.le.s32.totalorder 1, %s12
      %p148 = scmp.lt.s32.totalorder %s12, 3
      %p149 = pnand %p147, %p148
      %p150 = pneg %p149
      // Predicated region
      $region9: #{tpu_custom_call.1} parent=5 // pred_check
        _
      $region10: #{tpu_custom_call.1} parent=5 // pred_check_branch
        %152 = sbr.rel (%p149) target = $region12
      $region11: #{tpu_custom_call.1} parent=5 // pred_region
        %s153 = ssub.s32 %s12, 1
        // Predicated region
        $region13: #{tpu_custom_call.1} parent=11 // pred_check
          %p154 = pneg %p83
        $region14: #{tpu_custom_call.1} parent=11 // pred_check_branch
          %156 = sbr.rel (%p154) target = $region16
        $region15: #{tpu_custom_call.1} parent=11 // pred_region
          %p157 = scmp.lt.s32.totalorder %s23, 0
          %s158 = scalar_select %p157, %s23, 0
          %s159 = smul.addr %s158, 4
          %s160 = scalar_lea.vmem %s1, %s159
        $region16: #{tpu_custom_call.1} parent=11 // pred_fallthru
          _
        // Predicated region
        $region17: #{tpu_custom_call.1} parent=11 // pred_check
          %p161 = pneg %p109
        $region18: #{tpu_custom_call.1} parent=11 // pred_check_branch
          %163 = sbr.rel (%p161) target = $region20
        $region19: #{tpu_custom_call.1} parent=11 // pred_region
          %p164 = scmp.lt.s32.totalorder %s23, 0
          %s165 = scalar_select %p164, %s23, 0
          %s166 = scalar_lea.vmem %s2, %s165
        $region20: #{tpu_custom_call.1} parent=11 // pred_fallthru
          _
      $region12: #{tpu_custom_call.1} parent=5 // pred_fallthru
        _
      %p167 = scmp.lt.s32.totalorder %s12, 2
      // Predicated region
      $region21: #{tpu_custom_call.1} parent=5 // pred_check
        %p168 = pneg %p167
      $region22: #{tpu_custom_call.1} parent=5 // pred_check_branch
        %170 = sbr.rel (%p168) target = $region24
      $region23: #{tpu_custom_call.1} parent=5 // pred_region
        // Predicated region
        $region25: #{tpu_custom_call.1} parent=23 // pred_check
          %p171 = pneg %p51
        $region26: #{tpu_custom_call.1} parent=23 // pred_check_branch
          %173 = sbr.rel (%p171) target = $region28
        $region27: #{tpu_custom_call.1} parent=23 // pred_region
          %p174 = scmp.lt.s32.totalorder %s19, 1
          %s175 = scalar_select %p174, %s19, 1
          %s176 = smul.addr %s175, 54
          %s177 = smul.addr %s176, 4
          %s178 = scalar_lea.vmem %s0, %s177
        $region28: #{tpu_custom_call.1} parent=23 // pred_fallthru
          _
      $region24: #{tpu_custom_call.1} parent=5 // pred_fallthru
        _
      %p179 = scmp.le.s32.totalorder 1, %s12
      %p180 = scmp.lt.s32.totalorder %s12, 3
      %p181 = pnand %p179, %p180
      %p182 = pneg %p181
      // Predicated region
      $region29: #{tpu_custom_call.1} parent=5 // pred_check
        _
      $region30: #{tpu_custom_call.1} parent=5 // pred_check_branch
        %184 = sbr.rel (%p181) target = $region32
      $region31: #{tpu_custom_call.1} parent=5 // pred_region
        %s185 = ssub.s32 %s12, 1
        %p186 = scmp.lt.s32.totalorder %s22, 1
        %s187 = scalar_select %p186, %s22, 1
        %s188 = smul.addr %s187, 54
        %s189 = smul.addr %s188, 4
        %s190 = scalar_lea.vmem %s0, %s189
        %p191 = pneg %p57
        %p192 = pneg %p54
        %p193 = scmp.lt.s32.totalorder %s23, 0
        %s194 = scalar_select %p193, %s23, 0
        %s195 = smul.addr %s194, 4
        %s196 = scalar_lea.vmem %s1, %s195
        %p197 = pneg %p83
        %p198 = pneg %p80
        %p199 = scmp.lt.s32.totalorder %s23, 0
        %s200 = scalar_select %p199, %s23, 0
        %s201 = scalar_lea.vmem %s2, %s200
        %p202 = pneg %p109
        %p203 = pneg %p106
        %p204 = pneg %p139
        %p205 = pneg %p136
        %s206 = sand.u32 %s126, 1
        %s207 = scalar_lea.sflag [#allocation3], %s206
        %s208 = sand.u32 %s126, 1
        %s209 = smul.addr %s208, 256
        %s210 = scalar_lea.vmem [#allocation2], %s209
        %p211 = scmp.lt.s32.totalorder %s22, 1
        %s212 = scalar_select %p211, %s22, 1
        %s213 = smul.addr %s212, 54
        %s214 = smul.addr %s213, 4
        %s215 = scalar_lea.vmem %s0, %s214
        %p216 = scmp.lt.s32.totalorder %s23, 0
        %s217 = scalar_select %p216, %s23, 0
        %s218 = smul.addr %s217, 4
        %s219 = scalar_lea.vmem %s1, %s218
        %p220 = scmp.lt.s32.totalorder %s23, 0
        %s221 = scalar_select %p220, %s23, 0
        %s222 = scalar_lea.vmem %s2, %s221
        %s223 = smul.u32 16, %s24
        %s225 = smul.u32 %s24, 16
        %s226 = smul.u32 %s225, 3
        %s227 = smul.addr %s226, 4
        %s228 = scalar_lea.vmem %s215, %s227
        %v229 = vld [vmem:[%s228] sm:$0xf]
        %v230 = vld [vmem:[%s228 + $0x4] sm:$0xf]
        %v231 = vld [vmem:[%s228 + $0x8] sm:$0x1]
        %v232 = vld [vmem:[%s228 + $0xc] sm:$0xf]
        %v233 = vld [vmem:[%s228 + $0x10] sm:$0xf]
        %v234 = vld [vmem:[%s228 + $0x14] sm:$0x1]
        %v235 = vld [vmem:[%s228 + $0x18] sm:$0xf]
        %v236 = vld [vmem:[%s228 + $0x1c] sm:$0xf]
        %v237 = vld [vmem:[%s228 + $0x20] sm:$0x1]
        %v238 = vld [vmem:[%s228 + $0x24] sm:$0xf]
        %v239 = vld [vmem:[%s228 + $0x28] sm:$0xf]
        %v240 = vld [vmem:[%s228 + $0x2c] sm:$0x1]
        %v241 = vld [vmem:[%s228 + $0x30] sm:$0xf]
        %v242 = vld [vmem:[%s228 + $0x34] sm:$0xf]
        %v243 = vld [vmem:[%s228 + $0x38] sm:$0x1]
        %v244 = vld [vmem:[%s228 + $0x3c] sm:$0xf]
        %v245 = vld [vmem:[%s228 + $0x40] sm:$0xf]
        %v246 = vld [vmem:[%s228 + $0x44] sm:$0x1]
        %v247 = vld [vmem:[%s228 + $0x48] sm:$0xf]
        %v248 = vld [vmem:[%s228 + $0x4c] sm:$0xf]
        %v249 = vld [vmem:[%s228 + $0x50] sm:$0x1]
        %v250 = vld [vmem:[%s228 + $0x54] sm:$0xf]
        %v251 = vld [vmem:[%s228 + $0x58] sm:$0xf]
        %v252 = vld [vmem:[%s228 + $0x5c] sm:$0x1]
        %v253 = vld [vmem:[%s228 + $0x60] sm:$0xf]
        %v254 = vld [vmem:[%s228 + $0x64] sm:$0xf]
        %v255 = vld [vmem:[%s228 + $0x68] sm:$0x1]
        %v256 = vld [vmem:[%s228 + $0x6c] sm:$0xf]
        %v257 = vld [vmem:[%s228 + $0x70] sm:$0xf]
        %v258 = vld [vmem:[%s228 + $0x74] sm:$0x1]
        %v259 = vld [vmem:[%s228 + $0x78] sm:$0xf]
        %v260 = vld [vmem:[%s228 + $0x7c] sm:$0xf]
        %v261 = vld [vmem:[%s228 + $0x80] sm:$0x1]
        %v262 = vld [vmem:[%s228 + $0x84] sm:$0xf]
        %v263 = vld [vmem:[%s228 + $0x88] sm:$0xf]
        %v264 = vld [vmem:[%s228 + $0x8c] sm:$0x1]
        %v265 = vld [vmem:[%s228 + $0x90] sm:$0xf]
        %v266 = vld [vmem:[%s228 + $0x94] sm:$0xf]
        %v267 = vld [vmem:[%s228 + $0x98] sm:$0x1]
        %v268 = vld [vmem:[%s228 + $0x9c] sm:$0xf]
        %v269 = vld [vmem:[%s228 + $0xa0] sm:$0xf]
        %v270 = vld [vmem:[%s228 + $0xa4] sm:$0x1]
        %v271 = vld [vmem:[%s228 + $0xa8] sm:$0xf]
        %v272 = vld [vmem:[%s228 + $0xac] sm:$0xf]
        %v273 = vld [vmem:[%s228 + $0xb0] sm:$0x1]
        %v274 = vld [vmem:[%s228 + $0xb4] sm:$0xf]
        %v275 = vld [vmem:[%s228 + $0xb8] sm:$0xf]
        %v276 = vld [vmem:[%s228 + $0xbc] sm:$0x1]
        %v309 = vunpack.c.l.b16 %v229
        %v310 = vunpack.c.l.b16 %v230
        %v311 = vunpack.c.l.b16 %v232
        %v312 = vunpack.c.l.b16 %v233
        %v313 = vunpack.c.l.b16 %v235
        %v314 = vunpack.c.l.b16 %v236
        %v315 = vunpack.c.l.b16 %v238
        %v316 = vunpack.c.l.b16 %v239
        %v317 = vunpack.c.l.b16 %v241
        %v318 = vunpack.c.l.b16 %v242
        %v319 = vunpack.c.l.b16 %v244
        %v320 = vunpack.c.l.b16 %v245
        %v321 = vunpack.c.l.b16 %v247
        %v322 = vunpack.c.l.b16 %v248
        %v323 = vunpack.c.l.b16 %v250
        %v324 = vunpack.c.l.b16 %v251
        %v325 = vunpack.c.l.b16 %v253
        %v326 = vunpack.c.l.b16 %v254
        %v327 = vunpack.c.l.b16 %v256
        %v328 = vunpack.c.l.b16 %v257
        %v329 = vunpack.c.l.b16 %v259
        %v330 = vunpack.c.l.b16 %v260
        %v331 = vunpack.c.l.b16 %v262
        %v332 = vunpack.c.l.b16 %v263
        %v333 = vunpack.c.l.b16 %v265
        %v334 = vunpack.c.l.b16 %v266
        %v335 = vunpack.c.l.b16 %v268
        %v336 = vunpack.c.l.b16 %v269
        %v337 = vunpack.c.l.b16 %v271
        %v338 = vunpack.c.l.b16 %v272
        %v339 = vunpack.c.l.b16 %v274
        %v340 = vunpack.c.l.b16 %v275
        %v341 = vpack.c.b16 %v310, %v309
        %v342 = vpack.c.b16 %v312, %v311
        %v343 = vpack.c.b16 %v314, %v313
        %v344 = vpack.c.b16 %v316, %v315
        %v345 = vpack.c.b16 %v318, %v317
        %v346 = vpack.c.b16 %v320, %v319
        %v347 = vpack.c.b16 %v322, %v321
        %v348 = vpack.c.b16 %v324, %v323
        %v349 = vpack.c.b16 %v326, %v325
        %v350 = vpack.c.b16 %v328, %v327
        %v351 = vpack.c.b16 %v330, %v329
        %v352 = vpack.c.b16 %v332, %v331
        %v353 = vpack.c.b16 %v334, %v333
        %v354 = vpack.c.b16 %v336, %v335
        %v355 = vpack.c.b16 %v338, %v337
        %v356 = vpack.c.b16 %v340, %v339
        %v373 = vunpack.c.l.b16 %v231
        %v374 = vunpack.c.l.b16 %v234
        %v375 = vunpack.c.l.b16 %v237
        %v376 = vunpack.c.l.b16 %v240
        %v377 = vunpack.c.l.b16 %v243
        %v378 = vunpack.c.l.b16 %v246
        %v379 = vunpack.c.l.b16 %v249
        %v380 = vunpack.c.l.b16 %v252
        %v381 = vunpack.c.l.b16 %v255
        %v382 = vunpack.c.l.b16 %v258
        %v383 = vunpack.c.l.b16 %v261
        %v384 = vunpack.c.l.b16 %v264
        %v385 = vunpack.c.l.b16 %v267
        %v386 = vunpack.c.l.b16 %v270
        %v387 = vunpack.c.l.b16 %v273
        %v388 = vunpack.c.l.b16 %v276
        %v389 = vpack.c.b16 %v373, %v373
        %v390 = vpack.c.b16 %v374, %v374
        %v391 = vpack.c.b16 %v375, %v375
        %v392 = vpack.c.b16 %v376, %v376
        %v393 = vpack.c.b16 %v377, %v377
        %v394 = vpack.c.b16 %v378, %v378
        %v395 = vpack.c.b16 %v379, %v379
        %v396 = vpack.c.b16 %v380, %v380
        %v397 = vpack.c.b16 %v381, %v381
        %v398 = vpack.c.b16 %v382, %v382
        %v399 = vpack.c.b16 %v383, %v383
        %v400 = vpack.c.b16 %v384, %v384
        %v401 = vpack.c.b16 %v385, %v385
        %v402 = vpack.c.b16 %v386, %v386
        %v403 = vpack.c.b16 %v387, %v387
        %v404 = vpack.c.b16 %v388, %v388
        %vm405 = vsmask.f32 7424
        %v407 = vshrl.u32 %v341, 16
        %v409 = vshll.u32 %v341, 16
        %v411 = vrot.slane %v409, 1
        %v412 = vor.u32 %v407, %v411
        %v414 = vshll.u32 %v389, 16
        %v416 = vrot.slane %v414, 1
        %v417 = vsel %vm405, %v412, %v416
        %v419 = vshrl.u32 %v342, 16
        %v421 = vshll.u32 %v342, 16
        %v423 = vrot.slane %v421, 1
        %v424 = vor.u32 %v419, %v423
        %v426 = vshll.u32 %v390, 16
        %v428 = vrot.slane %v426, 1
        %v429 = vsel %vm405, %v424, %v428
        %v431 = vshrl.u32 %v343, 16
        %v433 = vshll.u32 %v343, 16
        %v435 = vrot.slane %v433, 1
        %v436 = vor.u32 %v431, %v435
        %v438 = vshll.u32 %v391, 16
        %v440 = vrot.slane %v438, 1
        %v441 = vsel %vm405, %v436, %v440
        %v443 = vshrl.u32 %v344, 16
        %v445 = vshll.u32 %v344, 16
        %v447 = vrot.slane %v445, 1
        %v448 = vor.u32 %v443, %v447
        %v450 = vshll.u32 %v392, 16
        %v452 = vrot.slane %v450, 1
        %v453 = vsel %vm405, %v448, %v452
        %v455 = vshrl.u32 %v345, 16
        %v457 = vshll.u32 %v345, 16
        %v459 = vrot.slane %v457, 1
        %v460 = vor.u32 %v455, %v459
        %v462 = vshll.u32 %v393, 16
        %v464 = vrot.slane %v462, 1
        %v465 = vsel %vm405, %v460, %v464
        %v467 = vshrl.u32 %v346, 16
        %v469 = vshll.u32 %v346, 16
        %v471 = vrot.slane %v469, 1
        %v472 = vor.u32 %v467, %v471
        %v474 = vshll.u32 %v394, 16
        %v476 = vrot.slane %v474, 1
        %v477 = vsel %vm405, %v472, %v476
        %v479 = vshrl.u32 %v347, 16
        %v481 = vshll.u32 %v347, 16
        %v483 = vrot.slane %v481, 1
        %v484 = vor.u32 %v479, %v483
        %v486 = vshll.u32 %v395, 16
        %v488 = vrot.slane %v486, 1
        %v489 = vsel %vm405, %v484, %v488
        %v491 = vshrl.u32 %v348, 16
        %v493 = vshll.u32 %v348, 16
        %v495 = vrot.slane %v493, 1
        %v496 = vor.u32 %v491, %v495
        %v498 = vshll.u32 %v396, 16
        %v500 = vrot.slane %v498, 1
        %v501 = vsel %vm405, %v496, %v500
        %v503 = vshrl.u32 %v349, 16
        %v505 = vshll.u32 %v349, 16
        %v507 = vrot.slane %v505, 1
        %v508 = vor.u32 %v503, %v507
        %v510 = vshll.u32 %v397, 16
        %v512 = vrot.slane %v510, 1
        %v513 = vsel %vm405, %v508, %v512
        %v515 = vshrl.u32 %v350, 16
        %v517 = vshll.u32 %v350, 16
        %v519 = vrot.slane %v517, 1
        %v520 = vor.u32 %v515, %v519
        %v522 = vshll.u32 %v398, 16
        %v524 = vrot.slane %v522, 1
        %v525 = vsel %vm405, %v520, %v524
        %v527 = vshrl.u32 %v351, 16
        %v529 = vshll.u32 %v351, 16
        %v531 = vrot.slane %v529, 1
        %v532 = vor.u32 %v527, %v531
        %v534 = vshll.u32 %v399, 16
        %v536 = vrot.slane %v534, 1
        %v537 = vsel %vm405, %v532, %v536
        %v539 = vshrl.u32 %v352, 16
        %v541 = vshll.u32 %v352, 16
        %v543 = vrot.slane %v541, 1
        %v544 = vor.u32 %v539, %v543
        %v546 = vshll.u32 %v400, 16
        %v548 = vrot.slane %v546, 1
        %v549 = vsel %vm405, %v544, %v548
        %v551 = vshrl.u32 %v353, 16
        %v553 = vshll.u32 %v353, 16
        %v555 = vrot.slane %v553, 1
        %v556 = vor.u32 %v551, %v555
        %v558 = vshll.u32 %v401, 16
        %v560 = vrot.slane %v558, 1
        %v561 = vsel %vm405, %v556, %v560
        %v563 = vshrl.u32 %v354, 16
        %v565 = vshll.u32 %v354, 16
        %v567 = vrot.slane %v565, 1
        %v568 = vor.u32 %v563, %v567
        %v570 = vshll.u32 %v402, 16
        %v572 = vrot.slane %v570, 1
        %v573 = vsel %vm405, %v568, %v572
        %v575 = vshrl.u32 %v355, 16
        %v577 = vshll.u32 %v355, 16
        %v579 = vrot.slane %v577, 1
        %v580 = vor.u32 %v575, %v579
        %v582 = vshll.u32 %v403, 16
        %v584 = vrot.slane %v582, 1
        %v585 = vsel %vm405, %v580, %v584
        %v587 = vshrl.u32 %v356, 16
        %v589 = vshll.u32 %v356, 16
        %v591 = vrot.slane %v589, 1
        %v592 = vor.u32 %v587, %v591
        %v594 = vshll.u32 %v404, 16
        %v596 = vrot.slane %v594, 1
        %v597 = vsel %vm405, %v592, %v596
        %598 = vrot.lane.b32.xlu0 %v417, 4
        %v599 = vpop.permute.xlu0 %598
        %600 = vrot.lane.b32.xlu0 %v429, 4
        %v601 = vpop.permute.xlu0 %600
        %602 = vrot.lane.b32.xlu0 %v441, 4
        %v603 = vpop.permute.xlu0 %602
        %604 = vrot.lane.b32.xlu0 %v453, 4
        %v605 = vpop.permute.xlu0 %604
        %606 = vrot.lane.b32.xlu0 %v465, 4
        %v607 = vpop.permute.xlu0 %606
        %608 = vrot.lane.b32.xlu0 %v477, 4
        %v609 = vpop.permute.xlu0 %608
        %610 = vrot.lane.b32.xlu0 %v489, 4
        %v611 = vpop.permute.xlu0 %610
        %612 = vrot.lane.b32.xlu0 %v501, 4
        %v613 = vpop.permute.xlu0 %612
        %614 = vrot.lane.b32.xlu0 %v513, 4
        %v615 = vpop.permute.xlu0 %614
        %616 = vrot.lane.b32.xlu0 %v525, 4
        %v617 = vpop.permute.xlu0 %616
        %618 = vrot.lane.b32.xlu0 %v537, 4
        %v619 = vpop.permute.xlu0 %618
        %620 = vrot.lane.b32.xlu0 %v549, 4
        %v621 = vpop.permute.xlu0 %620
        %622 = vrot.lane.b32.xlu0 %v561, 4
        %v623 = vpop.permute.xlu0 %622
        %624 = vrot.lane.b32.xlu0 %v573, 4
        %v625 = vpop.permute.xlu0 %624
        %626 = vrot.lane.b32.xlu0 %v585, 4
        %v627 = vpop.permute.xlu0 %626
        %628 = vrot.lane.b32.xlu0 %v597, 4
        %v629 = vpop.permute.xlu0 %628
        %vm630 = vcmask 1046528
        %v631 = vrot.slane %v341, 1
        %v632 = vrot.slane %v389, 1
        %v633 = vsel %vm630, %v631, %v632
        %v634 = vrot.slane %v342, 1
        %v635 = vrot.slane %v390, 1
        %v636 = vsel %vm630, %v634, %v635
        %v637 = vrot.slane %v343, 1
        %v638 = vrot.slane %v391, 1
        %v639 = vsel %vm630, %v637, %v638
        %v640 = vrot.slane %v344, 1
        %v641 = vrot.slane %v392, 1
        %v642 = vsel %vm630, %v640, %v641
        %v643 = vrot.slane %v345, 1
        %v644 = vrot.slane %v393, 1
        %v645 = vsel %vm630, %v643, %v644
        %v646 = vrot.slane %v346, 1
        %v647 = vrot.slane %v394, 1
        %v648 = vsel %vm630, %v646, %v647
        %v649 = vrot.slane %v347, 1
        %v650 = vrot.slane %v395, 1
        %v651 = vsel %vm630, %v649, %v650
        %v652 = vrot.slane %v348, 1
        %v653 = vrot.slane %v396, 1
        %v654 = vsel %vm630, %v652, %v653
        %v655 = vrot.slane %v349, 1
        %v656 = vrot.slane %v397, 1
        %v657 = vsel %vm630, %v655, %v656
        %v658 = vrot.slane %v350, 1
        %v659 = vrot.slane %v398, 1
        %v660 = vsel %vm630, %v658, %v659
        %v661 = vrot.slane %v351, 1
        %v662 = vrot.slane %v399, 1
        %v663 = vsel %vm630, %v661, %v662
        %v664 = vrot.slane %v352, 1
        %v665 = vrot.slane %v400, 1
        %v666 = vsel %vm630, %v664, %v665
        %v667 = vrot.slane %v353, 1
        %v668 = vrot.slane %v401, 1
        %v669 = vsel %vm630, %v667, %v668
        %v670 = vrot.slane %v354, 1
        %v671 = vrot.slane %v402, 1
        %v672 = vsel %vm630, %v670, %v671
        %v673 = vrot.slane %v355, 1
        %v674 = vrot.slane %v403, 1
        %v675 = vsel %vm630, %v673, %v674
        %v676 = vrot.slane %v356, 1
        %v677 = vrot.slane %v404, 1
        %v678 = vsel %vm630, %v676, %v677
        %679 = vrot.lane.b32.xlu0 %v633, 8
        %v680 = vpop.permute.xlu0 %679
        %681 = vrot.lane.b32.xlu0 %v636, 8
        %v682 = vpop.permute.xlu0 %681
        %683 = vrot.lane.b32.xlu0 %v639, 8
        %v684 = vpop.permute.xlu0 %683
        %685 = vrot.lane.b32.xlu0 %v642, 8
        %v686 = vpop.permute.xlu0 %685
        %687 = vrot.lane.b32.xlu0 %v645, 8
        %v688 = vpop.permute.xlu0 %687
        %689 = vrot.lane.b32.xlu0 %v648, 8
        %v690 = vpop.permute.xlu0 %689
        %691 = vrot.lane.b32.xlu0 %v651, 8
        %v692 = vpop.permute.xlu0 %691
        %693 = vrot.lane.b32.xlu0 %v654, 8
        %v694 = vpop.permute.xlu0 %693
        %695 = vrot.lane.b32.xlu0 %v657, 8
        %v696 = vpop.permute.xlu0 %695
        %697 = vrot.lane.b32.xlu0 %v660, 8
        %v698 = vpop.permute.xlu0 %697
        %699 = vrot.lane.b32.xlu0 %v663, 8
        %v700 = vpop.permute.xlu0 %699
        %701 = vrot.lane.b32.xlu0 %v666, 8
        %v702 = vpop.permute.xlu0 %701
        %703 = vrot.lane.b32.xlu0 %v669, 8
        %v704 = vpop.permute.xlu0 %703
        %705 = vrot.lane.b32.xlu0 %v672, 8
        %v706 = vpop.permute.xlu0 %705
        %707 = vrot.lane.b32.xlu0 %v675, 8
        %v708 = vpop.permute.xlu0 %707
        %709 = vrot.lane.b32.xlu0 %v678, 8
        %v710 = vpop.permute.xlu0 %709
        %vm711 = vcmask 31744
        %v713 = vsel %vm711, %v341, %v599
        %v715 = vsel %vm711, %v342, %v601
        %v717 = vsel %vm711, %v343, %v603
        %v719 = vsel %vm711, %v344, %v605
        %v721 = vsel %vm711, %v345, %v607
        %v723 = vsel %vm711, %v346, %v609
        %v725 = vsel %vm711, %v347, %v611
        %v727 = vsel %vm711, %v348, %v613
        %v729 = vsel %vm711, %v349, %v615
        %v731 = vsel %vm711, %v350, %v617
        %v733 = vsel %vm711, %v351, %v619
        %v735 = vsel %vm711, %v352, %v621
        %v737 = vsel %vm711, %v353, %v623
        %v739 = vsel %vm711, %v354, %v625
        %v741 = vsel %vm711, %v355, %v627
        %v743 = vsel %vm711, %v356, %v629
        %vm744 = vcmask 64512
        %v746 = vsel %vm744, %v713, %v680
        %v748 = vsel %vm744, %v715, %v682
        %v750 = vsel %vm744, %v717, %v684
        %v752 = vsel %vm744, %v719, %v686
        %v754 = vsel %vm744, %v721, %v688
        %v756 = vsel %vm744, %v723, %v690
        %v758 = vsel %vm744, %v725, %v692
        %v760 = vsel %vm744, %v727, %v694
        %v762 = vsel %vm744, %v729, %v696
        %v764 = vsel %vm744, %v731, %v698
        %v766 = vsel %vm744, %v733, %v700
        %v768 = vsel %vm744, %v735, %v702
        %v770 = vsel %vm744, %v737, %v704
        %v772 = vsel %vm744, %v739, %v706
        %v774 = vsel %vm744, %v741, %v708
        %v776 = vsel %vm744, %v743, %v710
        %v777 = vld [vmem:[%s219] sm:$0xf]
        %v778 = vld [vmem:[%s219 + $0x4] sm:$0x3]
        %s779 = sadd.s32 %s225, 1
        %s780 = smul.u32 %s779, 3
        %s781 = smul.addr %s780, 4
        %s782 = scalar_lea.vmem %s215, %s781
        %v783 = vld [vmem:[%s782] sm:$0xf]
        %v784 = vld [vmem:[%s782 + $0x4] sm:$0xf]
        %v785 = vld [vmem:[%s782 + $0x8] sm:$0x1]
        %v786 = vld [vmem:[%s782 + $0xc] sm:$0xf]
        %v787 = vld [vmem:[%s782 + $0x10] sm:$0xf]
        %v788 = vld [vmem:[%s782 + $0x14] sm:$0x1]
        %v789 = vld [vmem:[%s782 + $0x18] sm:$0xf]
        %v790 = vld [vmem:[%s782 + $0x1c] sm:$0xf]
        %v791 = vld [vmem:[%s782 + $0x20] sm:$0x1]
        %v792 = vld [vmem:[%s782 + $0x24] sm:$0xf]
        %v793 = vld [vmem:[%s782 + $0x28] sm:$0xf]
        %v794 = vld [vmem:[%s782 + $0x2c] sm:$0x1]
        %v795 = vld [vmem:[%s782 + $0x30] sm:$0xf]
        %v796 = vld [vmem:[%s782 + $0x34] sm:$0xf]
        %v797 = vld [vmem:[%s782 + $0x38] sm:$0x1]
        %v798 = vld [vmem:[%s782 + $0x3c] sm:$0xf]
        %v799 = vld [vmem:[%s782 + $0x40] sm:$0xf]
        %v800 = vld [vmem:[%s782 + $0x44] sm:$0x1]
        %v801 = vld [vmem:[%s782 + $0x48] sm:$0xf]
        %v802 = vld [vmem:[%s782 + $0x4c] sm:$0xf]
        %v803 = vld [vmem:[%s782 + $0x50] sm:$0x1]
        %v804 = vld [vmem:[%s782 + $0x54] sm:$0xf]
        %v805 = vld [vmem:[%s782 + $0x58] sm:$0xf]
        %v806 = vld [vmem:[%s782 + $0x5c] sm:$0x1]
        %v807 = vld [vmem:[%s782 + $0x60] sm:$0xf]
        %v808 = vld [vmem:[%s782 + $0x64] sm:$0xf]
        %v809 = vld [vmem:[%s782 + $0x68] sm:$0x1]
        %v810 = vld [vmem:[%s782 + $0x6c] sm:$0xf]
        %v811 = vld [vmem:[%s782 + $0x70] sm:$0xf]
        %v812 = vld [vmem:[%s782 + $0x74] sm:$0x1]
        %v813 = vld [vmem:[%s782 + $0x78] sm:$0xf]
        %v814 = vld [vmem:[%s782 + $0x7c] sm:$0xf]
        %v815 = vld [vmem:[%s782 + $0x80] sm:$0x1]
        %v816 = vld [vmem:[%s782 + $0x84] sm:$0xf]
        %v817 = vld [vmem:[%s782 + $0x88] sm:$0xf]
        %v818 = vld [vmem:[%s782 + $0x8c] sm:$0x1]
        %v819 = vld [vmem:[%s782 + $0x90] sm:$0xf]
        %v820 = vld [vmem:[%s782 + $0x94] sm:$0xf]
        %v821 = vld [vmem:[%s782 + $0x98] sm:$0x1]
        %v822 = vld [vmem:[%s782 + $0x9c] sm:$0xf]
        %v823 = vld [vmem:[%s782 + $0xa0] sm:$0xf]
        %v824 = vld [vmem:[%s782 + $0xa4] sm:$0x1]
        %v825 = vld [vmem:[%s782 + $0xa8] sm:$0xf]
        %v826 = vld [vmem:[%s782 + $0xac] sm:$0xf]
        %v827 = vld [vmem:[%s782 + $0xb0] sm:$0x1]
        %v828 = vld [vmem:[%s782 + $0xb4] sm:$0xf]
        %v829 = vld [vmem:[%s782 + $0xb8] sm:$0xf]
        %v830 = vld [vmem:[%s782 + $0xbc] sm:$0x1]
        %v863 = vunpack.c.l.b16 %v783
        %v864 = vunpack.c.l.b16 %v784
        %v865 = vunpack.c.l.b16 %v786
        %v866 = vunpack.c.l.b16 %v787
        %v867 = vunpack.c.l.b16 %v789
        %v868 = vunpack.c.l.b16 %v790
        %v869 = vunpack.c.l.b16 %v792
        %v870 = vunpack.c.l.b16 %v793
        %v871 = vunpack.c.l.b16 %v795
        %v872 = vunpack.c.l.b16 %v796
        %v873 = vunpack.c.l.b16 %v798
        %v874 = vunpack.c.l.b16 %v799
        %v875 = vunpack.c.l.b16 %v801
        %v876 = vunpack.c.l.b16 %v802
        %v877 = vunpack.c.l.b16 %v804
        %v878 = vunpack.c.l.b16 %v805
        %v879 = vunpack.c.l.b16 %v807
        %v880 = vunpack.c.l.b16 %v808
        %v881 = vunpack.c.l.b16 %v810
        %v882 = vunpack.c.l.b16 %v811
        %v883 = vunpack.c.l.b16 %v813
        %v884 = vunpack.c.l.b16 %v814
        %v885 = vunpack.c.l.b16 %v816
        %v886 = vunpack.c.l.b16 %v817
        %v887 = vunpack.c.l.b16 %v819
        %v888 = vunpack.c.l.b16 %v820
        %v889 = vunpack.c.l.b16 %v822
        %v890 = vunpack.c.l.b16 %v823
        %v891 = vunpack.c.l.b16 %v825
        %v892 = vunpack.c.l.b16 %v826
        %v893 = vunpack.c.l.b16 %v828
        %v894 = vunpack.c.l.b16 %v829
        %v895 = vpack.c.b16 %v864, %v863
        %v896 = vpack.c.b16 %v866, %v865
        %v897 = vpack.c.b16 %v868, %v867
        %v898 = vpack.c.b16 %v870, %v869
        %v899 = vpack.c.b16 %v872, %v871
        %v900 = vpack.c.b16 %v874, %v873
        %v901 = vpack.c.b16 %v876, %v875
        %v902 = vpack.c.b16 %v878, %v877
        %v903 = vpack.c.b16 %v880, %v879
        %v904 = vpack.c.b16 %v882, %v881
        %v905 = vpack.c.b16 %v884, %v883
        %v906 = vpack.c.b16 %v886, %v885
        %v907 = vpack.c.b16 %v888, %v887
        %v908 = vpack.c.b16 %v890, %v889
        %v909 = vpack.c.b16 %v892, %v891
        %v910 = vpack.c.b16 %v894, %v893
        %v927 = vunpack.c.l.b16 %v785
        %v928 = vunpack.c.l.b16 %v788
        %v929 = vunpack.c.l.b16 %v791
        %v930 = vunpack.c.l.b16 %v794
        %v931 = vunpack.c.l.b16 %v797
        %v932 = vunpack.c.l.b16 %v800
        %v933 = vunpack.c.l.b16 %v803
        %v934 = vunpack.c.l.b16 %v806
        %v935 = vunpack.c.l.b16 %v809
        %v936 = vunpack.c.l.b16 %v812
        %v937 = vunpack.c.l.b16 %v815
        %v938 = vunpack.c.l.b16 %v818
        %v939 = vunpack.c.l.b16 %v821
        %v940 = vunpack.c.l.b16 %v824
        %v941 = vunpack.c.l.b16 %v827
        %v942 = vunpack.c.l.b16 %v830
        %v943 = vpack.c.b16 %v927, %v927
        %v944 = vpack.c.b16 %v928, %v928
        %v945 = vpack.c.b16 %v929, %v929
        %v946 = vpack.c.b16 %v930, %v930
        %v947 = vpack.c.b16 %v931, %v931
        %v948 = vpack.c.b16 %v932, %v932
        %v949 = vpack.c.b16 %v933, %v933
        %v950 = vpack.c.b16 %v934, %v934
        %v951 = vpack.c.b16 %v935, %v935
        %v952 = vpack.c.b16 %v936, %v936
        %v953 = vpack.c.b16 %v937, %v937
        %v954 = vpack.c.b16 %v938, %v938
        %v955 = vpack.c.b16 %v939, %v939
        %v956 = vpack.c.b16 %v940, %v940
        %v957 = vpack.c.b16 %v941, %v941
        %v958 = vpack.c.b16 %v942, %v942
        %v960 = vshrl.u32 %v895, 16
        %v962 = vshll.u32 %v895, 16
        %v964 = vrot.slane %v962, 1
        %v965 = vor.u32 %v960, %v964
        %v967 = vshll.u32 %v943, 16
        %v969 = vrot.slane %v967, 1
        %v970 = vsel %vm405, %v965, %v969
        %v972 = vshrl.u32 %v896, 16
        %v974 = vshll.u32 %v896, 16
        %v976 = vrot.slane %v974, 1
        %v977 = vor.u32 %v972, %v976
        %v979 = vshll.u32 %v944, 16
        %v981 = vrot.slane %v979, 1
        %v982 = vsel %vm405, %v977, %v981
        %v984 = vshrl.u32 %v897, 16
        %v986 = vshll.u32 %v897, 16
        %v988 = vrot.slane %v986, 1
        %v989 = vor.u32 %v984, %v988
        %v991 = vshll.u32 %v945, 16
        %v993 = vrot.slane %v991, 1
        %v994 = vsel %vm405, %v989, %v993
        %v996 = vshrl.u32 %v898, 16
        %v998 = vshll.u32 %v898, 16
        %v1000 = vrot.slane %v998, 1
        %v1001 = vor.u32 %v996, %v1000
        %v1003 = vshll.u32 %v946, 16
        %v1005 = vrot.slane %v1003, 1
        %v1006 = vsel %vm405, %v1001, %v1005
        %v1008 = vshrl.u32 %v899, 16
        %v1010 = vshll.u32 %v899, 16
        %v1012 = vrot.slane %v1010, 1
        %v1013 = vor.u32 %v1008, %v1012
        %v1015 = vshll.u32 %v947, 16
        %v1017 = vrot.slane %v1015, 1
        %v1018 = vsel %vm405, %v1013, %v1017
        %v1020 = vshrl.u32 %v900, 16
        %v1022 = vshll.u32 %v900, 16
        %v1024 = vrot.slane %v1022, 1
        %v1025 = vor.u32 %v1020, %v1024
        %v1027 = vshll.u32 %v948, 16
        %v1029 = vrot.slane %v1027, 1
        %v1030 = vsel %vm405, %v1025, %v1029
        %v1032 = vshrl.u32 %v901, 16
        %v1034 = vshll.u32 %v901, 16
        %v1036 = vrot.slane %v1034, 1
        %v1037 = vor.u32 %v1032, %v1036
        %v1039 = vshll.u32 %v949, 16
        %v1041 = vrot.slane %v1039, 1
        %v1042 = vsel %vm405, %v1037, %v1041
        %v1044 = vshrl.u32 %v902, 16
        %v1046 = vshll.u32 %v902, 16
        %v1048 = vrot.slane %v1046, 1
        %v1049 = vor.u32 %v1044, %v1048
        %v1051 = vshll.u32 %v950, 16
        %v1053 = vrot.slane %v1051, 1
        %v1054 = vsel %vm405, %v1049, %v1053
        %v1056 = vshrl.u32 %v903, 16
        %v1058 = vshll.u32 %v903, 16
        %v1060 = vrot.slane %v1058, 1
        %v1061 = vor.u32 %v1056, %v1060
        %v1063 = vshll.u32 %v951, 16
        %v1065 = vrot.slane %v1063, 1
        %v1066 = vsel %vm405, %v1061, %v1065
        %v1068 = vshrl.u32 %v904, 16
        %v1070 = vshll.u32 %v904, 16
        %v1072 = vrot.slane %v1070, 1
        %v1073 = vor.u32 %v1068, %v1072
        %v1075 = vshll.u32 %v952, 16
        %v1077 = vrot.slane %v1075, 1
        %v1078 = vsel %vm405, %v1073, %v1077
        %v1080 = vshrl.u32 %v905, 16
        %v1082 = vshll.u32 %v905, 16
        %v1084 = vrot.slane %v1082, 1
        %v1085 = vor.u32 %v1080, %v1084
        %v1087 = vshll.u32 %v953, 16
        %v1089 = vrot.slane %v1087, 1
        %v1090 = vsel %vm405, %v1085, %v1089
        %v1092 = vshrl.u32 %v906, 16
        %v1094 = vshll.u32 %v906, 16
        %v1096 = vrot.slane %v1094, 1
        %v1097 = vor.u32 %v1092, %v1096
        %v1099 = vshll.u32 %v954, 16
        %v1101 = vrot.slane %v1099, 1
        %v1102 = vsel %vm405, %v1097, %v1101
        %v1104 = vshrl.u32 %v907, 16
        %v1106 = vshll.u32 %v907, 16
        %v1108 = vrot.slane %v1106, 1
        %v1109 = vor.u32 %v1104, %v1108
        %v1111 = vshll.u32 %v955, 16
        %v1113 = vrot.slane %v1111, 1
        %v1114 = vsel %vm405, %v1109, %v1113
        %v1116 = vshrl.u32 %v908, 16
        %v1118 = vshll.u32 %v908, 16
        %v1120 = vrot.slane %v1118, 1
        %v1121 = vor.u32 %v1116, %v1120
        %v1123 = vshll.u32 %v956, 16
        %v1125 = vrot.slane %v1123, 1
        %v1126 = vsel %vm405, %v1121, %v1125
        %v1128 = vshrl.u32 %v909, 16
        %v1130 = vshll.u32 %v909, 16
        %v1132 = vrot.slane %v1130, 1
        %v1133 = vor.u32 %v1128, %v1132
        %v1135 = vshll.u32 %v957, 16
        %v1137 = vrot.slane %v1135, 1
        %v1138 = vsel %vm405, %v1133, %v1137
        %v1140 = vshrl.u32 %v910, 16
        %v1142 = vshll.u32 %v910, 16
        %v1144 = vrot.slane %v1142, 1
        %v1145 = vor.u32 %v1140, %v1144
        %v1147 = vshll.u32 %v958, 16
        %v1149 = vrot.slane %v1147, 1
        %v1150 = vsel %vm405, %v1145, %v1149
        %1151 = vrot.lane.b32.xlu0 %v970, 4
        %v1152 = vpop.permute.xlu0 %1151
        %1153 = vrot.lane.b32.xlu0 %v982, 4
        %v1154 = vpop.permute.xlu0 %1153
        %1155 = vrot.lane.b32.xlu0 %v994, 4
        %v1156 = vpop.permute.xlu0 %1155
        %1157 = vrot.lane.b32.xlu0 %v1006, 4
        %v1158 = vpop.permute.xlu0 %1157
        %1159 = vrot.lane.b32.xlu0 %v1018, 4
        %v1160 = vpop.permute.xlu0 %1159
        %1161 = vrot.lane.b32.xlu0 %v1030, 4
        %v1162 = vpop.permute.xlu0 %1161
        %1163 = vrot.lane.b32.xlu0 %v1042, 4
        %v1164 = vpop.permute.xlu0 %1163
        %1165 = vrot.lane.b32.xlu0 %v1054, 4
        %v1166 = vpop.permute.xlu0 %1165
        %1167 = vrot.lane.b32.xlu0 %v1066, 4
        %v1168 = vpop.permute.xlu0 %1167
        %1169 = vrot.lane.b32.xlu0 %v1078, 4
        %v1170 = vpop.permute.xlu0 %1169
        %1171 = vrot.lane.b32.xlu0 %v1090, 4
        %v1172 = vpop.permute.xlu0 %1171
        %1173 = vrot.lane.b32.xlu0 %v1102, 4
        %v1174 = vpop.permute.xlu0 %1173
        %1175 = vrot.lane.b32.xlu0 %v1114, 4
        %v1176 = vpop.permute.xlu0 %1175
        %1177 = vrot.lane.b32.xlu0 %v1126, 4
        %v1178 = vpop.permute.xlu0 %1177
        %1179 = vrot.lane.b32.xlu0 %v1138, 4
        %v1180 = vpop.permute.xlu0 %1179
        %1181 = vrot.lane.b32.xlu0 %v1150, 4
        %v1182 = vpop.permute.xlu0 %1181
        %v1183 = vrot.slane %v895, 1
        %v1184 = vrot.slane %v943, 1
        %v1185 = vsel %vm630, %v1183, %v1184
        %v1186 = vrot.slane %v896, 1
        %v1187 = vrot.slane %v944, 1
        %v1188 = vsel %vm630, %v1186, %v1187
        %v1189 = vrot.slane %v897, 1
        %v1190 = vrot.slane %v945, 1
        %v1191 = vsel %vm630, %v1189, %v1190
        %v1192 = vrot.slane %v898, 1
        %v1193 = vrot.slane %v946, 1
        %v1194 = vsel %vm630, %v1192, %v1193
        %v1195 = vrot.slane %v899, 1
        %v1196 = vrot.slane %v947, 1
        %v1197 = vsel %vm630, %v1195, %v1196
        %v1198 = vrot.slane %v900, 1
        %v1199 = vrot.slane %v948, 1
        %v1200 = vsel %vm630, %v1198, %v1199
        %v1201 = vrot.slane %v901, 1
        %v1202 = vrot.slane %v949, 1
        %v1203 = vsel %vm630, %v1201, %v1202
        %v1204 = vrot.slane %v902, 1
        %v1205 = vrot.slane %v950, 1
        %v1206 = vsel %vm630, %v1204, %v1205
        %v1207 = vrot.slane %v903, 1
        %v1208 = vrot.slane %v951, 1
        %v1209 = vsel %vm630, %v1207, %v1208
        %v1210 = vrot.slane %v904, 1
        %v1211 = vrot.slane %v952, 1
        %v1212 = vsel %vm630, %v1210, %v1211
        %v1213 = vrot.slane %v905, 1
        %v1214 = vrot.slane %v953, 1
        %v1215 = vsel %vm630, %v1213, %v1214
        %v1216 = vrot.slane %v906, 1
        %v1217 = vrot.slane %v954, 1
        %v1218 = vsel %vm630, %v1216, %v1217
        %v1219 = vrot.slane %v907, 1
        %v1220 = vrot.slane %v955, 1
        %v1221 = vsel %vm630, %v1219, %v1220
        %v1222 = vrot.slane %v908, 1
        %v1223 = vrot.slane %v956, 1
        %v1224 = vsel %vm630, %v1222, %v1223
        %v1225 = vrot.slane %v909, 1
        %v1226 = vrot.slane %v957, 1
        %v1227 = vsel %vm630, %v1225, %v1226
        %v1228 = vrot.slane %v910, 1
        %v1229 = vrot.slane %v958, 1
        %v1230 = vsel %vm630, %v1228, %v1229
        %1231 = vrot.lane.b32.xlu0 %v1185, 8
        %v1232 = vpop.permute.xlu0 %1231
        %1233 = vrot.lane.b32.xlu0 %v1188, 8
        %v1234 = vpop.permute.xlu0 %1233
        %1235 = vrot.lane.b32.xlu0 %v1191, 8
        %v1236 = vpop.permute.xlu0 %1235
        %1237 = vrot.lane.b32.xlu0 %v1194, 8
        %v1238 = vpop.permute.xlu0 %1237
        %1239 = vrot.lane.b32.xlu0 %v1197, 8
        %v1240 = vpop.permute.xlu0 %1239
        %1241 = vrot.lane.b32.xlu0 %v1200, 8
        %v1242 = vpop.permute.xlu0 %1241
        %1243 = vrot.lane.b32.xlu0 %v1203, 8
        %v1244 = vpop.permute.xlu0 %1243
        %1245 = vrot.lane.b32.xlu0 %v1206, 8
        %v1246 = vpop.permute.xlu0 %1245
        %1247 = vrot.lane.b32.xlu0 %v1209, 8
        %v1248 = vpop.permute.xlu0 %1247
        %1249 = vrot.lane.b32.xlu0 %v1212, 8
        %v1250 = vpop.permute.xlu0 %1249
        %1251 = vrot.lane.b32.xlu0 %v1215, 8
        %v1252 = vpop.permute.xlu0 %1251
        %1253 = vrot.lane.b32.xlu0 %v1218, 8
        %v1254 = vpop.permute.xlu0 %1253
        %1255 = vrot.lane.b32.xlu0 %v1221, 8
        %v1256 = vpop.permute.xlu0 %1255
        %1257 = vrot.lane.b32.xlu0 %v1224, 8
        %v1258 = vpop.permute.xlu0 %1257
        %1259 = vrot.lane.b32.xlu0 %v1227, 8
        %v1260 = vpop.permute.xlu0 %1259
        %1261 = vrot.lane.b32.xlu0 %v1230, 8
        %v1262 = vpop.permute.xlu0 %1261
        %v1264 = vsel %vm711, %v895, %v1152
        %v1266 = vsel %vm711, %v896, %v1154
        %v1268 = vsel %vm711, %v897, %v1156
        %v1270 = vsel %vm711, %v898, %v1158
        %v1272 = vsel %vm711, %v899, %v1160
        %v1274 = vsel %vm711, %v900, %v1162
        %v1276 = vsel %vm711, %v901, %v1164
        %v1278 = vsel %vm711, %v902, %v1166
        %v1280 = vsel %vm711, %v903, %v1168
        %v1282 = vsel %vm711, %v904, %v1170
        %v1284 = vsel %vm711, %v905, %v1172
        %v1286 = vsel %vm711, %v906, %v1174
        %v1288 = vsel %vm711, %v907, %v1176
        %v1290 = vsel %vm711, %v908, %v1178
        %v1292 = vsel %vm711, %v909, %v1180
        %v1294 = vsel %vm711, %v910, %v1182
        %v1296 = vsel %vm744, %v1264, %v1232
        %v1298 = vsel %vm744, %v1266, %v1234
        %v1300 = vsel %vm744, %v1268, %v1236
        %v1302 = vsel %vm744, %v1270, %v1238
        %v1304 = vsel %vm744, %v1272, %v1240
        %v1306 = vsel %vm744, %v1274, %v1242
        %v1308 = vsel %vm744, %v1276, %v1244
        %v1310 = vsel %vm744, %v1278, %v1246
        %v1312 = vsel %vm744, %v1280, %v1248
        %v1314 = vsel %vm744, %v1282, %v1250
        %v1316 = vsel %vm744, %v1284, %v1252
        %v1318 = vsel %vm744, %v1286, %v1254
        %v1320 = vsel %vm744, %v1288, %v1256
        %v1322 = vsel %vm744, %v1290, %v1258
        %v1324 = vsel %vm744, %v1292, %v1260
        %v1326 = vsel %vm744, %v1294, %v1262
        %s1327 = scalar_lea.vmem %s219, 8
        %v1328 = vld [vmem:[%s1327] sm:$0xf]
        %v1329 = vld [vmem:[%s1327 + $0x4] sm:$0x3]
        %v1332 = vunpack.c.l.b16 %v1328
        %v1333 = vunpack.c.l.b16 %v1329
        %v1334 = vpack.c.b16 %v1333, %v1332
        %vm1335 = vcmask 97280
        %v1336 = vsel %vm1335, %v1296, 0
        %v1338 = vsel %vm1335, %v1298, 0
        %v1340 = vsel %vm1335, %v1300, 0
        %v1342 = vsel %vm1335, %v1302, 0
        %v1344 = vsel %vm1335, %v1304, 0
        %v1346 = vsel %vm1335, %v1306, 0
        %v1348 = vsel %vm1335, %v1308, 0
        %v1350 = vsel %vm1335, %v1310, 0
        %v1352 = vsel %vm1335, %v1312, 0
        %v1354 = vsel %vm1335, %v1314, 0
        %v1356 = vsel %vm1335, %v1316, 0
        %v1358 = vsel %vm1335, %v1318, 0
        %v1360 = vsel %vm1335, %v1320, 0
        %v1362 = vsel %vm1335, %v1322, 0
        %v1364 = vsel %vm1335, %v1324, 0
        %v1366 = vsel %vm1335, %v1326, 0
        %vm1368 = vcmask 1045504
        %v1370 = vsel %vm1368, %v1334, 0
        %1372 = vmatprep.subr.bf16.mxu0 0
        %1373 = vmatpush1.bf16.msra.mxu0 %v1370
        %1374 = vmatprep.subr.bf16.mxu0 0
        %1375 = vmatpush1.bf16.msra.mxu0 0
        %1376 = vmatprep.subr.bf16.mxu0 0
        %1377 = vmatpush1.bf16.msra.mxu0 0
        %1378 = vmatprep.subr.bf16.mxu0 0
        %1379 = vmatpush1.bf16.msra.mxu0 0
        %1380 = vmatprep.subr.bf16.mxu0 0
        %1381 = vmatpush1.bf16.msra.mxu0 0
        %1382 = vmatprep.subr.bf16.mxu0 0
        %1383 = vmatpush1.bf16.msra.mxu0 0
        %1384 = vmatprep.subr.bf16.mxu0 0
        %1385 = vmatpush1.bf16.msra.mxu0 0
        %1386 = vmatprep.subr.bf16.mxu0 0
        %1387 = vmatpush1.bf16.msra.mxu0 0
        %1388 = vmatprep.subr.bf16.mxu0 0
        %1389 = vmatpush1.bf16.msra.mxu0 0
        %1390 = vmatprep.subr.bf16.mxu0 0
        %1391 = vmatpush1.bf16.msra.mxu0 0
        %1392 = vmatprep.subr.bf16.mxu0 0
        %1393 = vmatpush1.bf16.msra.mxu0 0
        %1394 = vmatprep.subr.bf16.mxu0 0
        %1395 = vmatpush1.bf16.msra.mxu0 0
        %1396 = vmatprep.subr.bf16.mxu0 0
        %1397 = vmatpush1.bf16.msra.mxu0 0
        %1398 = vmatprep.subr.bf16.mxu0 0
        %1399 = vmatpush1.bf16.msra.mxu0 0
        %1400 = vmatprep.subr.bf16.mxu0 0
        %1401 = vmatpush1.bf16.msra.mxu0 0
        %1402 = vmatprep.subr.bf16.mxu0 0
        %1403 = vmatpush1.bf16.msra.mxu0 0
        %1404 = vmatprep.mubr.bf16.mxu0 0
        %1405 = vmatmul.mubr.bf16.gmra.mrb[0].mxu0 %v1336
        %v1406 = vpop.f32.mrb[0].mxu0
        %v1407 = vadd.f32 0.0, %v1406
        %v1408 = vpop.f32.mrb[0].mxu0
        %v1409 = vpop.f32.mrb[0].mxu0
        %v1410 = vadd.f32 0.0, %v1409
        %v1411 = vpop.f32.mrb[0].mxu0
        %1412 = vmatprep.mubr.bf16.mxu0 0
        %1413 = vmatmul.mubr.bf16.gmra.mrb[0].mxu0 %v1338
        %v1414 = vpop.f32.mrb[0].mxu0
        %v1415 = vadd.f32 0.0, %v1414
        %v1416 = vpop.f32.mrb[0].mxu0
        %v1417 = vpop.f32.mrb[0].mxu0
        %v1418 = vadd.f32 0.0, %v1417
        %v1419 = vpop.f32.mrb[0].mxu0
        %1420 = vmatprep.mubr.bf16.mxu0 0
        %1421 = vmatmul.mubr.bf16.gmra.mrb[0].mxu0 %v1340
        %v1422 = vpop.f32.mrb[0].mxu0
        %v1423 = vadd.f32 0.0, %v1422
        %v1424 = vpop.f32.mrb[0].mxu0
        %v1425 = vpop.f32.mrb[0].mxu0
        %v1426 = vadd.f32 0.0, %v1425
        %v1427 = vpop.f32.mrb[0].mxu0
        %1428 = vmatprep.mubr.bf16.mxu0 0
        %1429 = vmatmul.mubr.bf16.gmra.mrb[0].mxu0 %v1342
        %v1430 = vpop.f32.mrb[0].mxu0
        %v1431 = vadd.f32 0.0, %v1430
        %v1432 = vpop.f32.mrb[0].mxu0
        %v1433 = vpop.f32.mrb[0].mxu0
        %v1434 = vadd.f32 0.0, %v1433
        %v1435 = vpop.f32.mrb[0].mxu0
        %1436 = vmatprep.mubr.bf16.mxu0 0
        %1437 = vmatmul.mubr.bf16.gmra.mrb[0].mxu0 %v1344
        %v1438 = vpop.f32.mrb[0].mxu0
        %v1439 = vadd.f32 0.0, %v1438
        %v1440 = vpop.f32.mrb[0].mxu0
        %v1441 = vpop.f32.mrb[0].mxu0
        %v1442 = vadd.f32 0.0, %v1441
        %v1443 = vpop.f32.mrb[0].mxu0
        %1444 = vmatprep.mubr.bf16.mxu0 0
        %1445 = vmatmul.mubr.bf16.gmra.mrb[0].mxu0 %v1346
        %v1446 = vpop.f32.mrb[0].mxu0
        %v1447 = vadd.f32 0.0, %v1446
        %v1448 = vpop.f32.mrb[0].mxu0
        %v1449 = vpop.f32.mrb[0].mxu0
        %v1450 = vadd.f32 0.0, %v1449
        %v1451 = vpop.f32.mrb[0].mxu0
        %1452 = vmatprep.mubr.bf16.mxu0 0
        %1453 = vmatmul.mubr.bf16.gmra.mrb[0].mxu0 %v1348
        %v1454 = vpop.f32.mrb[0].mxu0
        %v1455 = vadd.f32 0.0, %v1454
        %v1456 = vpop.f32.mrb[0].mxu0
        %v1457 = vpop.f32.mrb[0].mxu0
        %v1458 = vadd.f32 0.0, %v1457
        %v1459 = vpop.f32.mrb[0].mxu0
        %1460 = vmatprep.mubr.bf16.mxu0 0
        %1461 = vmatmul.mubr.bf16.gmra.mrb[0].mxu0 %v1350
        %v1462 = vpop.f32.mrb[0].mxu0
        %v1463 = vadd.f32 0.0, %v1462
        %v1464 = vpop.f32.mrb[0].mxu0
        %v1465 = vpop.f32.mrb[0].mxu0
        %v1466 = vadd.f32 0.0, %v1465
        %v1467 = vpop.f32.mrb[0].mxu0
        %1468 = vmatprep.mubr.bf16.mxu0 0
        %1469 = vmatmul.mubr.bf16.gmra.mrb[0].mxu0 %v1352
        %v1470 = vpop.f32.mrb[0].mxu0
        %v1471 = vadd.f32 0.0, %v1470
        %v1472 = vpop.f32.mrb[0].mxu0
        %v1473 = vpop.f32.mrb[0].mxu0
        %v1474 = vadd.f32 0.0, %v1473
        %v1475 = vpop.f32.mrb[0].mxu0
        %1476 = vmatprep.mubr.bf16.mxu0 0
        %1477 = vmatmul.mubr.bf16.gmra.mrb[0].mxu0 %v1354
        %v1478 = vpop.f32.mrb[0].mxu0
        %v1479 = vadd.f32 0.0, %v1478
        %v1480 = vpop.f32.mrb[0].mxu0
        %v1481 = vpop.f32.mrb[0].mxu0
        %v1482 = vadd.f32 0.0, %v1481
        %v1483 = vpop.f32.mrb[0].mxu0
        %1484 = vmatprep.mubr.bf16.mxu0 0
        %1485 = vmatmul.mubr.bf16.gmra.mrb[0].mxu0 %v1356
        %v1486 = vpop.f32.mrb[0].mxu0
        %v1487 = vadd.f32 0.0, %v1486
        %v1488 = vpop.f32.mrb[0].mxu0
        %v1489 = vpop.f32.mrb[0].mxu0
        %v1490 = vadd.f32 0.0, %v1489
        %v1491 = vpop.f32.mrb[0].mxu0
        %1492 = vmatprep.mubr.bf16.mxu0 0
        %1493 = vmatmul.mubr.bf16.gmra.mrb[0].mxu0 %v1358
        %v1494 = vpop.f32.mrb[0].mxu0
        %v1495 = vadd.f32 0.0, %v1494
        %v1496 = vpop.f32.mrb[0].mxu0
        %v1497 = vpop.f32.mrb[0].mxu0
        %v1498 = vadd.f32 0.0, %v1497
        %v1499 = vpop.f32.mrb[0].mxu0
        %1500 = vmatprep.mubr.bf16.mxu0 0
        %1501 = vmatmul.mubr.bf16.gmra.mrb[0].mxu0 %v1360
        %v1502 = vpop.f32.mrb[0].mxu0
        %v1503 = vadd.f32 0.0, %v1502
        %v1504 = vpop.f32.mrb[0].mxu0
        %v1505 = vpop.f32.mrb[0].mxu0
        %v1506 = vadd.f32 0.0, %v1505
        %v1507 = vpop.f32.mrb[0].mxu0
        %1508 = vmatprep.mubr.bf16.mxu0 0
        %1509 = vmatmul.mubr.bf16.gmra.mrb[0].mxu0 %v1362
        %v1510 = vpop.f32.mrb[0].mxu0
        %v1511 = vadd.f32 0.0, %v1510
        %v1512 = vpop.f32.mrb[0].mxu0
        %v1513 = vpop.f32.mrb[0].mxu0
        %v1514 = vadd.f32 0.0, %v1513
        %v1515 = vpop.f32.mrb[0].mxu0
        %1516 = vmatprep.mubr.bf16.mxu0 0
        %1517 = vmatmul.mubr.bf16.gmra.mrb[0].mxu0 %v1364
        %v1518 = vpop.f32.mrb[0].mxu0
        %v1519 = vadd.f32 0.0, %v1518
        %v1520 = vpop.f32.mrb[0].mxu0
        %v1521 = vpop.f32.mrb[0].mxu0
        %v1522 = vadd.f32 0.0, %v1521
        %v1523 = vpop.f32.mrb[0].mxu0
        %1524 = vmatprep.mubr.bf16.mxu0 0
        %1525 = vmatmul.mubr.bf16.gmra.mrb[0].mxu0 %v1366
        %v1526 = vpop.f32.mrb[0].mxu0
        %v1527 = vadd.f32 0.0, %v1526
        %v1528 = vpop.f32.mrb[0].mxu0
        %v1529 = vpop.f32.mrb[0].mxu0
        %v1530 = vadd.f32 0.0, %v1529
        %v1531 = vpop.f32.mrb[0].mxu0
        %1532 = vdwg.mxu0
        %v1535 = vunpack.c.l.b16 %v777
        %v1536 = vunpack.c.l.b16 %v778
        %v1537 = vpack.c.b16 %v1536, %v1535
        %v1538 = vsel %vm1335, %v746, 0
        %v1540 = vsel %vm1335, %v748, 0
        %v1542 = vsel %vm1335, %v750, 0
        %v1544 = vsel %vm1335, %v752, 0
        %v1546 = vsel %vm1335, %v754, 0
        %v1548 = vsel %vm1335, %v756, 0
        %v1550 = vsel %vm1335, %v758, 0
        %v1552 = vsel %vm1335, %v760, 0
        %v1554 = vsel %vm1335, %v762, 0
        %v1556 = vsel %vm1335, %v764, 0
        %v1558 = vsel %vm1335, %v766, 0
        %v1560 = vsel %vm1335, %v768, 0
        %v1562 = vsel %vm1335, %v770, 0
        %v1564 = vsel %vm1335, %v772, 0
        %v1566 = vsel %vm1335, %v774, 0
        %v1568 = vsel %vm1335, %v776, 0
        %v1571 = vsel %vm1368, %v1537, 0
        %1573 = vmatprep.subr.bf16.mxu0 0
        %1574 = vmatpush1.bf16.msra.mxu0 %v1571
        %1575 = vmatprep.subr.bf16.mxu0 0
        %1576 = vmatpush1.bf16.msra.mxu0 0
        %1577 = vmatprep.subr.bf16.mxu0 0
        %1578 = vmatpush1.bf16.msra.mxu0 0
        %1579 = vmatprep.subr.bf16.mxu0 0
        %1580 = vmatpush1.bf16.msra.mxu0 0
        %1581 = vmatprep.subr.bf16.mxu0 0
        %1582 = vmatpush1.bf16.msra.mxu0 0
        %1583 = vmatprep.subr.bf16.mxu0 0
        %1584 = vmatpush1.bf16.msra.mxu0 0
        %1585 = vmatprep.subr.bf16.mxu0 0
        %1586 = vmatpush1.bf16.msra.mxu0 0
        %1587 = vmatprep.subr.bf16.mxu0 0
        %1588 = vmatpush1.bf16.msra.mxu0 0
        %1589 = vmatprep.subr.bf16.mxu0 0
        %1590 = vmatpush1.bf16.msra.mxu0 0
        %1591 = vmatprep.subr.bf16.mxu0 0
        %1592 = vmatpush1.bf16.msra.mxu0 0
        %1593 = vmatprep.subr.bf16.mxu0 0
        %1594 = vmatpush1.bf16.msra.mxu0 0
        %1595 = vmatprep.subr.bf16.mxu0 0
        %1596 = vmatpush1.bf16.msra.mxu0 0
        %1597 = vmatprep.subr.bf16.mxu0 0
        %1598 = vmatpush1.bf16.msra.mxu0 0
        %1599 = vmatprep.subr.bf16.mxu0 0
        %1600 = vmatpush1.bf16.msra.mxu0 0
        %1601 = vmatprep.subr.bf16.mxu0 0
        %1602 = vmatpush1.bf16.msra.mxu0 0
        %1603 = vmatprep.subr.bf16.mxu0 0
        %1604 = vmatpush1.bf16.msra.mxu0 0
        %1605 = vmatprep.mubr.bf16.mxu0 0
        %1606 = vmatmul.mubr.bf16.gmra.mrb[0].mxu0 %v1538
        %v1607 = vpop.f32.mrb[0].mxu0
        %v1608 = vadd.f32 %v1407, %v1607
        %v1609 = vpop.f32.mrb[0].mxu0
        %v1610 = vpop.f32.mrb[0].mxu0
        %v1611 = vadd.f32 %v1410, %v1610
        %v1612 = vpop.f32.mrb[0].mxu0
        %1613 = vmatprep.mubr.bf16.mxu0 0
        %1614 = vmatmul.mubr.bf16.gmra.mrb[0].mxu0 %v1540
        %v1615 = vpop.f32.mrb[0].mxu0
        %v1616 = vadd.f32 %v1415, %v1615
        %v1617 = vpop.f32.mrb[0].mxu0
        %v1618 = vpop.f32.mrb[0].mxu0
        %v1619 = vadd.f32 %v1418, %v1618
        %v1620 = vpop.f32.mrb[0].mxu0
        %1621 = vmatprep.mubr.bf16.mxu0 0
        %1622 = vmatmul.mubr.bf16.gmra.mrb[0].mxu0 %v1542
        %v1623 = vpop.f32.mrb[0].mxu0
        %v1624 = vadd.f32 %v1423, %v1623
        %v1625 = vpop.f32.mrb[0].mxu0
        %v1626 = vpop.f32.mrb[0].mxu0
        %v1627 = vadd.f32 %v1426, %v1626
        %v1628 = vpop.f32.mrb[0].mxu0
        %1629 = vmatprep.mubr.bf16.mxu0 0
        %1630 = vmatmul.mubr.bf16.gmra.mrb[0].mxu0 %v1544
        %v1631 = vpop.f32.mrb[0].mxu0
        %v1632 = vadd.f32 %v1431, %v1631
        %v1633 = vpop.f32.mrb[0].mxu0
        %v1634 = vpop.f32.mrb[0].mxu0
        %v1635 = vadd.f32 %v1434, %v1634
        %v1636 = vpop.f32.mrb[0].mxu0
        %1637 = vmatprep.mubr.bf16.mxu0 0
        %1638 = vmatmul.mubr.bf16.gmra.mrb[0].mxu0 %v1546
        %v1639 = vpop.f32.mrb[0].mxu0
        %v1640 = vadd.f32 %v1439, %v1639
        %v1641 = vpop.f32.mrb[0].mxu0
        %v1642 = vpop.f32.mrb[0].mxu0
        %v1643 = vadd.f32 %v1442, %v1642
        %v1644 = vpop.f32.mrb[0].mxu0
        %1645 = vmatprep.mubr.bf16.mxu0 0
        %1646 = vmatmul.mubr.bf16.gmra.mrb[0].mxu0 %v1548
        %v1647 = vpop.f32.mrb[0].mxu0
        %v1648 = vadd.f32 %v1447, %v1647
        %v1649 = vpop.f32.mrb[0].mxu0
        %v1650 = vpop.f32.mrb[0].mxu0
        %v1651 = vadd.f32 %v1450, %v1650
        %v1652 = vpop.f32.mrb[0].mxu0
        %1653 = vmatprep.mubr.bf16.mxu0 0
        %1654 = vmatmul.mubr.bf16.gmra.mrb[0].mxu0 %v1550
        %v1655 = vpop.f32.mrb[0].mxu0
        %v1656 = vadd.f32 %v1455, %v1655
        %v1657 = vpop.f32.mrb[0].mxu0
        %v1658 = vpop.f32.mrb[0].mxu0
        %v1659 = vadd.f32 %v1458, %v1658
        %v1660 = vpop.f32.mrb[0].mxu0
        %1661 = vmatprep.mubr.bf16.mxu0 0
        %1662 = vmatmul.mubr.bf16.gmra.mrb[0].mxu0 %v1552
        %v1663 = vpop.f32.mrb[0].mxu0
        %v1664 = vadd.f32 %v1463, %v1663
        %v1665 = vpop.f32.mrb[0].mxu0
        %v1666 = vpop.f32.mrb[0].mxu0
        %v1667 = vadd.f32 %v1466, %v1666
        %v1668 = vpop.f32.mrb[0].mxu0
        %1669 = vmatprep.mubr.bf16.mxu0 0
        %1670 = vmatmul.mubr.bf16.gmra.mrb[0].mxu0 %v1554
        %v1671 = vpop.f32.mrb[0].mxu0
        %v1672 = vadd.f32 %v1471, %v1671
        %v1673 = vpop.f32.mrb[0].mxu0
        %v1674 = vpop.f32.mrb[0].mxu0
        %v1675 = vadd.f32 %v1474, %v1674
        %v1676 = vpop.f32.mrb[0].mxu0
        %1677 = vmatprep.mubr.bf16.mxu0 0
        %1678 = vmatmul.mubr.bf16.gmra.mrb[0].mxu0 %v1556
        %v1679 = vpop.f32.mrb[0].mxu0
        %v1680 = vadd.f32 %v1479, %v1679
        %v1681 = vpop.f32.mrb[0].mxu0
        %v1682 = vpop.f32.mrb[0].mxu0
        %v1683 = vadd.f32 %v1482, %v1682
        %v1684 = vpop.f32.mrb[0].mxu0
        %1685 = vmatprep.mubr.bf16.mxu0 0
        %1686 = vmatmul.mubr.bf16.gmra.mrb[0].mxu0 %v1558
        %v1687 = vpop.f32.mrb[0].mxu0
        %v1688 = vadd.f32 %v1487, %v1687
        %v1689 = vpop.f32.mrb[0].mxu0
        %v1690 = vpop.f32.mrb[0].mxu0
        %v1691 = vadd.f32 %v1490, %v1690
        %v1692 = vpop.f32.mrb[0].mxu0
        %1693 = vmatprep.mubr.bf16.mxu0 0
        %1694 = vmatmul.mubr.bf16.gmra.mrb[0].mxu0 %v1560
        %v1695 = vpop.f32.mrb[0].mxu0
        %v1696 = vadd.f32 %v1495, %v1695
        %v1697 = vpop.f32.mrb[0].mxu0
        %v1698 = vpop.f32.mrb[0].mxu0
        %v1699 = vadd.f32 %v1498, %v1698
        %v1700 = vpop.f32.mrb[0].mxu0
        %1701 = vmatprep.mubr.bf16.mxu0 0
        %1702 = vmatmul.mubr.bf16.gmra.mrb[0].mxu0 %v1562
        %v1703 = vpop.f32.mrb[0].mxu0
        %v1704 = vadd.f32 %v1503, %v1703
        %v1705 = vpop.f32.mrb[0].mxu0
        %v1706 = vpop.f32.mrb[0].mxu0
        %v1707 = vadd.f32 %v1506, %v1706
        %v1708 = vpop.f32.mrb[0].mxu0
        %1709 = vmatprep.mubr.bf16.mxu0 0
        %1710 = vmatmul.mubr.bf16.gmra.mrb[0].mxu0 %v1564
        %v1711 = vpop.f32.mrb[0].mxu0
        %v1712 = vadd.f32 %v1511, %v1711
        %v1713 = vpop.f32.mrb[0].mxu0
        %v1714 = vpop.f32.mrb[0].mxu0
        %v1715 = vadd.f32 %v1514, %v1714
        %v1716 = vpop.f32.mrb[0].mxu0
        %1717 = vmatprep.mubr.bf16.mxu0 0
        %1718 = vmatmul.mubr.bf16.gmra.mrb[0].mxu0 %v1566
        %v1719 = vpop.f32.mrb[0].mxu0
        %v1720 = vadd.f32 %v1519, %v1719
        %v1721 = vpop.f32.mrb[0].mxu0
        %v1722 = vpop.f32.mrb[0].mxu0
        %v1723 = vadd.f32 %v1522, %v1722
        %v1724 = vpop.f32.mrb[0].mxu0
        %1725 = vmatprep.mubr.bf16.mxu0 0
        %1726 = vmatmul.mubr.bf16.gmra.mrb[0].mxu0 %v1568
        %v1727 = vpop.f32.mrb[0].mxu0
        %v1728 = vadd.f32 %v1527, %v1727
        %v1729 = vpop.f32.mrb[0].mxu0
        %v1730 = vpop.f32.mrb[0].mxu0
        %v1731 = vadd.f32 %v1530, %v1730
        %v1732 = vpop.f32.mrb[0].mxu0
        %1733 = vdwg.mxu0
        %s1734 = sadd.s32 %s225, 2
        %s1735 = smul.u32 %s1734, 3
        %s1736 = smul.addr %s1735, 4
        %s1737 = scalar_lea.vmem %s215, %s1736
        %v1738 = vld [vmem:[%s1737] sm:$0xf]
        %v1739 = vld [vmem:[%s1737 + $0x4] sm:$0xf]
        %v1740 = vld [vmem:[%s1737 + $0x8] sm:$0x1]
        %v1741 = vld [vmem:[%s1737 + $0xc] sm:$0xf]
        %v1742 = vld [vmem:[%s1737 + $0x10] sm:$0xf]
        %v1743 = vld [vmem:[%s1737 + $0x14] sm:$0x1]
        %v1744 = vld [vmem:[%s1737 + $0x18] sm:$0xf]
        %v1745 = vld [vmem:[%s1737 + $0x1c] sm:$0xf]
        %v1746 = vld [vmem:[%s1737 + $0x20] sm:$0x1]
        %v1747 = vld [vmem:[%s1737 + $0x24] sm:$0xf]
        %v1748 = vld [vmem:[%s1737 + $0x28] sm:$0xf]
        %v1749 = vld [vmem:[%s1737 + $0x2c] sm:$0x1]
        %v1750 = vld [vmem:[%s1737 + $0x30] sm:$0xf]
        %v1751 = vld [vmem:[%s1737 + $0x34] sm:$0xf]
        %v1752 = vld [vmem:[%s1737 + $0x38] sm:$0x1]
        %v1753 = vld [vmem:[%s1737 + $0x3c] sm:$0xf]
        %v1754 = vld [vmem:[%s1737 + $0x40] sm:$0xf]
        %v1755 = vld [vmem:[%s1737 + $0x44] sm:$0x1]
        %v1756 = vld [vmem:[%s1737 + $0x48] sm:$0xf]
        %v1757 = vld [vmem:[%s1737 + $0x4c] sm:$0xf]
        %v1758 = vld [vmem:[%s1737 + $0x50] sm:$0x1]
        %v1759 = vld [vmem:[%s1737 + $0x54] sm:$0xf]
        %v1760 = vld [vmem:[%s1737 + $0x58] sm:$0xf]
        %v1761 = vld [vmem:[%s1737 + $0x5c] sm:$0x1]
        %v1762 = vld [vmem:[%s1737 + $0x60] sm:$0xf]
        %v1763 = vld [vmem:[%s1737 + $0x64] sm:$0xf]
        %v1764 = vld [vmem:[%s1737 + $0x68] sm:$0x1]
        %v1765 = vld [vmem:[%s1737 + $0x6c] sm:$0xf]
        %v1766 = vld [vmem:[%s1737 + $0x70] sm:$0xf]
        %v1767 = vld [vmem:[%s1737 + $0x74] sm:$0x1]
        %v1768 = vld [vmem:[%s1737 + $0x78] sm:$0xf]
        %v1769 = vld [vmem:[%s1737 + $0x7c] sm:$0xf]
        %v1770 = vld [vmem:[%s1737 + $0x80] sm:$0x1]
        %v1771 = vld [vmem:[%s1737 + $0x84] sm:$0xf]
        %v1772 = vld [vmem:[%s1737 + $0x88] sm:$0xf]
        %v1773 = vld [vmem:[%s1737 + $0x8c] sm:$0x1]
        %v1774 = vld [vmem:[%s1737 + $0x90] sm:$0xf]
        %v1775 = vld [vmem:[%s1737 + $0x94] sm:$0xf]
        %v1776 = vld [vmem:[%s1737 + $0x98] sm:$0x1]
        %v1777 = vld [vmem:[%s1737 + $0x9c] sm:$0xf]
        %v1778 = vld [vmem:[%s1737 + $0xa0] sm:$0xf]
        %v1779 = vld [vmem:[%s1737 + $0xa4] sm:$0x1]
        %v1780 = vld [vmem:[%s1737 + $0xa8] sm:$0xf]
        %v1781 = vld [vmem:[%s1737 + $0xac] sm:$0xf]
        %v1782 = vld [vmem:[%s1737 + $0xb0] sm:$0x1]
        %v1783 = vld [vmem:[%s1737 + $0xb4] sm:$0xf]
        %v1784 = vld [vmem:[%s1737 + $0xb8] sm:$0xf]
        %v1785 = vld [vmem:[%s1737 + $0xbc] sm:$0x1]
        %v1818 = vunpack.c.l.b16 %v1738
        %v1819 = vunpack.c.l.b16 %v1739
        %v1820 = vunpack.c.l.b16 %v1741
        %v1821 = vunpack.c.l.b16 %v1742
        %v1822 = vunpack.c.l.b16 %v1744
        %v1823 = vunpack.c.l.b16 %v1745
        %v1824 = vunpack.c.l.b16 %v1747
        %v1825 = vunpack.c.l.b16 %v1748
        %v1826 = vunpack.c.l.b16 %v1750
        %v1827 = vunpack.c.l.b16 %v1751
        %v1828 = vunpack.c.l.b16 %v1753
        %v1829 = vunpack.c.l.b16 %v1754
        %v1830 = vunpack.c.l.b16 %v1756
        %v1831 = vunpack.c.l.b16 %v1757
        %v1832 = vunpack.c.l.b16 %v1759
        %v1833 = vunpack.c.l.b16 %v1760
        %v1834 = vunpack.c.l.b16 %v1762
        %v1835 = vunpack.c.l.b16 %v1763
        %v1836 = vunpack.c.l.b16 %v1765
        %v1837 = vunpack.c.l.b16 %v1766
        %v1838 = vunpack.c.l.b16 %v1768
        %v1839 = vunpack.c.l.b16 %v1769
        %v1840 = vunpack.c.l.b16 %v1771
        %v1841 = vunpack.c.l.b16 %v1772
        %v1842 = vunpack.c.l.b16 %v1774
        %v1843 = vunpack.c.l.b16 %v1775
        %v1844 = vunpack.c.l.b16 %v1777
        %v1845 = vunpack.c.l.b16 %v1778
        %v1846 = vunpack.c.l.b16 %v1780
        %v1847 = vunpack.c.l.b16 %v1781
        %v1848 = vunpack.c.l.b16 %v1783
        %v1849 = vunpack.c.l.b16 %v1784
        %v1850 = vpack.c.b16 %v1819, %v1818
        %v1851 = vpack.c.b16 %v1821, %v1820
        %v1852 = vpack.c.b16 %v1823, %v1822
        %v1853 = vpack.c.b16 %v1825, %v1824
        %v1854 = vpack.c.b16 %v1827, %v1826
        %v1855 = vpack.c.b16 %v1829, %v1828
        %v1856 = vpack.c.b16 %v1831, %v1830
        %v1857 = vpack.c.b16 %v1833, %v1832
        %v1858 = vpack.c.b16 %v1835, %v1834
        %v1859 = vpack.c.b16 %v1837, %v1836
        %v1860 = vpack.c.b16 %v1839, %v1838
        %v1861 = vpack.c.b16 %v1841, %v1840
        %v1862 = vpack.c.b16 %v1843, %v1842
        %v1863 = vpack.c.b16 %v1845, %v1844
        %v1864 = vpack.c.b16 %v1847, %v1846
        %v1865 = vpack.c.b16 %v1849, %v1848
        %v1882 = vunpack.c.l.b16 %v1740
        %v1883 = vunpack.c.l.b16 %v1743
        %v1884 = vunpack.c.l.b16 %v1746
        %v1885 = vunpack.c.l.b16 %v1749
        %v1886 = vunpack.c.l.b16 %v1752
        %v1887 = vunpack.c.l.b16 %v1755
        %v1888 = vunpack.c.l.b16 %v1758
        %v1889 = vunpack.c.l.b16 %v1761
        %v1890 = vunpack.c.l.b16 %v1764
        %v1891 = vunpack.c.l.b16 %v1767
        %v1892 = vunpack.c.l.b16 %v1770
        %v1893 = vunpack.c.l.b16 %v1773
        %v1894 = vunpack.c.l.b16 %v1776
        %v1895 = vunpack.c.l.b16 %v1779
        %v1896 = vunpack.c.l.b16 %v1782
        %v1897 = vunpack.c.l.b16 %v1785
        %v1898 = vpack.c.b16 %v1882, %v1882
        %v1899 = vpack.c.b16 %v1883, %v1883
        %v1900 = vpack.c.b16 %v1884, %v1884
        %v1901 = vpack.c.b16 %v1885, %v1885
        %v1902 = vpack.c.b16 %v1886, %v1886
        %v1903 = vpack.c.b16 %v1887, %v1887
        %v1904 = vpack.c.b16 %v1888, %v1888
        %v1905 = vpack.c.b16 %v1889, %v1889
        %v1906 = vpack.c.b16 %v1890, %v1890
        %v1907 = vpack.c.b16 %v1891, %v1891
        %v1908 = vpack.c.b16 %v1892, %v1892
        %v1909 = vpack.c.b16 %v1893, %v1893
        %v1910 = vpack.c.b16 %v1894, %v1894
        %v1911 = vpack.c.b16 %v1895, %v1895
        %v1912 = vpack.c.b16 %v1896, %v1896
        %v1913 = vpack.c.b16 %v1897, %v1897
        %v1915 = vshrl.u32 %v1850, 16
        %v1917 = vshll.u32 %v1850, 16
        %v1919 = vrot.slane %v1917, 1
        %v1920 = vor.u32 %v1915, %v1919
        %v1922 = vshll.u32 %v1898, 16
        %v1924 = vrot.slane %v1922, 1
        %v1925 = vsel %vm405, %v1920, %v1924
        %v1927 = vshrl.u32 %v1851, 16
        %v1929 = vshll.u32 %v1851, 16
        %v1931 = vrot.slane %v1929, 1
        %v1932 = vor.u32 %v1927, %v1931
        %v1934 = vshll.u32 %v1899, 16
        %v1936 = vrot.slane %v1934, 1
        %v1937 = vsel %vm405, %v1932, %v1936
        %v1939 = vshrl.u32 %v1852, 16
        %v1941 = vshll.u32 %v1852, 16
        %v1943 = vrot.slane %v1941, 1
        %v1944 = vor.u32 %v1939, %v1943
        %v1946 = vshll.u32 %v1900, 16
        %v1948 = vrot.slane %v1946, 1
        %v1949 = vsel %vm405, %v1944, %v1948
        %v1951 = vshrl.u32 %v1853, 16
        %v1953 = vshll.u32 %v1853, 16
        %v1955 = vrot.slane %v1953, 1
        %v1956 = vor.u32 %v1951, %v1955
        %v1958 = vshll.u32 %v1901, 16
        %v1960 = vrot.slane %v1958, 1
        %v1961 = vsel %vm405, %v1956, %v1960
        %v1963 = vshrl.u32 %v1854, 16
        %v1965 = vshll.u32 %v1854, 16
        %v1967 = vrot.slane %v1965, 1
        %v1968 = vor.u32 %v1963, %v1967
        %v1970 = vshll.u32 %v1902, 16
        %v1972 = vrot.slane %v1970, 1
        %v1973 = vsel %vm405, %v1968, %v1972
        %v1975 = vshrl.u32 %v1855, 16
        %v1977 = vshll.u32 %v1855, 16
        %v1979 = vrot.slane %v1977, 1
        %v1980 = vor.u32 %v1975, %v1979
        %v1982 = vshll.u32 %v1903, 16
        %v1984 = vrot.slane %v1982, 1
        %v1985 = vsel %vm405, %v1980, %v1984
        %v1987 = vshrl.u32 %v1856, 16
        %v1989 = vshll.u32 %v1856, 16
        %v1991 = vrot.slane %v1989, 1
        %v1992 = vor.u32 %v1987, %v1991
        %v1994 = vshll.u32 %v1904, 16
        %v1996 = vrot.slane %v1994, 1
        %v1997 = vsel %vm405, %v1992, %v1996
        %v1999 = vshrl.u32 %v1857, 16
        %v2001 = vshll.u32 %v1857, 16
        %v2003 = vrot.slane %v2001, 1
        %v2004 = vor.u32 %v1999, %v2003
        %v2006 = vshll.u32 %v1905, 16
        %v2008 = vrot.slane %v2006, 1
        %v2009 = vsel %vm405, %v2004, %v2008
        %v2011 = vshrl.u32 %v1858, 16
        %v2013 = vshll.u32 %v1858, 16
        %v2015 = vrot.slane %v2013, 1
        %v2016 = vor.u32 %v2011, %v2015
        %v2018 = vshll.u32 %v1906, 16
        %v2020 = vrot.slane %v2018, 1
        %v2021 = vsel %vm405, %v2016, %v2020
        %v2023 = vshrl.u32 %v1859, 16
        %v2025 = vshll.u32 %v1859, 16
        %v2027 = vrot.slane %v2025, 1
        %v2028 = vor.u32 %v2023, %v2027
        %v2030 = vshll.u32 %v1907, 16
        %v2032 = vrot.slane %v2030, 1
        %v2033 = vsel %vm405, %v2028, %v2032
        %v2035 = vshrl.u32 %v1860, 16
        %v2037 = vshll.u32 %v1860, 16
        %v2039 = vrot.slane %v2037, 1
        %v2040 = vor.u32 %v2035, %v2039
        %v2042 = vshll.u32 %v1908, 16
        %v2044 = vrot.slane %v2042, 1
        %v2045 = vsel %vm405, %v2040, %v2044
        %v2047 = vshrl.u32 %v1861, 16
        %v2049 = vshll.u32 %v1861, 16
        %v2051 = vrot.slane %v2049, 1
        %v2052 = vor.u32 %v2047, %v2051
        %v2054 = vshll.u32 %v1909, 16
        %v2056 = vrot.slane %v2054, 1
        %v2057 = vsel %vm405, %v2052, %v2056
        %v2059 = vshrl.u32 %v1862, 16
        %v2061 = vshll.u32 %v1862, 16
        %v2063 = vrot.slane %v2061, 1
        %v2064 = vor.u32 %v2059, %v2063
        %v2066 = vshll.u32 %v1910, 16
        %v2068 = vrot.slane %v2066, 1
        %v2069 = vsel %vm405, %v2064, %v2068
        %v2071 = vshrl.u32 %v1863, 16
        %v2073 = vshll.u32 %v1863, 16
        %v2075 = vrot.slane %v2073, 1
        %v2076 = vor.u32 %v2071, %v2075
        %v2078 = vshll.u32 %v1911, 16
        %v2080 = vrot.slane %v2078, 1
        %v2081 = vsel %vm405, %v2076, %v2080
        %v2083 = vshrl.u32 %v1864, 16
        %v2085 = vshll.u32 %v1864, 16
        %v2087 = vrot.slane %v2085, 1
        %v2088 = vor.u32 %v2083, %v2087
        %v2090 = vshll.u32 %v1912, 16
        %v2092 = vrot.slane %v2090, 1
        %v2093 = vsel %vm405, %v2088, %v2092
        %v2095 = vshrl.u32 %v1865, 16
        %v2097 = vshll.u32 %v1865, 16
        %v2099 = vrot.slane %v2097, 1
        %v2100 = vor.u32 %v2095, %v2099
        %v2102 = vshll.u32 %v1913, 16
        %v2104 = vrot.slane %v2102, 1
        %v2105 = vsel %vm405, %v2100, %v2104
        %2106 = vrot.lane.b32.xlu0 %v1925, 4
        %v2107 = vpop.permute.xlu0 %2106
        %2108 = vrot.lane.b32.xlu0 %v1937, 4
        %v2109 = vpop.permute.xlu0 %2108
        %2110 = vrot.lane.b32.xlu0 %v1949, 4
        %v2111 = vpop.permute.xlu0 %2110
        %2112 = vrot.lane.b32.xlu0 %v1961, 4
        %v2113 = vpop.permute.xlu0 %2112
        %2114 = vrot.lane.b32.xlu0 %v1973, 4
        %v2115 = vpop.permute.xlu0 %2114
        %2116 = vrot.lane.b32.xlu0 %v1985, 4
        %v2117 = vpop.permute.xlu0 %2116
        %2118 = vrot.lane.b32.xlu0 %v1997, 4
        %v2119 = vpop.permute.xlu0 %2118
        %2120 = vrot.lane.b32.xlu0 %v2009, 4
        %v2121 = vpop.permute.xlu0 %2120
        %2122 = vrot.lane.b32.xlu0 %v2021, 4
        %v2123 = vpop.permute.xlu0 %2122
        %2124 = vrot.lane.b32.xlu0 %v2033, 4
        %v2125 = vpop.permute.xlu0 %2124
        %2126 = vrot.lane.b32.xlu0 %v2045, 4
        %v2127 = vpop.permute.xlu0 %2126
        %2128 = vrot.lane.b32.xlu0 %v2057, 4
        %v2129 = vpop.permute.xlu0 %2128
        %2130 = vrot.lane.b32.xlu0 %v2069, 4
        %v2131 = vpop.permute.xlu0 %2130
        %2132 = vrot.lane.b32.xlu0 %v2081, 4
        %v2133 = vpop.permute.xlu0 %2132
        %2134 = vrot.lane.b32.xlu0 %v2093, 4
        %v2135 = vpop.permute.xlu0 %2134
        %2136 = vrot.lane.b32.xlu0 %v2105, 4
        %v2137 = vpop.permute.xlu0 %2136
        %v2138 = vrot.slane %v1850, 1
        %v2139 = vrot.slane %v1898, 1
        %v2140 = vsel %vm630, %v2138, %v2139
        %v2141 = vrot.slane %v1851, 1
        %v2142 = vrot.slane %v1899, 1
        %v2143 = vsel %vm630, %v2141, %v2142
        %v2144 = vrot.slane %v1852, 1
        %v2145 = vrot.slane %v1900, 1
        %v2146 = vsel %vm630, %v2144, %v2145
        %v2147 = vrot.slane %v1853, 1
        %v2148 = vrot.slane %v1901, 1
        %v2149 = vsel %vm630, %v2147, %v2148
        %v2150 = vrot.slane %v1854, 1
        %v2151 = vrot.slane %v1902, 1
        %v2152 = vsel %vm630, %v2150, %v2151
        %v2153 = vrot.slane %v1855, 1
        %v2154 = vrot.slane %v1903, 1
        %v2155 = vsel %vm630, %v2153, %v2154
        %v2156 = vrot.slane %v1856, 1
        %v2157 = vrot.slane %v1904, 1
        %v2158 = vsel %vm630, %v2156, %v2157
        %v2159 = vrot.slane %v1857, 1
        %v2160 = vrot.slane %v1905, 1
        %v2161 = vsel %vm630, %v2159, %v2160
        %v2162 = vrot.slane %v1858, 1
        %v2163 = vrot.slane %v1906, 1
        %v2164 = vsel %vm630, %v2162, %v2163
        %v2165 = vrot.slane %v1859, 1
        %v2166 = vrot.slane %v1907, 1
        %v2167 = vsel %vm630, %v2165, %v2166
        %v2168 = vrot.slane %v1860, 1
        %v2169 = vrot.slane %v1908, 1
        %v2170 = vsel %vm630, %v2168, %v2169
        %v2171 = vrot.slane %v1861, 1
        %v2172 = vrot.slane %v1909, 1
        %v2173 = vsel %vm630, %v2171, %v2172
        %v2174 = vrot.slane %v1862, 1
        %v2175 = vrot.slane %v1910, 1
        %v2176 = vsel %vm630, %v2174, %v2175
        %v2177 = vrot.slane %v1863, 1
        %v2178 = vrot.slane %v1911, 1
        %v2179 = vsel %vm630, %v2177, %v2178
        %v2180 = vrot.slane %v1864, 1
        %v2181 = vrot.slane %v1912, 1
        %v2182 = vsel %vm630, %v2180, %v2181
        %v2183 = vrot.slane %v1865, 1
        %v2184 = vrot.slane %v1913, 1
        %v2185 = vsel %vm630, %v2183, %v2184
        %2186 = vrot.lane.b32.xlu0 %v2140, 8
        %v2187 = vpop.permute.xlu0 %2186
        %2188 = vrot.lane.b32.xlu0 %v2143, 8
        %v2189 = vpop.permute.xlu0 %2188
        %2190 = vrot.lane.b32.xlu0 %v2146, 8
        %v2191 = vpop.permute.xlu0 %2190
        %2192 = vrot.lane.b32.xlu0 %v2149, 8
        %v2193 = vpop.permute.xlu0 %2192
        %2194 = vrot.lane.b32.xlu0 %v2152, 8
        %v2195 = vpop.permute.xlu0 %2194
        %2196 = vrot.lane.b32.xlu0 %v2155, 8
        %v2197 = vpop.permute.xlu0 %2196
        %2198 = vrot.lane.b32.xlu0 %v2158, 8
        %v2199 = vpop.permute.xlu0 %2198
        %2200 = vrot.lane.b32.xlu0 %v2161, 8
        %v2201 = vpop.permute.xlu0 %2200
        %2202 = vrot.lane.b32.xlu0 %v2164, 8
        %v2203 = vpop.permute.xlu0 %2202
        %2204 = vrot.lane.b32.xlu0 %v2167, 8
        %v2205 = vpop.permute.xlu0 %2204
        %2206 = vrot.lane.b32.xlu0 %v2170, 8
        %v2207 = vpop.permute.xlu0 %2206
        %2208 = vrot.lane.b32.xlu0 %v2173, 8
        %v2209 = vpop.permute.xlu0 %2208
        %2210 = vrot.lane.b32.xlu0 %v2176, 8
        %v2211 = vpop.permute.xlu0 %2210
        %2212 = vrot.lane.b32.xlu0 %v2179, 8
        %v2213 = vpop.permute.xlu0 %2212
        %2214 = vrot.lane.b32.xlu0 %v2182, 8
        %v2215 = vpop.permute.xlu0 %2214
        %2216 = vrot.lane.b32.xlu0 %v2185, 8
        %v2217 = vpop.permute.xlu0 %2216
        %v2219 = vsel %vm711, %v1850, %v2107
        %v2221 = vsel %vm711, %v1851, %v2109
        %v2223 = vsel %vm711, %v1852, %v2111
        %v2225 = vsel %vm711, %v1853, %v2113
        %v2227 = vsel %vm711, %v1854, %v2115
        %v2229 = vsel %vm711, %v1855, %v2117
        %v2231 = vsel %vm711, %v1856, %v2119
        %v2233 = vsel %vm711, %v1857, %v2121
        %v2235 = vsel %vm711, %v1858, %v2123
        %v2237 = vsel %vm711, %v1859, %v2125
        %v2239 = vsel %vm711, %v1860, %v2127
        %v2241 = vsel %vm711, %v1861, %v2129
        %v2243 = vsel %vm711, %v1862, %v2131
        %v2245 = vsel %vm711, %v1863, %v2133
        %v2247 = vsel %vm711, %v1864, %v2135
        %v2249 = vsel %vm711, %v1865, %v2137
        %v2251 = vsel %vm744, %v2219, %v2187
        %v2253 = vsel %vm744, %v2221, %v2189
        %v2255 = vsel %vm744, %v2223, %v2191
        %v2257 = vsel %vm744, %v2225, %v2193
        %v2259 = vsel %vm744, %v2227, %v2195
        %v2261 = vsel %vm744, %v2229, %v2197
        %v2263 = vsel %vm744, %v2231, %v2199
        %v2265 = vsel %vm744, %v2233, %v2201
        %v2267 = vsel %vm744, %v2235, %v2203
        %v2269 = vsel %vm744, %v2237, %v2205
        %v2271 = vsel %vm744, %v2239, %v2207
        %v2273 = vsel %vm744, %v2241, %v2209
        %v2275 = vsel %vm744, %v2243, %v2211
        %v2277 = vsel %vm744, %v2245, %v2213
        %v2279 = vsel %vm744, %v2247, %v2215
        %v2281 = vsel %vm744, %v2249, %v2217
        %s2282 = scalar_lea.vmem %s219, 16
        %v2283 = vld [vmem:[%s2282] sm:$0xf]
        %v2284 = vld [vmem:[%s2282 + $0x4] sm:$0x3]
        %v2287 = vunpack.c.l.b16 %v2283
        %v2288 = vunpack.c.l.b16 %v2284
        %v2289 = vpack.c.b16 %v2288, %v2287
        %v2290 = vsel %vm1335, %v2251, 0
        %v2292 = vsel %vm1335, %v2253, 0
        %v2294 = vsel %vm1335, %v2255, 0
        %v2296 = vsel %vm1335, %v2257, 0
        %v2298 = vsel %vm1335, %v2259, 0
        %v2300 = vsel %vm1335, %v2261, 0
        %v2302 = vsel %vm1335, %v2263, 0
        %v2304 = vsel %vm1335, %v2265, 0
        %v2306 = vsel %vm1335, %v2267, 0
        %v2308 = vsel %vm1335, %v2269, 0
        %v2310 = vsel %vm1335, %v2271, 0
        %v2312 = vsel %vm1335, %v2273, 0
        %v2314 = vsel %vm1335, %v2275, 0
        %v2316 = vsel %vm1335, %v2277, 0
        %v2318 = vsel %vm1335, %v2279, 0
        %v2320 = vsel %vm1335, %v2281, 0
        %v2323 = vsel %vm1368, %v2289, 0
        %2325 = vmatprep.subr.bf16.mxu0 0
        %2326 = vmatpush1.bf16.msra.mxu0 %v2323
        %2327 = vmatprep.subr.bf16.mxu0 0
        %2328 = vmatpush1.bf16.msra.mxu0 0
        %2329 = vmatprep.subr.bf16.mxu0 0
        %2330 = vmatpush1.bf16.msra.mxu0 0
        %2331 = vmatprep.subr.bf16.mxu0 0
        %2332 = vmatpush1.bf16.msra.mxu0 0
        %2333 = vmatprep.subr.bf16.mxu0 0
        %2334 = vmatpush1.bf16.msra.mxu0 0
        %2335 = vmatprep.subr.bf16.mxu0 0
        %2336 = vmatpush1.bf16.msra.mxu0 0
        %2337 = vmatprep.subr.bf16.mxu0 0
        %2338 = vmatpush1.bf16.msra.mxu0 0
        %2339 = vmatprep.subr.bf16.mxu0 0
        %2340 = vmatpush1.bf16.msra.mxu0 0
        %2341 = vmatprep.subr.bf16.mxu0 0
        %2342 = vmatpush1.bf16.msra.mxu0 0
        %2343 = vmatprep.subr.bf16.mxu0 0
        %2344 = vmatpush1.bf16.msra.mxu0 0
        %2345 = vmatprep.subr.bf16.mxu0 0
        %2346 = vmatpush1.bf16.msra.mxu0 0
        %2347 = vmatprep.subr.bf16.mxu0 0
        %2348 = vmatpush1.bf16.msra.mxu0 0
        %2349 = vmatprep.subr.bf16.mxu0 0
        %2350 = vmatpush1.bf16.msra.mxu0 0
        %2351 = vmatprep.subr.bf16.mxu0 0
        %2352 = vmatpush1.bf16.msra.mxu0 0
        %2353 = vmatprep.subr.bf16.mxu0 0
        %2354 = vmatpush1.bf16.msra.mxu0 0
        %2355 = vmatprep.subr.bf16.mxu0 0
        %2356 = vmatpush1.bf16.msra.mxu0 0
        %2357 = vmatprep.mubr.bf16.mxu0 0
        %2358 = vmatmul.mubr.bf16.gmra.mrb[0].mxu0 %v2290
        %v2359 = vpop.f32.mrb[0].mxu0
        %v2360 = vadd.f32 0.0, %v2359
        %v2361 = vpop.f32.mrb[0].mxu0
        %v2362 = vpop.f32.mrb[0].mxu0
        %v2363 = vadd.f32 0.0, %v2362
        %v2364 = vpop.f32.mrb[0].mxu0
        %2365 = vmatprep.mubr.bf16.mxu0 0
        %2366 = vmatmul.mubr.bf16.gmra.mrb[0].mxu0 %v2292
        %v2367 = vpop.f32.mrb[0].mxu0
        %v2368 = vadd.f32 0.0, %v2367
        %v2369 = vpop.f32.mrb[0].mxu0
        %v2370 = vpop.f32.mrb[0].mxu0
        %v2371 = vadd.f32 0.0, %v2370
        %v2372 = vpop.f32.mrb[0].mxu0
        %2373 = vmatprep.mubr.bf16.mxu0 0
        %2374 = vmatmul.mubr.bf16.gmra.mrb[0].mxu0 %v2294
        %v2375 = vpop.f32.mrb[0].mxu0
        %v2376 = vadd.f32 0.0, %v2375
        %v2377 = vpop.f32.mrb[0].mxu0
        %v2378 = vpop.f32.mrb[0].mxu0
        %v2379 = vadd.f32 0.0, %v2378
        %v2380 = vpop.f32.mrb[0].mxu0
        %2381 = vmatprep.mubr.bf16.mxu0 0
        %2382 = vmatmul.mubr.bf16.gmra.mrb[0].mxu0 %v2296
        %v2383 = vpop.f32.mrb[0].mxu0
        %v2384 = vadd.f32 0.0, %v2383
        %v2385 = vpop.f32.mrb[0].mxu0
        %v2386 = vpop.f32.mrb[0].mxu0
        %v2387 = vadd.f32 0.0, %v2386
        %v2388 = vpop.f32.mrb[0].mxu0
        %2389 = vmatprep.mubr.bf16.mxu0 0
        %2390 = vmatmul.mubr.bf16.gmra.mrb[0].mxu0 %v2298
        %v2391 = vpop.f32.mrb[0].mxu0
        %v2392 = vadd.f32 0.0, %v2391
        %v2393 = vpop.f32.mrb[0].mxu0
        %v2394 = vpop.f32.mrb[0].mxu0
        %v2395 = vadd.f32 0.0, %v2394
        %v2396 = vpop.f32.mrb[0].mxu0
        %2397 = vmatprep.mubr.bf16.mxu0 0
        %2398 = vmatmul.mubr.bf16.gmra.mrb[0].mxu0 %v2300
        %v2399 = vpop.f32.mrb[0].mxu0
        %v2400 = vadd.f32 0.0, %v2399
        %v2401 = vpop.f32.mrb[0].mxu0
        %v2402 = vpop.f32.mrb[0].mxu0
        %v2403 = vadd.f32 0.0, %v2402
        %v2404 = vpop.f32.mrb[0].mxu0
        %2405 = vmatprep.mubr.bf16.mxu0 0
        %2406 = vmatmul.mubr.bf16.gmra.mrb[0].mxu0 %v2302
        %v2407 = vpop.f32.mrb[0].mxu0
        %v2408 = vadd.f32 0.0, %v2407
        %v2409 = vpop.f32.mrb[0].mxu0
        %v2410 = vpop.f32.mrb[0].mxu0
        %v2411 = vadd.f32 0.0, %v2410
        %v2412 = vpop.f32.mrb[0].mxu0
        %2413 = vmatprep.mubr.bf16.mxu0 0
        %2414 = vmatmul.mubr.bf16.gmra.mrb[0].mxu0 %v2304
        %v2415 = vpop.f32.mrb[0].mxu0
        %v2416 = vadd.f32 0.0, %v2415
        %v2417 = vpop.f32.mrb[0].mxu0
        %v2418 = vpop.f32.mrb[0].mxu0
        %v2419 = vadd.f32 0.0, %v2418
        %v2420 = vpop.f32.mrb[0].mxu0
        %2421 = vmatprep.mubr.bf16.mxu0 0
        %2422 = vmatmul.mubr.bf16.gmra.mrb[0].mxu0 %v2306
        %v2423 = vpop.f32.mrb[0].mxu0
        %v2424 = vadd.f32 0.0, %v2423
        %v2425 = vpop.f32.mrb[0].mxu0
        %v2426 = vpop.f32.mrb[0].mxu0
        %v2427 = vadd.f32 0.0, %v2426
        %v2428 = vpop.f32.mrb[0].mxu0
        %2429 = vmatprep.mubr.bf16.mxu0 0
        %2430 = vmatmul.mubr.bf16.gmra.mrb[0].mxu0 %v2308
        %v2431 = vpop.f32.mrb[0].mxu0
        %v2432 = vadd.f32 0.0, %v2431
        %v2433 = vpop.f32.mrb[0].mxu0
        %v2434 = vpop.f32.mrb[0].mxu0
        %v2435 = vadd.f32 0.0, %v2434
        %v2436 = vpop.f32.mrb[0].mxu0
        %2437 = vmatprep.mubr.bf16.mxu0 0
        %2438 = vmatmul.mubr.bf16.gmra.mrb[0].mxu0 %v2310
        %v2439 = vpop.f32.mrb[0].mxu0
        %v2440 = vadd.f32 0.0, %v2439
        %v2441 = vpop.f32.mrb[0].mxu0
        %v2442 = vpop.f32.mrb[0].mxu0
        %v2443 = vadd.f32 0.0, %v2442
        %v2444 = vpop.f32.mrb[0].mxu0
        %2445 = vmatprep.mubr.bf16.mxu0 0
        %2446 = vmatmul.mubr.bf16.gmra.mrb[0].mxu0 %v2312
        %v2447 = vpop.f32.mrb[0].mxu0
        %v2448 = vadd.f32 0.0, %v2447
        %v2449 = vpop.f32.mrb[0].mxu0
        %v2450 = vpop.f32.mrb[0].mxu0
        %v2451 = vadd.f32 0.0, %v2450
        %v2452 = vpop.f32.mrb[0].mxu0
        %2453 = vmatprep.mubr.bf16.mxu0 0
        %2454 = vmatmul.mubr.bf16.gmra.mrb[0].mxu0 %v2314
        %v2455 = vpop.f32.mrb[0].mxu0
        %v2456 = vadd.f32 0.0, %v2455
        %v2457 = vpop.f32.mrb[0].mxu0
        %v2458 = vpop.f32.mrb[0].mxu0
        %v2459 = vadd.f32 0.0, %v2458
        %v2460 = vpop.f32.mrb[0].mxu0
        %2461 = vmatprep.mubr.bf16.mxu0 0
        %2462 = vmatmul.mubr.bf16.gmra.mrb[0].mxu0 %v2316
        %v2463 = vpop.f32.mrb[0].mxu0
        %v2464 = vadd.f32 0.0, %v2463
        %v2465 = vpop.f32.mrb[0].mxu0
        %v2466 = vpop.f32.mrb[0].mxu0
        %v2467 = vadd.f32 0.0, %v2466
        %v2468 = vpop.f32.mrb[0].mxu0
        %2469 = vmatprep.mubr.bf16.mxu0 0
        %2470 = vmatmul.mubr.bf16.gmra.mrb[0].mxu0 %v2318
        %v2471 = vpop.f32.mrb[0].mxu0
        %v2472 = vadd.f32 0.0, %v2471
        %v2473 = vpop.f32.mrb[0].mxu0
        %v2474 = vpop.f32.mrb[0].mxu0
        %v2475 = vadd.f32 0.0, %v2474
        %v2476 = vpop.f32.mrb[0].mxu0
        %2477 = vmatprep.mubr.bf16.mxu0 0
        %2478 = vmatmul.mubr.bf16.gmra.mrb[0].mxu0 %v2320
        %v2479 = vpop.f32.mrb[0].mxu0
        %v2480 = vadd.f32 0.0, %v2479
        %v2481 = vpop.f32.mrb[0].mxu0
        %v2482 = vpop.f32.mrb[0].mxu0
        %v2483 = vadd.f32 0.0, %v2482
        %v2484 = vpop.f32.mrb[0].mxu0
        %2485 = vdwg.mxu0
        %v2486 = vadd.f32 %v1608, %v2360
        %v2487 = vadd.f32 %v1611, %v2363
        %v2488 = vadd.f32 %v1616, %v2368
        %v2489 = vadd.f32 %v1619, %v2371
        %v2490 = vadd.f32 %v1624, %v2376
        %v2491 = vadd.f32 %v1627, %v2379
        %v2492 = vadd.f32 %v1632, %v2384
        %v2493 = vadd.f32 %v1635, %v2387
        %v2494 = vadd.f32 %v1640, %v2392
        %v2495 = vadd.f32 %v1643, %v2395
        %v2496 = vadd.f32 %v1648, %v2400
        %v2497 = vadd.f32 %v1651, %v2403
        %v2498 = vadd.f32 %v1656, %v2408
        %v2499 = vadd.f32 %v1659, %v2411
        %v2500 = vadd.f32 %v1664, %v2416
        %v2501 = vadd.f32 %v1667, %v2419
        %v2502 = vadd.f32 %v1672, %v2424
        %v2503 = vadd.f32 %v1675, %v2427
        %v2504 = vadd.f32 %v1680, %v2432
        %v2505 = vadd.f32 %v1683, %v2435
        %v2506 = vadd.f32 %v1688, %v2440
        %v2507 = vadd.f32 %v1691, %v2443
        %v2508 = vadd.f32 %v1696, %v2448
        %v2509 = vadd.f32 %v1699, %v2451
        %v2510 = vadd.f32 %v1704, %v2456
        %v2511 = vadd.f32 %v1707, %v2459
        %v2512 = vadd.f32 %v1712, %v2464
        %v2513 = vadd.f32 %v1715, %v2467
        %v2514 = vadd.f32 %v1720, %v2472
        %v2515 = vadd.f32 %v1723, %v2475
        %v2516 = vadd.f32 %v1728, %v2480
        %v2517 = vadd.f32 %v1731, %v2483
        %v2518 = vld [vmem:[%s222] sm:$0x1]
        %v2520 = vlaneseq
        %v2521 = vshrl.u32 %v2520, 7
        %v2522 = vsub.s32 0, %v2521
        %v2523 = vrot.slane %v2518, %v2522
        %v2525 = vadd.f32 %v2486, %v2523
        %v2526 = vadd.f32 %v2487, %v2523
        %v2527 = vadd.f32 %v2488, %v2523
        %v2528 = vadd.f32 %v2489, %v2523
        %v2529 = vadd.f32 %v2490, %v2523
        %v2530 = vadd.f32 %v2491, %v2523
        %v2531 = vadd.f32 %v2492, %v2523
        %v2532 = vadd.f32 %v2493, %v2523
        %v2533 = vadd.f32 %v2494, %v2523
        %v2534 = vadd.f32 %v2495, %v2523
        %v2535 = vadd.f32 %v2496, %v2523
        %v2536 = vadd.f32 %v2497, %v2523
        %v2537 = vadd.f32 %v2498, %v2523
        %v2538 = vadd.f32 %v2499, %v2523
        %v2539 = vadd.f32 %v2500, %v2523
        %v2540 = vadd.f32 %v2501, %v2523
        %v2541 = vadd.f32 %v2502, %v2523
        %v2542 = vadd.f32 %v2503, %v2523
        %v2543 = vadd.f32 %v2504, %v2523
        %v2544 = vadd.f32 %v2505, %v2523
        %v2545 = vadd.f32 %v2506, %v2523
        %v2546 = vadd.f32 %v2507, %v2523
        %v2547 = vadd.f32 %v2508, %v2523
        %v2548 = vadd.f32 %v2509, %v2523
        %v2549 = vadd.f32 %v2510, %v2523
        %v2550 = vadd.f32 %v2511, %v2523
        %v2551 = vadd.f32 %v2512, %v2523
        %v2552 = vadd.f32 %v2513, %v2523
        %v2553 = vadd.f32 %v2514, %v2523
        %v2554 = vadd.f32 %v2515, %v2523
        %v2555 = vadd.f32 %v2516, %v2523
        %v2556 = vadd.f32 %v2517, %v2523
        %v2557 = vmax.f32 %v2525, 0.0
        %v2558 = vmax.f32 %v2526, 0.0
        %v2559 = vmax.f32 %v2527, 0.0
        %v2560 = vmax.f32 %v2528, 0.0
        %v2561 = vmax.f32 %v2529, 0.0
        %v2562 = vmax.f32 %v2530, 0.0
        %v2563 = vmax.f32 %v2531, 0.0
        %v2564 = vmax.f32 %v2532, 0.0
        %v2565 = vmax.f32 %v2533, 0.0
        %v2566 = vmax.f32 %v2534, 0.0
        %v2567 = vmax.f32 %v2535, 0.0
        %v2568 = vmax.f32 %v2536, 0.0
        %v2569 = vmax.f32 %v2537, 0.0
        %v2570 = vmax.f32 %v2538, 0.0
        %v2571 = vmax.f32 %v2539, 0.0
        %v2572 = vmax.f32 %v2540, 0.0
        %v2573 = vmax.f32 %v2541, 0.0
        %v2574 = vmax.f32 %v2542, 0.0
        %v2575 = vmax.f32 %v2543, 0.0
        %v2576 = vmax.f32 %v2544, 0.0
        %v2577 = vmax.f32 %v2545, 0.0
        %v2578 = vmax.f32 %v2546, 0.0
        %v2579 = vmax.f32 %v2547, 0.0
        %v2580 = vmax.f32 %v2548, 0.0
        %v2581 = vmax.f32 %v2549, 0.0
        %v2582 = vmax.f32 %v2550, 0.0
        %v2583 = vmax.f32 %v2551, 0.0
        %v2584 = vmax.f32 %v2552, 0.0
        %v2585 = vmax.f32 %v2553, 0.0
        %v2586 = vmax.f32 %v2554, 0.0
        %v2587 = vmax.f32 %v2555, 0.0
        %v2588 = vmax.f32 %v2556, 0.0
        %2589 = vst [vmem:[%s210] sm:$0xff] %v2557
        %2590 = vst [vmem:[%s210 + $0x8] sm:$0xff] %v2558
        %2591 = vst [vmem:[%s210 + $0x10] sm:$0xff] %v2559
        %2592 = vst [vmem:[%s210 + $0x18] sm:$0xff] %v2560
        %2593 = vst [vmem:[%s210 + $0x20] sm:$0xff] %v2561
        %2594 = vst [vmem:[%s210 + $0x28] sm:$0xff] %v2562
        %2595 = vst [vmem:[%s210 + $0x30] sm:$0xff] %v2563
        %2596 = vst [vmem:[%s210 + $0x38] sm:$0xff] %v2564
        %2597 = vst [vmem:[%s210 + $0x40] sm:$0xff] %v2565
        %2598 = vst [vmem:[%s210 + $0x48] sm:$0xff] %v2566
        %2599 = vst [vmem:[%s210 + $0x50] sm:$0xff] %v2567
        %2600 = vst [vmem:[%s210 + $0x58] sm:$0xff] %v2568
        %2601 = vst [vmem:[%s210 + $0x60] sm:$0xff] %v2569
        %2602 = vst [vmem:[%s210 + $0x68] sm:$0xff] %v2570
        %2603 = vst [vmem:[%s210 + $0x70] sm:$0xff] %v2571
        %2604 = vst [vmem:[%s210 + $0x78] sm:$0xff] %v2572
        %2605 = vst [vmem:[%s210 + $0x80] sm:$0xff] %v2573
        %2606 = vst [vmem:[%s210 + $0x88] sm:$0xff] %v2574
        %2607 = vst [vmem:[%s210 + $0x90] sm:$0xff] %v2575
        %2608 = vst [vmem:[%s210 + $0x98] sm:$0xff] %v2576
        %2609 = vst [vmem:[%s210 + $0xa0] sm:$0xff] %v2577
        %2610 = vst [vmem:[%s210 + $0xa8] sm:$0xff] %v2578
        %2611 = vst [vmem:[%s210 + $0xb0] sm:$0xff] %v2579
        %2612 = vst [vmem:[%s210 + $0xb8] sm:$0xff] %v2580
        %2613 = vst [vmem:[%s210 + $0xc0] sm:$0xff] %v2581
        %2614 = vst [vmem:[%s210 + $0xc8] sm:$0xff] %v2582
        %2615 = vst [vmem:[%s210 + $0xd0] sm:$0xff] %v2583
        %2616 = vst [vmem:[%s210 + $0xd8] sm:$0xff] %v2584
        %2617 = vst [vmem:[%s210 + $0xe0] sm:$0xff] %v2585
        %2618 = vst [vmem:[%s210 + $0xe8] sm:$0xff] %v2586
        %2619 = vst [vmem:[%s210 + $0xf0] sm:$0xff] %v2587
        %2620 = vst [vmem:[%s210 + $0xf8] sm:$0xff] %v2588
        %s2621 = sand.u32 %s126, 1
        %s2622 = scalar_lea.sflag [#allocation3], %s2621
        %s2623 = sand.u32 %s126, 1
        %s2624 = smul.addr %s2623, 256
        %s2625 = scalar_lea.vmem [#allocation2], %s2624
        // Predicated region
        $region33: #{tpu_custom_call.1} parent=31 // pred_check
          %p2626 = pneg %p136
        $region34: #{tpu_custom_call.1} parent=31 // pred_check_branch
          %2628 = sbr.rel (%p2626) target = $region36
        $region35: #{tpu_custom_call.1} parent=31 // pred_region
          %s2629 = smul.u32 16, %s24
          %s2631 = ssub.s32 4096, 4096
          %2632 = vsyncadd %s2622, %s2631
          %s2633 = smul.addr %s2629, 2
          %s2634 = sadd.s32 %s23, %s2633
          %s2635 = smul.addr %s22, 32
          %s2636 = sadd.s32 %s2634, %s2635
          %s2637 = smul.addr %s2636, 128
          %s2638 = scalar_lea.hbm %s3, %s2637
          %s2639 = sshll.u32 %s2625, 4
          %s2640 = int_to_ptr.vmem [resolvable:$true] %s2639
          %2645 = dma.vmem_to_hbm [thread:$0]  %s2640, 4096, %s2638, %s2622, 128, 128, 8
        $region36: #{tpu_custom_call.1} parent=31 // pred_fallthru
          _
      $region32: #{tpu_custom_call.1} parent=5 // pred_fallthru
        _
      %p2646 = scmp.le.s32.totalorder 2, %s12
      // Predicated region
      $region37: #{tpu_custom_call.1} parent=5 // pred_check
        %p2647 = pneg %p2646
      $region38: #{tpu_custom_call.1} parent=5 // pred_check_branch
        %2649 = sbr.rel (%p2647) target = $region40
      $region39: #{tpu_custom_call.1} parent=5 // pred_region
        %s2650 = ssub.s32 %s12, 2
        // Predicated region
        $region41: #{tpu_custom_call.1} parent=39 // pred_check
          %p2651 = pneg %p142
        $region42: #{tpu_custom_call.1} parent=39 // pred_check_branch
          %2653 = sbr.rel (%p2651) target = $region44
        $region43: #{tpu_custom_call.1} parent=39 // pred_region
          %s2654 = sand.u32 %s127, 1
          %s2655 = scalar_lea.sflag [#allocation3], %s2654
          %s2656 = sand.u32 %s127, 1
          %s2657 = smul.addr %s2656, 256
          %s2658 = scalar_lea.vmem [#allocation2], %s2657
          %2659 = dma.done %s2655, 4096
        $region44: #{tpu_custom_call.1} parent=39 // pred_fallthru
          _
      $region40: #{tpu_custom_call.1} parent=5 // pred_fallthru
        _
    $region6: #{tpu_custom_call.1} parent=1 // loop_footer
      %s16 = sadd.s32 1, %s12
    $region7: #{tpu_custom_call.1} parent=1 // loop_footer_branch
      %11 = sbr.rel target = $region3
    $region8: #{tpu_custom_call.1} parent=1 // loop_exit
      _
    %2660 = vsyncpa [#allocation3], 1
    %s2661 = scalar_lea.sflag [#allocation3], 1
    %2662 = vsyncpa %s2661, 1

// kernel: tpu_custom_call.1
$region0: #{tpu_custom_call.1}
  #allocation0 [shape = 'u32[]', space=smem, size = 0x4, offset = 0x4, fixed_abs, tag = 'smem constant byte address 0x4 - core index']
  #allocation1 [shape = 'u32[144,128]{1,0:T(1,128)}', space=vmem, size = 0x12000, scoped, tag = 'internal scratch']
  %s0 = inlined_call_operand.vmem [shape: bf16[2,18,18,4], index: 0, kind: input, shape index: {}]
  %s1 = inlined_call_operand.vmem [shape: bf16[9,4,128], index: 1, kind: input, shape index: {}]
  %s2 = inlined_call_operand.vmem [shape: f32[1,128], index: 2, kind: input, shape index: {}]
  %s3 = inlined_call_operand.hbm [shape: f32[2,16,16,128], index: 3, kind: output, shape index: {}]
  %s4 = sld [smem:[#allocation0]]
  $region45: #{tpu_custom_call.1} parent=0
    _
  %s6 = ssub.s32 1, %s4
  %s7 = scalar_select 0, %s6, %s4
  $region1: #{tpu_custom_call.1} parent=0
    #allocation2 [shape = 'u8[262144]{0}', space=vmem, size = 0x40000, scoped, tag = 'output window, operand 0']
    #allocation3 [shape = 's32[2]{0}', space=sflag, size = 0x8, scoped, tag = 'scoped memory for tpu_custom_call.1']
    %8 = vsyncpa [#allocation3], 0
    %s9 = scalar_lea.sflag [#allocation3], 1
    %10 = vsyncpa %s9, 0
    loop: start=0, step=1, limit=4
    $region2: #{tpu_custom_call.1} parent=1 // loop_pre_header
      _
    $region3: #{tpu_custom_call.1} parent=1 // loop_header
      %s12 = sphi 0, %s16
      %p13 = scmp.ge.s32.totalorder %s12, 4
      %s19 = sphi 0, %s38
      %s20 = sphi 0, %s34
      %s21 = sphi 0, %s30
      %s22 = sphi 0, %s19
      %s23 = sphi 0, %s20
      %s24 = sphi 0, %s21
      %s25 = sphi 0, %s22
      %s26 = sphi 0, %s23
      %s27 = sphi 0, %s24
      %s41 = sphi 0, %s43
      %s44 = sphi 0, %s41
      %s45 = sphi 0, %s44
      %s61 = sphi 0, %s45
      %s67 = sphi 0, %s69
      %s70 = sphi 0, %s67
      %s71 = sphi 0, %s70
      %s87 = sphi 0, %s71
      %s93 = sphi 0, %s95
      %s96 = sphi 0, %s93
      %s97 = sphi 0, %s96
      %s113 = sphi 0, %s97
      %s123 = sphi 0, %s125
      %s126 = sphi 0, %s123
      %s127 = sphi 0, %s126
      %s143 = sphi 0, %s127
    $region4: #{tpu_custom_call.1} parent=1 // loop_header_branch
      %15 = sbr.rel (%p13) target = $region8
    $region5: #{tpu_custom_call.1} parent=1 // loop_body
      %s17 = ssub.s32 %s12, 1
      %s18 = ssub.s32 %s12, 2
      %s28 = sadd.s32 1, %s21
      %p29 = scmp.ge.s32.totalorder %s28, 1
      %s30 = scalar_select %p29, 0, %s28
      %s31 = sadd.s32 1, %s20
      %s32 = scalar_select %p29, %s31, %s20
      %p33 = scmp.ge.s32.totalorder %s32, 1
      %s34 = scalar_select %p33, 0, %s32
      %s35 = sadd.s32 1, %s19
      %s36 = scalar_select %p33, %s35, %s19
      %p37 = scmp.ge.s32.totalorder %s36, 2
      %s38 = scalar_select %p37, 0, %s36
      %s39 = ssub.s32 %s19, %s38
      %p40 = scmp.eq.s32.totalorder %s39, 0
      %s42 = sadd.s32 %s41, 1
      %s43 = scalar_select %p40, %s41, %s42
      %p46 = pneg %p40
      %p47 = scmp.eq.s32.totalorder %s12, 1
      %p48 = por %p46, %p47
      %p49 = scmp.ne.s32.totalorder %s41, %s44
      %p50 = scmp.eq.s32.totalorder %s12, 0
      %p51 = por %p49, %p50
      %p52 = scmp.ne.s32.totalorder %s41, %s44
      %p53 = scmp.eq.s32.totalorder %s17, 1
      %p54 = por %p52, %p53
      %p55 = scmp.ne.s32.totalorder %s44, %s45
      %p56 = scmp.eq.s32.totalorder %s17, 0
      %p57 = por %p55, %p56
      %p58 = scmp.ne.s32.totalorder %s44, %s45
      %p59 = scmp.eq.s32.totalorder %s18, 1
      %p60 = por %p58, %p59
      %p62 = scmp.ne.s32.totalorder %s45, %s61
      %p63 = scmp.eq.s32.totalorder %s18, 0
      %p64 = por %p62, %p63
      %s65 = ssub.s32 %s20, %s34
      %p66 = scmp.eq.s32.totalorder %s65, 0
      %s68 = sadd.s32 %s67, 1
      %s69 = scalar_select %p66, %s67, %s68
      %p72 = pneg %p66
      %p73 = scmp.eq.s32.totalorder %s12, 1
      %p74 = por %p72, %p73
      %p75 = scmp.ne.s32.totalorder %s67, %s70
      %p76 = scmp.eq.s32.totalorder %s12, 0
      %p77 = por %p75, %p76
      %p78 = scmp.ne.s32.totalorder %s67, %s70
      %p79 = scmp.eq.s32.totalorder %s17, 1
      %p80 = por %p78, %p79
      %p81 = scmp.ne.s32.totalorder %s70, %s71
      %p82 = scmp.eq.s32.totalorder %s17, 0
      %p83 = por %p81, %p82
      %p84 = scmp.ne.s32.totalorder %s70, %s71
      %p85 = scmp.eq.s32.totalorder %s18, 1
      %p86 = por %p84, %p85
      %p88 = scmp.ne.s32.totalorder %s71, %s87
      %p89 = scmp.eq.s32.totalorder %s18, 0
      %p90 = por %p88, %p89
      %s91 = ssub.s32 %s20, %s34
      %p92 = scmp.eq.s32.totalorder %s91, 0
      %s94 = sadd.s32 %s93, 1
      %s95 = scalar_select %p92, %s93, %s94
      %p98 = pneg %p92
      %p99 = scmp.eq.s32.totalorder %s12, 1
      %p100 = por %p98, %p99
      %p101 = scmp.ne.s32.totalorder %s93, %s96
      %p102 = scmp.eq.s32.totalorder %s12, 0
      %p103 = por %p101, %p102
      %p104 = scmp.ne.s32.totalorder %s93, %s96
      %p105 = scmp.eq.s32.totalorder %s17, 1
      %p106 = por %p104, %p105
      %p107 = scmp.ne.s32.totalorder %s96, %s97
      %p108 = scmp.eq.s32.totalorder %s17, 0
      %p109 = por %p107, %p108
      %p110 = scmp.ne.s32.totalorder %s96, %s97
      %p111 = scmp.eq.s32.totalorder %s18, 1
      %p112 = por %p110, %p111
      %p114 = scmp.ne.s32.totalorder %s97, %s113
      %p115 = scmp.eq.s32.totalorder %s18, 0
      %p116 = por %p114, %p115
      %s117 = ssub.s32 %s19, %s38
      %s118 = ssub.s32 %s21, %s30
      %s119 = sor.u32 %s117, %s118
      %s120 = ssub.s32 %s20, %s34
      %s121 = sor.u32 %s119, %s120
      %p122 = scmp.eq.s32.totalorder %s121, 0
      %s124 = sadd.s32 %s123, 1
      %s125 = scalar_select %p122, %s123, %s124
      %p128 = pneg %p122
      %p129 = scmp.eq.s32.totalorder %s12, 1
      %p130 = por %p128, %p129
      %p131 = scmp.ne.s32.totalorder %s123, %s126
      %p132 = scmp.eq.s32.totalorder %s12, 0
      %p133 = por %p131, %p132
      %p134 = scmp.ne.s32.totalorder %s123, %s126
      %p135 = scmp.eq.s32.totalorder %s17, 1
      %p136 = por %p134, %p135
      %p137 = scmp.ne.s32.totalorder %s126, %s127
      %p138 = scmp.eq.s32.totalorder %s17, 0
      %p139 = por %p137, %p138
      %p140 = scmp.ne.s32.totalorder %s126, %s127
      %p141 = scmp.eq.s32.totalorder %s18, 1
      %p142 = por %p140, %p141
      %p144 = scmp.ne.s32.totalorder %s127, %s143
      %p145 = scmp.eq.s32.totalorder %s18, 0
      %p146 = por %p144, %p145
      %p147 = scmp.le.s32.totalorder 1, %s12
      %p148 = scmp.lt.s32.totalorder %s12, 3
      %p149 = pnand %p147, %p148
      %p150 = pneg %p149
      // Predicated region
      $region9: #{tpu_custom_call.1} parent=5 // pred_check
        _
      $region10: #{tpu_custom_call.1} parent=5 // pred_check_branch
        %152 = sbr.rel (%p149) target = $region12
      $region11: #{tpu_custom_call.1} parent=5 // pred_region
        %s153 = ssub.s32 %s12, 1
        // Predicated region
        $region13: #{tpu_custom_call.1} parent=11 // pred_check
          %p154 = pneg %p83
        $region14: #{tpu_custom_call.1} parent=11 // pred_check_branch
          %156 = sbr.rel (%p154) target = $region16
        $region15: #{tpu_custom_call.1} parent=11 // pred_region
          %p157 = scmp.lt.s32.totalorder %s23, 0
          %s158 = scalar_select %p157, %s23, 0
          %s159 = smul.addr %s158, 2
          %s160 = scalar_lea.vmem %s1, %s159
        $region16: #{tpu_custom_call.1} parent=11 // pred_fallthru
          _
        // Predicated region
        $region17: #{tpu_custom_call.1} parent=11 // pred_check
          %p161 = pneg %p109
        $region18: #{tpu_custom_call.1} parent=11 // pred_check_branch
          %163 = sbr.rel (%p161) target = $region20
        $region19: #{tpu_custom_call.1} parent=11 // pred_region
          %p164 = scmp.lt.s32.totalorder %s23, 0
          %s165 = scalar_select %p164, %s23, 0
          %s166 = scalar_lea.vmem %s2, %s165
        $region20: #{tpu_custom_call.1} parent=11 // pred_fallthru
          _
      $region12: #{tpu_custom_call.1} parent=5 // pred_fallthru
        _
      %p167 = scmp.lt.s32.totalorder %s12, 2
      // Predicated region
      $region21: #{tpu_custom_call.1} parent=5 // pred_check
        %p168 = pneg %p167
      $region22: #{tpu_custom_call.1} parent=5 // pred_check_branch
        %170 = sbr.rel (%p168) target = $region24
      $region23: #{tpu_custom_call.1} parent=5 // pred_region
        // Predicated region
        $region25: #{tpu_custom_call.1} parent=23 // pred_check
          %p171 = pneg %p51
        $region26: #{tpu_custom_call.1} parent=23 // pred_check_branch
          %173 = sbr.rel (%p171) target = $region28
        $region27: #{tpu_custom_call.1} parent=23 // pred_region
          %p174 = scmp.lt.s32.totalorder %s19, 1
          %s175 = scalar_select %p174, %s19, 1
          %s176 = smul.addr %s175, 54
          %s177 = smul.addr %s176, 4
          %s178 = scalar_lea.vmem %s0, %s177
        $region28: #{tpu_custom_call.1} parent=23 // pred_fallthru
          _
      $region24: #{tpu_custom_call.1} parent=5 // pred_fallthru
        _
      %p179 = scmp.le.s32.totalorder 1, %s12
      %p180 = scmp.lt.s32.totalorder %s12, 3
      %p181 = pnand %p179, %p180
      %p182 = pneg %p181
      // Predicated region
      $region29: #{tpu_custom_call.1} parent=5 // pred_check
        _
      $region30: #{tpu_custom_call.1} parent=5 // pred_check_branch
        %184 = sbr.rel (%p181) target = $region32
      $region31: #{tpu_custom_call.1} parent=5 // pred_region
        %s185 = ssub.s32 %s12, 1
        %p186 = scmp.lt.s32.totalorder %s22, 1
        %s187 = scalar_select %p186, %s22, 1
        %s188 = smul.addr %s187, 54
        %s189 = smul.addr %s188, 4
        %s190 = scalar_lea.vmem %s0, %s189
        %p191 = pneg %p57
        %p192 = pneg %p54
        %p193 = scmp.lt.s32.totalorder %s23, 0
        %s194 = scalar_select %p193, %s23, 0
        %s195 = smul.addr %s194, 2
        %s196 = scalar_lea.vmem %s1, %s195
        %p197 = pneg %p83
        %p198 = pneg %p80
        %p199 = scmp.lt.s32.totalorder %s23, 0
        %s200 = scalar_select %p199, %s23, 0
        %s201 = scalar_lea.vmem %s2, %s200
        %p202 = pneg %p109
        %p203 = pneg %p106
        %p204 = pneg %p139
        %p205 = pneg %p136
        %s206 = sand.u32 %s126, 1
        %s207 = scalar_lea.sflag [#allocation3], %s206
        %s208 = sand.u32 %s126, 1
        %s209 = smul.addr %s208, 256
        %s210 = scalar_lea.vmem [#allocation2], %s209
        %p211 = scmp.lt.s32.totalorder %s22, 1
        %s212 = scalar_select %p211, %s22, 1
        %s213 = smul.addr %s212, 54
        %s214 = smul.addr %s213, 4
        %s215 = scalar_lea.vmem %s0, %s214
        %p216 = scmp.lt.s32.totalorder %s23, 0
        %s217 = scalar_select %p216, %s23, 0
        %s218 = smul.addr %s217, 2
        %s219 = scalar_lea.vmem %s1, %s218
        %p220 = scmp.lt.s32.totalorder %s23, 0
        %s221 = scalar_select %p220, %s23, 0
        %s222 = scalar_lea.vmem %s2, %s221
        %s223 = smul.u32 16, %s24
        %s225 = smul.u32 %s24, 16
        %s226 = smul.u32 %s225, 3
        %s227 = smul.addr %s226, 4
        %s228 = scalar_lea.vmem %s215, %s227
        %v229 = vld [vmem:[%s228] sm:$0xf]
        %v230 = vld [vmem:[%s228 + $0x4] sm:$0xf]
        %v231 = vld [vmem:[%s228 + $0x8] sm:$0x1]
        %v232 = vld [vmem:[%s228 + $0xc] sm:$0xf]
        %v233 = vld [vmem:[%s228 + $0x10] sm:$0xf]
        %v234 = vld [vmem:[%s228 + $0x14] sm:$0x1]
        %v235 = vld [vmem:[%s228 + $0x18] sm:$0xf]
        %v236 = vld [vmem:[%s228 + $0x1c] sm:$0xf]
        %v237 = vld [vmem:[%s228 + $0x20] sm:$0x1]
        %v238 = vld [vmem:[%s228 + $0x24] sm:$0xf]
        %v239 = vld [vmem:[%s228 + $0x28] sm:$0xf]
        %v240 = vld [vmem:[%s228 + $0x2c] sm:$0x1]
        %v241 = vld [vmem:[%s228 + $0x30] sm:$0xf]
        %v242 = vld [vmem:[%s228 + $0x34] sm:$0xf]
        %v243 = vld [vmem:[%s228 + $0x38] sm:$0x1]
        %v244 = vld [vmem:[%s228 + $0x3c] sm:$0xf]
        %v245 = vld [vmem:[%s228 + $0x40] sm:$0xf]
        %v246 = vld [vmem:[%s228 + $0x44] sm:$0x1]
        %v247 = vld [vmem:[%s228 + $0x48] sm:$0xf]
        %v248 = vld [vmem:[%s228 + $0x4c] sm:$0xf]
        %v249 = vld [vmem:[%s228 + $0x50] sm:$0x1]
        %v250 = vld [vmem:[%s228 + $0x54] sm:$0xf]
        %v251 = vld [vmem:[%s228 + $0x58] sm:$0xf]
        %v252 = vld [vmem:[%s228 + $0x5c] sm:$0x1]
        %v253 = vld [vmem:[%s228 + $0x60] sm:$0xf]
        %v254 = vld [vmem:[%s228 + $0x64] sm:$0xf]
        %v255 = vld [vmem:[%s228 + $0x68] sm:$0x1]
        %v256 = vld [vmem:[%s228 + $0x6c] sm:$0xf]
        %v257 = vld [vmem:[%s228 + $0x70] sm:$0xf]
        %v258 = vld [vmem:[%s228 + $0x74] sm:$0x1]
        %v259 = vld [vmem:[%s228 + $0x78] sm:$0xf]
        %v260 = vld [vmem:[%s228 + $0x7c] sm:$0xf]
        %v261 = vld [vmem:[%s228 + $0x80] sm:$0x1]
        %v262 = vld [vmem:[%s228 + $0x84] sm:$0xf]
        %v263 = vld [vmem:[%s228 + $0x88] sm:$0xf]
        %v264 = vld [vmem:[%s228 + $0x8c] sm:$0x1]
        %v265 = vld [vmem:[%s228 + $0x90] sm:$0xf]
        %v266 = vld [vmem:[%s228 + $0x94] sm:$0xf]
        %v267 = vld [vmem:[%s228 + $0x98] sm:$0x1]
        %v268 = vld [vmem:[%s228 + $0x9c] sm:$0xf]
        %v269 = vld [vmem:[%s228 + $0xa0] sm:$0xf]
        %v270 = vld [vmem:[%s228 + $0xa4] sm:$0x1]
        %v271 = vld [vmem:[%s228 + $0xa8] sm:$0xf]
        %v272 = vld [vmem:[%s228 + $0xac] sm:$0xf]
        %v273 = vld [vmem:[%s228 + $0xb0] sm:$0x1]
        %v274 = vld [vmem:[%s228 + $0xb4] sm:$0xf]
        %v275 = vld [vmem:[%s228 + $0xb8] sm:$0xf]
        %v276 = vld [vmem:[%s228 + $0xbc] sm:$0x1]
        %v277 = vld [vmem:[%s219] sm:$0x3]
        %vm278 = vsmask.f32 3328
        %vm279 = vsmask.f32 7440
        %vm280 = vmor %vm278, %vm279
        %v282 = vshrl.u32 %v229, 16
        %v284 = vrot.slane %v282, 4
        %v285 = vshll.u32 %v229, 16
        %v287 = vrot.slane %v285, 5
        %v288 = vor.u32 %v284, %v287
        %v289 = vrot.slane %v288, 4
        %v291 = vshll.u32 %v230, 16
        %v293 = vrot.slane %v291, 5
        %v294 = vsel %vm280, %v289, %v293
        %v295 = vshrl.u32 %v230, 16
        %v297 = vrot.slane %v295, 4
        %v298 = vor.u32 %v297, %v293
        %v299 = vrot.slane %v298, 4
        %v301 = vshll.u32 %v231, 16
        %v303 = vrot.slane %v301, 5
        %v304 = vsel %vm280, %v299, %v303
        %v306 = vshrl.u32 %v232, 16
        %v308 = vrot.slane %v306, 4
        %v309 = vshll.u32 %v232, 16
        %v311 = vrot.slane %v309, 5
        %v312 = vor.u32 %v308, %v311
        %v313 = vrot.slane %v312, 4
        %v315 = vshll.u32 %v233, 16
        %v317 = vrot.slane %v315, 5
        %v318 = vsel %vm280, %v313, %v317
        %v319 = vshrl.u32 %v233, 16
        %v321 = vrot.slane %v319, 4
        %v322 = vor.u32 %v321, %v317
        %v323 = vrot.slane %v322, 4
        %v325 = vshll.u32 %v234, 16
        %v327 = vrot.slane %v325, 5
        %v328 = vsel %vm280, %v323, %v327
        %v330 = vshrl.u32 %v235, 16
        %v332 = vrot.slane %v330, 4
        %v333 = vshll.u32 %v235, 16
        %v335 = vrot.slane %v333, 5
        %v336 = vor.u32 %v332, %v335
        %v337 = vrot.slane %v336, 4
        %v339 = vshll.u32 %v236, 16
        %v341 = vrot.slane %v339, 5
        %v342 = vsel %vm280, %v337, %v341
        %v343 = vshrl.u32 %v236, 16
        %v345 = vrot.slane %v343, 4
        %v346 = vor.u32 %v345, %v341
        %v347 = vrot.slane %v346, 4
        %v349 = vshll.u32 %v237, 16
        %v351 = vrot.slane %v349, 5
        %v352 = vsel %vm280, %v347, %v351
        %v354 = vshrl.u32 %v238, 16
        %v356 = vrot.slane %v354, 4
        %v357 = vshll.u32 %v238, 16
        %v359 = vrot.slane %v357, 5
        %v360 = vor.u32 %v356, %v359
        %v361 = vrot.slane %v360, 4
        %v363 = vshll.u32 %v239, 16
        %v365 = vrot.slane %v363, 5
        %v366 = vsel %vm280, %v361, %v365
        %v367 = vshrl.u32 %v239, 16
        %v369 = vrot.slane %v367, 4
        %v370 = vor.u32 %v369, %v365
        %v371 = vrot.slane %v370, 4
        %v373 = vshll.u32 %v240, 16
        %v375 = vrot.slane %v373, 5
        %v376 = vsel %vm280, %v371, %v375
        %v378 = vshrl.u32 %v241, 16
        %v380 = vrot.slane %v378, 4
        %v381 = vshll.u32 %v241, 16
        %v383 = vrot.slane %v381, 5
        %v384 = vor.u32 %v380, %v383
        %v385 = vrot.slane %v384, 4
        %v387 = vshll.u32 %v242, 16
        %v389 = vrot.slane %v387, 5
        %v390 = vsel %vm280, %v385, %v389
        %v391 = vshrl.u32 %v242, 16
        %v393 = vrot.slane %v391, 4
        %v394 = vor.u32 %v393, %v389
        %v395 = vrot.slane %v394, 4
        %v397 = vshll.u32 %v243, 16
        %v399 = vrot.slane %v397, 5
        %v400 = vsel %vm280, %v395, %v399
        %v402 = vshrl.u32 %v244, 16
        %v404 = vrot.slane %v402, 4
        %v405 = vshll.u32 %v244, 16
        %v407 = vrot.slane %v405, 5
        %v408 = vor.u32 %v404, %v407
        %v409 = vrot.slane %v408, 4
        %v411 = vshll.u32 %v245, 16
        %v413 = vrot.slane %v411, 5
        %v414 = vsel %vm280, %v409, %v413
        %v415 = vshrl.u32 %v245, 16
        %v417 = vrot.slane %v415, 4
        %v418 = vor.u32 %v417, %v413
        %v419 = vrot.slane %v418, 4
        %v421 = vshll.u32 %v246, 16
        %v423 = vrot.slane %v421, 5
        %v424 = vsel %vm280, %v419, %v423
        %v426 = vshrl.u32 %v247, 16
        %v428 = vrot.slane %v426, 4
        %v429 = vshll.u32 %v247, 16
        %v431 = vrot.slane %v429, 5
        %v432 = vor.u32 %v428, %v431
        %v433 = vrot.slane %v432, 4
        %v435 = vshll.u32 %v248, 16
        %v437 = vrot.slane %v435, 5
        %v438 = vsel %vm280, %v433, %v437
        %v439 = vshrl.u32 %v248, 16
        %v441 = vrot.slane %v439, 4
        %v442 = vor.u32 %v441, %v437
        %v443 = vrot.slane %v442, 4
        %v445 = vshll.u32 %v249, 16
        %v447 = vrot.slane %v445, 5
        %v448 = vsel %vm280, %v443, %v447
        %v450 = vshrl.u32 %v250, 16
        %v452 = vrot.slane %v450, 4
        %v453 = vshll.u32 %v250, 16
        %v455 = vrot.slane %v453, 5
        %v456 = vor.u32 %v452, %v455
        %v457 = vrot.slane %v456, 4
        %v459 = vshll.u32 %v251, 16
        %v461 = vrot.slane %v459, 5
        %v462 = vsel %vm280, %v457, %v461
        %v463 = vshrl.u32 %v251, 16
        %v465 = vrot.slane %v463, 4
        %v466 = vor.u32 %v465, %v461
        %v467 = vrot.slane %v466, 4
        %v469 = vshll.u32 %v252, 16
        %v471 = vrot.slane %v469, 5
        %v472 = vsel %vm280, %v467, %v471
        %v474 = vshrl.u32 %v253, 16
        %v476 = vrot.slane %v474, 4
        %v477 = vshll.u32 %v253, 16
        %v479 = vrot.slane %v477, 5
        %v480 = vor.u32 %v476, %v479
        %v481 = vrot.slane %v480, 4
        %v483 = vshll.u32 %v254, 16
        %v485 = vrot.slane %v483, 5
        %v486 = vsel %vm280, %v481, %v485
        %v487 = vshrl.u32 %v254, 16
        %v489 = vrot.slane %v487, 4
        %v490 = vor.u32 %v489, %v485
        %v491 = vrot.slane %v490, 4
        %v493 = vshll.u32 %v255, 16
        %v495 = vrot.slane %v493, 5
        %v496 = vsel %vm280, %v491, %v495
        %v498 = vshrl.u32 %v256, 16
        %v500 = vrot.slane %v498, 4
        %v501 = vshll.u32 %v256, 16
        %v503 = vrot.slane %v501, 5
        %v504 = vor.u32 %v500, %v503
        %v505 = vrot.slane %v504, 4
        %v507 = vshll.u32 %v257, 16
        %v509 = vrot.slane %v507, 5
        %v510 = vsel %vm280, %v505, %v509
        %v511 = vshrl.u32 %v257, 16
        %v513 = vrot.slane %v511, 4
        %v514 = vor.u32 %v513, %v509
        %v515 = vrot.slane %v514, 4
        %v517 = vshll.u32 %v258, 16
        %v519 = vrot.slane %v517, 5
        %v520 = vsel %vm280, %v515, %v519
        %v522 = vshrl.u32 %v259, 16
        %v524 = vrot.slane %v522, 4
        %v525 = vshll.u32 %v259, 16
        %v527 = vrot.slane %v525, 5
        %v528 = vor.u32 %v524, %v527
        %v529 = vrot.slane %v528, 4
        %v531 = vshll.u32 %v260, 16
        %v533 = vrot.slane %v531, 5
        %v534 = vsel %vm280, %v529, %v533
        %v535 = vshrl.u32 %v260, 16
        %v537 = vrot.slane %v535, 4
        %v538 = vor.u32 %v537, %v533
        %v539 = vrot.slane %v538, 4
        %v541 = vshll.u32 %v261, 16
        %v543 = vrot.slane %v541, 5
        %v544 = vsel %vm280, %v539, %v543
        %v546 = vshrl.u32 %v262, 16
        %v548 = vrot.slane %v546, 4
        %v549 = vshll.u32 %v262, 16
        %v551 = vrot.slane %v549, 5
        %v552 = vor.u32 %v548, %v551
        %v553 = vrot.slane %v552, 4
        %v555 = vshll.u32 %v263, 16
        %v557 = vrot.slane %v555, 5
        %v558 = vsel %vm280, %v553, %v557
        %v559 = vshrl.u32 %v263, 16
        %v561 = vrot.slane %v559, 4
        %v562 = vor.u32 %v561, %v557
        %v563 = vrot.slane %v562, 4
        %v565 = vshll.u32 %v264, 16
        %v567 = vrot.slane %v565, 5
        %v568 = vsel %vm280, %v563, %v567
        %v570 = vshrl.u32 %v265, 16
        %v572 = vrot.slane %v570, 4
        %v573 = vshll.u32 %v265, 16
        %v575 = vrot.slane %v573, 5
        %v576 = vor.u32 %v572, %v575
        %v577 = vrot.slane %v576, 4
        %v579 = vshll.u32 %v266, 16
        %v581 = vrot.slane %v579, 5
        %v582 = vsel %vm280, %v577, %v581
        %v583 = vshrl.u32 %v266, 16
        %v585 = vrot.slane %v583, 4
        %v586 = vor.u32 %v585, %v581
        %v587 = vrot.slane %v586, 4
        %v589 = vshll.u32 %v267, 16
        %v591 = vrot.slane %v589, 5
        %v592 = vsel %vm280, %v587, %v591
        %v594 = vshrl.u32 %v268, 16
        %v596 = vrot.slane %v594, 4
        %v597 = vshll.u32 %v268, 16
        %v599 = vrot.slane %v597, 5
        %v600 = vor.u32 %v596, %v599
        %v601 = vrot.slane %v600, 4
        %v603 = vshll.u32 %v269, 16
        %v605 = vrot.slane %v603, 5
        %v606 = vsel %vm280, %v601, %v605
        %v607 = vshrl.u32 %v269, 16
        %v609 = vrot.slane %v607, 4
        %v610 = vor.u32 %v609, %v605
        %v611 = vrot.slane %v610, 4
        %v613 = vshll.u32 %v270, 16
        %v615 = vrot.slane %v613, 5
        %v616 = vsel %vm280, %v611, %v615
        %v618 = vshrl.u32 %v271, 16
        %v620 = vrot.slane %v618, 4
        %v621 = vshll.u32 %v271, 16
        %v623 = vrot.slane %v621, 5
        %v624 = vor.u32 %v620, %v623
        %v625 = vrot.slane %v624, 4
        %v627 = vshll.u32 %v272, 16
        %v629 = vrot.slane %v627, 5
        %v630 = vsel %vm280, %v625, %v629
        %v631 = vshrl.u32 %v272, 16
        %v633 = vrot.slane %v631, 4
        %v634 = vor.u32 %v633, %v629
        %v635 = vrot.slane %v634, 4
        %v637 = vshll.u32 %v273, 16
        %v639 = vrot.slane %v637, 5
        %v640 = vsel %vm280, %v635, %v639
        %v642 = vshrl.u32 %v274, 16
        %v644 = vrot.slane %v642, 4
        %v645 = vshll.u32 %v274, 16
        %v647 = vrot.slane %v645, 5
        %v648 = vor.u32 %v644, %v647
        %v649 = vrot.slane %v648, 4
        %v651 = vshll.u32 %v275, 16
        %v653 = vrot.slane %v651, 5
        %v654 = vsel %vm280, %v649, %v653
        %v655 = vshrl.u32 %v275, 16
        %v657 = vrot.slane %v655, 4
        %v658 = vor.u32 %v657, %v653
        %v659 = vrot.slane %v658, 4
        %v661 = vshll.u32 %v276, 16
        %v663 = vrot.slane %v661, 5
        %v664 = vsel %vm280, %v659, %v663
        %s665 = scalar_lea.vmem %s219, 2
        %v666 = vld [vmem:[%s665] sm:$0x3]
        %v667 = vunpack.c.l.b16 %v294
        %v668 = vunpack.c.l.b16 %v304
        %v669 = vunpack.c.l.b16 %v318
        %v670 = vunpack.c.l.b16 %v328
        %v671 = vunpack.c.l.b16 %v342
        %v672 = vunpack.c.l.b16 %v352
        %v673 = vunpack.c.l.b16 %v366
        %v674 = vunpack.c.l.b16 %v376
        %v675 = vunpack.c.l.b16 %v390
        %v676 = vunpack.c.l.b16 %v400
        %v677 = vunpack.c.l.b16 %v414
        %v678 = vunpack.c.l.b16 %v424
        %v679 = vunpack.c.l.b16 %v438
        %v680 = vunpack.c.l.b16 %v448
        %v681 = vunpack.c.l.b16 %v462
        %v682 = vunpack.c.l.b16 %v472
        %v683 = vunpack.c.l.b16 %v486
        %v684 = vunpack.c.l.b16 %v496
        %v685 = vunpack.c.l.b16 %v510
        %v686 = vunpack.c.l.b16 %v520
        %v687 = vunpack.c.l.b16 %v534
        %v688 = vunpack.c.l.b16 %v544
        %v689 = vunpack.c.l.b16 %v558
        %v690 = vunpack.c.l.b16 %v568
        %v691 = vunpack.c.l.b16 %v582
        %v692 = vunpack.c.l.b16 %v592
        %v693 = vunpack.c.l.b16 %v606
        %v694 = vunpack.c.l.b16 %v616
        %v695 = vunpack.c.l.b16 %v630
        %v696 = vunpack.c.l.b16 %v640
        %v697 = vunpack.c.l.b16 %v654
        %v698 = vunpack.c.l.b16 %v664
        %v699 = vpack.c.b16 %v668, %v667
        %v700 = vpack.c.b16 %v670, %v669
        %v701 = vpack.c.b16 %v672, %v671
        %v702 = vpack.c.b16 %v674, %v673
        %v703 = vpack.c.b16 %v676, %v675
        %v704 = vpack.c.b16 %v678, %v677
        %v705 = vpack.c.b16 %v680, %v679
        %v706 = vpack.c.b16 %v682, %v681
        %v707 = vpack.c.b16 %v684, %v683
        %v708 = vpack.c.b16 %v686, %v685
        %v709 = vpack.c.b16 %v688, %v687
        %v710 = vpack.c.b16 %v690, %v689
        %v711 = vpack.c.b16 %v692, %v691
        %v712 = vpack.c.b16 %v694, %v693
        %v713 = vpack.c.b16 %v696, %v695
        %v714 = vpack.c.b16 %v698, %v697
        %vm715 = vcmask 31744
        %v717 = vsel %vm715, %v699, 0
        %v720 = vsel %vm715, %v700, 0
        %v723 = vsel %vm715, %v701, 0
        %v726 = vsel %vm715, %v702, 0
        %v729 = vsel %vm715, %v703, 0
        %v732 = vsel %vm715, %v704, 0
        %v735 = vsel %vm715, %v705, 0
        %v738 = vsel %vm715, %v706, 0
        %v741 = vsel %vm715, %v707, 0
        %v744 = vsel %vm715, %v708, 0
        %v747 = vsel %vm715, %v709, 0
        %v750 = vsel %vm715, %v710, 0
        %v753 = vsel %vm715, %v711, 0
        %v756 = vsel %vm715, %v712, 0
        %v759 = vsel %vm715, %v713, 0
        %v762 = vsel %vm715, %v714, 0
        %vm764 = vcmask 1041408
        %v766 = vsel %vm764, %v666, 0
        %768 = vmatprep.subr.bf16.mxu0 0
        %769 = vmatpush1.bf16.msra.mxu0 %v766
        %770 = vmatprep.subr.bf16.mxu0 0
        %771 = vmatpush1.bf16.msra.mxu0 0
        %772 = vmatprep.subr.bf16.mxu0 0
        %773 = vmatpush1.bf16.msra.mxu0 0
        %774 = vmatprep.subr.bf16.mxu0 0
        %775 = vmatpush1.bf16.msra.mxu0 0
        %776 = vmatprep.subr.bf16.mxu0 0
        %777 = vmatpush1.bf16.msra.mxu0 0
        %778 = vmatprep.subr.bf16.mxu0 0
        %779 = vmatpush1.bf16.msra.mxu0 0
        %780 = vmatprep.subr.bf16.mxu0 0
        %781 = vmatpush1.bf16.msra.mxu0 0
        %782 = vmatprep.subr.bf16.mxu0 0
        %783 = vmatpush1.bf16.msra.mxu0 0
        %784 = vmatprep.subr.bf16.mxu0 0
        %785 = vmatpush1.bf16.msra.mxu0 0
        %786 = vmatprep.subr.bf16.mxu0 0
        %787 = vmatpush1.bf16.msra.mxu0 0
        %788 = vmatprep.subr.bf16.mxu0 0
        %789 = vmatpush1.bf16.msra.mxu0 0
        %790 = vmatprep.subr.bf16.mxu0 0
        %791 = vmatpush1.bf16.msra.mxu0 0
        %792 = vmatprep.subr.bf16.mxu0 0
        %793 = vmatpush1.bf16.msra.mxu0 0
        %794 = vmatprep.subr.bf16.mxu0 0
        %795 = vmatpush1.bf16.msra.mxu0 0
        %796 = vmatprep.subr.bf16.mxu0 0
        %797 = vmatpush1.bf16.msra.mxu0 0
        %798 = vmatprep.subr.bf16.mxu0 0
        %799 = vmatpush1.bf16.msra.mxu0 0
        %800 = vmatprep.mubr.bf16.mxu0 0
        %801 = vmatmul.mubr.bf16.gmra.mrb[0].mxu0 %v717
        %v802 = vpop.f32.mrb[0].mxu0
        %v803 = vadd.f32 0.0, %v802
        %v804 = vpop.f32.mrb[0].mxu0
        %v805 = vpop.f32.mrb[0].mxu0
        %v806 = vadd.f32 0.0, %v805
        %v807 = vpop.f32.mrb[0].mxu0
        %808 = vmatprep.mubr.bf16.mxu0 0
        %809 = vmatmul.mubr.bf16.gmra.mrb[0].mxu0 %v720
        %v810 = vpop.f32.mrb[0].mxu0
        %v811 = vadd.f32 0.0, %v810
        %v812 = vpop.f32.mrb[0].mxu0
        %v813 = vpop.f32.mrb[0].mxu0
        %v814 = vadd.f32 0.0, %v813
        %v815 = vpop.f32.mrb[0].mxu0
        %816 = vmatprep.mubr.bf16.mxu0 0
        %817 = vmatmul.mubr.bf16.gmra.mrb[0].mxu0 %v723
        %v818 = vpop.f32.mrb[0].mxu0
        %v819 = vadd.f32 0.0, %v818
        %v820 = vpop.f32.mrb[0].mxu0
        %v821 = vpop.f32.mrb[0].mxu0
        %v822 = vadd.f32 0.0, %v821
        %v823 = vpop.f32.mrb[0].mxu0
        %824 = vmatprep.mubr.bf16.mxu0 0
        %825 = vmatmul.mubr.bf16.gmra.mrb[0].mxu0 %v726
        %v826 = vpop.f32.mrb[0].mxu0
        %v827 = vadd.f32 0.0, %v826
        %v828 = vpop.f32.mrb[0].mxu0
        %v829 = vpop.f32.mrb[0].mxu0
        %v830 = vadd.f32 0.0, %v829
        %v831 = vpop.f32.mrb[0].mxu0
        %832 = vmatprep.mubr.bf16.mxu0 0
        %833 = vmatmul.mubr.bf16.gmra.mrb[0].mxu0 %v729
        %v834 = vpop.f32.mrb[0].mxu0
        %v835 = vadd.f32 0.0, %v834
        %v836 = vpop.f32.mrb[0].mxu0
        %v837 = vpop.f32.mrb[0].mxu0
        %v838 = vadd.f32 0.0, %v837
        %v839 = vpop.f32.mrb[0].mxu0
        %840 = vmatprep.mubr.bf16.mxu0 0
        %841 = vmatmul.mubr.bf16.gmra.mrb[0].mxu0 %v732
        %v842 = vpop.f32.mrb[0].mxu0
        %v843 = vadd.f32 0.0, %v842
        %v844 = vpop.f32.mrb[0].mxu0
        %v845 = vpop.f32.mrb[0].mxu0
        %v846 = vadd.f32 0.0, %v845
        %v847 = vpop.f32.mrb[0].mxu0
        %848 = vmatprep.mubr.bf16.mxu0 0
        %849 = vmatmul.mubr.bf16.gmra.mrb[0].mxu0 %v735
        %v850 = vpop.f32.mrb[0].mxu0
        %v851 = vadd.f32 0.0, %v850
        %v852 = vpop.f32.mrb[0].mxu0
        %v853 = vpop.f32.mrb[0].mxu0
        %v854 = vadd.f32 0.0, %v853
        %v855 = vpop.f32.mrb[0].mxu0
        %856 = vmatprep.mubr.bf16.mxu0 0
        %857 = vmatmul.mubr.bf16.gmra.mrb[0].mxu0 %v738
        %v858 = vpop.f32.mrb[0].mxu0
        %v859 = vadd.f32 0.0, %v858
        %v860 = vpop.f32.mrb[0].mxu0
        %v861 = vpop.f32.mrb[0].mxu0
        %v862 = vadd.f32 0.0, %v861
        %v863 = vpop.f32.mrb[0].mxu0
        %864 = vmatprep.mubr.bf16.mxu0 0
        %865 = vmatmul.mubr.bf16.gmra.mrb[0].mxu0 %v741
        %v866 = vpop.f32.mrb[0].mxu0
        %v867 = vadd.f32 0.0, %v866
        %v868 = vpop.f32.mrb[0].mxu0
        %v869 = vpop.f32.mrb[0].mxu0
        %v870 = vadd.f32 0.0, %v869
        %v871 = vpop.f32.mrb[0].mxu0
        %872 = vmatprep.mubr.bf16.mxu0 0
        %873 = vmatmul.mubr.bf16.gmra.mrb[0].mxu0 %v744
        %v874 = vpop.f32.mrb[0].mxu0
        %v875 = vadd.f32 0.0, %v874
        %v876 = vpop.f32.mrb[0].mxu0
        %v877 = vpop.f32.mrb[0].mxu0
        %v878 = vadd.f32 0.0, %v877
        %v879 = vpop.f32.mrb[0].mxu0
        %880 = vmatprep.mubr.bf16.mxu0 0
        %881 = vmatmul.mubr.bf16.gmra.mrb[0].mxu0 %v747
        %v882 = vpop.f32.mrb[0].mxu0
        %v883 = vadd.f32 0.0, %v882
        %v884 = vpop.f32.mrb[0].mxu0
        %v885 = vpop.f32.mrb[0].mxu0
        %v886 = vadd.f32 0.0, %v885
        %v887 = vpop.f32.mrb[0].mxu0
        %888 = vmatprep.mubr.bf16.mxu0 0
        %889 = vmatmul.mubr.bf16.gmra.mrb[0].mxu0 %v750
        %v890 = vpop.f32.mrb[0].mxu0
        %v891 = vadd.f32 0.0, %v890
        %v892 = vpop.f32.mrb[0].mxu0
        %v893 = vpop.f32.mrb[0].mxu0
        %v894 = vadd.f32 0.0, %v893
        %v895 = vpop.f32.mrb[0].mxu0
        %896 = vmatprep.mubr.bf16.mxu0 0
        %897 = vmatmul.mubr.bf16.gmra.mrb[0].mxu0 %v753
        %v898 = vpop.f32.mrb[0].mxu0
        %v899 = vadd.f32 0.0, %v898
        %v900 = vpop.f32.mrb[0].mxu0
        %v901 = vpop.f32.mrb[0].mxu0
        %v902 = vadd.f32 0.0, %v901
        %v903 = vpop.f32.mrb[0].mxu0
        %904 = vmatprep.mubr.bf16.mxu0 0
        %905 = vmatmul.mubr.bf16.gmra.mrb[0].mxu0 %v756
        %v906 = vpop.f32.mrb[0].mxu0
        %v907 = vadd.f32 0.0, %v906
        %v908 = vpop.f32.mrb[0].mxu0
        %v909 = vpop.f32.mrb[0].mxu0
        %v910 = vadd.f32 0.0, %v909
        %v911 = vpop.f32.mrb[0].mxu0
        %912 = vmatprep.mubr.bf16.mxu0 0
        %913 = vmatmul.mubr.bf16.gmra.mrb[0].mxu0 %v759
        %v914 = vpop.f32.mrb[0].mxu0
        %v915 = vadd.f32 0.0, %v914
        %v916 = vpop.f32.mrb[0].mxu0
        %v917 = vpop.f32.mrb[0].mxu0
        %v918 = vadd.f32 0.0, %v917
        %v919 = vpop.f32.mrb[0].mxu0
        %920 = vmatprep.mubr.bf16.mxu0 0
        %921 = vmatmul.mubr.bf16.gmra.mrb[0].mxu0 %v762
        %v922 = vpop.f32.mrb[0].mxu0
        %v923 = vadd.f32 0.0, %v922
        %v924 = vpop.f32.mrb[0].mxu0
        %v925 = vpop.f32.mrb[0].mxu0
        %v926 = vadd.f32 0.0, %v925
        %v927 = vpop.f32.mrb[0].mxu0
        %928 = vdwg.mxu0
        %v961 = vunpack.c.l.b16 %v229
        %v962 = vunpack.c.l.b16 %v230
        %v963 = vunpack.c.l.b16 %v232
        %v964 = vunpack.c.l.b16 %v233
        %v965 = vunpack.c.l.b16 %v235
        %v966 = vunpack.c.l.b16 %v236
        %v967 = vunpack.c.l.b16 %v238
        %v968 = vunpack.c.l.b16 %v239
        %v969 = vunpack.c.l.b16 %v241
        %v970 = vunpack.c.l.b16 %v242
        %v971 = vunpack.c.l.b16 %v244
        %v972 = vunpack.c.l.b16 %v245
        %v973 = vunpack.c.l.b16 %v247
        %v974 = vunpack.c.l.b16 %v248
        %v975 = vunpack.c.l.b16 %v250
        %v976 = vunpack.c.l.b16 %v251
        %v977 = vunpack.c.l.b16 %v253
        %v978 = vunpack.c.l.b16 %v254
        %v979 = vunpack.c.l.b16 %v256
        %v980 = vunpack.c.l.b16 %v257
        %v981 = vunpack.c.l.b16 %v259
        %v982 = vunpack.c.l.b16 %v260
        %v983 = vunpack.c.l.b16 %v262
        %v984 = vunpack.c.l.b16 %v263
        %v985 = vunpack.c.l.b16 %v265
        %v986 = vunpack.c.l.b16 %v266
        %v987 = vunpack.c.l.b16 %v268
        %v988 = vunpack.c.l.b16 %v269
        %v989 = vunpack.c.l.b16 %v271
        %v990 = vunpack.c.l.b16 %v272
        %v991 = vunpack.c.l.b16 %v274
        %v992 = vunpack.c.l.b16 %v275
        %v993 = vpack.c.b16 %v962, %v961
        %v994 = vpack.c.b16 %v964, %v963
        %v995 = vpack.c.b16 %v966, %v965
        %v996 = vpack.c.b16 %v968, %v967
        %v997 = vpack.c.b16 %v970, %v969
        %v998 = vpack.c.b16 %v972, %v971
        %v999 = vpack.c.b16 %v974, %v973
        %v1000 = vpack.c.b16 %v976, %v975
        %v1001 = vpack.c.b16 %v978, %v977
        %v1002 = vpack.c.b16 %v980, %v979
        %v1003 = vpack.c.b16 %v982, %v981
        %v1004 = vpack.c.b16 %v984, %v983
        %v1005 = vpack.c.b16 %v986, %v985
        %v1006 = vpack.c.b16 %v988, %v987
        %v1007 = vpack.c.b16 %v990, %v989
        %v1008 = vpack.c.b16 %v992, %v991
        %v1010 = vsel %vm715, %v993, 0
        %v1013 = vsel %vm715, %v994, 0
        %v1016 = vsel %vm715, %v995, 0
        %v1019 = vsel %vm715, %v996, 0
        %v1022 = vsel %vm715, %v997, 0
        %v1025 = vsel %vm715, %v998, 0
        %v1028 = vsel %vm715, %v999, 0
        %v1031 = vsel %vm715, %v1000, 0
        %v1034 = vsel %vm715, %v1001, 0
        %v1037 = vsel %vm715, %v1002, 0
        %v1040 = vsel %vm715, %v1003, 0
        %v1043 = vsel %vm715, %v1004, 0
        %v1046 = vsel %vm715, %v1005, 0
        %v1049 = vsel %vm715, %v1006, 0
        %v1052 = vsel %vm715, %v1007, 0
        %v1055 = vsel %vm715, %v1008, 0
        %v1058 = vsel %vm764, %v277, 0
        %1060 = vmatprep.subr.bf16.mxu0 0
        %1061 = vmatpush1.bf16.msra.mxu0 %v1058
        %1062 = vmatprep.subr.bf16.mxu0 0
        %1063 = vmatpush1.bf16.msra.mxu0 0
        %1064 = vmatprep.subr.bf16.mxu0 0
        %1065 = vmatpush1.bf16.msra.mxu0 0
        %1066 = vmatprep.subr.bf16.mxu0 0
        %1067 = vmatpush1.bf16.msra.mxu0 0
        %1068 = vmatprep.subr.bf16.mxu0 0
        %1069 = vmatpush1.bf16.msra.mxu0 0
        %1070 = vmatprep.subr.bf16.mxu0 0
        %1071 = vmatpush1.bf16.msra.mxu0 0
        %1072 = vmatprep.subr.bf16.mxu0 0
        %1073 = vmatpush1.bf16.msra.mxu0 0
        %1074 = vmatprep.subr.bf16.mxu0 0
        %1075 = vmatpush1.bf16.msra.mxu0 0
        %1076 = vmatprep.subr.bf16.mxu0 0
        %1077 = vmatpush1.bf16.msra.mxu0 0
        %1078 = vmatprep.subr.bf16.mxu0 0
        %1079 = vmatpush1.bf16.msra.mxu0 0
        %1080 = vmatprep.subr.bf16.mxu0 0
        %1081 = vmatpush1.bf16.msra.mxu0 0
        %1082 = vmatprep.subr.bf16.mxu0 0
        %1083 = vmatpush1.bf16.msra.mxu0 0
        %1084 = vmatprep.subr.bf16.mxu0 0
        %1085 = vmatpush1.bf16.msra.mxu0 0
        %1086 = vmatprep.subr.bf16.mxu0 0
        %1087 = vmatpush1.bf16.msra.mxu0 0
        %1088 = vmatprep.subr.bf16.mxu0 0
        %1089 = vmatpush1.bf16.msra.mxu0 0
        %1090 = vmatprep.subr.bf16.mxu0 0
        %1091 = vmatpush1.bf16.msra.mxu0 0
        %1092 = vmatprep.mubr.bf16.mxu0 0
        %1093 = vmatmul.mubr.bf16.gmra.mrb[0].mxu0 %v1010
        %v1094 = vpop.f32.mrb[0].mxu0
        %v1095 = vadd.f32 %v803, %v1094
        %v1096 = vpop.f32.mrb[0].mxu0
        %v1097 = vpop.f32.mrb[0].mxu0
        %v1098 = vadd.f32 %v806, %v1097
        %v1099 = vpop.f32.mrb[0].mxu0
        %1100 = vmatprep.mubr.bf16.mxu0 0
        %1101 = vmatmul.mubr.bf16.gmra.mrb[0].mxu0 %v1013
        %v1102 = vpop.f32.mrb[0].mxu0
        %v1103 = vadd.f32 %v811, %v1102
        %v1104 = vpop.f32.mrb[0].mxu0
        %v1105 = vpop.f32.mrb[0].mxu0
        %v1106 = vadd.f32 %v814, %v1105
        %v1107 = vpop.f32.mrb[0].mxu0
        %1108 = vmatprep.mubr.bf16.mxu0 0
        %1109 = vmatmul.mubr.bf16.gmra.mrb[0].mxu0 %v1016
        %v1110 = vpop.f32.mrb[0].mxu0
        %v1111 = vadd.f32 %v819, %v1110
        %v1112 = vpop.f32.mrb[0].mxu0
        %v1113 = vpop.f32.mrb[0].mxu0
        %v1114 = vadd.f32 %v822, %v1113
        %v1115 = vpop.f32.mrb[0].mxu0
        %1116 = vmatprep.mubr.bf16.mxu0 0
        %1117 = vmatmul.mubr.bf16.gmra.mrb[0].mxu0 %v1019
        %v1118 = vpop.f32.mrb[0].mxu0
        %v1119 = vadd.f32 %v827, %v1118
        %v1120 = vpop.f32.mrb[0].mxu0
        %v1121 = vpop.f32.mrb[0].mxu0
        %v1122 = vadd.f32 %v830, %v1121
        %v1123 = vpop.f32.mrb[0].mxu0
        %1124 = vmatprep.mubr.bf16.mxu0 0
        %1125 = vmatmul.mubr.bf16.gmra.mrb[0].mxu0 %v1022
        %v1126 = vpop.f32.mrb[0].mxu0
        %v1127 = vadd.f32 %v835, %v1126
        %v1128 = vpop.f32.mrb[0].mxu0
        %v1129 = vpop.f32.mrb[0].mxu0
        %v1130 = vadd.f32 %v838, %v1129
        %v1131 = vpop.f32.mrb[0].mxu0
        %1132 = vmatprep.mubr.bf16.mxu0 0
        %1133 = vmatmul.mubr.bf16.gmra.mrb[0].mxu0 %v1025
        %v1134 = vpop.f32.mrb[0].mxu0
        %v1135 = vadd.f32 %v843, %v1134
        %v1136 = vpop.f32.mrb[0].mxu0
        %v1137 = vpop.f32.mrb[0].mxu0
        %v1138 = vadd.f32 %v846, %v1137
        %v1139 = vpop.f32.mrb[0].mxu0
        %1140 = vmatprep.mubr.bf16.mxu0 0
        %1141 = vmatmul.mubr.bf16.gmra.mrb[0].mxu0 %v1028
        %v1142 = vpop.f32.mrb[0].mxu0
        %v1143 = vadd.f32 %v851, %v1142
        %v1144 = vpop.f32.mrb[0].mxu0
        %v1145 = vpop.f32.mrb[0].mxu0
        %v1146 = vadd.f32 %v854, %v1145
        %v1147 = vpop.f32.mrb[0].mxu0
        %1148 = vmatprep.mubr.bf16.mxu0 0
        %1149 = vmatmul.mubr.bf16.gmra.mrb[0].mxu0 %v1031
        %v1150 = vpop.f32.mrb[0].mxu0
        %v1151 = vadd.f32 %v859, %v1150
        %v1152 = vpop.f32.mrb[0].mxu0
        %v1153 = vpop.f32.mrb[0].mxu0
        %v1154 = vadd.f32 %v862, %v1153
        %v1155 = vpop.f32.mrb[0].mxu0
        %1156 = vmatprep.mubr.bf16.mxu0 0
        %1157 = vmatmul.mubr.bf16.gmra.mrb[0].mxu0 %v1034
        %v1158 = vpop.f32.mrb[0].mxu0
        %v1159 = vadd.f32 %v867, %v1158
        %v1160 = vpop.f32.mrb[0].mxu0
        %v1161 = vpop.f32.mrb[0].mxu0
        %v1162 = vadd.f32 %v870, %v1161
        %v1163 = vpop.f32.mrb[0].mxu0
        %1164 = vmatprep.mubr.bf16.mxu0 0
        %1165 = vmatmul.mubr.bf16.gmra.mrb[0].mxu0 %v1037
        %v1166 = vpop.f32.mrb[0].mxu0
        %v1167 = vadd.f32 %v875, %v1166
        %v1168 = vpop.f32.mrb[0].mxu0
        %v1169 = vpop.f32.mrb[0].mxu0
        %v1170 = vadd.f32 %v878, %v1169
        %v1171 = vpop.f32.mrb[0].mxu0
        %1172 = vmatprep.mubr.bf16.mxu0 0
        %1173 = vmatmul.mubr.bf16.gmra.mrb[0].mxu0 %v1040
        %v1174 = vpop.f32.mrb[0].mxu0
        %v1175 = vadd.f32 %v883, %v1174
        %v1176 = vpop.f32.mrb[0].mxu0
        %v1177 = vpop.f32.mrb[0].mxu0
        %v1178 = vadd.f32 %v886, %v1177
        %v1179 = vpop.f32.mrb[0].mxu0
        %1180 = vmatprep.mubr.bf16.mxu0 0
        %1181 = vmatmul.mubr.bf16.gmra.mrb[0].mxu0 %v1043
        %v1182 = vpop.f32.mrb[0].mxu0
        %v1183 = vadd.f32 %v891, %v1182
        %v1184 = vpop.f32.mrb[0].mxu0
        %v1185 = vpop.f32.mrb[0].mxu0
        %v1186 = vadd.f32 %v894, %v1185
        %v1187 = vpop.f32.mrb[0].mxu0
        %1188 = vmatprep.mubr.bf16.mxu0 0
        %1189 = vmatmul.mubr.bf16.gmra.mrb[0].mxu0 %v1046
        %v1190 = vpop.f32.mrb[0].mxu0
        %v1191 = vadd.f32 %v899, %v1190
        %v1192 = vpop.f32.mrb[0].mxu0
        %v1193 = vpop.f32.mrb[0].mxu0
        %v1194 = vadd.f32 %v902, %v1193
        %v1195 = vpop.f32.mrb[0].mxu0
        %1196 = vmatprep.mubr.bf16.mxu0 0
        %1197 = vmatmul.mubr.bf16.gmra.mrb[0].mxu0 %v1049
        %v1198 = vpop.f32.mrb[0].mxu0
        %v1199 = vadd.f32 %v907, %v1198
        %v1200 = vpop.f32.mrb[0].mxu0
        %v1201 = vpop.f32.mrb[0].mxu0
        %v1202 = vadd.f32 %v910, %v1201
        %v1203 = vpop.f32.mrb[0].mxu0
        %1204 = vmatprep.mubr.bf16.mxu0 0
        %1205 = vmatmul.mubr.bf16.gmra.mrb[0].mxu0 %v1052
        %v1206 = vpop.f32.mrb[0].mxu0
        %v1207 = vadd.f32 %v915, %v1206
        %v1208 = vpop.f32.mrb[0].mxu0
        %v1209 = vpop.f32.mrb[0].mxu0
        %v1210 = vadd.f32 %v918, %v1209
        %v1211 = vpop.f32.mrb[0].mxu0
        %1212 = vmatprep.mubr.bf16.mxu0 0
        %1213 = vmatmul.mubr.bf16.gmra.mrb[0].mxu0 %v1055
        %v1214 = vpop.f32.mrb[0].mxu0
        %v1215 = vadd.f32 %v923, %v1214
        %v1216 = vpop.f32.mrb[0].mxu0
        %v1217 = vpop.f32.mrb[0].mxu0
        %v1218 = vadd.f32 %v926, %v1217
        %v1219 = vpop.f32.mrb[0].mxu0
        %1220 = vdwg.mxu0
        %vm1237 = vcmask 1042432
        %vm1238 = vcmask 1046532
        %vm1239 = vmor %vm1237, %vm1238
        %v1240 = vrot.slane %v229, 5
        %v1241 = vrot.slane %v1240, 4
        %v1242 = vrot.slane %v230, 5
        %v1243 = vsel %vm1239, %v1241, %v1242
        %v1244 = vrot.slane %v1242, 4
        %v1245 = vrot.slane %v231, 5
        %v1246 = vsel %vm1239, %v1244, %v1245
        %v1247 = vrot.slane %v232, 5
        %v1248 = vrot.slane %v1247, 4
        %v1249 = vrot.slane %v233, 5
        %v1250 = vsel %vm1239, %v1248, %v1249
        %v1251 = vrot.slane %v1249, 4
        %v1252 = vrot.slane %v234, 5
        %v1253 = vsel %vm1239, %v1251, %v1252
        %v1254 = vrot.slane %v235, 5
        %v1255 = vrot.slane %v1254, 4
        %v1256 = vrot.slane %v236, 5
        %v1257 = vsel %vm1239, %v1255, %v1256
        %v1258 = vrot.slane %v1256, 4
        %v1259 = vrot.slane %v237, 5
        %v1260 = vsel %vm1239, %v1258, %v1259
        %v1261 = vrot.slane %v238, 5
        %v1262 = vrot.slane %v1261, 4
        %v1263 = vrot.slane %v239, 5
        %v1264 = vsel %vm1239, %v1262, %v1263
        %v1265 = vrot.slane %v1263, 4
        %v1266 = vrot.slane %v240, 5
        %v1267 = vsel %vm1239, %v1265, %v1266
        %v1268 = vrot.slane %v241, 5
        %v1269 = vrot.slane %v1268, 4
        %v1270 = vrot.slane %v242, 5
        %v1271 = vsel %vm1239, %v1269, %v1270
        %v1272 = vrot.slane %v1270, 4
        %v1273 = vrot.slane %v243, 5
        %v1274 = vsel %vm1239, %v1272, %v1273
        %v1275 = vrot.slane %v244, 5
        %v1276 = vrot.slane %v1275, 4
        %v1277 = vrot.slane %v245, 5
        %v1278 = vsel %vm1239, %v1276, %v1277
        %v1279 = vrot.slane %v1277, 4
        %v1280 = vrot.slane %v246, 5
        %v1281 = vsel %vm1239, %v1279, %v1280
        %v1282 = vrot.slane %v247, 5
        %v1283 = vrot.slane %v1282, 4
        %v1284 = vrot.slane %v248, 5
        %v1285 = vsel %vm1239, %v1283, %v1284
        %v1286 = vrot.slane %v1284, 4
        %v1287 = vrot.slane %v249, 5
        %v1288 = vsel %vm1239, %v1286, %v1287
        %v1289 = vrot.slane %v250, 5
        %v1290 = vrot.slane %v1289, 4
        %v1291 = vrot.slane %v251, 5
        %v1292 = vsel %vm1239, %v1290, %v1291
        %v1293 = vrot.slane %v1291, 4
        %v1294 = vrot.slane %v252, 5
        %v1295 = vsel %vm1239, %v1293, %v1294
        %v1296 = vrot.slane %v253, 5
        %v1297 = vrot.slane %v1296, 4
        %v1298 = vrot.slane %v254, 5
        %v1299 = vsel %vm1239, %v1297, %v1298
        %v1300 = vrot.slane %v1298, 4
        %v1301 = vrot.slane %v255, 5
        %v1302 = vsel %vm1239, %v1300, %v1301
        %v1303 = vrot.slane %v256, 5
        %v1304 = vrot.slane %v1303, 4
        %v1305 = vrot.slane %v257, 5
        %v1306 = vsel %vm1239, %v1304, %v1305
        %v1307 = vrot.slane %v1305, 4
        %v1308 = vrot.slane %v258, 5
        %v1309 = vsel %vm1239, %v1307, %v1308
        %v1310 = vrot.slane %v259, 5
        %v1311 = vrot.slane %v1310, 4
        %v1312 = vrot.slane %v260, 5
        %v1313 = vsel %vm1239, %v1311, %v1312
        %v1314 = vrot.slane %v1312, 4
        %v1315 = vrot.slane %v261, 5
        %v1316 = vsel %vm1239, %v1314, %v1315
        %v1317 = vrot.slane %v262, 5
        %v1318 = vrot.slane %v1317, 4
        %v1319 = vrot.slane %v263, 5
        %v1320 = vsel %vm1239, %v1318, %v1319
        %v1321 = vrot.slane %v1319, 4
        %v1322 = vrot.slane %v264, 5
        %v1323 = vsel %vm1239, %v1321, %v1322
        %v1324 = vrot.slane %v265, 5
        %v1325 = vrot.slane %v1324, 4
        %v1326 = vrot.slane %v266, 5
        %v1327 = vsel %vm1239, %v1325, %v1326
        %v1328 = vrot.slane %v1326, 4
        %v1329 = vrot.slane %v267, 5
        %v1330 = vsel %vm1239, %v1328, %v1329
        %v1331 = vrot.slane %v268, 5
        %v1332 = vrot.slane %v1331, 4
        %v1333 = vrot.slane %v269, 5
        %v1334 = vsel %vm1239, %v1332, %v1333
        %v1335 = vrot.slane %v1333, 4
        %v1336 = vrot.slane %v270, 5
        %v1337 = vsel %vm1239, %v1335, %v1336
        %v1338 = vrot.slane %v271, 5
        %v1339 = vrot.slane %v1338, 4
        %v1340 = vrot.slane %v272, 5
        %v1341 = vsel %vm1239, %v1339, %v1340
        %v1342 = vrot.slane %v1340, 4
        %v1343 = vrot.slane %v273, 5
        %v1344 = vsel %vm1239, %v1342, %v1343
        %v1345 = vrot.slane %v274, 5
        %v1346 = vrot.slane %v1345, 4
        %v1347 = vrot.slane %v275, 5
        %v1348 = vsel %vm1239, %v1346, %v1347
        %v1349 = vrot.slane %v1347, 4
        %v1350 = vrot.slane %v276, 5
        %v1351 = vsel %vm1239, %v1349, %v1350
        %s1352 = scalar_lea.vmem %s219, 4
        %v1353 = vld [vmem:[%s1352] sm:$0x3]
        %v1354 = vunpack.c.l.b16 %v1243
        %v1355 = vunpack.c.l.b16 %v1246
        %v1356 = vunpack.c.l.b16 %v1250
        %v1357 = vunpack.c.l.b16 %v1253
        %v1358 = vunpack.c.l.b16 %v1257
        %v1359 = vunpack.c.l.b16 %v1260
        %v1360 = vunpack.c.l.b16 %v1264
        %v1361 = vunpack.c.l.b16 %v1267
        %v1362 = vunpack.c.l.b16 %v1271
        %v1363 = vunpack.c.l.b16 %v1274
        %v1364 = vunpack.c.l.b16 %v1278
        %v1365 = vunpack.c.l.b16 %v1281
        %v1366 = vunpack.c.l.b16 %v1285
        %v1367 = vunpack.c.l.b16 %v1288
        %v1368 = vunpack.c.l.b16 %v1292
        %v1369 = vunpack.c.l.b16 %v1295
        %v1370 = vunpack.c.l.b16 %v1299
        %v1371 = vunpack.c.l.b16 %v1302
        %v1372 = vunpack.c.l.b16 %v1306
        %v1373 = vunpack.c.l.b16 %v1309
        %v1374 = vunpack.c.l.b16 %v1313
        %v1375 = vunpack.c.l.b16 %v1316
        %v1376 = vunpack.c.l.b16 %v1320
        %v1377 = vunpack.c.l.b16 %v1323
        %v1378 = vunpack.c.l.b16 %v1327
        %v1379 = vunpack.c.l.b16 %v1330
        %v1380 = vunpack.c.l.b16 %v1334
        %v1381 = vunpack.c.l.b16 %v1337
        %v1382 = vunpack.c.l.b16 %v1341
        %v1383 = vunpack.c.l.b16 %v1344
        %v1384 = vunpack.c.l.b16 %v1348
        %v1385 = vunpack.c.l.b16 %v1351
        %v1386 = vpack.c.b16 %v1355, %v1354
        %v1387 = vpack.c.b16 %v1357, %v1356
        %v1388 = vpack.c.b16 %v1359, %v1358
        %v1389 = vpack.c.b16 %v1361, %v1360
        %v1390 = vpack.c.b16 %v1363, %v1362
        %v1391 = vpack.c.b16 %v1365, %v1364
        %v1392 = vpack.c.b16 %v1367, %v1366
        %v1393 = vpack.c.b16 %v1369, %v1368
        %v1394 = vpack.c.b16 %v1371, %v1370
        %v1395 = vpack.c.b16 %v1373, %v1372
        %v1396 = vpack.c.b16 %v1375, %v1374
        %v1397 = vpack.c.b16 %v1377, %v1376
        %v1398 = vpack.c.b16 %v1379, %v1378
        %v1399 = vpack.c.b16 %v1381, %v1380
        %v1400 = vpack.c.b16 %v1383, %v1382
        %v1401 = vpack.c.b16 %v1385, %v1384
        %v1403 = vsel %vm715, %v1386, 0
        %v1406 = vsel %vm715, %v1387, 0
        %v1409 = vsel %vm715, %v1388, 0
        %v1412 = vsel %vm715, %v1389, 0
        %v1415 = vsel %vm715, %v1390, 0
        %v1418 = vsel %vm715, %v1391, 0
        %v1421 = vsel %vm715, %v1392, 0
        %v1424 = vsel %vm715, %v1393, 0
        %v1427 = vsel %vm715, %v1394, 0
        %v1430 = vsel %vm715, %v1395, 0
        %v1433 = vsel %vm715, %v1396, 0
        %v1436 = vsel %vm715, %v1397, 0
        %v1439 = vsel %vm715, %v1398, 0
        %v1442 = vsel %vm715, %v1399, 0
        %v1445 = vsel %vm715, %v1400, 0
        %v1448 = vsel %vm715, %v1401, 0
        %v1451 = vsel %vm764, %v1353, 0
        %1453 = vmatprep.subr.bf16.mxu0 0
        %1454 = vmatpush1.bf16.msra.mxu0 %v1451
        %1455 = vmatprep.subr.bf16.mxu0 0
        %1456 = vmatpush1.bf16.msra.mxu0 0
        %1457 = vmatprep.subr.bf16.mxu0 0
        %1458 = vmatpush1.bf16.msra.mxu0 0
        %1459 = vmatprep.subr.bf16.mxu0 0
        %1460 = vmatpush1.bf16.msra.mxu0 0
        %1461 = vmatprep.subr.bf16.mxu0 0
        %1462 = vmatpush1.bf16.msra.mxu0 0
        %1463 = vmatprep.subr.bf16.mxu0 0
        %1464 = vmatpush1.bf16.msra.mxu0 0
        %1465 = vmatprep.subr.bf16.mxu0 0
        %1466 = vmatpush1.bf16.msra.mxu0 0
        %1467 = vmatprep.subr.bf16.mxu0 0
        %1468 = vmatpush1.bf16.msra.mxu0 0
        %1469 = vmatprep.subr.bf16.mxu0 0
        %1470 = vmatpush1.bf16.msra.mxu0 0
        %1471 = vmatprep.subr.bf16.mxu0 0
        %1472 = vmatpush1.bf16.msra.mxu0 0
        %1473 = vmatprep.subr.bf16.mxu0 0
        %1474 = vmatpush1.bf16.msra.mxu0 0
        %1475 = vmatprep.subr.bf16.mxu0 0
        %1476 = vmatpush1.bf16.msra.mxu0 0
        %1477 = vmatprep.subr.bf16.mxu0 0
        %1478 = vmatpush1.bf16.msra.mxu0 0
        %1479 = vmatprep.subr.bf16.mxu0 0
        %1480 = vmatpush1.bf16.msra.mxu0 0
        %1481 = vmatprep.subr.bf16.mxu0 0
        %1482 = vmatpush1.bf16.msra.mxu0 0
        %1483 = vmatprep.subr.bf16.mxu0 0
        %1484 = vmatpush1.bf16.msra.mxu0 0
        %1485 = vmatprep.mubr.bf16.mxu0 0
        %1486 = vmatmul.mubr.bf16.gmra.mrb[0].mxu0 %v1403
        %v1487 = vpop.f32.mrb[0].mxu0
        %v1488 = vadd.f32 0.0, %v1487
        %v1489 = vpop.f32.mrb[0].mxu0
        %v1490 = vpop.f32.mrb[0].mxu0
        %v1491 = vadd.f32 0.0, %v1490
        %v1492 = vpop.f32.mrb[0].mxu0
        %1493 = vmatprep.mubr.bf16.mxu0 0
        %1494 = vmatmul.mubr.bf16.gmra.mrb[0].mxu0 %v1406
        %v1495 = vpop.f32.mrb[0].mxu0
        %v1496 = vadd.f32 0.0, %v1495
        %v1497 = vpop.f32.mrb[0].mxu0
        %v1498 = vpop.f32.mrb[0].mxu0
        %v1499 = vadd.f32 0.0, %v1498
        %v1500 = vpop.f32.mrb[0].mxu0
        %1501 = vmatprep.mubr.bf16.mxu0 0
        %1502 = vmatmul.mubr.bf16.gmra.mrb[0].mxu0 %v1409
        %v1503 = vpop.f32.mrb[0].mxu0
        %v1504 = vadd.f32 0.0, %v1503
        %v1505 = vpop.f32.mrb[0].mxu0
        %v1506 = vpop.f32.mrb[0].mxu0
        %v1507 = vadd.f32 0.0, %v1506
        %v1508 = vpop.f32.mrb[0].mxu0
        %1509 = vmatprep.mubr.bf16.mxu0 0
        %1510 = vmatmul.mubr.bf16.gmra.mrb[0].mxu0 %v1412
        %v1511 = vpop.f32.mrb[0].mxu0
        %v1512 = vadd.f32 0.0, %v1511
        %v1513 = vpop.f32.mrb[0].mxu0
        %v1514 = vpop.f32.mrb[0].mxu0
        %v1515 = vadd.f32 0.0, %v1514
        %v1516 = vpop.f32.mrb[0].mxu0
        %1517 = vmatprep.mubr.bf16.mxu0 0
        %1518 = vmatmul.mubr.bf16.gmra.mrb[0].mxu0 %v1415
        %v1519 = vpop.f32.mrb[0].mxu0
        %v1520 = vadd.f32 0.0, %v1519
        %v1521 = vpop.f32.mrb[0].mxu0
        %v1522 = vpop.f32.mrb[0].mxu0
        %v1523 = vadd.f32 0.0, %v1522
        %v1524 = vpop.f32.mrb[0].mxu0
        %1525 = vmatprep.mubr.bf16.mxu0 0
        %1526 = vmatmul.mubr.bf16.gmra.mrb[0].mxu0 %v1418
        %v1527 = vpop.f32.mrb[0].mxu0
        %v1528 = vadd.f32 0.0, %v1527
        %v1529 = vpop.f32.mrb[0].mxu0
        %v1530 = vpop.f32.mrb[0].mxu0
        %v1531 = vadd.f32 0.0, %v1530
        %v1532 = vpop.f32.mrb[0].mxu0
        %1533 = vmatprep.mubr.bf16.mxu0 0
        %1534 = vmatmul.mubr.bf16.gmra.mrb[0].mxu0 %v1421
        %v1535 = vpop.f32.mrb[0].mxu0
        %v1536 = vadd.f32 0.0, %v1535
        %v1537 = vpop.f32.mrb[0].mxu0
        %v1538 = vpop.f32.mrb[0].mxu0
        %v1539 = vadd.f32 0.0, %v1538
        %v1540 = vpop.f32.mrb[0].mxu0
        %1541 = vmatprep.mubr.bf16.mxu0 0
        %1542 = vmatmul.mubr.bf16.gmra.mrb[0].mxu0 %v1424
        %v1543 = vpop.f32.mrb[0].mxu0
        %v1544 = vadd.f32 0.0, %v1543
        %v1545 = vpop.f32.mrb[0].mxu0
        %v1546 = vpop.f32.mrb[0].mxu0
        %v1547 = vadd.f32 0.0, %v1546
        %v1548 = vpop.f32.mrb[0].mxu0
        %1549 = vmatprep.mubr.bf16.mxu0 0
        %1550 = vmatmul.mubr.bf16.gmra.mrb[0].mxu0 %v1427
        %v1551 = vpop.f32.mrb[0].mxu0
        %v1552 = vadd.f32 0.0, %v1551
        %v1553 = vpop.f32.mrb[0].mxu0
        %v1554 = vpop.f32.mrb[0].mxu0
        %v1555 = vadd.f32 0.0, %v1554
        %v1556 = vpop.f32.mrb[0].mxu0
        %1557 = vmatprep.mubr.bf16.mxu0 0
        %1558 = vmatmul.mubr.bf16.gmra.mrb[0].mxu0 %v1430
        %v1559 = vpop.f32.mrb[0].mxu0
        %v1560 = vadd.f32 0.0, %v1559
        %v1561 = vpop.f32.mrb[0].mxu0
        %v1562 = vpop.f32.mrb[0].mxu0
        %v1563 = vadd.f32 0.0, %v1562
        %v1564 = vpop.f32.mrb[0].mxu0
        %1565 = vmatprep.mubr.bf16.mxu0 0
        %1566 = vmatmul.mubr.bf16.gmra.mrb[0].mxu0 %v1433
        %v1567 = vpop.f32.mrb[0].mxu0
        %v1568 = vadd.f32 0.0, %v1567
        %v1569 = vpop.f32.mrb[0].mxu0
        %v1570 = vpop.f32.mrb[0].mxu0
        %v1571 = vadd.f32 0.0, %v1570
        %v1572 = vpop.f32.mrb[0].mxu0
        %1573 = vmatprep.mubr.bf16.mxu0 0
        %1574 = vmatmul.mubr.bf16.gmra.mrb[0].mxu0 %v1436
        %v1575 = vpop.f32.mrb[0].mxu0
        %v1576 = vadd.f32 0.0, %v1575
        %v1577 = vpop.f32.mrb[0].mxu0
        %v1578 = vpop.f32.mrb[0].mxu0
        %v1579 = vadd.f32 0.0, %v1578
        %v1580 = vpop.f32.mrb[0].mxu0
        %1581 = vmatprep.mubr.bf16.mxu0 0
        %1582 = vmatmul.mubr.bf16.gmra.mrb[0].mxu0 %v1439
        %v1583 = vpop.f32.mrb[0].mxu0
        %v1584 = vadd.f32 0.0, %v1583
        %v1585 = vpop.f32.mrb[0].mxu0
        %v1586 = vpop.f32.mrb[0].mxu0
        %v1587 = vadd.f32 0.0, %v1586
        %v1588 = vpop.f32.mrb[0].mxu0
        %1589 = vmatprep.mubr.bf16.mxu0 0
        %1590 = vmatmul.mubr.bf16.gmra.mrb[0].mxu0 %v1442
        %v1591 = vpop.f32.mrb[0].mxu0
        %v1592 = vadd.f32 0.0, %v1591
        %v1593 = vpop.f32.mrb[0].mxu0
        %v1594 = vpop.f32.mrb[0].mxu0
        %v1595 = vadd.f32 0.0, %v1594
        %v1596 = vpop.f32.mrb[0].mxu0
        %1597 = vmatprep.mubr.bf16.mxu0 0
        %1598 = vmatmul.mubr.bf16.gmra.mrb[0].mxu0 %v1445
        %v1599 = vpop.f32.mrb[0].mxu0
        %v1600 = vadd.f32 0.0, %v1599
        %v1601 = vpop.f32.mrb[0].mxu0
        %v1602 = vpop.f32.mrb[0].mxu0
        %v1603 = vadd.f32 0.0, %v1602
        %v1604 = vpop.f32.mrb[0].mxu0
        %1605 = vmatprep.mubr.bf16.mxu0 0
        %1606 = vmatmul.mubr.bf16.gmra.mrb[0].mxu0 %v1448
        %v1607 = vpop.f32.mrb[0].mxu0
        %v1608 = vadd.f32 0.0, %v1607
        %v1609 = vpop.f32.mrb[0].mxu0
        %v1610 = vpop.f32.mrb[0].mxu0
        %v1611 = vadd.f32 0.0, %v1610
        %v1612 = vpop.f32.mrb[0].mxu0
        %1613 = vdwg.mxu0
        %v1614 = vadd.f32 %v1095, %v1488
        %v1615 = vadd.f32 %v1098, %v1491
        %v1616 = vadd.f32 %v1103, %v1496
        %v1617 = vadd.f32 %v1106, %v1499
        %v1618 = vadd.f32 %v1111, %v1504
        %v1619 = vadd.f32 %v1114, %v1507
        %v1620 = vadd.f32 %v1119, %v1512
        %v1621 = vadd.f32 %v1122, %v1515
        %v1622 = vadd.f32 %v1127, %v1520
        %v1623 = vadd.f32 %v1130, %v1523
        %v1624 = vadd.f32 %v1135, %v1528
        %v1625 = vadd.f32 %v1138, %v1531
        %v1626 = vadd.f32 %v1143, %v1536
        %v1627 = vadd.f32 %v1146, %v1539
        %v1628 = vadd.f32 %v1151, %v1544
        %v1629 = vadd.f32 %v1154, %v1547
        %v1630 = vadd.f32 %v1159, %v1552
        %v1631 = vadd.f32 %v1162, %v1555
        %v1632 = vadd.f32 %v1167, %v1560
        %v1633 = vadd.f32 %v1170, %v1563
        %v1634 = vadd.f32 %v1175, %v1568
        %v1635 = vadd.f32 %v1178, %v1571
        %v1636 = vadd.f32 %v1183, %v1576
        %v1637 = vadd.f32 %v1186, %v1579
        %v1638 = vadd.f32 %v1191, %v1584
        %v1639 = vadd.f32 %v1194, %v1587
        %v1640 = vadd.f32 %v1199, %v1592
        %v1641 = vadd.f32 %v1202, %v1595
        %v1642 = vadd.f32 %v1207, %v1600
        %v1643 = vadd.f32 %v1210, %v1603
        %v1644 = vadd.f32 %v1215, %v1608
        %v1645 = vadd.f32 %v1218, %v1611
        %s1646 = sadd.s32 %s225, 1
        %s1647 = smul.u32 %s1646, 3
        %s1648 = smul.addr %s1647, 4
        %s1649 = scalar_lea.vmem %s215, %s1648
        %v1650 = vld [vmem:[%s1649] sm:$0xf]
        %v1651 = vld [vmem:[%s1649 + $0x4] sm:$0xf]
        %v1652 = vld [vmem:[%s1649 + $0x8] sm:$0x1]
        %v1653 = vld [vmem:[%s1649 + $0xc] sm:$0xf]
        %v1654 = vld [vmem:[%s1649 + $0x10] sm:$0xf]
        %v1655 = vld [vmem:[%s1649 + $0x14] sm:$0x1]
        %v1656 = vld [vmem:[%s1649 + $0x18] sm:$0xf]
        %v1657 = vld [vmem:[%s1649 + $0x1c] sm:$0xf]
        %v1658 = vld [vmem:[%s1649 + $0x20] sm:$0x1]
        %v1659 = vld [vmem:[%s1649 + $0x24] sm:$0xf]
        %v1660 = vld [vmem:[%s1649 + $0x28] sm:$0xf]
        %v1661 = vld [vmem:[%s1649 + $0x2c] sm:$0x1]
        %v1662 = vld [vmem:[%s1649 + $0x30] sm:$0xf]
        %v1663 = vld [vmem:[%s1649 + $0x34] sm:$0xf]
        %v1664 = vld [vmem:[%s1649 + $0x38] sm:$0x1]
        %v1665 = vld [vmem:[%s1649 + $0x3c] sm:$0xf]
        %v1666 = vld [vmem:[%s1649 + $0x40] sm:$0xf]
        %v1667 = vld [vmem:[%s1649 + $0x44] sm:$0x1]
        %v1668 = vld [vmem:[%s1649 + $0x48] sm:$0xf]
        %v1669 = vld [vmem:[%s1649 + $0x4c] sm:$0xf]
        %v1670 = vld [vmem:[%s1649 + $0x50] sm:$0x1]
        %v1671 = vld [vmem:[%s1649 + $0x54] sm:$0xf]
        %v1672 = vld [vmem:[%s1649 + $0x58] sm:$0xf]
        %v1673 = vld [vmem:[%s1649 + $0x5c] sm:$0x1]
        %v1674 = vld [vmem:[%s1649 + $0x60] sm:$0xf]
        %v1675 = vld [vmem:[%s1649 + $0x64] sm:$0xf]
        %v1676 = vld [vmem:[%s1649 + $0x68] sm:$0x1]
        %v1677 = vld [vmem:[%s1649 + $0x6c] sm:$0xf]
        %v1678 = vld [vmem:[%s1649 + $0x70] sm:$0xf]
        %v1679 = vld [vmem:[%s1649 + $0x74] sm:$0x1]
        %v1680 = vld [vmem:[%s1649 + $0x78] sm:$0xf]
        %v1681 = vld [vmem:[%s1649 + $0x7c] sm:$0xf]
        %v1682 = vld [vmem:[%s1649 + $0x80] sm:$0x1]
        %v1683 = vld [vmem:[%s1649 + $0x84] sm:$0xf]
        %v1684 = vld [vmem:[%s1649 + $0x88] sm:$0xf]
        %v1685 = vld [vmem:[%s1649 + $0x8c] sm:$0x1]
        %v1686 = vld [vmem:[%s1649 + $0x90] sm:$0xf]
        %v1687 = vld [vmem:[%s1649 + $0x94] sm:$0xf]
        %v1688 = vld [vmem:[%s1649 + $0x98] sm:$0x1]
        %v1689 = vld [vmem:[%s1649 + $0x9c] sm:$0xf]
        %v1690 = vld [vmem:[%s1649 + $0xa0] sm:$0xf]
        %v1691 = vld [vmem:[%s1649 + $0xa4] sm:$0x1]
        %v1692 = vld [vmem:[%s1649 + $0xa8] sm:$0xf]
        %v1693 = vld [vmem:[%s1649 + $0xac] sm:$0xf]
        %v1694 = vld [vmem:[%s1649 + $0xb0] sm:$0x1]
        %v1695 = vld [vmem:[%s1649 + $0xb4] sm:$0xf]
        %v1696 = vld [vmem:[%s1649 + $0xb8] sm:$0xf]
        %v1697 = vld [vmem:[%s1649 + $0xbc] sm:$0x1]
        %s1698 = scalar_lea.vmem %s219, 6
        %v1699 = vld [vmem:[%s1698] sm:$0x3]
        %v1732 = vunpack.c.l.b16 %v1650
        %v1733 = vunpack.c.l.b16 %v1651
        %v1734 = vunpack.c.l.b16 %v1653
        %v1735 = vunpack.c.l.b16 %v1654
        %v1736 = vunpack.c.l.b16 %v1656
        %v1737 = vunpack.c.l.b16 %v1657
        %v1738 = vunpack.c.l.b16 %v1659
        %v1739 = vunpack.c.l.b16 %v1660
        %v1740 = vunpack.c.l.b16 %v1662
        %v1741 = vunpack.c.l.b16 %v1663
        %v1742 = vunpack.c.l.b16 %v1665
        %v1743 = vunpack.c.l.b16 %v1666
        %v1744 = vunpack.c.l.b16 %v1668
        %v1745 = vunpack.c.l.b16 %v1669
        %v1746 = vunpack.c.l.b16 %v1671
        %v1747 = vunpack.c.l.b16 %v1672
        %v1748 = vunpack.c.l.b16 %v1674
        %v1749 = vunpack.c.l.b16 %v1675
        %v1750 = vunpack.c.l.b16 %v1677
        %v1751 = vunpack.c.l.b16 %v1678
        %v1752 = vunpack.c.l.b16 %v1680
        %v1753 = vunpack.c.l.b16 %v1681
        %v1754 = vunpack.c.l.b16 %v1683
        %v1755 = vunpack.c.l.b16 %v1684
        %v1756 = vunpack.c.l.b16 %v1686
        %v1757 = vunpack.c.l.b16 %v1687
        %v1758 = vunpack.c.l.b16 %v1689
        %v1759 = vunpack.c.l.b16 %v1690
        %v1760 = vunpack.c.l.b16 %v1692
        %v1761 = vunpack.c.l.b16 %v1693
        %v1762 = vunpack.c.l.b16 %v1695
        %v1763 = vunpack.c.l.b16 %v1696
        %v1764 = vpack.c.b16 %v1733, %v1732
        %v1765 = vpack.c.b16 %v1735, %v1734
        %v1766 = vpack.c.b16 %v1737, %v1736
        %v1767 = vpack.c.b16 %v1739, %v1738
        %v1768 = vpack.c.b16 %v1741, %v1740
        %v1769 = vpack.c.b16 %v1743, %v1742
        %v1770 = vpack.c.b16 %v1745, %v1744
        %v1771 = vpack.c.b16 %v1747, %v1746
        %v1772 = vpack.c.b16 %v1749, %v1748
        %v1773 = vpack.c.b16 %v1751, %v1750
        %v1774 = vpack.c.b16 %v1753, %v1752
        %v1775 = vpack.c.b16 %v1755, %v1754
        %v1776 = vpack.c.b16 %v1757, %v1756
        %v1777 = vpack.c.b16 %v1759, %v1758
        %v1778 = vpack.c.b16 %v1761, %v1760
        %v1779 = vpack.c.b16 %v1763, %v1762
        %v1781 = vsel %vm715, %v1764, 0
        %v1784 = vsel %vm715, %v1765, 0
        %v1787 = vsel %vm715, %v1766, 0
        %v1790 = vsel %vm715, %v1767, 0
        %v1793 = vsel %vm715, %v1768, 0
        %v1796 = vsel %vm715, %v1769, 0
        %v1799 = vsel %vm715, %v1770, 0
        %v1802 = vsel %vm715, %v1771, 0
        %v1805 = vsel %vm715, %v1772, 0
        %v1808 = vsel %vm715, %v1773, 0
        %v1811 = vsel %vm715, %v1774, 0
        %v1814 = vsel %vm715, %v1775, 0
        %v1817 = vsel %vm715, %v1776, 0
        %v1820 = vsel %vm715, %v1777, 0
        %v1823 = vsel %vm715, %v1778, 0
        %v1826 = vsel %vm715, %v1779, 0
        %v1829 = vsel %vm764, %v1699, 0
        %1831 = vmatprep.subr.bf16.mxu0 0
        %1832 = vmatpush1.bf16.msra.mxu0 %v1829
        %1833 = vmatprep.subr.bf16.mxu0 0
        %1834 = vmatpush1.bf16.msra.mxu0 0
        %1835 = vmatprep.subr.bf16.mxu0 0
        %1836 = vmatpush1.bf16.msra.mxu0 0
        %1837 = vmatprep.subr.bf16.mxu0 0
        %1838 = vmatpush1.bf16.msra.mxu0 0
        %1839 = vmatprep.subr.bf16.mxu0 0
        %1840 = vmatpush1.bf16.msra.mxu0 0
        %1841 = vmatprep.subr.bf16.mxu0 0
        %1842 = vmatpush1.bf16.msra.mxu0 0
        %1843 = vmatprep.subr.bf16.mxu0 0
        %1844 = vmatpush1.bf16.msra.mxu0 0
        %1845 = vmatprep.subr.bf16.mxu0 0
        %1846 = vmatpush1.bf16.msra.mxu0 0
        %1847 = vmatprep.subr.bf16.mxu0 0
        %1848 = vmatpush1.bf16.msra.mxu0 0
        %1849 = vmatprep.subr.bf16.mxu0 0
        %1850 = vmatpush1.bf16.msra.mxu0 0
        %1851 = vmatprep.subr.bf16.mxu0 0
        %1852 = vmatpush1.bf16.msra.mxu0 0
        %1853 = vmatprep.subr.bf16.mxu0 0
        %1854 = vmatpush1.bf16.msra.mxu0 0
        %1855 = vmatprep.subr.bf16.mxu0 0
        %1856 = vmatpush1.bf16.msra.mxu0 0
        %1857 = vmatprep.subr.bf16.mxu0 0
        %1858 = vmatpush1.bf16.msra.mxu0 0
        %1859 = vmatprep.subr.bf16.mxu0 0
        %1860 = vmatpush1.bf16.msra.mxu0 0
        %1861 = vmatprep.subr.bf16.mxu0 0
        %1862 = vmatpush1.bf16.msra.mxu0 0
        %1863 = vmatprep.mubr.bf16.mxu0 0
        %1864 = vmatmul.mubr.bf16.gmra.mrb[0].mxu0 %v1781
        %v1865 = vpop.f32.mrb[0].mxu0
        %v1866 = vadd.f32 0.0, %v1865
        %v1867 = vpop.f32.mrb[0].mxu0
        %v1868 = vpop.f32.mrb[0].mxu0
        %v1869 = vadd.f32 0.0, %v1868
        %v1870 = vpop.f32.mrb[0].mxu0
        %1871 = vmatprep.mubr.bf16.mxu0 0
        %1872 = vmatmul.mubr.bf16.gmra.mrb[0].mxu0 %v1784
        %v1873 = vpop.f32.mrb[0].mxu0
        %v1874 = vadd.f32 0.0, %v1873
        %v1875 = vpop.f32.mrb[0].mxu0
        %v1876 = vpop.f32.mrb[0].mxu0
        %v1877 = vadd.f32 0.0, %v1876
        %v1878 = vpop.f32.mrb[0].mxu0
        %1879 = vmatprep.mubr.bf16.mxu0 0
        %1880 = vmatmul.mubr.bf16.gmra.mrb[0].mxu0 %v1787
        %v1881 = vpop.f32.mrb[0].mxu0
        %v1882 = vadd.f32 0.0, %v1881
        %v1883 = vpop.f32.mrb[0].mxu0
        %v1884 = vpop.f32.mrb[0].mxu0
        %v1885 = vadd.f32 0.0, %v1884
        %v1886 = vpop.f32.mrb[0].mxu0
        %1887 = vmatprep.mubr.bf16.mxu0 0
        %1888 = vmatmul.mubr.bf16.gmra.mrb[0].mxu0 %v1790
        %v1889 = vpop.f32.mrb[0].mxu0
        %v1890 = vadd.f32 0.0, %v1889
        %v1891 = vpop.f32.mrb[0].mxu0
        %v1892 = vpop.f32.mrb[0].mxu0
        %v1893 = vadd.f32 0.0, %v1892
        %v1894 = vpop.f32.mrb[0].mxu0
        %1895 = vmatprep.mubr.bf16.mxu0 0
        %1896 = vmatmul.mubr.bf16.gmra.mrb[0].mxu0 %v1793
        %v1897 = vpop.f32.mrb[0].mxu0
        %v1898 = vadd.f32 0.0, %v1897
        %v1899 = vpop.f32.mrb[0].mxu0
        %v1900 = vpop.f32.mrb[0].mxu0
        %v1901 = vadd.f32 0.0, %v1900
        %v1902 = vpop.f32.mrb[0].mxu0
        %1903 = vmatprep.mubr.bf16.mxu0 0
        %1904 = vmatmul.mubr.bf16.gmra.mrb[0].mxu0 %v1796
        %v1905 = vpop.f32.mrb[0].mxu0
        %v1906 = vadd.f32 0.0, %v1905
        %v1907 = vpop.f32.mrb[0].mxu0
        %v1908 = vpop.f32.mrb[0].mxu0
        %v1909 = vadd.f32 0.0, %v1908
        %v1910 = vpop.f32.mrb[0].mxu0
        %1911 = vmatprep.mubr.bf16.mxu0 0
        %1912 = vmatmul.mubr.bf16.gmra.mrb[0].mxu0 %v1799
        %v1913 = vpop.f32.mrb[0].mxu0
        %v1914 = vadd.f32 0.0, %v1913
        %v1915 = vpop.f32.mrb[0].mxu0
        %v1916 = vpop.f32.mrb[0].mxu0
        %v1917 = vadd.f32 0.0, %v1916
        %v1918 = vpop.f32.mrb[0].mxu0
        %1919 = vmatprep.mubr.bf16.mxu0 0
        %1920 = vmatmul.mubr.bf16.gmra.mrb[0].mxu0 %v1802
        %v1921 = vpop.f32.mrb[0].mxu0
        %v1922 = vadd.f32 0.0, %v1921
        %v1923 = vpop.f32.mrb[0].mxu0
        %v1924 = vpop.f32.mrb[0].mxu0
        %v1925 = vadd.f32 0.0, %v1924
        %v1926 = vpop.f32.mrb[0].mxu0
        %1927 = vmatprep.mubr.bf16.mxu0 0
        %1928 = vmatmul.mubr.bf16.gmra.mrb[0].mxu0 %v1805
        %v1929 = vpop.f32.mrb[0].mxu0
        %v1930 = vadd.f32 0.0, %v1929
        %v1931 = vpop.f32.mrb[0].mxu0
        %v1932 = vpop.f32.mrb[0].mxu0
        %v1933 = vadd.f32 0.0, %v1932
        %v1934 = vpop.f32.mrb[0].mxu0
        %1935 = vmatprep.mubr.bf16.mxu0 0
        %1936 = vmatmul.mubr.bf16.gmra.mrb[0].mxu0 %v1808
        %v1937 = vpop.f32.mrb[0].mxu0
        %v1938 = vadd.f32 0.0, %v1937
        %v1939 = vpop.f32.mrb[0].mxu0
        %v1940 = vpop.f32.mrb[0].mxu0
        %v1941 = vadd.f32 0.0, %v1940
        %v1942 = vpop.f32.mrb[0].mxu0
        %1943 = vmatprep.mubr.bf16.mxu0 0
        %1944 = vmatmul.mubr.bf16.gmra.mrb[0].mxu0 %v1811
        %v1945 = vpop.f32.mrb[0].mxu0
        %v1946 = vadd.f32 0.0, %v1945
        %v1947 = vpop.f32.mrb[0].mxu0
        %v1948 = vpop.f32.mrb[0].mxu0
        %v1949 = vadd.f32 0.0, %v1948
        %v1950 = vpop.f32.mrb[0].mxu0
        %1951 = vmatprep.mubr.bf16.mxu0 0
        %1952 = vmatmul.mubr.bf16.gmra.mrb[0].mxu0 %v1814
        %v1953 = vpop.f32.mrb[0].mxu0
        %v1954 = vadd.f32 0.0, %v1953
        %v1955 = vpop.f32.mrb[0].mxu0
        %v1956 = vpop.f32.mrb[0].mxu0
        %v1957 = vadd.f32 0.0, %v1956
        %v1958 = vpop.f32.mrb[0].mxu0
        %1959 = vmatprep.mubr.bf16.mxu0 0
        %1960 = vmatmul.mubr.bf16.gmra.mrb[0].mxu0 %v1817
        %v1961 = vpop.f32.mrb[0].mxu0
        %v1962 = vadd.f32 0.0, %v1961
        %v1963 = vpop.f32.mrb[0].mxu0
        %v1964 = vpop.f32.mrb[0].mxu0
        %v1965 = vadd.f32 0.0, %v1964
        %v1966 = vpop.f32.mrb[0].mxu0
        %1967 = vmatprep.mubr.bf16.mxu0 0
        %1968 = vmatmul.mubr.bf16.gmra.mrb[0].mxu0 %v1820
        %v1969 = vpop.f32.mrb[0].mxu0
        %v1970 = vadd.f32 0.0, %v1969
        %v1971 = vpop.f32.mrb[0].mxu0
        %v1972 = vpop.f32.mrb[0].mxu0
        %v1973 = vadd.f32 0.0, %v1972
        %v1974 = vpop.f32.mrb[0].mxu0
        %1975 = vmatprep.mubr.bf16.mxu0 0
        %1976 = vmatmul.mubr.bf16.gmra.mrb[0].mxu0 %v1823
        %v1977 = vpop.f32.mrb[0].mxu0
        %v1978 = vadd.f32 0.0, %v1977
        %v1979 = vpop.f32.mrb[0].mxu0
        %v1980 = vpop.f32.mrb[0].mxu0
        %v1981 = vadd.f32 0.0, %v1980
        %v1982 = vpop.f32.mrb[0].mxu0
        %1983 = vmatprep.mubr.bf16.mxu0 0
        %1984 = vmatmul.mubr.bf16.gmra.mrb[0].mxu0 %v1826
        %v1985 = vpop.f32.mrb[0].mxu0
        %v1986 = vadd.f32 0.0, %v1985
        %v1987 = vpop.f32.mrb[0].mxu0
        %v1988 = vpop.f32.mrb[0].mxu0
        %v1989 = vadd.f32 0.0, %v1988
        %v1990 = vpop.f32.mrb[0].mxu0
        %1991 = vdwg.mxu0
        %v1992 = vadd.f32 %v1614, %v1866
        %v1993 = vadd.f32 %v1615, %v1869
        %v1994 = vadd.f32 %v1616, %v1874
        %v1995 = vadd.f32 %v1617, %v1877
        %v1996 = vadd.f32 %v1618, %v1882
        %v1997 = vadd.f32 %v1619, %v1885
        %v1998 = vadd.f32 %v1620, %v1890
        %v1999 = vadd.f32 %v1621, %v1893
        %v2000 = vadd.f32 %v1622, %v1898
        %v2001 = vadd.f32 %v1623, %v1901
        %v2002 = vadd.f32 %v1624, %v1906
        %v2003 = vadd.f32 %v1625, %v1909
        %v2004 = vadd.f32 %v1626, %v1914
        %v2005 = vadd.f32 %v1627, %v1917
        %v2006 = vadd.f32 %v1628, %v1922
        %v2007 = vadd.f32 %v1629, %v1925
        %v2008 = vadd.f32 %v1630, %v1930
        %v2009 = vadd.f32 %v1631, %v1933
        %v2010 = vadd.f32 %v1632, %v1938
        %v2011 = vadd.f32 %v1633, %v1941
        %v2012 = vadd.f32 %v1634, %v1946
        %v2013 = vadd.f32 %v1635, %v1949
        %v2014 = vadd.f32 %v1636, %v1954
        %v2015 = vadd.f32 %v1637, %v1957
        %v2016 = vadd.f32 %v1638, %v1962
        %v2017 = vadd.f32 %v1639, %v1965
        %v2018 = vadd.f32 %v1640, %v1970
        %v2019 = vadd.f32 %v1641, %v1973
        %v2020 = vadd.f32 %v1642, %v1978
        %v2021 = vadd.f32 %v1643, %v1981
        %v2022 = vadd.f32 %v1644, %v1986
        %v2023 = vadd.f32 %v1645, %v1989
        %v2025 = vshrl.u32 %v1650, 16
        %v2027 = vrot.slane %v2025, 4
        %v2028 = vshll.u32 %v1650, 16
        %v2030 = vrot.slane %v2028, 5
        %v2031 = vor.u32 %v2027, %v2030
        %v2032 = vrot.slane %v2031, 4
        %v2034 = vshll.u32 %v1651, 16
        %v2036 = vrot.slane %v2034, 5
        %v2037 = vsel %vm280, %v2032, %v2036
        %v2038 = vshrl.u32 %v1651, 16
        %v2040 = vrot.slane %v2038, 4
        %v2041 = vor.u32 %v2040, %v2036
        %v2042 = vrot.slane %v2041, 4
        %v2044 = vshll.u32 %v1652, 16
        %v2046 = vrot.slane %v2044, 5
        %v2047 = vsel %vm280, %v2042, %v2046
        %v2049 = vshrl.u32 %v1653, 16
        %v2051 = vrot.slane %v2049, 4
        %v2052 = vshll.u32 %v1653, 16
        %v2054 = vrot.slane %v2052, 5
        %v2055 = vor.u32 %v2051, %v2054
        %v2056 = vrot.slane %v2055, 4
        %v2058 = vshll.u32 %v1654, 16
        %v2060 = vrot.slane %v2058, 5
        %v2061 = vsel %vm280, %v2056, %v2060
        %v2062 = vshrl.u32 %v1654, 16
        %v2064 = vrot.slane %v2062, 4
        %v2065 = vor.u32 %v2064, %v2060
        %v2066 = vrot.slane %v2065, 4
        %v2068 = vshll.u32 %v1655, 16
        %v2070 = vrot.slane %v2068, 5
        %v2071 = vsel %vm280, %v2066, %v2070
        %v2073 = vshrl.u32 %v1656, 16
        %v2075 = vrot.slane %v2073, 4
        %v2076 = vshll.u32 %v1656, 16
        %v2078 = vrot.slane %v2076, 5
        %v2079 = vor.u32 %v2075, %v2078
        %v2080 = vrot.slane %v2079, 4
        %v2082 = vshll.u32 %v1657, 16
        %v2084 = vrot.slane %v2082, 5
        %v2085 = vsel %vm280, %v2080, %v2084
        %v2086 = vshrl.u32 %v1657, 16
        %v2088 = vrot.slane %v2086, 4
        %v2089 = vor.u32 %v2088, %v2084
        %v2090 = vrot.slane %v2089, 4
        %v2092 = vshll.u32 %v1658, 16
        %v2094 = vrot.slane %v2092, 5
        %v2095 = vsel %vm280, %v2090, %v2094
        %v2097 = vshrl.u32 %v1659, 16
        %v2099 = vrot.slane %v2097, 4
        %v2100 = vshll.u32 %v1659, 16
        %v2102 = vrot.slane %v2100, 5
        %v2103 = vor.u32 %v2099, %v2102
        %v2104 = vrot.slane %v2103, 4
        %v2106 = vshll.u32 %v1660, 16
        %v2108 = vrot.slane %v2106, 5
        %v2109 = vsel %vm280, %v2104, %v2108
        %v2110 = vshrl.u32 %v1660, 16
        %v2112 = vrot.slane %v2110, 4
        %v2113 = vor.u32 %v2112, %v2108
        %v2114 = vrot.slane %v2113, 4
        %v2116 = vshll.u32 %v1661, 16
        %v2118 = vrot.slane %v2116, 5
        %v2119 = vsel %vm280, %v2114, %v2118
        %v2121 = vshrl.u32 %v1662, 16
        %v2123 = vrot.slane %v2121, 4
        %v2124 = vshll.u32 %v1662, 16
        %v2126 = vrot.slane %v2124, 5
        %v2127 = vor.u32 %v2123, %v2126
        %v2128 = vrot.slane %v2127, 4
        %v2130 = vshll.u32 %v1663, 16
        %v2132 = vrot.slane %v2130, 5
        %v2133 = vsel %vm280, %v2128, %v2132
        %v2134 = vshrl.u32 %v1663, 16
        %v2136 = vrot.slane %v2134, 4
        %v2137 = vor.u32 %v2136, %v2132
        %v2138 = vrot.slane %v2137, 4
        %v2140 = vshll.u32 %v1664, 16
        %v2142 = vrot.slane %v2140, 5
        %v2143 = vsel %vm280, %v2138, %v2142
        %v2145 = vshrl.u32 %v1665, 16
        %v2147 = vrot.slane %v2145, 4
        %v2148 = vshll.u32 %v1665, 16
        %v2150 = vrot.slane %v2148, 5
        %v2151 = vor.u32 %v2147, %v2150
        %v2152 = vrot.slane %v2151, 4
        %v2154 = vshll.u32 %v1666, 16
        %v2156 = vrot.slane %v2154, 5
        %v2157 = vsel %vm280, %v2152, %v2156
        %v2158 = vshrl.u32 %v1666, 16
        %v2160 = vrot.slane %v2158, 4
        %v2161 = vor.u32 %v2160, %v2156
        %v2162 = vrot.slane %v2161, 4
        %v2164 = vshll.u32 %v1667, 16
        %v2166 = vrot.slane %v2164, 5
        %v2167 = vsel %vm280, %v2162, %v2166
        %v2169 = vshrl.u32 %v1668, 16
        %v2171 = vrot.slane %v2169, 4
        %v2172 = vshll.u32 %v1668, 16
        %v2174 = vrot.slane %v2172, 5
        %v2175 = vor.u32 %v2171, %v2174
        %v2176 = vrot.slane %v2175, 4
        %v2178 = vshll.u32 %v1669, 16
        %v2180 = vrot.slane %v2178, 5
        %v2181 = vsel %vm280, %v2176, %v2180
        %v2182 = vshrl.u32 %v1669, 16
        %v2184 = vrot.slane %v2182, 4
        %v2185 = vor.u32 %v2184, %v2180
        %v2186 = vrot.slane %v2185, 4
        %v2188 = vshll.u32 %v1670, 16
        %v2190 = vrot.slane %v2188, 5
        %v2191 = vsel %vm280, %v2186, %v2190
        %v2193 = vshrl.u32 %v1671, 16
        %v2195 = vrot.slane %v2193, 4
        %v2196 = vshll.u32 %v1671, 16
        %v2198 = vrot.slane %v2196, 5
        %v2199 = vor.u32 %v2195, %v2198
        %v2200 = vrot.slane %v2199, 4
        %v2202 = vshll.u32 %v1672, 16
        %v2204 = vrot.slane %v2202, 5
        %v2205 = vsel %vm280, %v2200, %v2204
        %v2206 = vshrl.u32 %v1672, 16
        %v2208 = vrot.slane %v2206, 4
        %v2209 = vor.u32 %v2208, %v2204
        %v2210 = vrot.slane %v2209, 4
        %v2212 = vshll.u32 %v1673, 16
        %v2214 = vrot.slane %v2212, 5
        %v2215 = vsel %vm280, %v2210, %v2214
        %v2217 = vshrl.u32 %v1674, 16
        %v2219 = vrot.slane %v2217, 4
        %v2220 = vshll.u32 %v1674, 16
        %v2222 = vrot.slane %v2220, 5
        %v2223 = vor.u32 %v2219, %v2222
        %v2224 = vrot.slane %v2223, 4
        %v2226 = vshll.u32 %v1675, 16
        %v2228 = vrot.slane %v2226, 5
        %v2229 = vsel %vm280, %v2224, %v2228
        %v2230 = vshrl.u32 %v1675, 16
        %v2232 = vrot.slane %v2230, 4
        %v2233 = vor.u32 %v2232, %v2228
        %v2234 = vrot.slane %v2233, 4
        %v2236 = vshll.u32 %v1676, 16
        %v2238 = vrot.slane %v2236, 5
        %v2239 = vsel %vm280, %v2234, %v2238
        %v2241 = vshrl.u32 %v1677, 16
        %v2243 = vrot.slane %v2241, 4
        %v2244 = vshll.u32 %v1677, 16
        %v2246 = vrot.slane %v2244, 5
        %v2247 = vor.u32 %v2243, %v2246
        %v2248 = vrot.slane %v2247, 4
        %v2250 = vshll.u32 %v1678, 16
        %v2252 = vrot.slane %v2250, 5
        %v2253 = vsel %vm280, %v2248, %v2252
        %v2254 = vshrl.u32 %v1678, 16
        %v2256 = vrot.slane %v2254, 4
        %v2257 = vor.u32 %v2256, %v2252
        %v2258 = vrot.slane %v2257, 4
        %v2260 = vshll.u32 %v1679, 16
        %v2262 = vrot.slane %v2260, 5
        %v2263 = vsel %vm280, %v2258, %v2262
        %v2265 = vshrl.u32 %v1680, 16
        %v2267 = vrot.slane %v2265, 4
        %v2268 = vshll.u32 %v1680, 16
        %v2270 = vrot.slane %v2268, 5
        %v2271 = vor.u32 %v2267, %v2270
        %v2272 = vrot.slane %v2271, 4
        %v2274 = vshll.u32 %v1681, 16
        %v2276 = vrot.slane %v2274, 5
        %v2277 = vsel %vm280, %v2272, %v2276
        %v2278 = vshrl.u32 %v1681, 16
        %v2280 = vrot.slane %v2278, 4
        %v2281 = vor.u32 %v2280, %v2276
        %v2282 = vrot.slane %v2281, 4
        %v2284 = vshll.u32 %v1682, 16
        %v2286 = vrot.slane %v2284, 5
        %v2287 = vsel %vm280, %v2282, %v2286
        %v2289 = vshrl.u32 %v1683, 16
        %v2291 = vrot.slane %v2289, 4
        %v2292 = vshll.u32 %v1683, 16
        %v2294 = vrot.slane %v2292, 5
        %v2295 = vor.u32 %v2291, %v2294
        %v2296 = vrot.slane %v2295, 4
        %v2298 = vshll.u32 %v1684, 16
        %v2300 = vrot.slane %v2298, 5
        %v2301 = vsel %vm280, %v2296, %v2300
        %v2302 = vshrl.u32 %v1684, 16
        %v2304 = vrot.slane %v2302, 4
        %v2305 = vor.u32 %v2304, %v2300
        %v2306 = vrot.slane %v2305, 4
        %v2308 = vshll.u32 %v1685, 16
        %v2310 = vrot.slane %v2308, 5
        %v2311 = vsel %vm280, %v2306, %v2310
        %v2313 = vshrl.u32 %v1686, 16
        %v2315 = vrot.slane %v2313, 4
        %v2316 = vshll.u32 %v1686, 16
        %v2318 = vrot.slane %v2316, 5
        %v2319 = vor.u32 %v2315, %v2318
        %v2320 = vrot.slane %v2319, 4
        %v2322 = vshll.u32 %v1687, 16
        %v2324 = vrot.slane %v2322, 5
        %v2325 = vsel %vm280, %v2320, %v2324
        %v2326 = vshrl.u32 %v1687, 16
        %v2328 = vrot.slane %v2326, 4
        %v2329 = vor.u32 %v2328, %v2324
        %v2330 = vrot.slane %v2329, 4
        %v2332 = vshll.u32 %v1688, 16
        %v2334 = vrot.slane %v2332, 5
        %v2335 = vsel %vm280, %v2330, %v2334
        %v2337 = vshrl.u32 %v1689, 16
        %v2339 = vrot.slane %v2337, 4
        %v2340 = vshll.u32 %v1689, 16
        %v2342 = vrot.slane %v2340, 5
        %v2343 = vor.u32 %v2339, %v2342
        %v2344 = vrot.slane %v2343, 4
        %v2346 = vshll.u32 %v1690, 16
        %v2348 = vrot.slane %v2346, 5
        %v2349 = vsel %vm280, %v2344, %v2348
        %v2350 = vshrl.u32 %v1690, 16
        %v2352 = vrot.slane %v2350, 4
        %v2353 = vor.u32 %v2352, %v2348
        %v2354 = vrot.slane %v2353, 4
        %v2356 = vshll.u32 %v1691, 16
        %v2358 = vrot.slane %v2356, 5
        %v2359 = vsel %vm280, %v2354, %v2358
        %v2361 = vshrl.u32 %v1692, 16
        %v2363 = vrot.slane %v2361, 4
        %v2364 = vshll.u32 %v1692, 16
        %v2366 = vrot.slane %v2364, 5
        %v2367 = vor.u32 %v2363, %v2366
        %v2368 = vrot.slane %v2367, 4
        %v2370 = vshll.u32 %v1693, 16
        %v2372 = vrot.slane %v2370, 5
        %v2373 = vsel %vm280, %v2368, %v2372
        %v2374 = vshrl.u32 %v1693, 16
        %v2376 = vrot.slane %v2374, 4
        %v2377 = vor.u32 %v2376, %v2372
        %v2378 = vrot.slane %v2377, 4
        %v2380 = vshll.u32 %v1694, 16
        %v2382 = vrot.slane %v2380, 5
        %v2383 = vsel %vm280, %v2378, %v2382
        %v2385 = vshrl.u32 %v1695, 16
        %v2387 = vrot.slane %v2385, 4
        %v2388 = vshll.u32 %v1695, 16
        %v2390 = vrot.slane %v2388, 5
        %v2391 = vor.u32 %v2387, %v2390
        %v2392 = vrot.slane %v2391, 4
        %v2394 = vshll.u32 %v1696, 16
        %v2396 = vrot.slane %v2394, 5
        %v2397 = vsel %vm280, %v2392, %v2396
        %v2398 = vshrl.u32 %v1696, 16
        %v2400 = vrot.slane %v2398, 4
        %v2401 = vor.u32 %v2400, %v2396
        %v2402 = vrot.slane %v2401, 4
        %v2404 = vshll.u32 %v1697, 16
        %v2406 = vrot.slane %v2404, 5
        %v2407 = vsel %vm280, %v2402, %v2406
        %s2408 = scalar_lea.vmem %s219, 8
        %v2409 = vld [vmem:[%s2408] sm:$0x3]
        %v2410 = vunpack.c.l.b16 %v2037
        %v2411 = vunpack.c.l.b16 %v2047
        %v2412 = vunpack.c.l.b16 %v2061
        %v2413 = vunpack.c.l.b16 %v2071
        %v2414 = vunpack.c.l.b16 %v2085
        %v2415 = vunpack.c.l.b16 %v2095
        %v2416 = vunpack.c.l.b16 %v2109
        %v2417 = vunpack.c.l.b16 %v2119
        %v2418 = vunpack.c.l.b16 %v2133
        %v2419 = vunpack.c.l.b16 %v2143
        %v2420 = vunpack.c.l.b16 %v2157
        %v2421 = vunpack.c.l.b16 %v2167
        %v2422 = vunpack.c.l.b16 %v2181
        %v2423 = vunpack.c.l.b16 %v2191
        %v2424 = vunpack.c.l.b16 %v2205
        %v2425 = vunpack.c.l.b16 %v2215
        %v2426 = vunpack.c.l.b16 %v2229
        %v2427 = vunpack.c.l.b16 %v2239
        %v2428 = vunpack.c.l.b16 %v2253
        %v2429 = vunpack.c.l.b16 %v2263
        %v2430 = vunpack.c.l.b16 %v2277
        %v2431 = vunpack.c.l.b16 %v2287
        %v2432 = vunpack.c.l.b16 %v2301
        %v2433 = vunpack.c.l.b16 %v2311
        %v2434 = vunpack.c.l.b16 %v2325
        %v2435 = vunpack.c.l.b16 %v2335
        %v2436 = vunpack.c.l.b16 %v2349
        %v2437 = vunpack.c.l.b16 %v2359
        %v2438 = vunpack.c.l.b16 %v2373
        %v2439 = vunpack.c.l.b16 %v2383
        %v2440 = vunpack.c.l.b16 %v2397
        %v2441 = vunpack.c.l.b16 %v2407
        %v2442 = vpack.c.b16 %v2411, %v2410
        %v2443 = vpack.c.b16 %v2413, %v2412
        %v2444 = vpack.c.b16 %v2415, %v2414
        %v2445 = vpack.c.b16 %v2417, %v2416
        %v2446 = vpack.c.b16 %v2419, %v2418
        %v2447 = vpack.c.b16 %v2421, %v2420
        %v2448 = vpack.c.b16 %v2423, %v2422
        %v2449 = vpack.c.b16 %v2425, %v2424
        %v2450 = vpack.c.b16 %v2427, %v2426
        %v2451 = vpack.c.b16 %v2429, %v2428
        %v2452 = vpack.c.b16 %v2431, %v2430
        %v2453 = vpack.c.b16 %v2433, %v2432
        %v2454 = vpack.c.b16 %v2435, %v2434
        %v2455 = vpack.c.b16 %v2437, %v2436
        %v2456 = vpack.c.b16 %v2439, %v2438
        %v2457 = vpack.c.b16 %v2441, %v2440
        %v2459 = vsel %vm715, %v2442, 0
        %v2462 = vsel %vm715, %v2443, 0
        %v2465 = vsel %vm715, %v2444, 0
        %v2468 = vsel %vm715, %v2445, 0
        %v2471 = vsel %vm715, %v2446, 0
        %v2474 = vsel %vm715, %v2447, 0
        %v2477 = vsel %vm715, %v2448, 0
        %v2480 = vsel %vm715, %v2449, 0
        %v2483 = vsel %vm715, %v2450, 0
        %v2486 = vsel %vm715, %v2451, 0
        %v2489 = vsel %vm715, %v2452, 0
        %v2492 = vsel %vm715, %v2453, 0
        %v2495 = vsel %vm715, %v2454, 0
        %v2498 = vsel %vm715, %v2455, 0
        %v2501 = vsel %vm715, %v2456, 0
        %v2504 = vsel %vm715, %v2457, 0
        %v2507 = vsel %vm764, %v2409, 0
        %2509 = vmatprep.subr.bf16.mxu0 0
        %2510 = vmatpush1.bf16.msra.mxu0 %v2507
        %2511 = vmatprep.subr.bf16.mxu0 0
        %2512 = vmatpush1.bf16.msra.mxu0 0
        %2513 = vmatprep.subr.bf16.mxu0 0
        %2514 = vmatpush1.bf16.msra.mxu0 0
        %2515 = vmatprep.subr.bf16.mxu0 0
        %2516 = vmatpush1.bf16.msra.mxu0 0
        %2517 = vmatprep.subr.bf16.mxu0 0
        %2518 = vmatpush1.bf16.msra.mxu0 0
        %2519 = vmatprep.subr.bf16.mxu0 0
        %2520 = vmatpush1.bf16.msra.mxu0 0
        %2521 = vmatprep.subr.bf16.mxu0 0
        %2522 = vmatpush1.bf16.msra.mxu0 0
        %2523 = vmatprep.subr.bf16.mxu0 0
        %2524 = vmatpush1.bf16.msra.mxu0 0
        %2525 = vmatprep.subr.bf16.mxu0 0
        %2526 = vmatpush1.bf16.msra.mxu0 0
        %2527 = vmatprep.subr.bf16.mxu0 0
        %2528 = vmatpush1.bf16.msra.mxu0 0
        %2529 = vmatprep.subr.bf16.mxu0 0
        %2530 = vmatpush1.bf16.msra.mxu0 0
        %2531 = vmatprep.subr.bf16.mxu0 0
        %2532 = vmatpush1.bf16.msra.mxu0 0
        %2533 = vmatprep.subr.bf16.mxu0 0
        %2534 = vmatpush1.bf16.msra.mxu0 0
        %2535 = vmatprep.subr.bf16.mxu0 0
        %2536 = vmatpush1.bf16.msra.mxu0 0
        %2537 = vmatprep.subr.bf16.mxu0 0
        %2538 = vmatpush1.bf16.msra.mxu0 0
        %2539 = vmatprep.subr.bf16.mxu0 0
        %2540 = vmatpush1.bf16.msra.mxu0 0
        %2541 = vmatprep.mubr.bf16.mxu0 0
        %2542 = vmatmul.mubr.bf16.gmra.mrb[0].mxu0 %v2459
        %v2543 = vpop.f32.mrb[0].mxu0
        %v2544 = vadd.f32 0.0, %v2543
        %v2545 = vpop.f32.mrb[0].mxu0
        %v2546 = vpop.f32.mrb[0].mxu0
        %v2547 = vadd.f32 0.0, %v2546
        %v2548 = vpop.f32.mrb[0].mxu0
        %2549 = vmatprep.mubr.bf16.mxu0 0
        %2550 = vmatmul.mubr.bf16.gmra.mrb[0].mxu0 %v2462
        %v2551 = vpop.f32.mrb[0].mxu0
        %v2552 = vadd.f32 0.0, %v2551
        %v2553 = vpop.f32.mrb[0].mxu0
        %v2554 = vpop.f32.mrb[0].mxu0
        %v2555 = vadd.f32 0.0, %v2554
        %v2556 = vpop.f32.mrb[0].mxu0
        %2557 = vmatprep.mubr.bf16.mxu0 0
        %2558 = vmatmul.mubr.bf16.gmra.mrb[0].mxu0 %v2465
        %v2559 = vpop.f32.mrb[0].mxu0
        %v2560 = vadd.f32 0.0, %v2559
        %v2561 = vpop.f32.mrb[0].mxu0
        %v2562 = vpop.f32.mrb[0].mxu0
        %v2563 = vadd.f32 0.0, %v2562
        %v2564 = vpop.f32.mrb[0].mxu0
        %2565 = vmatprep.mubr.bf16.mxu0 0
        %2566 = vmatmul.mubr.bf16.gmra.mrb[0].mxu0 %v2468
        %v2567 = vpop.f32.mrb[0].mxu0
        %v2568 = vadd.f32 0.0, %v2567
        %v2569 = vpop.f32.mrb[0].mxu0
        %v2570 = vpop.f32.mrb[0].mxu0
        %v2571 = vadd.f32 0.0, %v2570
        %v2572 = vpop.f32.mrb[0].mxu0
        %2573 = vmatprep.mubr.bf16.mxu0 0
        %2574 = vmatmul.mubr.bf16.gmra.mrb[0].mxu0 %v2471
        %v2575 = vpop.f32.mrb[0].mxu0
        %v2576 = vadd.f32 0.0, %v2575
        %v2577 = vpop.f32.mrb[0].mxu0
        %v2578 = vpop.f32.mrb[0].mxu0
        %v2579 = vadd.f32 0.0, %v2578
        %v2580 = vpop.f32.mrb[0].mxu0
        %2581 = vmatprep.mubr.bf16.mxu0 0
        %2582 = vmatmul.mubr.bf16.gmra.mrb[0].mxu0 %v2474
        %v2583 = vpop.f32.mrb[0].mxu0
        %v2584 = vadd.f32 0.0, %v2583
        %v2585 = vpop.f32.mrb[0].mxu0
        %v2586 = vpop.f32.mrb[0].mxu0
        %v2587 = vadd.f32 0.0, %v2586
        %v2588 = vpop.f32.mrb[0].mxu0
        %2589 = vmatprep.mubr.bf16.mxu0 0
        %2590 = vmatmul.mubr.bf16.gmra.mrb[0].mxu0 %v2477
        %v2591 = vpop.f32.mrb[0].mxu0
        %v2592 = vadd.f32 0.0, %v2591
        %v2593 = vpop.f32.mrb[0].mxu0
        %v2594 = vpop.f32.mrb[0].mxu0
        %v2595 = vadd.f32 0.0, %v2594
        %v2596 = vpop.f32.mrb[0].mxu0
        %2597 = vmatprep.mubr.bf16.mxu0 0
        %2598 = vmatmul.mubr.bf16.gmra.mrb[0].mxu0 %v2480
        %v2599 = vpop.f32.mrb[0].mxu0
        %v2600 = vadd.f32 0.0, %v2599
        %v2601 = vpop.f32.mrb[0].mxu0
        %v2602 = vpop.f32.mrb[0].mxu0
        %v2603 = vadd.f32 0.0, %v2602
        %v2604 = vpop.f32.mrb[0].mxu0
        %2605 = vmatprep.mubr.bf16.mxu0 0
        %2606 = vmatmul.mubr.bf16.gmra.mrb[0].mxu0 %v2483
        %v2607 = vpop.f32.mrb[0].mxu0
        %v2608 = vadd.f32 0.0, %v2607
        %v2609 = vpop.f32.mrb[0].mxu0
        %v2610 = vpop.f32.mrb[0].mxu0
        %v2611 = vadd.f32 0.0, %v2610
        %v2612 = vpop.f32.mrb[0].mxu0
        %2613 = vmatprep.mubr.bf16.mxu0 0
        %2614 = vmatmul.mubr.bf16.gmra.mrb[0].mxu0 %v2486
        %v2615 = vpop.f32.mrb[0].mxu0
        %v2616 = vadd.f32 0.0, %v2615
        %v2617 = vpop.f32.mrb[0].mxu0
        %v2618 = vpop.f32.mrb[0].mxu0
        %v2619 = vadd.f32 0.0, %v2618
        %v2620 = vpop.f32.mrb[0].mxu0
        %2621 = vmatprep.mubr.bf16.mxu0 0
        %2622 = vmatmul.mubr.bf16.gmra.mrb[0].mxu0 %v2489
        %v2623 = vpop.f32.mrb[0].mxu0
        %v2624 = vadd.f32 0.0, %v2623
        %v2625 = vpop.f32.mrb[0].mxu0
        %v2626 = vpop.f32.mrb[0].mxu0
        %v2627 = vadd.f32 0.0, %v2626
        %v2628 = vpop.f32.mrb[0].mxu0
        %2629 = vmatprep.mubr.bf16.mxu0 0
        %2630 = vmatmul.mubr.bf16.gmra.mrb[0].mxu0 %v2492
        %v2631 = vpop.f32.mrb[0].mxu0
        %v2632 = vadd.f32 0.0, %v2631
        %v2633 = vpop.f32.mrb[0].mxu0
        %v2634 = vpop.f32.mrb[0].mxu0
        %v2635 = vadd.f32 0.0, %v2634
        %v2636 = vpop.f32.mrb[0].mxu0
        %2637 = vmatprep.mubr.bf16.mxu0 0
        %2638 = vmatmul.mubr.bf16.gmra.mrb[0].mxu0 %v2495
        %v2639 = vpop.f32.mrb[0].mxu0
        %v2640 = vadd.f32 0.0, %v2639
        %v2641 = vpop.f32.mrb[0].mxu0
        %v2642 = vpop.f32.mrb[0].mxu0
        %v2643 = vadd.f32 0.0, %v2642
        %v2644 = vpop.f32.mrb[0].mxu0
        %2645 = vmatprep.mubr.bf16.mxu0 0
        %2646 = vmatmul.mubr.bf16.gmra.mrb[0].mxu0 %v2498
        %v2647 = vpop.f32.mrb[0].mxu0
        %v2648 = vadd.f32 0.0, %v2647
        %v2649 = vpop.f32.mrb[0].mxu0
        %v2650 = vpop.f32.mrb[0].mxu0
        %v2651 = vadd.f32 0.0, %v2650
        %v2652 = vpop.f32.mrb[0].mxu0
        %2653 = vmatprep.mubr.bf16.mxu0 0
        %2654 = vmatmul.mubr.bf16.gmra.mrb[0].mxu0 %v2501
        %v2655 = vpop.f32.mrb[0].mxu0
        %v2656 = vadd.f32 0.0, %v2655
        %v2657 = vpop.f32.mrb[0].mxu0
        %v2658 = vpop.f32.mrb[0].mxu0
        %v2659 = vadd.f32 0.0, %v2658
        %v2660 = vpop.f32.mrb[0].mxu0
        %2661 = vmatprep.mubr.bf16.mxu0 0
        %2662 = vmatmul.mubr.bf16.gmra.mrb[0].mxu0 %v2504
        %v2663 = vpop.f32.mrb[0].mxu0
        %v2664 = vadd.f32 0.0, %v2663
        %v2665 = vpop.f32.mrb[0].mxu0
        %v2666 = vpop.f32.mrb[0].mxu0
        %v2667 = vadd.f32 0.0, %v2666
        %v2668 = vpop.f32.mrb[0].mxu0
        %2669 = vdwg.mxu0
        %v2670 = vadd.f32 %v1992, %v2544
        %v2671 = vadd.f32 %v1993, %v2547
        %v2672 = vadd.f32 %v1994, %v2552
        %v2673 = vadd.f32 %v1995, %v2555
        %v2674 = vadd.f32 %v1996, %v2560
        %v2675 = vadd.f32 %v1997, %v2563
        %v2676 = vadd.f32 %v1998, %v2568
        %v2677 = vadd.f32 %v1999, %v2571
        %v2678 = vadd.f32 %v2000, %v2576
        %v2679 = vadd.f32 %v2001, %v2579
        %v2680 = vadd.f32 %v2002, %v2584
        %v2681 = vadd.f32 %v2003, %v2587
        %v2682 = vadd.f32 %v2004, %v2592
        %v2683 = vadd.f32 %v2005, %v2595
        %v2684 = vadd.f32 %v2006, %v2600
        %v2685 = vadd.f32 %v2007, %v2603
        %v2686 = vadd.f32 %v2008, %v2608
        %v2687 = vadd.f32 %v2009, %v2611
        %v2688 = vadd.f32 %v2010, %v2616
        %v2689 = vadd.f32 %v2011, %v2619
        %v2690 = vadd.f32 %v2012, %v2624
        %v2691 = vadd.f32 %v2013, %v2627
        %v2692 = vadd.f32 %v2014, %v2632
        %v2693 = vadd.f32 %v2015, %v2635
        %v2694 = vadd.f32 %v2016, %v2640
        %v2695 = vadd.f32 %v2017, %v2643
        %v2696 = vadd.f32 %v2018, %v2648
        %v2697 = vadd.f32 %v2019, %v2651
        %v2698 = vadd.f32 %v2020, %v2656
        %v2699 = vadd.f32 %v2021, %v2659
        %v2700 = vadd.f32 %v2022, %v2664
        %v2701 = vadd.f32 %v2023, %v2667
        %v2718 = vrot.slane %v1650, 5
        %v2719 = vrot.slane %v2718, 4
        %v2720 = vrot.slane %v1651, 5
        %v2721 = vsel %vm1239, %v2719, %v2720
        %v2722 = vrot.slane %v2720, 4
        %v2723 = vrot.slane %v1652, 5
        %v2724 = vsel %vm1239, %v2722, %v2723
        %v2725 = vrot.slane %v1653, 5
        %v2726 = vrot.slane %v2725, 4
        %v2727 = vrot.slane %v1654, 5
        %v2728 = vsel %vm1239, %v2726, %v2727
        %v2729 = vrot.slane %v2727, 4
        %v2730 = vrot.slane %v1655, 5
        %v2731 = vsel %vm1239, %v2729, %v2730
        %v2732 = vrot.slane %v1656, 5
        %v2733 = vrot.slane %v2732, 4
        %v2734 = vrot.slane %v1657, 5
        %v2735 = vsel %vm1239, %v2733, %v2734
        %v2736 = vrot.slane %v2734, 4
        %v2737 = vrot.slane %v1658, 5
        %v2738 = vsel %vm1239, %v2736, %v2737
        %v2739 = vrot.slane %v1659, 5
        %v2740 = vrot.slane %v2739, 4
        %v2741 = vrot.slane %v1660, 5
        %v2742 = vsel %vm1239, %v2740, %v2741
        %v2743 = vrot.slane %v2741, 4
        %v2744 = vrot.slane %v1661, 5
        %v2745 = vsel %vm1239, %v2743, %v2744
        %v2746 = vrot.slane %v1662, 5
        %v2747 = vrot.slane %v2746, 4
        %v2748 = vrot.slane %v1663, 5
        %v2749 = vsel %vm1239, %v2747, %v2748
        %v2750 = vrot.slane %v2748, 4
        %v2751 = vrot.slane %v1664, 5
        %v2752 = vsel %vm1239, %v2750, %v2751
        %v2753 = vrot.slane %v1665, 5
        %v2754 = vrot.slane %v2753, 4
        %v2755 = vrot.slane %v1666, 5
        %v2756 = vsel %vm1239, %v2754, %v2755
        %v2757 = vrot.slane %v2755, 4
        %v2758 = vrot.slane %v1667, 5
        %v2759 = vsel %vm1239, %v2757, %v2758
        %v2760 = vrot.slane %v1668, 5
        %v2761 = vrot.slane %v2760, 4
        %v2762 = vrot.slane %v1669, 5
        %v2763 = vsel %vm1239, %v2761, %v2762
        %v2764 = vrot.slane %v2762, 4
        %v2765 = vrot.slane %v1670, 5
        %v2766 = vsel %vm1239, %v2764, %v2765
        %v2767 = vrot.slane %v1671, 5
        %v2768 = vrot.slane %v2767, 4
        %v2769 = vrot.slane %v1672, 5
        %v2770 = vsel %vm1239, %v2768, %v2769
        %v2771 = vrot.slane %v2769, 4
        %v2772 = vrot.slane %v1673, 5
        %v2773 = vsel %vm1239, %v2771, %v2772
        %v2774 = vrot.slane %v1674, 5
        %v2775 = vrot.slane %v2774, 4
        %v2776 = vrot.slane %v1675, 5
        %v2777 = vsel %vm1239, %v2775, %v2776
        %v2778 = vrot.slane %v2776, 4
        %v2779 = vrot.slane %v1676, 5
        %v2780 = vsel %vm1239, %v2778, %v2779
        %v2781 = vrot.slane %v1677, 5
        %v2782 = vrot.slane %v2781, 4
        %v2783 = vrot.slane %v1678, 5
        %v2784 = vsel %vm1239, %v2782, %v2783
        %v2785 = vrot.slane %v2783, 4
        %v2786 = vrot.slane %v1679, 5
        %v2787 = vsel %vm1239, %v2785, %v2786
        %v2788 = vrot.slane %v1680, 5
        %v2789 = vrot.slane %v2788, 4
        %v2790 = vrot.slane %v1681, 5
        %v2791 = vsel %vm1239, %v2789, %v2790
        %v2792 = vrot.slane %v2790, 4
        %v2793 = vrot.slane %v1682, 5
        %v2794 = vsel %vm1239, %v2792, %v2793
        %v2795 = vrot.slane %v1683, 5
        %v2796 = vrot.slane %v2795, 4
        %v2797 = vrot.slane %v1684, 5
        %v2798 = vsel %vm1239, %v2796, %v2797
        %v2799 = vrot.slane %v2797, 4
        %v2800 = vrot.slane %v1685, 5
        %v2801 = vsel %vm1239, %v2799, %v2800
        %v2802 = vrot.slane %v1686, 5
        %v2803 = vrot.slane %v2802, 4
        %v2804 = vrot.slane %v1687, 5
        %v2805 = vsel %vm1239, %v2803, %v2804
        %v2806 = vrot.slane %v2804, 4
        %v2807 = vrot.slane %v1688, 5
        %v2808 = vsel %vm1239, %v2806, %v2807
        %v2809 = vrot.slane %v1689, 5
        %v2810 = vrot.slane %v2809, 4
        %v2811 = vrot.slane %v1690, 5
        %v2812 = vsel %vm1239, %v2810, %v2811
        %v2813 = vrot.slane %v2811, 4
        %v2814 = vrot.slane %v1691, 5
        %v2815 = vsel %vm1239, %v2813, %v2814
        %v2816 = vrot.slane %v1692, 5
        %v2817 = vrot.slane %v2816, 4
        %v2818 = vrot.slane %v1693, 5
        %v2819 = vsel %vm1239, %v2817, %v2818
        %v2820 = vrot.slane %v2818, 4
        %v2821 = vrot.slane %v1694, 5
        %v2822 = vsel %vm1239, %v2820, %v2821
        %v2823 = vrot.slane %v1695, 5
        %v2824 = vrot.slane %v2823, 4
        %v2825 = vrot.slane %v1696, 5
        %v2826 = vsel %vm1239, %v2824, %v2825
        %v2827 = vrot.slane %v2825, 4
        %v2828 = vrot.slane %v1697, 5
        %v2829 = vsel %vm1239, %v2827, %v2828
        %s2830 = scalar_lea.vmem %s219, 10
        %v2831 = vld [vmem:[%s2830] sm:$0x3]
        %v2832 = vunpack.c.l.b16 %v2721
        %v2833 = vunpack.c.l.b16 %v2724
        %v2834 = vunpack.c.l.b16 %v2728
        %v2835 = vunpack.c.l.b16 %v2731
        %v2836 = vunpack.c.l.b16 %v2735
        %v2837 = vunpack.c.l.b16 %v2738
        %v2838 = vunpack.c.l.b16 %v2742
        %v2839 = vunpack.c.l.b16 %v2745
        %v2840 = vunpack.c.l.b16 %v2749
        %v2841 = vunpack.c.l.b16 %v2752
        %v2842 = vunpack.c.l.b16 %v2756
        %v2843 = vunpack.c.l.b16 %v2759
        %v2844 = vunpack.c.l.b16 %v2763
        %v2845 = vunpack.c.l.b16 %v2766
        %v2846 = vunpack.c.l.b16 %v2770
        %v2847 = vunpack.c.l.b16 %v2773
        %v2848 = vunpack.c.l.b16 %v2777
        %v2849 = vunpack.c.l.b16 %v2780
        %v2850 = vunpack.c.l.b16 %v2784
        %v2851 = vunpack.c.l.b16 %v2787
        %v2852 = vunpack.c.l.b16 %v2791
        %v2853 = vunpack.c.l.b16 %v2794
        %v2854 = vunpack.c.l.b16 %v2798
        %v2855 = vunpack.c.l.b16 %v2801
        %v2856 = vunpack.c.l.b16 %v2805
        %v2857 = vunpack.c.l.b16 %v2808
        %v2858 = vunpack.c.l.b16 %v2812
        %v2859 = vunpack.c.l.b16 %v2815
        %v2860 = vunpack.c.l.b16 %v2819
        %v2861 = vunpack.c.l.b16 %v2822
        %v2862 = vunpack.c.l.b16 %v2826
        %v2863 = vunpack.c.l.b16 %v2829
        %v2864 = vpack.c.b16 %v2833, %v2832
        %v2865 = vpack.c.b16 %v2835, %v2834
        %v2866 = vpack.c.b16 %v2837, %v2836
        %v2867 = vpack.c.b16 %v2839, %v2838
        %v2868 = vpack.c.b16 %v2841, %v2840
        %v2869 = vpack.c.b16 %v2843, %v2842
        %v2870 = vpack.c.b16 %v2845, %v2844
        %v2871 = vpack.c.b16 %v2847, %v2846
        %v2872 = vpack.c.b16 %v2849, %v2848
        %v2873 = vpack.c.b16 %v2851, %v2850
        %v2874 = vpack.c.b16 %v2853, %v2852
        %v2875 = vpack.c.b16 %v2855, %v2854
        %v2876 = vpack.c.b16 %v2857, %v2856
        %v2877 = vpack.c.b16 %v2859, %v2858
        %v2878 = vpack.c.b16 %v2861, %v2860
        %v2879 = vpack.c.b16 %v2863, %v2862
        %v2881 = vsel %vm715, %v2864, 0
        %v2884 = vsel %vm715, %v2865, 0
        %v2887 = vsel %vm715, %v2866, 0
        %v2890 = vsel %vm715, %v2867, 0
        %v2893 = vsel %vm715, %v2868, 0
        %v2896 = vsel %vm715, %v2869, 0
        %v2899 = vsel %vm715, %v2870, 0
        %v2902 = vsel %vm715, %v2871, 0
        %v2905 = vsel %vm715, %v2872, 0
        %v2908 = vsel %vm715, %v2873, 0
        %v2911 = vsel %vm715, %v2874, 0
        %v2914 = vsel %vm715, %v2875, 0
        %v2917 = vsel %vm715, %v2876, 0
        %v2920 = vsel %vm715, %v2877, 0
        %v2923 = vsel %vm715, %v2878, 0
        %v2926 = vsel %vm715, %v2879, 0
        %v2929 = vsel %vm764, %v2831, 0
        %2931 = vmatprep.subr.bf16.mxu0 0
        %2932 = vmatpush1.bf16.msra.mxu0 %v2929
        %2933 = vmatprep.subr.bf16.mxu0 0
        %2934 = vmatpush1.bf16.msra.mxu0 0
        %2935 = vmatprep.subr.bf16.mxu0 0
        %2936 = vmatpush1.bf16.msra.mxu0 0
        %2937 = vmatprep.subr.bf16.mxu0 0
        %2938 = vmatpush1.bf16.msra.mxu0 0
        %2939 = vmatprep.subr.bf16.mxu0 0
        %2940 = vmatpush1.bf16.msra.mxu0 0
        %2941 = vmatprep.subr.bf16.mxu0 0
        %2942 = vmatpush1.bf16.msra.mxu0 0
        %2943 = vmatprep.subr.bf16.mxu0 0
        %2944 = vmatpush1.bf16.msra.mxu0 0
        %2945 = vmatprep.subr.bf16.mxu0 0
        %2946 = vmatpush1.bf16.msra.mxu0 0
        %2947 = vmatprep.subr.bf16.mxu0 0
        %2948 = vmatpush1.bf16.msra.mxu0 0
        %2949 = vmatprep.subr.bf16.mxu0 0
        %2950 = vmatpush1.bf16.msra.mxu0 0
        %2951 = vmatprep.subr.bf16.mxu0 0
        %2952 = vmatpush1.bf16.msra.mxu0 0
        %2953 = vmatprep.subr.bf16.mxu0 0
        %2954 = vmatpush1.bf16.msra.mxu0 0
        %2955 = vmatprep.subr.bf16.mxu0 0
        %2956 = vmatpush1.bf16.msra.mxu0 0
        %2957 = vmatprep.subr.bf16.mxu0 0
        %2958 = vmatpush1.bf16.msra.mxu0 0
        %2959 = vmatprep.subr.bf16.mxu0 0
        %2960 = vmatpush1.bf16.msra.mxu0 0
        %2961 = vmatprep.subr.bf16.mxu0 0
        %2962 = vmatpush1.bf16.msra.mxu0 0
        %2963 = vmatprep.mubr.bf16.mxu0 0
        %2964 = vmatmul.mubr.bf16.gmra.mrb[0].mxu0 %v2881
        %v2965 = vpop.f32.mrb[0].mxu0
        %v2966 = vadd.f32 0.0, %v2965
        %v2967 = vpop.f32.mrb[0].mxu0
        %v2968 = vpop.f32.mrb[0].mxu0
        %v2969 = vadd.f32 0.0, %v2968
        %v2970 = vpop.f32.mrb[0].mxu0
        %2971 = vmatprep.mubr.bf16.mxu0 0
        %2972 = vmatmul.mubr.bf16.gmra.mrb[0].mxu0 %v2884
        %v2973 = vpop.f32.mrb[0].mxu0
        %v2974 = vadd.f32 0.0, %v2973
        %v2975 = vpop.f32.mrb[0].mxu0
        %v2976 = vpop.f32.mrb[0].mxu0
        %v2977 = vadd.f32 0.0, %v2976
        %v2978 = vpop.f32.mrb[0].mxu0
        %2979 = vmatprep.mubr.bf16.mxu0 0
        %2980 = vmatmul.mubr.bf16.gmra.mrb[0].mxu0 %v2887
        %v2981 = vpop.f32.mrb[0].mxu0
        %v2982 = vadd.f32 0.0, %v2981
        %v2983 = vpop.f32.mrb[0].mxu0
        %v2984 = vpop.f32.mrb[0].mxu0
        %v2985 = vadd.f32 0.0, %v2984
        %v2986 = vpop.f32.mrb[0].mxu0
        %2987 = vmatprep.mubr.bf16.mxu0 0
        %2988 = vmatmul.mubr.bf16.gmra.mrb[0].mxu0 %v2890
        %v2989 = vpop.f32.mrb[0].mxu0
        %v2990 = vadd.f32 0.0, %v2989
        %v2991 = vpop.f32.mrb[0].mxu0
        %v2992 = vpop.f32.mrb[0].mxu0
        %v2993 = vadd.f32 0.0, %v2992
        %v2994 = vpop.f32.mrb[0].mxu0
        %2995 = vmatprep.mubr.bf16.mxu0 0
        %2996 = vmatmul.mubr.bf16.gmra.mrb[0].mxu0 %v2893
        %v2997 = vpop.f32.mrb[0].mxu0
        %v2998 = vadd.f32 0.0, %v2997
        %v2999 = vpop.f32.mrb[0].mxu0
        %v3000 = vpop.f32.mrb[0].mxu0
        %v3001 = vadd.f32 0.0, %v3000
        %v3002 = vpop.f32.mrb[0].mxu0
        %3003 = vmatprep.mubr.bf16.mxu0 0
        %3004 = vmatmul.mubr.bf16.gmra.mrb[0].mxu0 %v2896
        %v3005 = vpop.f32.mrb[0].mxu0
        %v3006 = vadd.f32 0.0, %v3005
        %v3007 = vpop.f32.mrb[0].mxu0
        %v3008 = vpop.f32.mrb[0].mxu0
        %v3009 = vadd.f32 0.0, %v3008
        %v3010 = vpop.f32.mrb[0].mxu0
        %3011 = vmatprep.mubr.bf16.mxu0 0
        %3012 = vmatmul.mubr.bf16.gmra.mrb[0].mxu0 %v2899
        %v3013 = vpop.f32.mrb[0].mxu0
        %v3014 = vadd.f32 0.0, %v3013
        %v3015 = vpop.f32.mrb[0].mxu0
        %v3016 = vpop.f32.mrb[0].mxu0
        %v3017 = vadd.f32 0.0, %v3016
        %v3018 = vpop.f32.mrb[0].mxu0
        %3019 = vmatprep.mubr.bf16.mxu0 0
        %3020 = vmatmul.mubr.bf16.gmra.mrb[0].mxu0 %v2902
        %v3021 = vpop.f32.mrb[0].mxu0
        %v3022 = vadd.f32 0.0, %v3021
        %v3023 = vpop.f32.mrb[0].mxu0
        %v3024 = vpop.f32.mrb[0].mxu0
        %v3025 = vadd.f32 0.0, %v3024
        %v3026 = vpop.f32.mrb[0].mxu0
        %3027 = vmatprep.mubr.bf16.mxu0 0
        %3028 = vmatmul.mubr.bf16.gmra.mrb[0].mxu0 %v2905
        %v3029 = vpop.f32.mrb[0].mxu0
        %v3030 = vadd.f32 0.0, %v3029
        %v3031 = vpop.f32.mrb[0].mxu0
        %v3032 = vpop.f32.mrb[0].mxu0
        %v3033 = vadd.f32 0.0, %v3032
        %v3034 = vpop.f32.mrb[0].mxu0
        %3035 = vmatprep.mubr.bf16.mxu0 0
        %3036 = vmatmul.mubr.bf16.gmra.mrb[0].mxu0 %v2908
        %v3037 = vpop.f32.mrb[0].mxu0
        %v3038 = vadd.f32 0.0, %v3037
        %v3039 = vpop.f32.mrb[0].mxu0
        %v3040 = vpop.f32.mrb[0].mxu0
        %v3041 = vadd.f32 0.0, %v3040
        %v3042 = vpop.f32.mrb[0].mxu0
        %3043 = vmatprep.mubr.bf16.mxu0 0
        %3044 = vmatmul.mubr.bf16.gmra.mrb[0].mxu0 %v2911
        %v3045 = vpop.f32.mrb[0].mxu0
        %v3046 = vadd.f32 0.0, %v3045
        %v3047 = vpop.f32.mrb[0].mxu0
        %v3048 = vpop.f32.mrb[0].mxu0
        %v3049 = vadd.f32 0.0, %v3048
        %v3050 = vpop.f32.mrb[0].mxu0
        %3051 = vmatprep.mubr.bf16.mxu0 0
        %3052 = vmatmul.mubr.bf16.gmra.mrb[0].mxu0 %v2914
        %v3053 = vpop.f32.mrb[0].mxu0
        %v3054 = vadd.f32 0.0, %v3053
        %v3055 = vpop.f32.mrb[0].mxu0
        %v3056 = vpop.f32.mrb[0].mxu0
        %v3057 = vadd.f32 0.0, %v3056
        %v3058 = vpop.f32.mrb[0].mxu0
        %3059 = vmatprep.mubr.bf16.mxu0 0
        %3060 = vmatmul.mubr.bf16.gmra.mrb[0].mxu0 %v2917
        %v3061 = vpop.f32.mrb[0].mxu0
        %v3062 = vadd.f32 0.0, %v3061
        %v3063 = vpop.f32.mrb[0].mxu0
        %v3064 = vpop.f32.mrb[0].mxu0
        %v3065 = vadd.f32 0.0, %v3064
        %v3066 = vpop.f32.mrb[0].mxu0
        %3067 = vmatprep.mubr.bf16.mxu0 0
        %3068 = vmatmul.mubr.bf16.gmra.mrb[0].mxu0 %v2920
        %v3069 = vpop.f32.mrb[0].mxu0
        %v3070 = vadd.f32 0.0, %v3069
        %v3071 = vpop.f32.mrb[0].mxu0
        %v3072 = vpop.f32.mrb[0].mxu0
        %v3073 = vadd.f32 0.0, %v3072
        %v3074 = vpop.f32.mrb[0].mxu0
        %3075 = vmatprep.mubr.bf16.mxu0 0
        %3076 = vmatmul.mubr.bf16.gmra.mrb[0].mxu0 %v2923
        %v3077 = vpop.f32.mrb[0].mxu0
        %v3078 = vadd.f32 0.0, %v3077
        %v3079 = vpop.f32.mrb[0].mxu0
        %v3080 = vpop.f32.mrb[0].mxu0
        %v3081 = vadd.f32 0.0, %v3080
        %v3082 = vpop.f32.mrb[0].mxu0
        %3083 = vmatprep.mubr.bf16.mxu0 0
        %3084 = vmatmul.mubr.bf16.gmra.mrb[0].mxu0 %v2926
        %v3085 = vpop.f32.mrb[0].mxu0
        %v3086 = vadd.f32 0.0, %v3085
        %v3087 = vpop.f32.mrb[0].mxu0
        %v3088 = vpop.f32.mrb[0].mxu0
        %v3089 = vadd.f32 0.0, %v3088
        %v3090 = vpop.f32.mrb[0].mxu0
        %3091 = vdwg.mxu0
        %v3092 = vadd.f32 %v2670, %v2966
        %v3093 = vadd.f32 %v2671, %v2969
        %v3094 = vadd.f32 %v2672, %v2974
        %v3095 = vadd.f32 %v2673, %v2977
        %v3096 = vadd.f32 %v2674, %v2982
        %v3097 = vadd.f32 %v2675, %v2985
        %v3098 = vadd.f32 %v2676, %v2990
        %v3099 = vadd.f32 %v2677, %v2993
        %v3100 = vadd.f32 %v2678, %v2998
        %v3101 = vadd.f32 %v2679, %v3001
        %v3102 = vadd.f32 %v2680, %v3006
        %v3103 = vadd.f32 %v2681, %v3009
        %v3104 = vadd.f32 %v2682, %v3014
        %v3105 = vadd.f32 %v2683, %v3017
        %v3106 = vadd.f32 %v2684, %v3022
        %v3107 = vadd.f32 %v2685, %v3025
        %v3108 = vadd.f32 %v2686, %v3030
        %v3109 = vadd.f32 %v2687, %v3033
        %v3110 = vadd.f32 %v2688, %v3038
        %v3111 = vadd.f32 %v2689, %v3041
        %v3112 = vadd.f32 %v2690, %v3046
        %v3113 = vadd.f32 %v2691, %v3049
        %v3114 = vadd.f32 %v2692, %v3054
        %v3115 = vadd.f32 %v2693, %v3057
        %v3116 = vadd.f32 %v2694, %v3062
        %v3117 = vadd.f32 %v2695, %v3065
        %v3118 = vadd.f32 %v2696, %v3070
        %v3119 = vadd.f32 %v2697, %v3073
        %v3120 = vadd.f32 %v2698, %v3078
        %v3121 = vadd.f32 %v2699, %v3081
        %v3122 = vadd.f32 %v2700, %v3086
        %v3123 = vadd.f32 %v2701, %v3089
        %s3124 = sadd.s32 %s225, 2
        %s3125 = smul.u32 %s3124, 3
        %s3126 = smul.addr %s3125, 4
        %s3127 = scalar_lea.vmem %s215, %s3126
        %v3128 = vld [vmem:[%s3127] sm:$0xf]
        %v3129 = vld [vmem:[%s3127 + $0x4] sm:$0xf]
        %v3130 = vld [vmem:[%s3127 + $0x8] sm:$0x1]
        %v3131 = vld [vmem:[%s3127 + $0xc] sm:$0xf]
        %v3132 = vld [vmem:[%s3127 + $0x10] sm:$0xf]
        %v3133 = vld [vmem:[%s3127 + $0x14] sm:$0x1]
        %v3134 = vld [vmem:[%s3127 + $0x18] sm:$0xf]
        %v3135 = vld [vmem:[%s3127 + $0x1c] sm:$0xf]
        %v3136 = vld [vmem:[%s3127 + $0x20] sm:$0x1]
        %v3137 = vld [vmem:[%s3127 + $0x24] sm:$0xf]
        %v3138 = vld [vmem:[%s3127 + $0x28] sm:$0xf]
        %v3139 = vld [vmem:[%s3127 + $0x2c] sm:$0x1]
        %v3140 = vld [vmem:[%s3127 + $0x30] sm:$0xf]
        %v3141 = vld [vmem:[%s3127 + $0x34] sm:$0xf]
        %v3142 = vld [vmem:[%s3127 + $0x38] sm:$0x1]
        %v3143 = vld [vmem:[%s3127 + $0x3c] sm:$0xf]
        %v3144 = vld [vmem:[%s3127 + $0x40] sm:$0xf]
        %v3145 = vld [vmem:[%s3127 + $0x44] sm:$0x1]
        %v3146 = vld [vmem:[%s3127 + $0x48] sm:$0xf]
        %v3147 = vld [vmem:[%s3127 + $0x4c] sm:$0xf]
        %v3148 = vld [vmem:[%s3127 + $0x50] sm:$0x1]
        %v3149 = vld [vmem:[%s3127 + $0x54] sm:$0xf]
        %v3150 = vld [vmem:[%s3127 + $0x58] sm:$0xf]
        %v3151 = vld [vmem:[%s3127 + $0x5c] sm:$0x1]
        %v3152 = vld [vmem:[%s3127 + $0x60] sm:$0xf]
        %v3153 = vld [vmem:[%s3127 + $0x64] sm:$0xf]
        %v3154 = vld [vmem:[%s3127 + $0x68] sm:$0x1]
        %v3155 = vld [vmem:[%s3127 + $0x6c] sm:$0xf]
        %v3156 = vld [vmem:[%s3127 + $0x70] sm:$0xf]
        %v3157 = vld [vmem:[%s3127 + $0x74] sm:$0x1]
        %v3158 = vld [vmem:[%s3127 + $0x78] sm:$0xf]
        %v3159 = vld [vmem:[%s3127 + $0x7c] sm:$0xf]
        %v3160 = vld [vmem:[%s3127 + $0x80] sm:$0x1]
        %v3161 = vld [vmem:[%s3127 + $0x84] sm:$0xf]
        %v3162 = vld [vmem:[%s3127 + $0x88] sm:$0xf]
        %v3163 = vld [vmem:[%s3127 + $0x8c] sm:$0x1]
        %v3164 = vld [vmem:[%s3127 + $0x90] sm:$0xf]
        %v3165 = vld [vmem:[%s3127 + $0x94] sm:$0xf]
        %v3166 = vld [vmem:[%s3127 + $0x98] sm:$0x1]
        %v3167 = vld [vmem:[%s3127 + $0x9c] sm:$0xf]
        %v3168 = vld [vmem:[%s3127 + $0xa0] sm:$0xf]
        %v3169 = vld [vmem:[%s3127 + $0xa4] sm:$0x1]
        %v3170 = vld [vmem:[%s3127 + $0xa8] sm:$0xf]
        %v3171 = vld [vmem:[%s3127 + $0xac] sm:$0xf]
        %v3172 = vld [vmem:[%s3127 + $0xb0] sm:$0x1]
        %v3173 = vld [vmem:[%s3127 + $0xb4] sm:$0xf]
        %v3174 = vld [vmem:[%s3127 + $0xb8] sm:$0xf]
        %v3175 = vld [vmem:[%s3127 + $0xbc] sm:$0x1]
        %s3176 = scalar_lea.vmem %s219, 12
        %v3177 = vld [vmem:[%s3176] sm:$0x3]
        %v3210 = vunpack.c.l.b16 %v3128
        %v3211 = vunpack.c.l.b16 %v3129
        %v3212 = vunpack.c.l.b16 %v3131
        %v3213 = vunpack.c.l.b16 %v3132
        %v3214 = vunpack.c.l.b16 %v3134
        %v3215 = vunpack.c.l.b16 %v3135
        %v3216 = vunpack.c.l.b16 %v3137
        %v3217 = vunpack.c.l.b16 %v3138
        %v3218 = vunpack.c.l.b16 %v3140
        %v3219 = vunpack.c.l.b16 %v3141
        %v3220 = vunpack.c.l.b16 %v3143
        %v3221 = vunpack.c.l.b16 %v3144
        %v3222 = vunpack.c.l.b16 %v3146
        %v3223 = vunpack.c.l.b16 %v3147
        %v3224 = vunpack.c.l.b16 %v3149
        %v3225 = vunpack.c.l.b16 %v3150
        %v3226 = vunpack.c.l.b16 %v3152
        %v3227 = vunpack.c.l.b16 %v3153
        %v3228 = vunpack.c.l.b16 %v3155
        %v3229 = vunpack.c.l.b16 %v3156
        %v3230 = vunpack.c.l.b16 %v3158
        %v3231 = vunpack.c.l.b16 %v3159
        %v3232 = vunpack.c.l.b16 %v3161
        %v3233 = vunpack.c.l.b16 %v3162
        %v3234 = vunpack.c.l.b16 %v3164
        %v3235 = vunpack.c.l.b16 %v3165
        %v3236 = vunpack.c.l.b16 %v3167
        %v3237 = vunpack.c.l.b16 %v3168
        %v3238 = vunpack.c.l.b16 %v3170
        %v3239 = vunpack.c.l.b16 %v3171
        %v3240 = vunpack.c.l.b16 %v3173
        %v3241 = vunpack.c.l.b16 %v3174
        %v3242 = vpack.c.b16 %v3211, %v3210
        %v3243 = vpack.c.b16 %v3213, %v3212
        %v3244 = vpack.c.b16 %v3215, %v3214
        %v3245 = vpack.c.b16 %v3217, %v3216
        %v3246 = vpack.c.b16 %v3219, %v3218
        %v3247 = vpack.c.b16 %v3221, %v3220
        %v3248 = vpack.c.b16 %v3223, %v3222
        %v3249 = vpack.c.b16 %v3225, %v3224
        %v3250 = vpack.c.b16 %v3227, %v3226
        %v3251 = vpack.c.b16 %v3229, %v3228
        %v3252 = vpack.c.b16 %v3231, %v3230
        %v3253 = vpack.c.b16 %v3233, %v3232
        %v3254 = vpack.c.b16 %v3235, %v3234
        %v3255 = vpack.c.b16 %v3237, %v3236
        %v3256 = vpack.c.b16 %v3239, %v3238
        %v3257 = vpack.c.b16 %v3241, %v3240
        %v3259 = vsel %vm715, %v3242, 0
        %v3262 = vsel %vm715, %v3243, 0
        %v3265 = vsel %vm715, %v3244, 0
        %v3268 = vsel %vm715, %v3245, 0
        %v3271 = vsel %vm715, %v3246, 0
        %v3274 = vsel %vm715, %v3247, 0
        %v3277 = vsel %vm715, %v3248, 0
        %v3280 = vsel %vm715, %v3249, 0
        %v3283 = vsel %vm715, %v3250, 0
        %v3286 = vsel %vm715, %v3251, 0
        %v3289 = vsel %vm715, %v3252, 0
        %v3292 = vsel %vm715, %v3253, 0
        %v3295 = vsel %vm715, %v3254, 0
        %v3298 = vsel %vm715, %v3255, 0
        %v3301 = vsel %vm715, %v3256, 0
        %v3304 = vsel %vm715, %v3257, 0
        %v3307 = vsel %vm764, %v3177, 0
        %3309 = vmatprep.subr.bf16.mxu0 0
        %3310 = vmatpush1.bf16.msra.mxu0 %v3307
        %3311 = vmatprep.subr.bf16.mxu0 0
        %3312 = vmatpush1.bf16.msra.mxu0 0
        %3313 = vmatprep.subr.bf16.mxu0 0
        %3314 = vmatpush1.bf16.msra.mxu0 0
        %3315 = vmatprep.subr.bf16.mxu0 0
        %3316 = vmatpush1.bf16.msra.mxu0 0
        %3317 = vmatprep.subr.bf16.mxu0 0
        %3318 = vmatpush1.bf16.msra.mxu0 0
        %3319 = vmatprep.subr.bf16.mxu0 0
        %3320 = vmatpush1.bf16.msra.mxu0 0
        %3321 = vmatprep.subr.bf16.mxu0 0
        %3322 = vmatpush1.bf16.msra.mxu0 0
        %3323 = vmatprep.subr.bf16.mxu0 0
        %3324 = vmatpush1.bf16.msra.mxu0 0
        %3325 = vmatprep.subr.bf16.mxu0 0
        %3326 = vmatpush1.bf16.msra.mxu0 0
        %3327 = vmatprep.subr.bf16.mxu0 0
        %3328 = vmatpush1.bf16.msra.mxu0 0
        %3329 = vmatprep.subr.bf16.mxu0 0
        %3330 = vmatpush1.bf16.msra.mxu0 0
        %3331 = vmatprep.subr.bf16.mxu0 0
        %3332 = vmatpush1.bf16.msra.mxu0 0
        %3333 = vmatprep.subr.bf16.mxu0 0
        %3334 = vmatpush1.bf16.msra.mxu0 0
        %3335 = vmatprep.subr.bf16.mxu0 0
        %3336 = vmatpush1.bf16.msra.mxu0 0
        %3337 = vmatprep.subr.bf16.mxu0 0
        %3338 = vmatpush1.bf16.msra.mxu0 0
        %3339 = vmatprep.subr.bf16.mxu0 0
        %3340 = vmatpush1.bf16.msra.mxu0 0
        %3341 = vmatprep.mubr.bf16.mxu0 0
        %3342 = vmatmul.mubr.bf16.gmra.mrb[0].mxu0 %v3259
        %v3343 = vpop.f32.mrb[0].mxu0
        %v3344 = vadd.f32 0.0, %v3343
        %v3345 = vpop.f32.mrb[0].mxu0
        %v3346 = vpop.f32.mrb[0].mxu0
        %v3347 = vadd.f32 0.0, %v3346
        %v3348 = vpop.f32.mrb[0].mxu0
        %3349 = vmatprep.mubr.bf16.mxu0 0
        %3350 = vmatmul.mubr.bf16.gmra.mrb[0].mxu0 %v3262
        %v3351 = vpop.f32.mrb[0].mxu0
        %v3352 = vadd.f32 0.0, %v3351
        %v3353 = vpop.f32.mrb[0].mxu0
        %v3354 = vpop.f32.mrb[0].mxu0
        %v3355 = vadd.f32 0.0, %v3354
        %v3356 = vpop.f32.mrb[0].mxu0
        %3357 = vmatprep.mubr.bf16.mxu0 0
        %3358 = vmatmul.mubr.bf16.gmra.mrb[0].mxu0 %v3265
        %v3359 = vpop.f32.mrb[0].mxu0
        %v3360 = vadd.f32 0.0, %v3359
        %v3361 = vpop.f32.mrb[0].mxu0
        %v3362 = vpop.f32.mrb[0].mxu0
        %v3363 = vadd.f32 0.0, %v3362
        %v3364 = vpop.f32.mrb[0].mxu0
        %3365 = vmatprep.mubr.bf16.mxu0 0
        %3366 = vmatmul.mubr.bf16.gmra.mrb[0].mxu0 %v3268
        %v3367 = vpop.f32.mrb[0].mxu0
        %v3368 = vadd.f32 0.0, %v3367
        %v3369 = vpop.f32.mrb[0].mxu0
        %v3370 = vpop.f32.mrb[0].mxu0
        %v3371 = vadd.f32 0.0, %v3370
        %v3372 = vpop.f32.mrb[0].mxu0
        %3373 = vmatprep.mubr.bf16.mxu0 0
        %3374 = vmatmul.mubr.bf16.gmra.mrb[0].mxu0 %v3271
        %v3375 = vpop.f32.mrb[0].mxu0
        %v3376 = vadd.f32 0.0, %v3375
        %v3377 = vpop.f32.mrb[0].mxu0
        %v3378 = vpop.f32.mrb[0].mxu0
        %v3379 = vadd.f32 0.0, %v3378
        %v3380 = vpop.f32.mrb[0].mxu0
        %3381 = vmatprep.mubr.bf16.mxu0 0
        %3382 = vmatmul.mubr.bf16.gmra.mrb[0].mxu0 %v3274
        %v3383 = vpop.f32.mrb[0].mxu0
        %v3384 = vadd.f32 0.0, %v3383
        %v3385 = vpop.f32.mrb[0].mxu0
        %v3386 = vpop.f32.mrb[0].mxu0
        %v3387 = vadd.f32 0.0, %v3386
        %v3388 = vpop.f32.mrb[0].mxu0
        %3389 = vmatprep.mubr.bf16.mxu0 0
        %3390 = vmatmul.mubr.bf16.gmra.mrb[0].mxu0 %v3277
        %v3391 = vpop.f32.mrb[0].mxu0
        %v3392 = vadd.f32 0.0, %v3391
        %v3393 = vpop.f32.mrb[0].mxu0
        %v3394 = vpop.f32.mrb[0].mxu0
        %v3395 = vadd.f32 0.0, %v3394
        %v3396 = vpop.f32.mrb[0].mxu0
        %3397 = vmatprep.mubr.bf16.mxu0 0
        %3398 = vmatmul.mubr.bf16.gmra.mrb[0].mxu0 %v3280
        %v3399 = vpop.f32.mrb[0].mxu0
        %v3400 = vadd.f32 0.0, %v3399
        %v3401 = vpop.f32.mrb[0].mxu0
        %v3402 = vpop.f32.mrb[0].mxu0
        %v3403 = vadd.f32 0.0, %v3402
        %v3404 = vpop.f32.mrb[0].mxu0
        %3405 = vmatprep.mubr.bf16.mxu0 0
        %3406 = vmatmul.mubr.bf16.gmra.mrb[0].mxu0 %v3283
        %v3407 = vpop.f32.mrb[0].mxu0
        %v3408 = vadd.f32 0.0, %v3407
        %v3409 = vpop.f32.mrb[0].mxu0
        %v3410 = vpop.f32.mrb[0].mxu0
        %v3411 = vadd.f32 0.0, %v3410
        %v3412 = vpop.f32.mrb[0].mxu0
        %3413 = vmatprep.mubr.bf16.mxu0 0
        %3414 = vmatmul.mubr.bf16.gmra.mrb[0].mxu0 %v3286
        %v3415 = vpop.f32.mrb[0].mxu0
        %v3416 = vadd.f32 0.0, %v3415
        %v3417 = vpop.f32.mrb[0].mxu0
        %v3418 = vpop.f32.mrb[0].mxu0
        %v3419 = vadd.f32 0.0, %v3418
        %v3420 = vpop.f32.mrb[0].mxu0
        %3421 = vmatprep.mubr.bf16.mxu0 0
        %3422 = vmatmul.mubr.bf16.gmra.mrb[0].mxu0 %v3289
        %v3423 = vpop.f32.mrb[0].mxu0
        %v3424 = vadd.f32 0.0, %v3423
        %v3425 = vpop.f32.mrb[0].mxu0
        %v3426 = vpop.f32.mrb[0].mxu0
        %v3427 = vadd.f32 0.0, %v3426
        %v3428 = vpop.f32.mrb[0].mxu0
        %3429 = vmatprep.mubr.bf16.mxu0 0
        %3430 = vmatmul.mubr.bf16.gmra.mrb[0].mxu0 %v3292
        %v3431 = vpop.f32.mrb[0].mxu0
        %v3432 = vadd.f32 0.0, %v3431
        %v3433 = vpop.f32.mrb[0].mxu0
        %v3434 = vpop.f32.mrb[0].mxu0
        %v3435 = vadd.f32 0.0, %v3434
        %v3436 = vpop.f32.mrb[0].mxu0
        %3437 = vmatprep.mubr.bf16.mxu0 0
        %3438 = vmatmul.mubr.bf16.gmra.mrb[0].mxu0 %v3295
        %v3439 = vpop.f32.mrb[0].mxu0
        %v3440 = vadd.f32 0.0, %v3439
        %v3441 = vpop.f32.mrb[0].mxu0
        %v3442 = vpop.f32.mrb[0].mxu0
        %v3443 = vadd.f32 0.0, %v3442
        %v3444 = vpop.f32.mrb[0].mxu0
        %3445 = vmatprep.mubr.bf16.mxu0 0
        %3446 = vmatmul.mubr.bf16.gmra.mrb[0].mxu0 %v3298
        %v3447 = vpop.f32.mrb[0].mxu0
        %v3448 = vadd.f32 0.0, %v3447
        %v3449 = vpop.f32.mrb[0].mxu0
        %v3450 = vpop.f32.mrb[0].mxu0
        %v3451 = vadd.f32 0.0, %v3450
        %v3452 = vpop.f32.mrb[0].mxu0
        %3453 = vmatprep.mubr.bf16.mxu0 0
        %3454 = vmatmul.mubr.bf16.gmra.mrb[0].mxu0 %v3301
        %v3455 = vpop.f32.mrb[0].mxu0
        %v3456 = vadd.f32 0.0, %v3455
        %v3457 = vpop.f32.mrb[0].mxu0
        %v3458 = vpop.f32.mrb[0].mxu0
        %v3459 = vadd.f32 0.0, %v3458
        %v3460 = vpop.f32.mrb[0].mxu0
        %3461 = vmatprep.mubr.bf16.mxu0 0
        %3462 = vmatmul.mubr.bf16.gmra.mrb[0].mxu0 %v3304
        %v3463 = vpop.f32.mrb[0].mxu0
        %v3464 = vadd.f32 0.0, %v3463
        %v3465 = vpop.f32.mrb[0].mxu0
        %v3466 = vpop.f32.mrb[0].mxu0
        %v3467 = vadd.f32 0.0, %v3466
        %v3468 = vpop.f32.mrb[0].mxu0
        %3469 = vdwg.mxu0
        %v3470 = vadd.f32 %v3092, %v3344
        %v3471 = vadd.f32 %v3093, %v3347
        %v3472 = vadd.f32 %v3094, %v3352
        %v3473 = vadd.f32 %v3095, %v3355
        %v3474 = vadd.f32 %v3096, %v3360
        %v3475 = vadd.f32 %v3097, %v3363
        %v3476 = vadd.f32 %v3098, %v3368
        %v3477 = vadd.f32 %v3099, %v3371
        %v3478 = vadd.f32 %v3100, %v3376
        %v3479 = vadd.f32 %v3101, %v3379
        %v3480 = vadd.f32 %v3102, %v3384
        %v3481 = vadd.f32 %v3103, %v3387
        %v3482 = vadd.f32 %v3104, %v3392
        %v3483 = vadd.f32 %v3105, %v3395
        %v3484 = vadd.f32 %v3106, %v3400
        %v3485 = vadd.f32 %v3107, %v3403
        %v3486 = vadd.f32 %v3108, %v3408
        %v3487 = vadd.f32 %v3109, %v3411
        %v3488 = vadd.f32 %v3110, %v3416
        %v3489 = vadd.f32 %v3111, %v3419
        %v3490 = vadd.f32 %v3112, %v3424
        %v3491 = vadd.f32 %v3113, %v3427
        %v3492 = vadd.f32 %v3114, %v3432
        %v3493 = vadd.f32 %v3115, %v3435
        %v3494 = vadd.f32 %v3116, %v3440
        %v3495 = vadd.f32 %v3117, %v3443
        %v3496 = vadd.f32 %v3118, %v3448
        %v3497 = vadd.f32 %v3119, %v3451
        %v3498 = vadd.f32 %v3120, %v3456
        %v3499 = vadd.f32 %v3121, %v3459
        %v3500 = vadd.f32 %v3122, %v3464
        %v3501 = vadd.f32 %v3123, %v3467
        %v3503 = vshrl.u32 %v3128, 16
        %v3505 = vrot.slane %v3503, 4
        %v3506 = vshll.u32 %v3128, 16
        %v3508 = vrot.slane %v3506, 5
        %v3509 = vor.u32 %v3505, %v3508
        %v3510 = vrot.slane %v3509, 4
        %v3512 = vshll.u32 %v3129, 16
        %v3514 = vrot.slane %v3512, 5
        %v3515 = vsel %vm280, %v3510, %v3514
        %v3516 = vshrl.u32 %v3129, 16
        %v3518 = vrot.slane %v3516, 4
        %v3519 = vor.u32 %v3518, %v3514
        %v3520 = vrot.slane %v3519, 4
        %v3522 = vshll.u32 %v3130, 16
        %v3524 = vrot.slane %v3522, 5
        %v3525 = vsel %vm280, %v3520, %v3524
        %v3527 = vshrl.u32 %v3131, 16
        %v3529 = vrot.slane %v3527, 4
        %v3530 = vshll.u32 %v3131, 16
        %v3532 = vrot.slane %v3530, 5
        %v3533 = vor.u32 %v3529, %v3532
        %v3534 = vrot.slane %v3533, 4
        %v3536 = vshll.u32 %v3132, 16
        %v3538 = vrot.slane %v3536, 5
        %v3539 = vsel %vm280, %v3534, %v3538
        %v3540 = vshrl.u32 %v3132, 16
        %v3542 = vrot.slane %v3540, 4
        %v3543 = vor.u32 %v3542, %v3538
        %v3544 = vrot.slane %v3543, 4
        %v3546 = vshll.u32 %v3133, 16
        %v3548 = vrot.slane %v3546, 5
        %v3549 = vsel %vm280, %v3544, %v3548
        %v3551 = vshrl.u32 %v3134, 16
        %v3553 = vrot.slane %v3551, 4
        %v3554 = vshll.u32 %v3134, 16
        %v3556 = vrot.slane %v3554, 5
        %v3557 = vor.u32 %v3553, %v3556
        %v3558 = vrot.slane %v3557, 4
        %v3560 = vshll.u32 %v3135, 16
        %v3562 = vrot.slane %v3560, 5
        %v3563 = vsel %vm280, %v3558, %v3562
        %v3564 = vshrl.u32 %v3135, 16
        %v3566 = vrot.slane %v3564, 4
        %v3567 = vor.u32 %v3566, %v3562
        %v3568 = vrot.slane %v3567, 4
        %v3570 = vshll.u32 %v3136, 16
        %v3572 = vrot.slane %v3570, 5
        %v3573 = vsel %vm280, %v3568, %v3572
        %v3575 = vshrl.u32 %v3137, 16
        %v3577 = vrot.slane %v3575, 4
        %v3578 = vshll.u32 %v3137, 16
        %v3580 = vrot.slane %v3578, 5
        %v3581 = vor.u32 %v3577, %v3580
        %v3582 = vrot.slane %v3581, 4
        %v3584 = vshll.u32 %v3138, 16
        %v3586 = vrot.slane %v3584, 5
        %v3587 = vsel %vm280, %v3582, %v3586
        %v3588 = vshrl.u32 %v3138, 16
        %v3590 = vrot.slane %v3588, 4
        %v3591 = vor.u32 %v3590, %v3586
        %v3592 = vrot.slane %v3591, 4
        %v3594 = vshll.u32 %v3139, 16
        %v3596 = vrot.slane %v3594, 5
        %v3597 = vsel %vm280, %v3592, %v3596
        %v3599 = vshrl.u32 %v3140, 16
        %v3601 = vrot.slane %v3599, 4
        %v3602 = vshll.u32 %v3140, 16
        %v3604 = vrot.slane %v3602, 5
        %v3605 = vor.u32 %v3601, %v3604
        %v3606 = vrot.slane %v3605, 4
        %v3608 = vshll.u32 %v3141, 16
        %v3610 = vrot.slane %v3608, 5
        %v3611 = vsel %vm280, %v3606, %v3610
        %v3612 = vshrl.u32 %v3141, 16
        %v3614 = vrot.slane %v3612, 4
        %v3615 = vor.u32 %v3614, %v3610
        %v3616 = vrot.slane %v3615, 4
        %v3618 = vshll.u32 %v3142, 16
        %v3620 = vrot.slane %v3618, 5
        %v3621 = vsel %vm280, %v3616, %v3620
        %v3623 = vshrl.u32 %v3143, 16
        %v3625 = vrot.slane %v3623, 4
        %v3626 = vshll.u32 %v3143, 16
        %v3628 = vrot.slane %v3626, 5
        %v3629 = vor.u32 %v3625, %v3628
        %v3630 = vrot.slane %v3629, 4
        %v3632 = vshll.u32 %v3144, 16
        %v3634 = vrot.slane %v3632, 5
        %v3635 = vsel %vm280, %v3630, %v3634
        %v3636 = vshrl.u32 %v3144, 16
        %v3638 = vrot.slane %v3636, 4
        %v3639 = vor.u32 %v3638, %v3634
        %v3640 = vrot.slane %v3639, 4
        %v3642 = vshll.u32 %v3145, 16
        %v3644 = vrot.slane %v3642, 5
        %v3645 = vsel %vm280, %v3640, %v3644
        %v3647 = vshrl.u32 %v3146, 16
        %v3649 = vrot.slane %v3647, 4
        %v3650 = vshll.u32 %v3146, 16
        %v3652 = vrot.slane %v3650, 5
        %v3653 = vor.u32 %v3649, %v3652
        %v3654 = vrot.slane %v3653, 4
        %v3656 = vshll.u32 %v3147, 16
        %v3658 = vrot.slane %v3656, 5
        %v3659 = vsel %vm280, %v3654, %v3658
        %v3660 = vshrl.u32 %v3147, 16
        %v3662 = vrot.slane %v3660, 4
        %v3663 = vor.u32 %v3662, %v3658
        %v3664 = vrot.slane %v3663, 4
        %v3666 = vshll.u32 %v3148, 16
        %v3668 = vrot.slane %v3666, 5
        %v3669 = vsel %vm280, %v3664, %v3668
        %v3671 = vshrl.u32 %v3149, 16
        %v3673 = vrot.slane %v3671, 4
        %v3674 = vshll.u32 %v3149, 16
        %v3676 = vrot.slane %v3674, 5
        %v3677 = vor.u32 %v3673, %v3676
        %v3678 = vrot.slane %v3677, 4
        %v3680 = vshll.u32 %v3150, 16
        %v3682 = vrot.slane %v3680, 5
        %v3683 = vsel %vm280, %v3678, %v3682
        %v3684 = vshrl.u32 %v3150, 16
        %v3686 = vrot.slane %v3684, 4
        %v3687 = vor.u32 %v3686, %v3682
        %v3688 = vrot.slane %v3687, 4
        %v3690 = vshll.u32 %v3151, 16
        %v3692 = vrot.slane %v3690, 5
        %v3693 = vsel %vm280, %v3688, %v3692
        %v3695 = vshrl.u32 %v3152, 16
        %v3697 = vrot.slane %v3695, 4
        %v3698 = vshll.u32 %v3152, 16
        %v3700 = vrot.slane %v3698, 5
        %v3701 = vor.u32 %v3697, %v3700
        %v3702 = vrot.slane %v3701, 4
        %v3704 = vshll.u32 %v3153, 16
        %v3706 = vrot.slane %v3704, 5
        %v3707 = vsel %vm280, %v3702, %v3706
        %v3708 = vshrl.u32 %v3153, 16
        %v3710 = vrot.slane %v3708, 4
        %v3711 = vor.u32 %v3710, %v3706
        %v3712 = vrot.slane %v3711, 4
        %v3714 = vshll.u32 %v3154, 16
        %v3716 = vrot.slane %v3714, 5
        %v3717 = vsel %vm280, %v3712, %v3716
        %v3719 = vshrl.u32 %v3155, 16
        %v3721 = vrot.slane %v3719, 4
        %v3722 = vshll.u32 %v3155, 16
        %v3724 = vrot.slane %v3722, 5
        %v3725 = vor.u32 %v3721, %v3724
        %v3726 = vrot.slane %v3725, 4
        %v3728 = vshll.u32 %v3156, 16
        %v3730 = vrot.slane %v3728, 5
        %v3731 = vsel %vm280, %v3726, %v3730
        %v3732 = vshrl.u32 %v3156, 16
        %v3734 = vrot.slane %v3732, 4
        %v3735 = vor.u32 %v3734, %v3730
        %v3736 = vrot.slane %v3735, 4
        %v3738 = vshll.u32 %v3157, 16
        %v3740 = vrot.slane %v3738, 5
        %v3741 = vsel %vm280, %v3736, %v3740
        %v3743 = vshrl.u32 %v3158, 16
        %v3745 = vrot.slane %v3743, 4
        %v3746 = vshll.u32 %v3158, 16
        %v3748 = vrot.slane %v3746, 5
        %v3749 = vor.u32 %v3745, %v3748
        %v3750 = vrot.slane %v3749, 4
        %v3752 = vshll.u32 %v3159, 16
        %v3754 = vrot.slane %v3752, 5
        %v3755 = vsel %vm280, %v3750, %v3754
        %v3756 = vshrl.u32 %v3159, 16
        %v3758 = vrot.slane %v3756, 4
        %v3759 = vor.u32 %v3758, %v3754
        %v3760 = vrot.slane %v3759, 4
        %v3762 = vshll.u32 %v3160, 16
        %v3764 = vrot.slane %v3762, 5
        %v3765 = vsel %vm280, %v3760, %v3764
        %v3767 = vshrl.u32 %v3161, 16
        %v3769 = vrot.slane %v3767, 4
        %v3770 = vshll.u32 %v3161, 16
        %v3772 = vrot.slane %v3770, 5
        %v3773 = vor.u32 %v3769, %v3772
        %v3774 = vrot.slane %v3773, 4
        %v3776 = vshll.u32 %v3162, 16
        %v3778 = vrot.slane %v3776, 5
        %v3779 = vsel %vm280, %v3774, %v3778
        %v3780 = vshrl.u32 %v3162, 16
        %v3782 = vrot.slane %v3780, 4
        %v3783 = vor.u32 %v3782, %v3778
        %v3784 = vrot.slane %v3783, 4
        %v3786 = vshll.u32 %v3163, 16
        %v3788 = vrot.slane %v3786, 5
        %v3789 = vsel %vm280, %v3784, %v3788
        %v3791 = vshrl.u32 %v3164, 16
        %v3793 = vrot.slane %v3791, 4
        %v3794 = vshll.u32 %v3164, 16
        %v3796 = vrot.slane %v3794, 5
        %v3797 = vor.u32 %v3793, %v3796
        %v3798 = vrot.slane %v3797, 4
        %v3800 = vshll.u32 %v3165, 16
        %v3802 = vrot.slane %v3800, 5
        %v3803 = vsel %vm280, %v3798, %v3802
        %v3804 = vshrl.u32 %v3165, 16
        %v3806 = vrot.slane %v3804, 4
        %v3807 = vor.u32 %v3806, %v3802
        %v3808 = vrot.slane %v3807, 4
        %v3810 = vshll.u32 %v3166, 16
        %v3812 = vrot.slane %v3810, 5
        %v3813 = vsel %vm280, %v3808, %v3812
        %v3815 = vshrl.u32 %v3167, 16
        %v3817 = vrot.slane %v3815, 4
        %v3818 = vshll.u32 %v3167, 16
        %v3820 = vrot.slane %v3818, 5
        %v3821 = vor.u32 %v3817, %v3820
        %v3822 = vrot.slane %v3821, 4
        %v3824 = vshll.u32 %v3168, 16
        %v3826 = vrot.slane %v3824, 5
        %v3827 = vsel %vm280, %v3822, %v3826
        %v3828 = vshrl.u32 %v3168, 16
        %v3830 = vrot.slane %v3828, 4
        %v3831 = vor.u32 %v3830, %v3826
        %v3832 = vrot.slane %v3831, 4
        %v3834 = vshll.u32 %v3169, 16
        %v3836 = vrot.slane %v3834, 5
        %v3837 = vsel %vm280, %v3832, %v3836
        %v3839 = vshrl.u32 %v3170, 16
        %v3841 = vrot.slane %v3839, 4
        %v3842 = vshll.u32 %v3170, 16
        %v3844 = vrot.slane %v3842, 5
        %v3845 = vor.u32 %v3841, %v3844
        %v3846 = vrot.slane %v3845, 4
        %v3848 = vshll.u32 %v3171, 16
        %v3850 = vrot.slane %v3848, 5
        %v3851 = vsel %vm280, %v3846, %v3850
        %v3852 = vshrl.u32 %v3171, 16
        %v3854 = vrot.slane %v3852, 4
        %v3855 = vor.u32 %v3854, %v3850
        %v3856 = vrot.slane %v3855, 4
        %v3858 = vshll.u32 %v3172, 16
        %v3860 = vrot.slane %v3858, 5
        %v3861 = vsel %vm280, %v3856, %v3860
        %v3863 = vshrl.u32 %v3173, 16
        %v3865 = vrot.slane %v3863, 4
        %v3866 = vshll.u32 %v3173, 16
        %v3868 = vrot.slane %v3866, 5
        %v3869 = vor.u32 %v3865, %v3868
        %v3870 = vrot.slane %v3869, 4
        %v3872 = vshll.u32 %v3174, 16
        %v3874 = vrot.slane %v3872, 5
        %v3875 = vsel %vm280, %v3870, %v3874
        %v3876 = vshrl.u32 %v3174, 16
        %v3878 = vrot.slane %v3876, 4
        %v3879 = vor.u32 %v3878, %v3874
        %v3880 = vrot.slane %v3879, 4
        %v3882 = vshll.u32 %v3175, 16
        %v3884 = vrot.slane %v3882, 5
        %v3885 = vsel %vm280, %v3880, %v3884
        %s3886 = scalar_lea.vmem %s219, 14
        %v3887 = vld [vmem:[%s3886] sm:$0x3]
        %v3888 = vunpack.c.l.b16 %v3515
        %v3889 = vunpack.c.l.b16 %v3525
        %v3890 = vunpack.c.l.b16 %v3539
        %v3891 = vunpack.c.l.b16 %v3549
        %v3892 = vunpack.c.l.b16 %v3563
        %v3893 = vunpack.c.l.b16 %v3573
        %v3894 = vunpack.c.l.b16 %v3587
        %v3895 = vunpack.c.l.b16 %v3597
        %v3896 = vunpack.c.l.b16 %v3611
        %v3897 = vunpack.c.l.b16 %v3621
        %v3898 = vunpack.c.l.b16 %v3635
        %v3899 = vunpack.c.l.b16 %v3645
        %v3900 = vunpack.c.l.b16 %v3659
        %v3901 = vunpack.c.l.b16 %v3669
        %v3902 = vunpack.c.l.b16 %v3683
        %v3903 = vunpack.c.l.b16 %v3693
        %v3904 = vunpack.c.l.b16 %v3707
        %v3905 = vunpack.c.l.b16 %v3717
        %v3906 = vunpack.c.l.b16 %v3731
        %v3907 = vunpack.c.l.b16 %v3741
        %v3908 = vunpack.c.l.b16 %v3755
        %v3909 = vunpack.c.l.b16 %v3765
        %v3910 = vunpack.c.l.b16 %v3779
        %v3911 = vunpack.c.l.b16 %v3789
        %v3912 = vunpack.c.l.b16 %v3803
        %v3913 = vunpack.c.l.b16 %v3813
        %v3914 = vunpack.c.l.b16 %v3827
        %v3915 = vunpack.c.l.b16 %v3837
        %v3916 = vunpack.c.l.b16 %v3851
        %v3917 = vunpack.c.l.b16 %v3861
        %v3918 = vunpack.c.l.b16 %v3875
        %v3919 = vunpack.c.l.b16 %v3885
        %v3920 = vpack.c.b16 %v3889, %v3888
        %v3921 = vpack.c.b16 %v3891, %v3890
        %v3922 = vpack.c.b16 %v3893, %v3892
        %v3923 = vpack.c.b16 %v3895, %v3894
        %v3924 = vpack.c.b16 %v3897, %v3896
        %v3925 = vpack.c.b16 %v3899, %v3898
        %v3926 = vpack.c.b16 %v3901, %v3900
        %v3927 = vpack.c.b16 %v3903, %v3902
        %v3928 = vpack.c.b16 %v3905, %v3904
        %v3929 = vpack.c.b16 %v3907, %v3906
        %v3930 = vpack.c.b16 %v3909, %v3908
        %v3931 = vpack.c.b16 %v3911, %v3910
        %v3932 = vpack.c.b16 %v3913, %v3912
        %v3933 = vpack.c.b16 %v3915, %v3914
        %v3934 = vpack.c.b16 %v3917, %v3916
        %v3935 = vpack.c.b16 %v3919, %v3918
        %v3937 = vsel %vm715, %v3920, 0
        %v3940 = vsel %vm715, %v3921, 0
        %v3943 = vsel %vm715, %v3922, 0
        %v3946 = vsel %vm715, %v3923, 0
        %v3949 = vsel %vm715, %v3924, 0
        %v3952 = vsel %vm715, %v3925, 0
        %v3955 = vsel %vm715, %v3926, 0
        %v3958 = vsel %vm715, %v3927, 0
        %v3961 = vsel %vm715, %v3928, 0
        %v3964 = vsel %vm715, %v3929, 0
        %v3967 = vsel %vm715, %v3930, 0
        %v3970 = vsel %vm715, %v3931, 0
        %v3973 = vsel %vm715, %v3932, 0
        %v3976 = vsel %vm715, %v3933, 0
        %v3979 = vsel %vm715, %v3934, 0
        %v3982 = vsel %vm715, %v3935, 0
        %v3985 = vsel %vm764, %v3887, 0
        %3987 = vmatprep.subr.bf16.mxu0 0
        %3988 = vmatpush1.bf16.msra.mxu0 %v3985
        %3989 = vmatprep.subr.bf16.mxu0 0
        %3990 = vmatpush1.bf16.msra.mxu0 0
        %3991 = vmatprep.subr.bf16.mxu0 0
        %3992 = vmatpush1.bf16.msra.mxu0 0
        %3993 = vmatprep.subr.bf16.mxu0 0
        %3994 = vmatpush1.bf16.msra.mxu0 0
        %3995 = vmatprep.subr.bf16.mxu0 0
        %3996 = vmatpush1.bf16.msra.mxu0 0
        %3997 = vmatprep.subr.bf16.mxu0 0
        %3998 = vmatpush1.bf16.msra.mxu0 0
        %3999 = vmatprep.subr.bf16.mxu0 0
        %4000 = vmatpush1.bf16.msra.mxu0 0
        %4001 = vmatprep.subr.bf16.mxu0 0
        %4002 = vmatpush1.bf16.msra.mxu0 0
        %4003 = vmatprep.subr.bf16.mxu0 0
        %4004 = vmatpush1.bf16.msra.mxu0 0
        %4005 = vmatprep.subr.bf16.mxu0 0
        %4006 = vmatpush1.bf16.msra.mxu0 0
        %4007 = vmatprep.subr.bf16.mxu0 0
        %4008 = vmatpush1.bf16.msra.mxu0 0
        %4009 = vmatprep.subr.bf16.mxu0 0
        %4010 = vmatpush1.bf16.msra.mxu0 0
        %4011 = vmatprep.subr.bf16.mxu0 0
        %4012 = vmatpush1.bf16.msra.mxu0 0
        %4013 = vmatprep.subr.bf16.mxu0 0
        %4014 = vmatpush1.bf16.msra.mxu0 0
        %4015 = vmatprep.subr.bf16.mxu0 0
        %4016 = vmatpush1.bf16.msra.mxu0 0
        %4017 = vmatprep.subr.bf16.mxu0 0
        %4018 = vmatpush1.bf16.msra.mxu0 0
        %4019 = vmatprep.mubr.bf16.mxu0 0
        %4020 = vmatmul.mubr.bf16.gmra.mrb[0].mxu0 %v3937
        %v4021 = vpop.f32.mrb[0].mxu0
        %v4022 = vadd.f32 0.0, %v4021
        %v4023 = vpop.f32.mrb[0].mxu0
        %v4024 = vpop.f32.mrb[0].mxu0
        %v4025 = vadd.f32 0.0, %v4024
        %v4026 = vpop.f32.mrb[0].mxu0
        %4027 = vmatprep.mubr.bf16.mxu0 0
        %4028 = vmatmul.mubr.bf16.gmra.mrb[0].mxu0 %v3940
        %v4029 = vpop.f32.mrb[0].mxu0
        %v4030 = vadd.f32 0.0, %v4029
        %v4031 = vpop.f32.mrb[0].mxu0
        %v4032 = vpop.f32.mrb[0].mxu0
        %v4033 = vadd.f32 0.0, %v4032
        %v4034 = vpop.f32.mrb[0].mxu0
        %4035 = vmatprep.mubr.bf16.mxu0 0
        %4036 = vmatmul.mubr.bf16.gmra.mrb[0].mxu0 %v3943
        %v4037 = vpop.f32.mrb[0].mxu0
        %v4038 = vadd.f32 0.0, %v4037
        %v4039 = vpop.f32.mrb[0].mxu0
        %v4040 = vpop.f32.mrb[0].mxu0
        %v4041 = vadd.f32 0.0, %v4040
        %v4042 = vpop.f32.mrb[0].mxu0
        %4043 = vmatprep.mubr.bf16.mxu0 0
        %4044 = vmatmul.mubr.bf16.gmra.mrb[0].mxu0 %v3946
        %v4045 = vpop.f32.mrb[0].mxu0
        %v4046 = vadd.f32 0.0, %v4045
        %v4047 = vpop.f32.mrb[0].mxu0
        %v4048 = vpop.f32.mrb[0].mxu0
        %v4049 = vadd.f32 0.0, %v4048
        %v4050 = vpop.f32.mrb[0].mxu0
        %4051 = vmatprep.mubr.bf16.mxu0 0
        %4052 = vmatmul.mubr.bf16.gmra.mrb[0].mxu0 %v3949
        %v4053 = vpop.f32.mrb[0].mxu0
        %v4054 = vadd.f32 0.0, %v4053
        %v4055 = vpop.f32.mrb[0].mxu0
        %v4056 = vpop.f32.mrb[0].mxu0
        %v4057 = vadd.f32 0.0, %v4056
        %v4058 = vpop.f32.mrb[0].mxu0
        %4059 = vmatprep.mubr.bf16.mxu0 0
        %4060 = vmatmul.mubr.bf16.gmra.mrb[0].mxu0 %v3952
        %v4061 = vpop.f32.mrb[0].mxu0
        %v4062 = vadd.f32 0.0, %v4061
        %v4063 = vpop.f32.mrb[0].mxu0
        %v4064 = vpop.f32.mrb[0].mxu0
        %v4065 = vadd.f32 0.0, %v4064
        %v4066 = vpop.f32.mrb[0].mxu0
        %4067 = vmatprep.mubr.bf16.mxu0 0
        %4068 = vmatmul.mubr.bf16.gmra.mrb[0].mxu0 %v3955
        %v4069 = vpop.f32.mrb[0].mxu0
        %v4070 = vadd.f32 0.0, %v4069
        %v4071 = vpop.f32.mrb[0].mxu0
        %v4072 = vpop.f32.mrb[0].mxu0
        %v4073 = vadd.f32 0.0, %v4072
        %v4074 = vpop.f32.mrb[0].mxu0
        %4075 = vmatprep.mubr.bf16.mxu0 0
        %4076 = vmatmul.mubr.bf16.gmra.mrb[0].mxu0 %v3958
        %v4077 = vpop.f32.mrb[0].mxu0
        %v4078 = vadd.f32 0.0, %v4077
        %v4079 = vpop.f32.mrb[0].mxu0
        %v4080 = vpop.f32.mrb[0].mxu0
        %v4081 = vadd.f32 0.0, %v4080
        %v4082 = vpop.f32.mrb[0].mxu0
        %4083 = vmatprep.mubr.bf16.mxu0 0
        %4084 = vmatmul.mubr.bf16.gmra.mrb[0].mxu0 %v3961
        %v4085 = vpop.f32.mrb[0].mxu0
        %v4086 = vadd.f32 0.0, %v4085
        %v4087 = vpop.f32.mrb[0].mxu0
        %v4088 = vpop.f32.mrb[0].mxu0
        %v4089 = vadd.f32 0.0, %v4088
        %v4090 = vpop.f32.mrb[0].mxu0
        %4091 = vmatprep.mubr.bf16.mxu0 0
        %4092 = vmatmul.mubr.bf16.gmra.mrb[0].mxu0 %v3964
        %v4093 = vpop.f32.mrb[0].mxu0
        %v4094 = vadd.f32 0.0, %v4093
        %v4095 = vpop.f32.mrb[0].mxu0
        %v4096 = vpop.f32.mrb[0].mxu0
        %v4097 = vadd.f32 0.0, %v4096
        %v4098 = vpop.f32.mrb[0].mxu0
        %4099 = vmatprep.mubr.bf16.mxu0 0
        %4100 = vmatmul.mubr.bf16.gmra.mrb[0].mxu0 %v3967
        %v4101 = vpop.f32.mrb[0].mxu0
        %v4102 = vadd.f32 0.0, %v4101
        %v4103 = vpop.f32.mrb[0].mxu0
        %v4104 = vpop.f32.mrb[0].mxu0
        %v4105 = vadd.f32 0.0, %v4104
        %v4106 = vpop.f32.mrb[0].mxu0
        %4107 = vmatprep.mubr.bf16.mxu0 0
        %4108 = vmatmul.mubr.bf16.gmra.mrb[0].mxu0 %v3970
        %v4109 = vpop.f32.mrb[0].mxu0
        %v4110 = vadd.f32 0.0, %v4109
        %v4111 = vpop.f32.mrb[0].mxu0
        %v4112 = vpop.f32.mrb[0].mxu0
        %v4113 = vadd.f32 0.0, %v4112
        %v4114 = vpop.f32.mrb[0].mxu0
        %4115 = vmatprep.mubr.bf16.mxu0 0
        %4116 = vmatmul.mubr.bf16.gmra.mrb[0].mxu0 %v3973
        %v4117 = vpop.f32.mrb[0].mxu0
        %v4118 = vadd.f32 0.0, %v4117
        %v4119 = vpop.f32.mrb[0].mxu0
        %v4120 = vpop.f32.mrb[0].mxu0
        %v4121 = vadd.f32 0.0, %v4120
        %v4122 = vpop.f32.mrb[0].mxu0
        %4123 = vmatprep.mubr.bf16.mxu0 0
        %4124 = vmatmul.mubr.bf16.gmra.mrb[0].mxu0 %v3976
        %v4125 = vpop.f32.mrb[0].mxu0
        %v4126 = vadd.f32 0.0, %v4125
        %v4127 = vpop.f32.mrb[0].mxu0
        %v4128 = vpop.f32.mrb[0].mxu0
        %v4129 = vadd.f32 0.0, %v4128
        %v4130 = vpop.f32.mrb[0].mxu0
        %4131 = vmatprep.mubr.bf16.mxu0 0
        %4132 = vmatmul.mubr.bf16.gmra.mrb[0].mxu0 %v3979
        %v4133 = vpop.f32.mrb[0].mxu0
        %v4134 = vadd.f32 0.0, %v4133
        %v4135 = vpop.f32.mrb[0].mxu0
        %v4136 = vpop.f32.mrb[0].mxu0
        %v4137 = vadd.f32 0.0, %v4136
        %v4138 = vpop.f32.mrb[0].mxu0
        %4139 = vmatprep.mubr.bf16.mxu0 0
        %4140 = vmatmul.mubr.bf16.gmra.mrb[0].mxu0 %v3982
        %v4141 = vpop.f32.mrb[0].mxu0
        %v4142 = vadd.f32 0.0, %v4141
        %v4143 = vpop.f32.mrb[0].mxu0
        %v4144 = vpop.f32.mrb[0].mxu0
        %v4145 = vadd.f32 0.0, %v4144
        %v4146 = vpop.f32.mrb[0].mxu0
        %4147 = vdwg.mxu0
        %v4148 = vadd.f32 %v3470, %v4022
        %v4149 = vadd.f32 %v3471, %v4025
        %v4150 = vadd.f32 %v3472, %v4030
        %v4151 = vadd.f32 %v3473, %v4033
        %v4152 = vadd.f32 %v3474, %v4038
        %v4153 = vadd.f32 %v3475, %v4041
        %v4154 = vadd.f32 %v3476, %v4046
        %v4155 = vadd.f32 %v3477, %v4049
        %v4156 = vadd.f32 %v3478, %v4054
        %v4157 = vadd.f32 %v3479, %v4057
        %v4158 = vadd.f32 %v3480, %v4062
        %v4159 = vadd.f32 %v3481, %v4065
        %v4160 = vadd.f32 %v3482, %v4070
        %v4161 = vadd.f32 %v3483, %v4073
        %v4162 = vadd.f32 %v3484, %v4078
        %v4163 = vadd.f32 %v3485, %v4081
        %v4164 = vadd.f32 %v3486, %v4086
        %v4165 = vadd.f32 %v3487, %v4089
        %v4166 = vadd.f32 %v3488, %v4094
        %v4167 = vadd.f32 %v3489, %v4097
        %v4168 = vadd.f32 %v3490, %v4102
        %v4169 = vadd.f32 %v3491, %v4105
        %v4170 = vadd.f32 %v3492, %v4110
        %v4171 = vadd.f32 %v3493, %v4113
        %v4172 = vadd.f32 %v3494, %v4118
        %v4173 = vadd.f32 %v3495, %v4121
        %v4174 = vadd.f32 %v3496, %v4126
        %v4175 = vadd.f32 %v3497, %v4129
        %v4176 = vadd.f32 %v3498, %v4134
        %v4177 = vadd.f32 %v3499, %v4137
        %v4178 = vadd.f32 %v3500, %v4142
        %v4179 = vadd.f32 %v3501, %v4145
        %v4196 = vrot.slane %v3128, 5
        %v4197 = vrot.slane %v4196, 4
        %v4198 = vrot.slane %v3129, 5
        %v4199 = vsel %vm1239, %v4197, %v4198
        %v4200 = vrot.slane %v4198, 4
        %v4201 = vrot.slane %v3130, 5
        %v4202 = vsel %vm1239, %v4200, %v4201
        %v4203 = vrot.slane %v3131, 5
        %v4204 = vrot.slane %v4203, 4
        %v4205 = vrot.slane %v3132, 5
        %v4206 = vsel %vm1239, %v4204, %v4205
        %v4207 = vrot.slane %v4205, 4
        %v4208 = vrot.slane %v3133, 5
        %v4209 = vsel %vm1239, %v4207, %v4208
        %v4210 = vrot.slane %v3134, 5
        %v4211 = vrot.slane %v4210, 4
        %v4212 = vrot.slane %v3135, 5
        %v4213 = vsel %vm1239, %v4211, %v4212
        %v4214 = vrot.slane %v4212, 4
        %v4215 = vrot.slane %v3136, 5
        %v4216 = vsel %vm1239, %v4214, %v4215
        %v4217 = vrot.slane %v3137, 5
        %v4218 = vrot.slane %v4217, 4
        %v4219 = vrot.slane %v3138, 5
        %v4220 = vsel %vm1239, %v4218, %v4219
        %v4221 = vrot.slane %v4219, 4
        %v4222 = vrot.slane %v3139, 5
        %v4223 = vsel %vm1239, %v4221, %v4222
        %v4224 = vrot.slane %v3140, 5
        %v4225 = vrot.slane %v4224, 4
        %v4226 = vrot.slane %v3141, 5
        %v4227 = vsel %vm1239, %v4225, %v4226
        %v4228 = vrot.slane %v4226, 4
        %v4229 = vrot.slane %v3142, 5
        %v4230 = vsel %vm1239, %v4228, %v4229
        %v4231 = vrot.slane %v3143, 5
        %v4232 = vrot.slane %v4231, 4
        %v4233 = vrot.slane %v3144, 5
        %v4234 = vsel %vm1239, %v4232, %v4233
        %v4235 = vrot.slane %v4233, 4
        %v4236 = vrot.slane %v3145, 5
        %v4237 = vsel %vm1239, %v4235, %v4236
        %v4238 = vrot.slane %v3146, 5
        %v4239 = vrot.slane %v4238, 4
        %v4240 = vrot.slane %v3147, 5
        %v4241 = vsel %vm1239, %v4239, %v4240
        %v4242 = vrot.slane %v4240, 4
        %v4243 = vrot.slane %v3148, 5
        %v4244 = vsel %vm1239, %v4242, %v4243
        %v4245 = vrot.slane %v3149, 5
        %v4246 = vrot.slane %v4245, 4
        %v4247 = vrot.slane %v3150, 5
        %v4248 = vsel %vm1239, %v4246, %v4247
        %v4249 = vrot.slane %v4247, 4
        %v4250 = vrot.slane %v3151, 5
        %v4251 = vsel %vm1239, %v4249, %v4250
        %v4252 = vrot.slane %v3152, 5
        %v4253 = vrot.slane %v4252, 4
        %v4254 = vrot.slane %v3153, 5
        %v4255 = vsel %vm1239, %v4253, %v4254
        %v4256 = vrot.slane %v4254, 4
        %v4257 = vrot.slane %v3154, 5
        %v4258 = vsel %vm1239, %v4256, %v4257
        %v4259 = vrot.slane %v3155, 5
        %v4260 = vrot.slane %v4259, 4
        %v4261 = vrot.slane %v3156, 5
        %v4262 = vsel %vm1239, %v4260, %v4261
        %v4263 = vrot.slane %v4261, 4
        %v4264 = vrot.slane %v3157, 5
        %v4265 = vsel %vm1239, %v4263, %v4264
        %v4266 = vrot.slane %v3158, 5
        %v4267 = vrot.slane %v4266, 4
        %v4268 = vrot.slane %v3159, 5
        %v4269 = vsel %vm1239, %v4267, %v4268
        %v4270 = vrot.slane %v4268, 4
        %v4271 = vrot.slane %v3160, 5
        %v4272 = vsel %vm1239, %v4270, %v4271
        %v4273 = vrot.slane %v3161, 5
        %v4274 = vrot.slane %v4273, 4
        %v4275 = vrot.slane %v3162, 5
        %v4276 = vsel %vm1239, %v4274, %v4275
        %v4277 = vrot.slane %v4275, 4
        %v4278 = vrot.slane %v3163, 5
        %v4279 = vsel %vm1239, %v4277, %v4278
        %v4280 = vrot.slane %v3164, 5
        %v4281 = vrot.slane %v4280, 4
        %v4282 = vrot.slane %v3165, 5
        %v4283 = vsel %vm1239, %v4281, %v4282
        %v4284 = vrot.slane %v4282, 4
        %v4285 = vrot.slane %v3166, 5
        %v4286 = vsel %vm1239, %v4284, %v4285
        %v4287 = vrot.slane %v3167, 5
        %v4288 = vrot.slane %v4287, 4
        %v4289 = vrot.slane %v3168, 5
        %v4290 = vsel %vm1239, %v4288, %v4289
        %v4291 = vrot.slane %v4289, 4
        %v4292 = vrot.slane %v3169, 5
        %v4293 = vsel %vm1239, %v4291, %v4292
        %v4294 = vrot.slane %v3170, 5
        %v4295 = vrot.slane %v4294, 4
        %v4296 = vrot.slane %v3171, 5
        %v4297 = vsel %vm1239, %v4295, %v4296
        %v4298 = vrot.slane %v4296, 4
        %v4299 = vrot.slane %v3172, 5
        %v4300 = vsel %vm1239, %v4298, %v4299
        %v4301 = vrot.slane %v3173, 5
        %v4302 = vrot.slane %v4301, 4
        %v4303 = vrot.slane %v3174, 5
        %v4304 = vsel %vm1239, %v4302, %v4303
        %v4305 = vrot.slane %v4303, 4
        %v4306 = vrot.slane %v3175, 5
        %v4307 = vsel %vm1239, %v4305, %v4306
        %s4308 = scalar_lea.vmem %s219, 16
        %v4309 = vld [vmem:[%s4308] sm:$0x3]
        %v4310 = vunpack.c.l.b16 %v4199
        %v4311 = vunpack.c.l.b16 %v4202
        %v4312 = vunpack.c.l.b16 %v4206
        %v4313 = vunpack.c.l.b16 %v4209
        %v4314 = vunpack.c.l.b16 %v4213
        %v4315 = vunpack.c.l.b16 %v4216
        %v4316 = vunpack.c.l.b16 %v4220
        %v4317 = vunpack.c.l.b16 %v4223
        %v4318 = vunpack.c.l.b16 %v4227
        %v4319 = vunpack.c.l.b16 %v4230
        %v4320 = vunpack.c.l.b16 %v4234
        %v4321 = vunpack.c.l.b16 %v4237
        %v4322 = vunpack.c.l.b16 %v4241
        %v4323 = vunpack.c.l.b16 %v4244
        %v4324 = vunpack.c.l.b16 %v4248
        %v4325 = vunpack.c.l.b16 %v4251
        %v4326 = vunpack.c.l.b16 %v4255
        %v4327 = vunpack.c.l.b16 %v4258
        %v4328 = vunpack.c.l.b16 %v4262
        %v4329 = vunpack.c.l.b16 %v4265
        %v4330 = vunpack.c.l.b16 %v4269
        %v4331 = vunpack.c.l.b16 %v4272
        %v4332 = vunpack.c.l.b16 %v4276
        %v4333 = vunpack.c.l.b16 %v4279
        %v4334 = vunpack.c.l.b16 %v4283
        %v4335 = vunpack.c.l.b16 %v4286
        %v4336 = vunpack.c.l.b16 %v4290
        %v4337 = vunpack.c.l.b16 %v4293
        %v4338 = vunpack.c.l.b16 %v4297
        %v4339 = vunpack.c.l.b16 %v4300
        %v4340 = vunpack.c.l.b16 %v4304
        %v4341 = vunpack.c.l.b16 %v4307
        %v4342 = vpack.c.b16 %v4311, %v4310
        %v4343 = vpack.c.b16 %v4313, %v4312
        %v4344 = vpack.c.b16 %v4315, %v4314
        %v4345 = vpack.c.b16 %v4317, %v4316
        %v4346 = vpack.c.b16 %v4319, %v4318
        %v4347 = vpack.c.b16 %v4321, %v4320
        %v4348 = vpack.c.b16 %v4323, %v4322
        %v4349 = vpack.c.b16 %v4325, %v4324
        %v4350 = vpack.c.b16 %v4327, %v4326
        %v4351 = vpack.c.b16 %v4329, %v4328
        %v4352 = vpack.c.b16 %v4331, %v4330
        %v4353 = vpack.c.b16 %v4333, %v4332
        %v4354 = vpack.c.b16 %v4335, %v4334
        %v4355 = vpack.c.b16 %v4337, %v4336
        %v4356 = vpack.c.b16 %v4339, %v4338
        %v4357 = vpack.c.b16 %v4341, %v4340
        %v4359 = vsel %vm715, %v4342, 0
        %v4362 = vsel %vm715, %v4343, 0
        %v4365 = vsel %vm715, %v4344, 0
        %v4368 = vsel %vm715, %v4345, 0
        %v4371 = vsel %vm715, %v4346, 0
        %v4374 = vsel %vm715, %v4347, 0
        %v4377 = vsel %vm715, %v4348, 0
        %v4380 = vsel %vm715, %v4349, 0
        %v4383 = vsel %vm715, %v4350, 0
        %v4386 = vsel %vm715, %v4351, 0
        %v4389 = vsel %vm715, %v4352, 0
        %v4392 = vsel %vm715, %v4353, 0
        %v4395 = vsel %vm715, %v4354, 0
        %v4398 = vsel %vm715, %v4355, 0
        %v4401 = vsel %vm715, %v4356, 0
        %v4404 = vsel %vm715, %v4357, 0
        %v4407 = vsel %vm764, %v4309, 0
        %4409 = vmatprep.subr.bf16.mxu0 0
        %4410 = vmatpush1.bf16.msra.mxu0 %v4407
        %4411 = vmatprep.subr.bf16.mxu0 0
        %4412 = vmatpush1.bf16.msra.mxu0 0
        %4413 = vmatprep.subr.bf16.mxu0 0
        %4414 = vmatpush1.bf16.msra.mxu0 0
        %4415 = vmatprep.subr.bf16.mxu0 0
        %4416 = vmatpush1.bf16.msra.mxu0 0
        %4417 = vmatprep.subr.bf16.mxu0 0
        %4418 = vmatpush1.bf16.msra.mxu0 0
        %4419 = vmatprep.subr.bf16.mxu0 0
        %4420 = vmatpush1.bf16.msra.mxu0 0
        %4421 = vmatprep.subr.bf16.mxu0 0
        %4422 = vmatpush1.bf16.msra.mxu0 0
        %4423 = vmatprep.subr.bf16.mxu0 0
        %4424 = vmatpush1.bf16.msra.mxu0 0
        %4425 = vmatprep.subr.bf16.mxu0 0
        %4426 = vmatpush1.bf16.msra.mxu0 0
        %4427 = vmatprep.subr.bf16.mxu0 0
        %4428 = vmatpush1.bf16.msra.mxu0 0
        %4429 = vmatprep.subr.bf16.mxu0 0
        %4430 = vmatpush1.bf16.msra.mxu0 0
        %4431 = vmatprep.subr.bf16.mxu0 0
        %4432 = vmatpush1.bf16.msra.mxu0 0
        %4433 = vmatprep.subr.bf16.mxu0 0
        %4434 = vmatpush1.bf16.msra.mxu0 0
        %4435 = vmatprep.subr.bf16.mxu0 0
        %4436 = vmatpush1.bf16.msra.mxu0 0
        %4437 = vmatprep.subr.bf16.mxu0 0
        %4438 = vmatpush1.bf16.msra.mxu0 0
        %4439 = vmatprep.subr.bf16.mxu0 0
        %4440 = vmatpush1.bf16.msra.mxu0 0
        %4441 = vmatprep.mubr.bf16.mxu0 0
        %4442 = vmatmul.mubr.bf16.gmra.mrb[0].mxu0 %v4359
        %v4443 = vpop.f32.mrb[0].mxu0
        %v4444 = vadd.f32 0.0, %v4443
        %v4445 = vpop.f32.mrb[0].mxu0
        %v4446 = vpop.f32.mrb[0].mxu0
        %v4447 = vadd.f32 0.0, %v4446
        %v4448 = vpop.f32.mrb[0].mxu0
        %4449 = vmatprep.mubr.bf16.mxu0 0
        %4450 = vmatmul.mubr.bf16.gmra.mrb[0].mxu0 %v4362
        %v4451 = vpop.f32.mrb[0].mxu0
        %v4452 = vadd.f32 0.0, %v4451
        %v4453 = vpop.f32.mrb[0].mxu0
        %v4454 = vpop.f32.mrb[0].mxu0
        %v4455 = vadd.f32 0.0, %v4454
        %v4456 = vpop.f32.mrb[0].mxu0
        %4457 = vmatprep.mubr.bf16.mxu0 0
        %4458 = vmatmul.mubr.bf16.gmra.mrb[0].mxu0 %v4365
        %v4459 = vpop.f32.mrb[0].mxu0
        %v4460 = vadd.f32 0.0, %v4459
        %v4461 = vpop.f32.mrb[0].mxu0
        %v4462 = vpop.f32.mrb[0].mxu0
        %v4463 = vadd.f32 0.0, %v4462
        %v4464 = vpop.f32.mrb[0].mxu0
        %4465 = vmatprep.mubr.bf16.mxu0 0
        %4466 = vmatmul.mubr.bf16.gmra.mrb[0].mxu0 %v4368
        %v4467 = vpop.f32.mrb[0].mxu0
        %v4468 = vadd.f32 0.0, %v4467
        %v4469 = vpop.f32.mrb[0].mxu0
        %v4470 = vpop.f32.mrb[0].mxu0
        %v4471 = vadd.f32 0.0, %v4470
        %v4472 = vpop.f32.mrb[0].mxu0
        %4473 = vmatprep.mubr.bf16.mxu0 0
        %4474 = vmatmul.mubr.bf16.gmra.mrb[0].mxu0 %v4371
        %v4475 = vpop.f32.mrb[0].mxu0
        %v4476 = vadd.f32 0.0, %v4475
        %v4477 = vpop.f32.mrb[0].mxu0
        %v4478 = vpop.f32.mrb[0].mxu0
        %v4479 = vadd.f32 0.0, %v4478
        %v4480 = vpop.f32.mrb[0].mxu0
        %4481 = vmatprep.mubr.bf16.mxu0 0
        %4482 = vmatmul.mubr.bf16.gmra.mrb[0].mxu0 %v4374
        %v4483 = vpop.f32.mrb[0].mxu0
        %v4484 = vadd.f32 0.0, %v4483
        %v4485 = vpop.f32.mrb[0].mxu0
        %v4486 = vpop.f32.mrb[0].mxu0
        %v4487 = vadd.f32 0.0, %v4486
        %v4488 = vpop.f32.mrb[0].mxu0
        %4489 = vmatprep.mubr.bf16.mxu0 0
        %4490 = vmatmul.mubr.bf16.gmra.mrb[0].mxu0 %v4377
        %v4491 = vpop.f32.mrb[0].mxu0
        %v4492 = vadd.f32 0.0, %v4491
        %v4493 = vpop.f32.mrb[0].mxu0
        %v4494 = vpop.f32.mrb[0].mxu0
        %v4495 = vadd.f32 0.0, %v4494
        %v4496 = vpop.f32.mrb[0].mxu0
        %4497 = vmatprep.mubr.bf16.mxu0 0
        %4498 = vmatmul.mubr.bf16.gmra.mrb[0].mxu0 %v4380
        %v4499 = vpop.f32.mrb[0].mxu0
        %v4500 = vadd.f32 0.0, %v4499
        %v4501 = vpop.f32.mrb[0].mxu0
        %v4502 = vpop.f32.mrb[0].mxu0
        %v4503 = vadd.f32 0.0, %v4502
        %v4504 = vpop.f32.mrb[0].mxu0
        %4505 = vmatprep.mubr.bf16.mxu0 0
        %4506 = vmatmul.mubr.bf16.gmra.mrb[0].mxu0 %v4383
        %v4507 = vpop.f32.mrb[0].mxu0
        %v4508 = vadd.f32 0.0, %v4507
        %v4509 = vpop.f32.mrb[0].mxu0
        %v4510 = vpop.f32.mrb[0].mxu0
        %v4511 = vadd.f32 0.0, %v4510
        %v4512 = vpop.f32.mrb[0].mxu0
        %4513 = vmatprep.mubr.bf16.mxu0 0
        %4514 = vmatmul.mubr.bf16.gmra.mrb[0].mxu0 %v4386
        %v4515 = vpop.f32.mrb[0].mxu0
        %v4516 = vadd.f32 0.0, %v4515
        %v4517 = vpop.f32.mrb[0].mxu0
        %v4518 = vpop.f32.mrb[0].mxu0
        %v4519 = vadd.f32 0.0, %v4518
        %v4520 = vpop.f32.mrb[0].mxu0
        %4521 = vmatprep.mubr.bf16.mxu0 0
        %4522 = vmatmul.mubr.bf16.gmra.mrb[0].mxu0 %v4389
        %v4523 = vpop.f32.mrb[0].mxu0
        %v4524 = vadd.f32 0.0, %v4523
        %v4525 = vpop.f32.mrb[0].mxu0
        %v4526 = vpop.f32.mrb[0].mxu0
        %v4527 = vadd.f32 0.0, %v4526
        %v4528 = vpop.f32.mrb[0].mxu0
        %4529 = vmatprep.mubr.bf16.mxu0 0
        %4530 = vmatmul.mubr.bf16.gmra.mrb[0].mxu0 %v4392
        %v4531 = vpop.f32.mrb[0].mxu0
        %v4532 = vadd.f32 0.0, %v4531
        %v4533 = vpop.f32.mrb[0].mxu0
        %v4534 = vpop.f32.mrb[0].mxu0
        %v4535 = vadd.f32 0.0, %v4534
        %v4536 = vpop.f32.mrb[0].mxu0
        %4537 = vmatprep.mubr.bf16.mxu0 0
        %4538 = vmatmul.mubr.bf16.gmra.mrb[0].mxu0 %v4395
        %v4539 = vpop.f32.mrb[0].mxu0
        %v4540 = vadd.f32 0.0, %v4539
        %v4541 = vpop.f32.mrb[0].mxu0
        %v4542 = vpop.f32.mrb[0].mxu0
        %v4543 = vadd.f32 0.0, %v4542
        %v4544 = vpop.f32.mrb[0].mxu0
        %4545 = vmatprep.mubr.bf16.mxu0 0
        %4546 = vmatmul.mubr.bf16.gmra.mrb[0].mxu0 %v4398
        %v4547 = vpop.f32.mrb[0].mxu0
        %v4548 = vadd.f32 0.0, %v4547
        %v4549 = vpop.f32.mrb[0].mxu0
        %v4550 = vpop.f32.mrb[0].mxu0
        %v4551 = vadd.f32 0.0, %v4550
        %v4552 = vpop.f32.mrb[0].mxu0
        %4553 = vmatprep.mubr.bf16.mxu0 0
        %4554 = vmatmul.mubr.bf16.gmra.mrb[0].mxu0 %v4401
        %v4555 = vpop.f32.mrb[0].mxu0
        %v4556 = vadd.f32 0.0, %v4555
        %v4557 = vpop.f32.mrb[0].mxu0
        %v4558 = vpop.f32.mrb[0].mxu0
        %v4559 = vadd.f32 0.0, %v4558
        %v4560 = vpop.f32.mrb[0].mxu0
        %4561 = vmatprep.mubr.bf16.mxu0 0
        %4562 = vmatmul.mubr.bf16.gmra.mrb[0].mxu0 %v4404
        %v4563 = vpop.f32.mrb[0].mxu0
        %v4564 = vadd.f32 0.0, %v4563
        %v4565 = vpop.f32.mrb[0].mxu0
        %v4566 = vpop.f32.mrb[0].mxu0
        %v4567 = vadd.f32 0.0, %v4566
        %v4568 = vpop.f32.mrb[0].mxu0
        %4569 = vdwg.mxu0
        %v4570 = vadd.f32 %v4148, %v4444
        %v4571 = vadd.f32 %v4149, %v4447
        %v4572 = vadd.f32 %v4150, %v4452
        %v4573 = vadd.f32 %v4151, %v4455
        %v4574 = vadd.f32 %v4152, %v4460
        %v4575 = vadd.f32 %v4153, %v4463
        %v4576 = vadd.f32 %v4154, %v4468
        %v4577 = vadd.f32 %v4155, %v4471
        %v4578 = vadd.f32 %v4156, %v4476
        %v4579 = vadd.f32 %v4157, %v4479
        %v4580 = vadd.f32 %v4158, %v4484
        %v4581 = vadd.f32 %v4159, %v4487
        %v4582 = vadd.f32 %v4160, %v4492
        %v4583 = vadd.f32 %v4161, %v4495
        %v4584 = vadd.f32 %v4162, %v4500
        %v4585 = vadd.f32 %v4163, %v4503
        %v4586 = vadd.f32 %v4164, %v4508
        %v4587 = vadd.f32 %v4165, %v4511
        %v4588 = vadd.f32 %v4166, %v4516
        %v4589 = vadd.f32 %v4167, %v4519
        %v4590 = vadd.f32 %v4168, %v4524
        %v4591 = vadd.f32 %v4169, %v4527
        %v4592 = vadd.f32 %v4170, %v4532
        %v4593 = vadd.f32 %v4171, %v4535
        %v4594 = vadd.f32 %v4172, %v4540
        %v4595 = vadd.f32 %v4173, %v4543
        %v4596 = vadd.f32 %v4174, %v4548
        %v4597 = vadd.f32 %v4175, %v4551
        %v4598 = vadd.f32 %v4176, %v4556
        %v4599 = vadd.f32 %v4177, %v4559
        %v4600 = vadd.f32 %v4178, %v4564
        %v4601 = vadd.f32 %v4179, %v4567
        %v4602 = vld [vmem:[%s222] sm:$0x1]
        %v4604 = vlaneseq
        %v4605 = vshrl.u32 %v4604, 7
        %v4606 = vsub.s32 0, %v4605
        %v4607 = vrot.slane %v4602, %v4606
        %v4609 = vadd.f32 %v4570, %v4607
        %v4610 = vadd.f32 %v4571, %v4607
        %v4611 = vadd.f32 %v4572, %v4607
        %v4612 = vadd.f32 %v4573, %v4607
        %v4613 = vadd.f32 %v4574, %v4607
        %v4614 = vadd.f32 %v4575, %v4607
        %v4615 = vadd.f32 %v4576, %v4607
        %v4616 = vadd.f32 %v4577, %v4607
        %v4617 = vadd.f32 %v4578, %v4607
        %v4618 = vadd.f32 %v4579, %v4607
        %v4619 = vadd.f32 %v4580, %v4607
        %v4620 = vadd.f32 %v4581, %v4607
        %v4621 = vadd.f32 %v4582, %v4607
        %v4622 = vadd.f32 %v4583, %v4607
        %v4623 = vadd.f32 %v4584, %v4607
        %v4624 = vadd.f32 %v4585, %v4607
        %v4625 = vadd.f32 %v4586, %v4607
        %v4626 = vadd.f32 %v4587, %v4607
        %v4627 = vadd.f32 %v4588, %v4607
        %v4628 = vadd.f32 %v4589, %v4607
        %v4629 = vadd.f32 %v4590, %v4607
        %v4630 = vadd.f32 %v4591, %v4607
        %v4631 = vadd.f32 %v4592, %v4607
        %v4632 = vadd.f32 %v4593, %v4607
        %v4633 = vadd.f32 %v4594, %v4607
        %v4634 = vadd.f32 %v4595, %v4607
        %v4635 = vadd.f32 %v4596, %v4607
        %v4636 = vadd.f32 %v4597, %v4607
        %v4637 = vadd.f32 %v4598, %v4607
        %v4638 = vadd.f32 %v4599, %v4607
        %v4639 = vadd.f32 %v4600, %v4607
        %v4640 = vadd.f32 %v4601, %v4607
        %v4641 = vmax.f32 %v4609, 0.0
        %v4642 = vmax.f32 %v4610, 0.0
        %v4643 = vmax.f32 %v4611, 0.0
        %v4644 = vmax.f32 %v4612, 0.0
        %v4645 = vmax.f32 %v4613, 0.0
        %v4646 = vmax.f32 %v4614, 0.0
        %v4647 = vmax.f32 %v4615, 0.0
        %v4648 = vmax.f32 %v4616, 0.0
        %v4649 = vmax.f32 %v4617, 0.0
        %v4650 = vmax.f32 %v4618, 0.0
        %v4651 = vmax.f32 %v4619, 0.0
        %v4652 = vmax.f32 %v4620, 0.0
        %v4653 = vmax.f32 %v4621, 0.0
        %v4654 = vmax.f32 %v4622, 0.0
        %v4655 = vmax.f32 %v4623, 0.0
        %v4656 = vmax.f32 %v4624, 0.0
        %v4657 = vmax.f32 %v4625, 0.0
        %v4658 = vmax.f32 %v4626, 0.0
        %v4659 = vmax.f32 %v4627, 0.0
        %v4660 = vmax.f32 %v4628, 0.0
        %v4661 = vmax.f32 %v4629, 0.0
        %v4662 = vmax.f32 %v4630, 0.0
        %v4663 = vmax.f32 %v4631, 0.0
        %v4664 = vmax.f32 %v4632, 0.0
        %v4665 = vmax.f32 %v4633, 0.0
        %v4666 = vmax.f32 %v4634, 0.0
        %v4667 = vmax.f32 %v4635, 0.0
        %v4668 = vmax.f32 %v4636, 0.0
        %v4669 = vmax.f32 %v4637, 0.0
        %v4670 = vmax.f32 %v4638, 0.0
        %v4671 = vmax.f32 %v4639, 0.0
        %v4672 = vmax.f32 %v4640, 0.0
        %4673 = vst [vmem:[%s210] sm:$0xff] %v4641
        %4674 = vst [vmem:[%s210 + $0x8] sm:$0xff] %v4642
        %4675 = vst [vmem:[%s210 + $0x10] sm:$0xff] %v4643
        %4676 = vst [vmem:[%s210 + $0x18] sm:$0xff] %v4644
        %4677 = vst [vmem:[%s210 + $0x20] sm:$0xff] %v4645
        %4678 = vst [vmem:[%s210 + $0x28] sm:$0xff] %v4646
        %4679 = vst [vmem:[%s210 + $0x30] sm:$0xff] %v4647
        %4680 = vst [vmem:[%s210 + $0x38] sm:$0xff] %v4648
        %4681 = vst [vmem:[%s210 + $0x40] sm:$0xff] %v4649
        %4682 = vst [vmem:[%s210 + $0x48] sm:$0xff] %v4650
        %4683 = vst [vmem:[%s210 + $0x50] sm:$0xff] %v4651
        %4684 = vst [vmem:[%s210 + $0x58] sm:$0xff] %v4652
        %4685 = vst [vmem:[%s210 + $0x60] sm:$0xff] %v4653
        %4686 = vst [vmem:[%s210 + $0x68] sm:$0xff] %v4654
        %4687 = vst [vmem:[%s210 + $0x70] sm:$0xff] %v4655
        %4688 = vst [vmem:[%s210 + $0x78] sm:$0xff] %v4656
        %4689 = vst [vmem:[%s210 + $0x80] sm:$0xff] %v4657
        %4690 = vst [vmem:[%s210 + $0x88] sm:$0xff] %v4658
        %4691 = vst [vmem:[%s210 + $0x90] sm:$0xff] %v4659
        %4692 = vst [vmem:[%s210 + $0x98] sm:$0xff] %v4660
        %4693 = vst [vmem:[%s210 + $0xa0] sm:$0xff] %v4661
        %4694 = vst [vmem:[%s210 + $0xa8] sm:$0xff] %v4662
        %4695 = vst [vmem:[%s210 + $0xb0] sm:$0xff] %v4663
        %4696 = vst [vmem:[%s210 + $0xb8] sm:$0xff] %v4664
        %4697 = vst [vmem:[%s210 + $0xc0] sm:$0xff] %v4665
        %4698 = vst [vmem:[%s210 + $0xc8] sm:$0xff] %v4666
        %4699 = vst [vmem:[%s210 + $0xd0] sm:$0xff] %v4667
        %4700 = vst [vmem:[%s210 + $0xd8] sm:$0xff] %v4668
        %4701 = vst [vmem:[%s210 + $0xe0] sm:$0xff] %v4669
        %4702 = vst [vmem:[%s210 + $0xe8] sm:$0xff] %v4670
        %4703 = vst [vmem:[%s210 + $0xf0] sm:$0xff] %v4671
        %4704 = vst [vmem:[%s210 + $0xf8] sm:$0xff] %v4672
        %s4705 = sand.u32 %s126, 1
        %s4706 = scalar_lea.sflag [#allocation3], %s4705
        %s4707 = sand.u32 %s126, 1
        %s4708 = smul.addr %s4707, 256
        %s4709 = scalar_lea.vmem [#allocation2], %s4708
        // Predicated region
        $region33: #{tpu_custom_call.1} parent=31 // pred_check
          %p4710 = pneg %p136
        $region34: #{tpu_custom_call.1} parent=31 // pred_check_branch
          %4712 = sbr.rel (%p4710) target = $region36
        $region35: #{tpu_custom_call.1} parent=31 // pred_region
          %s4713 = smul.u32 16, %s24
          %s4715 = ssub.s32 4096, 4096
          %4716 = vsyncadd %s4706, %s4715
          %s4717 = smul.addr %s4713, 2
          %s4718 = sadd.s32 %s23, %s4717
          %s4719 = smul.addr %s22, 32
          %s4720 = sadd.s32 %s4718, %s4719
          %s4721 = smul.addr %s4720, 128
          %s4722 = scalar_lea.hbm %s3, %s4721
          %s4723 = sshll.u32 %s4709, 4
          %s4724 = int_to_ptr.vmem [resolvable:$true] %s4723
          %4729 = dma.vmem_to_hbm [thread:$0]  %s4724, 4096, %s4722, %s4706, 128, 128, 8
        $region36: #{tpu_custom_call.1} parent=31 // pred_fallthru
          _
      $region32: #{tpu_custom_call.1} parent=5 // pred_fallthru
        _
      %p4730 = scmp.le.s32.totalorder 2, %s12
      // Predicated region
      $region37: #{tpu_custom_call.1} parent=5 // pred_check
        %p4731 = pneg %p4730
      $region38: #{tpu_custom_call.1} parent=5 // pred_check_branch
        %4733 = sbr.rel (%p4731) target = $region40
      $region39: #{tpu_custom_call.1} parent=5 // pred_region
        %s4734 = ssub.s32 %s12, 2
        // Predicated region
        $region41: #{tpu_custom_call.1} parent=39 // pred_check
          %p4735 = pneg %p142
        $region42: #{tpu_custom_call.1} parent=39 // pred_check_branch
          %4737 = sbr.rel (%p4735) target = $region44
        $region43: #{tpu_custom_call.1} parent=39 // pred_region
          %s4738 = sand.u32 %s127, 1
          %s4739 = scalar_lea.sflag [#allocation3], %s4738
          %s4740 = sand.u32 %s127, 1
          %s4741 = smul.addr %s4740, 256
          %s4742 = scalar_lea.vmem [#allocation2], %s4741
          %4743 = dma.done %s4739, 4096
        $region44: #{tpu_custom_call.1} parent=39 // pred_fallthru
          _
      $region40: #{tpu_custom_call.1} parent=5 // pred_fallthru
        _
    $region6: #{tpu_custom_call.1} parent=1 // loop_footer
      %s16 = sadd.s32 1, %s12
    $region7: #{tpu_custom_call.1} parent=1 // loop_footer_branch
      %11 = sbr.rel target = $region3
    $region8: #{tpu_custom_call.1} parent=1 // loop_exit
      _
    %4744 = vsyncpa [#allocation3], 1
    %s4745 = scalar_lea.sflag [#allocation3], 1
    %4746 = vsyncpa %s4745, 1

</llo_original>
